<compile_context>
chip_gen: v5e
topology: v5e:2x2
jax: 0.10.0
libtpu: 0.0.40
codegen_flags: <defaults>
</compile_context>

<pallas_src>
import numpy as np
import jax
import jax.numpy as jnp
from jax.experimental import pallas as pl
from jax.experimental.pallas import tpu as pltpu  # noqa: F401  (TPU backend)


def _round_up(x, m):
    return ((x + m - 1) // m) * m


# ----------------------------------------------------------------------------
# Fused per-layer kernel: ConvT (tap-shifted matmuls) + bias + BN/ReLU or Tanh
# ----------------------------------------------------------------------------
def _make_layer_kernel(mode, n_taps, kw_w, wp, mw, count):
    """mode: 'bn_relu' | 'tanh'.  Tap t = kh*kw_w + kw -> lane shift kh*wp + kw."""
    inv_count = 1.0 / float(count)

    def conv_bias(w_ref, x_ref, b_ref):
        acc = None
        for t in range(n_taps):                       # static unroll (16 taps)
            kh, kw = divmod(t, kw_w)
            shift = kh * wp + kw                      # static lane offset
            xs = x_ref[:, pl.ds(shift, mw)]           # (Cin, Mw) contiguous slice
            part = jnp.dot(w_ref[t], xs, preferred_element_type=jnp.float32)
            acc = part if acc is None else acc + part
        return acc + b_ref[...]                       # bias added once

    if mode == "bn_relu":
        def kernel(w_ref, x_ref, b_ref, g_ref, bt_ref, mask_ref, o_ref):
            y = conv_bias(w_ref, x_ref, b_ref)        # (CP, Mw)
            m = mask_ref[...]                         # (1, Mw) validity mask
            mean = jnp.sum(y * m, axis=1, keepdims=True) * inv_count
            d = (y - mean) * m
            var = jnp.sum(d * d, axis=1, keepdims=True) * inv_count
            y = (y - mean) * jax.lax.rsqrt(var + 1e-5) * g_ref[...] + bt_ref[...]
            o_ref[...] = jnp.maximum(y, 0.0)
    else:
        def kernel(w_ref, x_ref, b_ref, o_ref):
            o_ref[...] = jnp.tanh(conv_bias(w_ref, x_ref, b_ref))
    return kernel


def _fused_layer(xf, geom, pk, cout, k, *, mode):
    """xf: (Cin, Lin) flattened dilated+padded activation.  Returns (CP, Mw)."""
    cin, _ = xf.shape
    n_taps, cp, cin_w = pk["w_taps"].shape
    assert cin_w == cin and n_taps == k * k
    kernel = _make_layer_kernel(mode, n_taps, k, geom["Wp"], geom["Mw"],
                                geom["count"])
    args = [pk["w_taps"], xf, pk["b"]]
    if mode == "bn_relu":
        args += [pk["gamma"], pk["beta"], geom["mask"]]
    # No grid: single invocation, whole operands resident in VMEM (<0.5 MB).
    return pl.pallas_call(
        kernel,
        out_shape=jax.ShapeDtypeStruct((cp, geom["Mw"]), jnp.float32),
    )(*args)


# ----------------------------------------------------------------------------
# XLA glue: zero-dilate + pad(k-1-p) + lane-dense flatten (tiny tensors)
# ----------------------------------------------------------------------------
def _dilate_pad_flatten(x_cnhw, k, s, p):
    C, N, H, W = x_cnhw.shape
    Hd, Wd = (H - 1) * s + 1, (W - 1) * s + 1
    ph = k - 1 - p
    Hp, Wp = Hd + 2 * ph, Wd + 2 * ph
    Ho, Wo = Hp - k + 1, Wp - k + 1
    xp = jnp.zeros((C, N, Hp, Wp), x_cnhw.dtype)
    xp = xp.at[:, :, ph:ph + Hd:s, ph:ph + Wd:s].set(x_cnhw)
    L = N * Hp * Wp
    Mw = _round_up(L, 128)
    shift_max = (k - 1) * Wp + (k - 1)
    Lin = Mw + _round_up(shift_max, 128)              # room for largest tap shift
    xf = jnp.zeros((C, Lin), x_cnhw.dtype).at[:, :L].set(xp.reshape(C, L))

    # validity mask over the wide output (static, numpy -> baked constant)
    msk = np.zeros((N, Hp, Wp), np.float32)
    msk[:, :Ho, :Wo] = 1.0
    mask_flat = np.zeros((1, Mw), np.float32)
    mask_flat[0, :L] = msk.reshape(-1)

    geom = dict(N=N, Hp=Hp, Wp=Wp, Ho=Ho, Wo=Wo, L=L, Mw=Mw,
                count=N * Ho * Wo, mask=jnp.asarray(mask_flat))
    return xf, geom


# ----------------------------------------------------------------------------
# One-time parameter packing (hoisted out of the forward pass)
# ----------------------------------------------------------------------------
def pack_netg_params(params):
    packed = []
    for p in params:
        w, b = p["w"], p["b"]
        cin, cout, kh, kw = w.shape
        cp = _round_up(cout, 8)
        wf = jnp.flip(w, axis=(2, 3))                           # spatial flip
        wt = jnp.transpose(wf, (2, 3, 1, 0)).reshape(kh * kw, cout, cin)
        e = {
            "w_taps": jnp.zeros((kh * kw, cp, cin), jnp.float32)
                        .at[:, :cout, :].set(wt.astype(jnp.float32)),
            "b": jnp.zeros((cp, 1), jnp.float32).at[:cout, 0].set(b),
        }
        if "gamma" in p:
            e["gamma"] = jnp.zeros((cp, 1), jnp.float32).at[:cout, 0].set(p["gamma"])
            e["beta"] = jnp.zeros((cp, 1), jnp.float32).at[:cout, 0].set(p["beta"])
        packed.append(e)
    return packed


# ----------------------------------------------------------------------------
# NetG forward
# ----------------------------------------------------------------------------
CFG = dict(
    genLayers=3,
    genInChannels=[8, 16, 8],
    genOutChannels=[16, 8, 3],
    genKernelSize=[4, 4, 4],
    genStride=[2, 2, 2],
    genPadding=1,
)


def init_params(key, cfg):
    params = []
    for l in range(cfg["genLayers"]):
        cin = cfg["genInChannels"][l]
        cout = cfg["genOutChannels"][l]
        k = cfg["genKernelSize"][l]
        key, k1, k2 = jax.random.split(key, 3)
        p = {
            "w": jax.random.normal(k1, (cin, cout, k, k), jnp.float32) * 0.1,
            "b": jax.random.normal(k2, (cout,), jnp.float32) * 0.1,
        }
        if l < cfg["genLayers"] - 1:
            p["gamma"] = jnp.ones((cout,), jnp.float32)   # BatchNorm2d defaults
            p["beta"] = jnp.zeros((cout,), jnp.float32)
        params.append(p)
    return params


def netg_forward(packed, x_nchw, cfg=CFG):
    # external NCHW (PyTorch) <-> internal channel-major (C, N, H, W)
    x = jnp.transpose(x_nchw, (1, 0, 2, 3)).astype(jnp.float32)
    nl = cfg["genLayers"]
    for l in range(nl):
        pk = packed[l]
        k = cfg["genKernelSize"][l]
        cout = cfg["genOutChannels"][l]
        last = (l == nl - 1)
        xf, geom = _dilate_pad_flatten(x, k, cfg["genStride"][l], cfg["genPadding"])
        yw = _fused_layer(xf, geom, pk, cout, k,
                          mode=("tanh" if last else "bn_relu"))
        # drop padded channels and invalid (wide) lanes, restore spatial dims
        x = (yw[:cout, :geom["L"]]
             .reshape(cout, geom["N"], geom["Hp"], geom["Wp"])
             [:, :, :geom["Ho"], :geom["Wo"]])
    return jnp.transpose(x, (1, 0, 2, 3))                 # (C,N,H,W) -> NCHW


# ----------------------------------------------------------------------------
# Pure-JAX reference (correctness sanity check)
# ----------------------------------------------------------------------------
def _ref_convt(x_nchw, w, b, s, p):
    cin, cout, kh, kw = w.shape
    w_oihw = jnp.transpose(jnp.flip(w, axis=(2, 3)), (1, 0, 2, 3))
    y = jax.lax.conv_general_dilated(
        x_nchw, w_oihw, window_strides=(1, 1),
        padding=[(kh - 1 - p, kh - 1 - p), (kw - 1 - p, kw - 1 - p)],
        lhs_dilation=(s, s),
        dimension_numbers=("NCHW", "OIHW", "NCHW"),
        precision=jax.lax.Precision.HIGHEST,
    )
    return y + b[None, :, None, None]


def netg_reference(params, x_nchw, cfg=CFG):
    x = x_nchw.astype(jnp.float32)
    nl = cfg["genLayers"]
    for l in range(nl):
        p = params[l]
        last = l == nl - 1
        x = _ref_convt(x, p["w"], p["b"], cfg["genStride"][l], cfg["genPadding"])
        if not last:
            mean = jnp.mean(x, axis=(0, 2, 3), keepdims=True)
            var = jnp.mean((x - mean) ** 2, axis=(0, 2, 3), keepdims=True)
            x = (x - mean) * jax.lax.rsqrt(var + 1e-5)
            x = x * p["gamma"][None, :, None, None] + p["beta"][None, :, None, None]
            x = jnp.maximum(x, 0.0)
        else:
            x = jnp.tanh(x)
    return x


# ----------------------------------------------------------------------------
if __name__ == "__main__":
    key = jax.random.PRNGKey(0)
    kp, kx = jax.random.split(key)
    params = init_params(kp, CFG)
    packed = pack_netg_params(params)        # one-time packing (outside forward)

    # latent input (N, C_in, H, W) = (2, 8, 4, 4)  -> output (2, 3, 32, 32)
    x = jax.random.normal(kx, (2, CFG["genInChannels"][0], 4, 4), jnp.float32)

    fwd = jax.jit(netg_forward)
    out = jax.block_until_ready(fwd(packed, x))
    assert out.shape == (2, CFG["genOutChannels"][-1], 32, 32), out.shape

    ref = jax.block_until_ready(netg_reference(params, x))
    np.testing.assert_allclose(np.asarray(out), np.asarray(ref),
                               atol=1e-3, rtol=1e-3)

    print("KERNEL_OK")
</pallas_src>

<mosaic_0001>
module attributes {stable_mosaic.version = 11 : i64} {
  func.func @kernel(%arg0: memref<16x16x8xf32, #tpu.memory_space<vmem>>, %arg1: memref<8x384xf32, #tpu.memory_space<vmem>>, %arg2: memref<16x1xf32, #tpu.memory_space<vmem>>, %arg3: memref<16x1xf32, #tpu.memory_space<vmem>>, %arg4: memref<16x1xf32, #tpu.memory_space<vmem>>, %arg5: memref<1x256xf32, #tpu.memory_space<vmem>>, %arg6: memref<16x256xf32, #tpu.memory_space<vmem>>) attributes {dimension_semantics = [], scalar_prefetch = 0 : i64, scratch_operands = 0 : i64, tpu.core_type = #tpu.core_type<tc>} {
    %c0 = arith.constant 0 : index
    %c0_0 = arith.constant 0 : index
    %0 = vector.load %arg1[%c0, %c0_0] : memref<8x384xf32, #tpu.memory_space<vmem>>, vector<8x256xf32>
    %c0_1 = arith.constant 0 : index
    %c0_2 = arith.constant 0 : index
    %c0_3 = arith.constant 0 : index
    %1 = vector.load %arg0[%c0_1, %c0_2, %c0_3] : memref<16x16x8xf32, #tpu.memory_space<vmem>>, vector<1x16x8xf32>
    %2 = vector.shape_cast %1 : vector<1x16x8xf32> to vector<16x8xf32>
    %cst = arith.constant dense<0.000000e+00> : vector<16x256xf32>
    %3 = tpu.matmul %2, %0, %cst {dimension_numbers = #tpu.dot_dimension_numbers<[1], [0], [0], [1], [0, 0, 1, 1], [], []>} : vector<16x8xf32>, vector<8x256xf32>, vector<16x256xf32> -> vector<16x256xf32>
    %c0_4 = arith.constant 0 : index
    %c1 = arith.constant 1 : index
    %4 = vector.load %arg1[%c0_4, %c1] : memref<8x384xf32, #tpu.memory_space<vmem>>, vector<8x256xf32>
    %c1_5 = arith.constant 1 : index
    %c0_6 = arith.constant 0 : index
    %c0_7 = arith.constant 0 : index
    %5 = vector.load %arg0[%c1_5, %c0_6, %c0_7] : memref<16x16x8xf32, #tpu.memory_space<vmem>>, vector<1x16x8xf32>
    %6 = vector.shape_cast %5 : vector<1x16x8xf32> to vector<16x8xf32>
    %cst_8 = arith.constant dense<0.000000e+00> : vector<16x256xf32>
    %7 = tpu.matmul %6, %4, %cst_8 {dimension_numbers = #tpu.dot_dimension_numbers<[1], [0], [0], [1], [0, 0, 1, 1], [], []>} : vector<16x8xf32>, vector<8x256xf32>, vector<16x256xf32> -> vector<16x256xf32>
    %8 = arith.addf %3, %7 : vector<16x256xf32>
    %c0_9 = arith.constant 0 : index
    %c2 = arith.constant 2 : index
    %9 = vector.load %arg1[%c0_9, %c2] : memref<8x384xf32, #tpu.memory_space<vmem>>, vector<8x256xf32>
    %c2_10 = arith.constant 2 : index
    %c0_11 = arith.constant 0 : index
    %c0_12 = arith.constant 0 : index
    %10 = vector.load %arg0[%c2_10, %c0_11, %c0_12] : memref<16x16x8xf32, #tpu.memory_space<vmem>>, vector<1x16x8xf32>
    %11 = vector.shape_cast %10 : vector<1x16x8xf32> to vector<16x8xf32>
    %cst_13 = arith.constant dense<0.000000e+00> : vector<16x256xf32>
    %12 = tpu.matmul %11, %9, %cst_13 {dimension_numbers = #tpu.dot_dimension_numbers<[1], [0], [0], [1], [0, 0, 1, 1], [], []>} : vector<16x8xf32>, vector<8x256xf32>, vector<16x256xf32> -> vector<16x256xf32>
    %13 = arith.addf %8, %12 : vector<16x256xf32>
    %c0_14 = arith.constant 0 : index
    %c3 = arith.constant 3 : index
    %14 = vector.load %arg1[%c0_14, %c3] : memref<8x384xf32, #tpu.memory_space<vmem>>, vector<8x256xf32>
    %c3_15 = arith.constant 3 : index
    %c0_16 = arith.constant 0 : index
    %c0_17 = arith.constant 0 : index
    %15 = vector.load %arg0[%c3_15, %c0_16, %c0_17] : memref<16x16x8xf32, #tpu.memory_space<vmem>>, vector<1x16x8xf32>
    %16 = vector.shape_cast %15 : vector<1x16x8xf32> to vector<16x8xf32>
    %cst_18 = arith.constant dense<0.000000e+00> : vector<16x256xf32>
    %17 = tpu.matmul %16, %14, %cst_18 {dimension_numbers = #tpu.dot_dimension_numbers<[1], [0], [0], [1], [0, 0, 1, 1], [], []>} : vector<16x8xf32>, vector<8x256xf32>, vector<16x256xf32> -> vector<16x256xf32>
    %18 = arith.addf %13, %17 : vector<16x256xf32>
    %c0_19 = arith.constant 0 : index
    %c11 = arith.constant 11 : index
    %19 = vector.load %arg1[%c0_19, %c11] : memref<8x384xf32, #tpu.memory_space<vmem>>, vector<8x256xf32>
    %c4 = arith.constant 4 : index
    %c0_20 = arith.constant 0 : index
    %c0_21 = arith.constant 0 : index
    %20 = vector.load %arg0[%c4, %c0_20, %c0_21] : memref<16x16x8xf32, #tpu.memory_space<vmem>>, vector<1x16x8xf32>
    %21 = vector.shape_cast %20 : vector<1x16x8xf32> to vector<16x8xf32>
    %cst_22 = arith.constant dense<0.000000e+00> : vector<16x256xf32>
    %22 = tpu.matmul %21, %19, %cst_22 {dimension_numbers = #tpu.dot_dimension_numbers<[1], [0], [0], [1], [0, 0, 1, 1], [], []>} : vector<16x8xf32>, vector<8x256xf32>, vector<16x256xf32> -> vector<16x256xf32>
    %23 = arith.addf %18, %22 : vector<16x256xf32>
    %c0_23 = arith.constant 0 : index
    %c12 = arith.constant 12 : index
    %24 = vector.load %arg1[%c0_23, %c12] : memref<8x384xf32, #tpu.memory_space<vmem>>, vector<8x256xf32>
    %c5 = arith.constant 5 : index
    %c0_24 = arith.constant 0 : index
    %c0_25 = arith.constant 0 : index
    %25 = vector.load %arg0[%c5, %c0_24, %c0_25] : memref<16x16x8xf32, #tpu.memory_space<vmem>>, vector<1x16x8xf32>
    %26 = vector.shape_cast %25 : vector<1x16x8xf32> to vector<16x8xf32>
    %cst_26 = arith.constant dense<0.000000e+00> : vector<16x256xf32>
    %27 = tpu.matmul %26, %24, %cst_26 {dimension_numbers = #tpu.dot_dimension_numbers<[1], [0], [0], [1], [0, 0, 1, 1], [], []>} : vector<16x8xf32>, vector<8x256xf32>, vector<16x256xf32> -> vector<16x256xf32>
    %28 = arith.addf %23, %27 : vector<16x256xf32>
    %c0_27 = arith.constant 0 : index
    %c13 = arith.constant 13 : index
    %29 = vector.load %arg1[%c0_27, %c13] : memref<8x384xf32, #tpu.memory_space<vmem>>, vector<8x256xf32>
    %c6 = arith.constant 6 : index
    %c0_28 = arith.constant 0 : index
    %c0_29 = arith.constant 0 : index
    %30 = vector.load %arg0[%c6, %c0_28, %c0_29] : memref<16x16x8xf32, #tpu.memory_space<vmem>>, vector<1x16x8xf32>
    %31 = vector.shape_cast %30 : vector<1x16x8xf32> to vector<16x8xf32>
    %cst_30 = arith.constant dense<0.000000e+00> : vector<16x256xf32>
    %32 = tpu.matmul %31, %29, %cst_30 {dimension_numbers = #tpu.dot_dimension_numbers<[1], [0], [0], [1], [0, 0, 1, 1], [], []>} : vector<16x8xf32>, vector<8x256xf32>, vector<16x256xf32> -> vector<16x256xf32>
    %33 = arith.addf %28, %32 : vector<16x256xf32>
    %c0_31 = arith.constant 0 : index
    %c14 = arith.constant 14 : index
    %34 = vector.load %arg1[%c0_31, %c14] : memref<8x384xf32, #tpu.memory_space<vmem>>, vector<8x256xf32>
    %c7 = arith.constant 7 : index
    %c0_32 = arith.constant 0 : index
    %c0_33 = arith.constant 0 : index
    %35 = vector.load %arg0[%c7, %c0_32, %c0_33] : memref<16x16x8xf32, #tpu.memory_space<vmem>>, vector<1x16x8xf32>
    %36 = vector.shape_cast %35 : vector<1x16x8xf32> to vector<16x8xf32>
    %cst_34 = arith.constant dense<0.000000e+00> : vector<16x256xf32>
    %37 = tpu.matmul %36, %34, %cst_34 {dimension_numbers = #tpu.dot_dimension_numbers<[1], [0], [0], [1], [0, 0, 1, 1], [], []>} : vector<16x8xf32>, vector<8x256xf32>, vector<16x256xf32> -> vector<16x256xf32>
    %38 = arith.addf %33, %37 : vector<16x256xf32>
    %c0_35 = arith.constant 0 : index
    %c22 = arith.constant 22 : index
    %39 = vector.load %arg1[%c0_35, %c22] : memref<8x384xf32, #tpu.memory_space<vmem>>, vector<8x256xf32>
    %c8 = arith.constant 8 : index
    %c0_36 = arith.constant 0 : index
    %c0_37 = arith.constant 0 : index
    %40 = vector.load %arg0[%c8, %c0_36, %c0_37] : memref<16x16x8xf32, #tpu.memory_space<vmem>>, vector<1x16x8xf32>
    %41 = vector.shape_cast %40 : vector<1x16x8xf32> to vector<16x8xf32>
    %cst_38 = arith.constant dense<0.000000e+00> : vector<16x256xf32>
    %42 = tpu.matmul %41, %39, %cst_38 {dimension_numbers = #tpu.dot_dimension_numbers<[1], [0], [0], [1], [0, 0, 1, 1], [], []>} : vector<16x8xf32>, vector<8x256xf32>, vector<16x256xf32> -> vector<16x256xf32>
    %43 = arith.addf %38, %42 : vector<16x256xf32>
    %c0_39 = arith.constant 0 : index
    %c23 = arith.constant 23 : index
    %44 = vector.load %arg1[%c0_39, %c23] : memref<8x384xf32, #tpu.memory_space<vmem>>, vector<8x256xf32>
    %c9 = arith.constant 9 : index
    %c0_40 = arith.constant 0 : index
    %c0_41 = arith.constant 0 : index
    %45 = vector.load %arg0[%c9, %c0_40, %c0_41] : memref<16x16x8xf32, #tpu.memory_space<vmem>>, vector<1x16x8xf32>
    %46 = vector.shape_cast %45 : vector<1x16x8xf32> to vector<16x8xf32>
    %cst_42 = arith.constant dense<0.000000e+00> : vector<16x256xf32>
    %47 = tpu.matmul %46, %44, %cst_42 {dimension_numbers = #tpu.dot_dimension_numbers<[1], [0], [0], [1], [0, 0, 1, 1], [], []>} : vector<16x8xf32>, vector<8x256xf32>, vector<16x256xf32> -> vector<16x256xf32>
    %48 = arith.addf %43, %47 : vector<16x256xf32>
    %c0_43 = arith.constant 0 : index
    %c24 = arith.constant 24 : index
    %49 = vector.load %arg1[%c0_43, %c24] : memref<8x384xf32, #tpu.memory_space<vmem>>, vector<8x256xf32>
    %c10 = arith.constant 10 : index
    %c0_44 = arith.constant 0 : index
    %c0_45 = arith.constant 0 : index
    %50 = vector.load %arg0[%c10, %c0_44, %c0_45] : memref<16x16x8xf32, #tpu.memory_space<vmem>>, vector<1x16x8xf32>
    %51 = vector.shape_cast %50 : vector<1x16x8xf32> to vector<16x8xf32>
    %cst_46 = arith.constant dense<0.000000e+00> : vector<16x256xf32>
    %52 = tpu.matmul %51, %49, %cst_46 {dimension_numbers = #tpu.dot_dimension_numbers<[1], [0], [0], [1], [0, 0, 1, 1], [], []>} : vector<16x8xf32>, vector<8x256xf32>, vector<16x256xf32> -> vector<16x256xf32>
    %53 = arith.addf %48, %52 : vector<16x256xf32>
    %c0_47 = arith.constant 0 : index
    %c25 = arith.constant 25 : index
    %54 = vector.load %arg1[%c0_47, %c25] : memref<8x384xf32, #tpu.memory_space<vmem>>, vector<8x256xf32>
    %c11_48 = arith.constant 11 : index
    %c0_49 = arith.constant 0 : index
    %c0_50 = arith.constant 0 : index
    %55 = vector.load %arg0[%c11_48, %c0_49, %c0_50] : memref<16x16x8xf32, #tpu.memory_space<vmem>>, vector<1x16x8xf32>
    %56 = vector.shape_cast %55 : vector<1x16x8xf32> to vector<16x8xf32>
    %cst_51 = arith.constant dense<0.000000e+00> : vector<16x256xf32>
    %57 = tpu.matmul %56, %54, %cst_51 {dimension_numbers = #tpu.dot_dimension_numbers<[1], [0], [0], [1], [0, 0, 1, 1], [], []>} : vector<16x8xf32>, vector<8x256xf32>, vector<16x256xf32> -> vector<16x256xf32>
    %58 = arith.addf %53, %57 : vector<16x256xf32>
    %c0_52 = arith.constant 0 : index
    %c33 = arith.constant 33 : index
    %59 = vector.load %arg1[%c0_52, %c33] : memref<8x384xf32, #tpu.memory_space<vmem>>, vector<8x256xf32>
    %c12_53 = arith.constant 12 : index
    %c0_54 = arith.constant 0 : index
    %c0_55 = arith.constant 0 : index
    %60 = vector.load %arg0[%c12_53, %c0_54, %c0_55] : memref<16x16x8xf32, #tpu.memory_space<vmem>>, vector<1x16x8xf32>
    %61 = vector.shape_cast %60 : vector<1x16x8xf32> to vector<16x8xf32>
    %cst_56 = arith.constant dense<0.000000e+00> : vector<16x256xf32>
    %62 = tpu.matmul %61, %59, %cst_56 {dimension_numbers = #tpu.dot_dimension_numbers<[1], [0], [0], [1], [0, 0, 1, 1], [], []>} : vector<16x8xf32>, vector<8x256xf32>, vector<16x256xf32> -> vector<16x256xf32>
    %63 = arith.addf %58, %62 : vector<16x256xf32>
    %c0_57 = arith.constant 0 : index
    %c34 = arith.constant 34 : index
    %64 = vector.load %arg1[%c0_57, %c34] : memref<8x384xf32, #tpu.memory_space<vmem>>, vector<8x256xf32>
    %c13_58 = arith.constant 13 : index
    %c0_59 = arith.constant 0 : index
    %c0_60 = arith.constant 0 : index
    %65 = vector.load %arg0[%c13_58, %c0_59, %c0_60] : memref<16x16x8xf32, #tpu.memory_space<vmem>>, vector<1x16x8xf32>
    %66 = vector.shape_cast %65 : vector<1x16x8xf32> to vector<16x8xf32>
    %cst_61 = arith.constant dense<0.000000e+00> : vector<16x256xf32>
    %67 = tpu.matmul %66, %64, %cst_61 {dimension_numbers = #tpu.dot_dimension_numbers<[1], [0], [0], [1], [0, 0, 1, 1], [], []>} : vector<16x8xf32>, vector<8x256xf32>, vector<16x256xf32> -> vector<16x256xf32>
    %68 = arith.addf %63, %67 : vector<16x256xf32>
    %c0_62 = arith.constant 0 : index
    %c35 = arith.constant 35 : index
    %69 = vector.load %arg1[%c0_62, %c35] : memref<8x384xf32, #tpu.memory_space<vmem>>, vector<8x256xf32>
    %c14_63 = arith.constant 14 : index
    %c0_64 = arith.constant 0 : index
    %c0_65 = arith.constant 0 : index
    %70 = vector.load %arg0[%c14_63, %c0_64, %c0_65] : memref<16x16x8xf32, #tpu.memory_space<vmem>>, vector<1x16x8xf32>
    %71 = vector.shape_cast %70 : vector<1x16x8xf32> to vector<16x8xf32>
    %cst_66 = arith.constant dense<0.000000e+00> : vector<16x256xf32>
    %72 = tpu.matmul %71, %69, %cst_66 {dimension_numbers = #tpu.dot_dimension_numbers<[1], [0], [0], [1], [0, 0, 1, 1], [], []>} : vector<16x8xf32>, vector<8x256xf32>, vector<16x256xf32> -> vector<16x256xf32>
    %73 = arith.addf %68, %72 : vector<16x256xf32>
    %c0_67 = arith.constant 0 : index
    %c36 = arith.constant 36 : index
    %74 = vector.load %arg1[%c0_67, %c36] : memref<8x384xf32, #tpu.memory_space<vmem>>, vector<8x256xf32>
    %c15 = arith.constant 15 : index
    %c0_68 = arith.constant 0 : index
    %c0_69 = arith.constant 0 : index
    %75 = vector.load %arg0[%c15, %c0_68, %c0_69] : memref<16x16x8xf32, #tpu.memory_space<vmem>>, vector<1x16x8xf32>
    %76 = vector.shape_cast %75 : vector<1x16x8xf32> to vector<16x8xf32>
    %cst_70 = arith.constant dense<0.000000e+00> : vector<16x256xf32>
    %77 = tpu.matmul %76, %74, %cst_70 {dimension_numbers = #tpu.dot_dimension_numbers<[1], [0], [0], [1], [0, 0, 1, 1], [], []>} : vector<16x8xf32>, vector<8x256xf32>, vector<16x256xf32> -> vector<16x256xf32>
    %78 = arith.addf %73, %77 : vector<16x256xf32>
    %c0_71 = arith.constant 0 : index
    %c0_72 = arith.constant 0 : index
    %79 = vector.load %arg2[%c0_71, %c0_72] : memref<16x1xf32, #tpu.memory_space<vmem>>, vector<16x1xf32>
    %80 = vector.broadcast %79 : vector<16x1xf32> to vector<16x256xf32>
    %81 = arith.addf %78, %80 : vector<16x256xf32>
    %c0_73 = arith.constant 0 : index
    %c0_74 = arith.constant 0 : index
    %82 = vector.load %arg5[%c0_73, %c0_74] : memref<1x256xf32, #tpu.memory_space<vmem>>, vector<1x256xf32>
    %83 = vector.broadcast %82 : vector<1x256xf32> to vector<16x256xf32>
    %84 = arith.mulf %81, %83 : vector<16x256xf32>
    %cst_75 = arith.constant dense<0.000000e+00> : vector<16xf32>
    %85 = vector.multi_reduction <add>, %84, %cst_75 [1] : vector<16x256xf32> to vector<16xf32>
    %86 = vector.shape_cast %85 : vector<16xf32> to vector<16x1xf32>
    %cst_76 = arith.constant 7.812500e-03 : f32
    %87 = vector.broadcast %cst_76 : f32 to vector<16x1xf32>
    %88 = arith.mulf %86, %87 : vector<16x1xf32>
    %89 = vector.broadcast %88 : vector<16x1xf32> to vector<16x256xf32>
    %90 = arith.subf %81, %89 : vector<16x256xf32>
    %91 = vector.broadcast %82 : vector<1x256xf32> to vector<16x256xf32>
    %92 = arith.mulf %90, %91 : vector<16x256xf32>
    %93 = arith.mulf %92, %92 : vector<16x256xf32>
    %cst_77 = arith.constant dense<0.000000e+00> : vector<16xf32>
    %94 = vector.multi_reduction <add>, %93, %cst_77 [1] : vector<16x256xf32> to vector<16xf32>
    %95 = vector.shape_cast %94 : vector<16xf32> to vector<16x1xf32>
    %cst_78 = arith.constant 7.812500e-03 : f32
    %96 = vector.broadcast %cst_78 : f32 to vector<16x1xf32>
    %97 = arith.mulf %95, %96 : vector<16x1xf32>
    %98 = vector.broadcast %88 : vector<16x1xf32> to vector<16x256xf32>
    %99 = arith.subf %81, %98 : vector<16x256xf32>
    %cst_79 = arith.constant 9.99999974E-6 : f32
    %100 = vector.broadcast %cst_79 : f32 to vector<16x1xf32>
    %101 = arith.addf %97, %100 : vector<16x1xf32>
    %102 = math.rsqrt %101 : vector<16x1xf32>
    %103 = vector.broadcast %102 : vector<16x1xf32> to vector<16x256xf32>
    %104 = arith.mulf %99, %103 : vector<16x256xf32>
    %c0_80 = arith.constant 0 : index
    %c0_81 = arith.constant 0 : index
    %105 = vector.load %arg3[%c0_80, %c0_81] : memref<16x1xf32, #tpu.memory_space<vmem>>, vector<16x1xf32>
    %106 = vector.broadcast %105 : vector<16x1xf32> to vector<16x256xf32>
    %107 = arith.mulf %104, %106 : vector<16x256xf32>
    %c0_82 = arith.constant 0 : index
    %c0_83 = arith.constant 0 : index
    %108 = vector.load %arg4[%c0_82, %c0_83] : memref<16x1xf32, #tpu.memory_space<vmem>>, vector<16x1xf32>
    %109 = vector.broadcast %108 : vector<16x1xf32> to vector<16x256xf32>
    %110 = arith.addf %107, %109 : vector<16x256xf32>
    %cst_84 = arith.constant 0.000000e+00 : f32
    %111 = vector.broadcast %cst_84 : f32 to vector<16x256xf32>
    %112 = arith.maximumf %110, %111 : vector<16x256xf32>
    %c0_85 = arith.constant 0 : index
    %c0_86 = arith.constant 0 : index
    %113 = vector.load %arg6[%c0_85, %c0_86] : memref<16x256xf32, #tpu.memory_space<vmem>>, vector<16x256xf32>
    tpu.vector_store %arg6[%c0_85, %c0_86], %112 {strides = array<i32>} : memref<16x256xf32, #tpu.memory_space<vmem>>, vector<16x256xf32>,
    return
  }
}

module attributes {stable_mosaic.version = 11 : i64} {
  func.func @kernel(%arg0: memref<16x8x16xf32, #tpu.memory_space<vmem>>, %arg1: memref<16x896xf32, #tpu.memory_space<vmem>>, %arg2: memref<8x1xf32, #tpu.memory_space<vmem>>, %arg3: memref<8x1xf32, #tpu.memory_space<vmem>>, %arg4: memref<8x1xf32, #tpu.memory_space<vmem>>, %arg5: memref<1x768xf32, #tpu.memory_space<vmem>>, %arg6: memref<8x768xf32, #tpu.memory_space<vmem>>) attributes {dimension_semantics = [], scalar_prefetch = 0 : i64, scratch_operands = 0 : i64, tpu.core_type = #tpu.core_type<tc>} {
    %c0 = arith.constant 0 : index
    %c0_0 = arith.constant 0 : index
    %0 = vector.load %arg1[%c0, %c0_0] : memref<16x896xf32, #tpu.memory_space<vmem>>, vector<16x768xf32>
    %c0_1 = arith.constant 0 : index
    %c0_2 = arith.constant 0 : index
    %c0_3 = arith.constant 0 : index
    %1 = vector.load %arg0[%c0_1, %c0_2, %c0_3] : memref<16x8x16xf32, #tpu.memory_space<vmem>>, vector<1x8x16xf32>
    %2 = vector.shape_cast %1 : vector<1x8x16xf32> to vector<8x16xf32>
    %cst = arith.constant dense<0.000000e+00> : vector<8x768xf32>
    %3 = tpu.matmul %2, %0, %cst {dimension_numbers = #tpu.dot_dimension_numbers<[1], [0], [0], [1], [0, 0, 1, 1], [], []>} : vector<8x16xf32>, vector<16x768xf32>, vector<8x768xf32> -> vector<8x768xf32>
    %c0_4 = arith.constant 0 : index
    %c1 = arith.constant 1 : index
    %4 = vector.load %arg1[%c0_4, %c1] : memref<16x896xf32, #tpu.memory_space<vmem>>, vector<16x768xf32>
    %c1_5 = arith.constant 1 : index
    %c0_6 = arith.constant 0 : index
    %c0_7 = arith.constant 0 : index
    %5 = vector.load %arg0[%c1_5, %c0_6, %c0_7] : memref<16x8x16xf32, #tpu.memory_space<vmem>>, vector<1x8x16xf32>
    %6 = vector.shape_cast %5 : vector<1x8x16xf32> to vector<8x16xf32>
    %cst_8 = arith.constant dense<0.000000e+00> : vector<8x768xf32>
    %7 = tpu.matmul %6, %4, %cst_8 {dimension_numbers = #tpu.dot_dimension_numbers<[1], [0], [0], [1], [0, 0, 1, 1], [], []>} : vector<8x16xf32>, vector<16x768xf32>, vector<8x768xf32> -> vector<8x768xf32>
    %8 = arith.addf %3, %7 : vector<8x768xf32>
    %c0_9 = arith.constant 0 : index
    %c2 = arith.constant 2 : index
    %9 = vector.load %arg1[%c0_9, %c2] : memref<16x896xf32, #tpu.memory_space<vmem>>, vector<16x768xf32>
    %c2_10 = arith.constant 2 : index
    %c0_11 = arith.constant 0 : index
    %c0_12 = arith.constant 0 : index
    %10 = vector.load %arg0[%c2_10, %c0_11, %c0_12] : memref<16x8x16xf32, #tpu.memory_space<vmem>>, vector<1x8x16xf32>
    %11 = vector.shape_cast %10 : vector<1x8x16xf32> to vector<8x16xf32>
    %cst_13 = arith.constant dense<0.000000e+00> : vector<8x768xf32>
    %12 = tpu.matmul %11, %9, %cst_13 {dimension_numbers = #tpu.dot_dimension_numbers<[1], [0], [0], [1], [0, 0, 1, 1], [], []>} : vector<8x16xf32>, vector<16x768xf32>, vector<8x768xf32> -> vector<8x768xf32>
    %13 = arith.addf %8, %12 : vector<8x768xf32>
    %c0_14 = arith.constant 0 : index
    %c3 = arith.constant 3 : index
    %14 = vector.load %arg1[%c0_14, %c3] : memref<16x896xf32, #tpu.memory_space<vmem>>, vector<16x768xf32>
    %c3_15 = arith.constant 3 : index
    %c0_16 = arith.constant 0 : index
    %c0_17 = arith.constant 0 : index
    %15 = vector.load %arg0[%c3_15, %c0_16, %c0_17] : memref<16x8x16xf32, #tpu.memory_space<vmem>>, vector<1x8x16xf32>
    %16 = vector.shape_cast %15 : vector<1x8x16xf32> to vector<8x16xf32>
    %cst_18 = arith.constant dense<0.000000e+00> : vector<8x768xf32>
    %17 = tpu.matmul %16, %14, %cst_18 {dimension_numbers = #tpu.dot_dimension_numbers<[1], [0], [0], [1], [0, 0, 1, 1], [], []>} : vector<8x16xf32>, vector<16x768xf32>, vector<8x768xf32> -> vector<8x768xf32>
    %18 = arith.addf %13, %17 : vector<8x768xf32>
    %c0_19 = arith.constant 0 : index
    %c19 = arith.constant 19 : index
    %19 = vector.load %arg1[%c0_19, %c19] : memref<16x896xf32, #tpu.memory_space<vmem>>, vector<16x768xf32>
    %c4 = arith.constant 4 : index
    %c0_20 = arith.constant 0 : index
    %c0_21 = arith.constant 0 : index
    %20 = vector.load %arg0[%c4, %c0_20, %c0_21] : memref<16x8x16xf32, #tpu.memory_space<vmem>>, vector<1x8x16xf32>
    %21 = vector.shape_cast %20 : vector<1x8x16xf32> to vector<8x16xf32>
    %cst_22 = arith.constant dense<0.000000e+00> : vector<8x768xf32>
    %22 = tpu.matmul %21, %19, %cst_22 {dimension_numbers = #tpu.dot_dimension_numbers<[1], [0], [0], [1], [0, 0, 1, 1], [], []>} : vector<8x16xf32>, vector<16x768xf32>, vector<8x768xf32> -> vector<8x768xf32>
    %23 = arith.addf %18, %22 : vector<8x768xf32>
    %c0_23 = arith.constant 0 : index
    %c20 = arith.constant 20 : index
    %24 = vector.load %arg1[%c0_23, %c20] : memref<16x896xf32, #tpu.memory_space<vmem>>, vector<16x768xf32>
    %c5 = arith.constant 5 : index
    %c0_24 = arith.constant 0 : index
    %c0_25 = arith.constant 0 : index
    %25 = vector.load %arg0[%c5, %c0_24, %c0_25] : memref<16x8x16xf32, #tpu.memory_space<vmem>>, vector<1x8x16xf32>
    %26 = vector.shape_cast %25 : vector<1x8x16xf32> to vector<8x16xf32>
    %cst_26 = arith.constant dense<0.000000e+00> : vector<8x768xf32>
    %27 = tpu.matmul %26, %24, %cst_26 {dimension_numbers = #tpu.dot_dimension_numbers<[1], [0], [0], [1], [0, 0, 1, 1], [], []>} : vector<8x16xf32>, vector<16x768xf32>, vector<8x768xf32> -> vector<8x768xf32>
    %28 = arith.addf %23, %27 : vector<8x768xf32>
    %c0_27 = arith.constant 0 : index
    %c21 = arith.constant 21 : index
    %29 = vector.load %arg1[%c0_27, %c21] : memref<16x896xf32, #tpu.memory_space<vmem>>, vector<16x768xf32>
    %c6 = arith.constant 6 : index
    %c0_28 = arith.constant 0 : index
    %c0_29 = arith.constant 0 : index
    %30 = vector.load %arg0[%c6, %c0_28, %c0_29] : memref<16x8x16xf32, #tpu.memory_space<vmem>>, vector<1x8x16xf32>
    %31 = vector.shape_cast %30 : vector<1x8x16xf32> to vector<8x16xf32>
    %cst_30 = arith.constant dense<0.000000e+00> : vector<8x768xf32>
    %32 = tpu.matmul %31, %29, %cst_30 {dimension_numbers = #tpu.dot_dimension_numbers<[1], [0], [0], [1], [0, 0, 1, 1], [], []>} : vector<8x16xf32>, vector<16x768xf32>, vector<8x768xf32> -> vector<8x768xf32>
    %33 = arith.addf %28, %32 : vector<8x768xf32>
    %c0_31 = arith.constant 0 : index
    %c22 = arith.constant 22 : index
    %34 = vector.load %arg1[%c0_31, %c22] : memref<16x896xf32, #tpu.memory_space<vmem>>, vector<16x768xf32>
    %c7 = arith.constant 7 : index
    %c0_32 = arith.constant 0 : index
    %c0_33 = arith.constant 0 : index
    %35 = vector.load %arg0[%c7, %c0_32, %c0_33] : memref<16x8x16xf32, #tpu.memory_space<vmem>>, vector<1x8x16xf32>
    %36 = vector.shape_cast %35 : vector<1x8x16xf32> to vector<8x16xf32>
    %cst_34 = arith.constant dense<0.000000e+00> : vector<8x768xf32>
    %37 = tpu.matmul %36, %34, %cst_34 {dimension_numbers = #tpu.dot_dimension_numbers<[1], [0], [0], [1], [0, 0, 1, 1], [], []>} : vector<8x16xf32>, vector<16x768xf32>, vector<8x768xf32> -> vector<8x768xf32>
    %38 = arith.addf %33, %37 : vector<8x768xf32>
    %c0_35 = arith.constant 0 : index
    %c38 = arith.constant 38 : index
    %39 = vector.load %arg1[%c0_35, %c38] : memref<16x896xf32, #tpu.memory_space<vmem>>, vector<16x768xf32>
    %c8 = arith.constant 8 : index
    %c0_36 = arith.constant 0 : index
    %c0_37 = arith.constant 0 : index
    %40 = vector.load %arg0[%c8, %c0_36, %c0_37] : memref<16x8x16xf32, #tpu.memory_space<vmem>>, vector<1x8x16xf32>
    %41 = vector.shape_cast %40 : vector<1x8x16xf32> to vector<8x16xf32>
    %cst_38 = arith.constant dense<0.000000e+00> : vector<8x768xf32>
    %42 = tpu.matmul %41, %39, %cst_38 {dimension_numbers = #tpu.dot_dimension_numbers<[1], [0], [0], [1], [0, 0, 1, 1], [], []>} : vector<8x16xf32>, vector<16x768xf32>, vector<8x768xf32> -> vector<8x768xf32>
    %43 = arith.addf %38, %42 : vector<8x768xf32>
    %c0_39 = arith.constant 0 : index
    %c39 = arith.constant 39 : index
    %44 = vector.load %arg1[%c0_39, %c39] : memref<16x896xf32, #tpu.memory_space<vmem>>, vector<16x768xf32>
    %c9 = arith.constant 9 : index
    %c0_40 = arith.constant 0 : index
    %c0_41 = arith.constant 0 : index
    %45 = vector.load %arg0[%c9, %c0_40, %c0_41] : memref<16x8x16xf32, #tpu.memory_space<vmem>>, vector<1x8x16xf32>
    %46 = vector.shape_cast %45 : vector<1x8x16xf32> to vector<8x16xf32>
    %cst_42 = arith.constant dense<0.000000e+00> : vector<8x768xf32>
    %47 = tpu.matmul %46, %44, %cst_42 {dimension_numbers = #tpu.dot_dimension_numbers<[1], [0], [0], [1], [0, 0, 1, 1], [], []>} : vector<8x16xf32>, vector<16x768xf32>, vector<8x768xf32> -> vector<8x768xf32>
    %48 = arith.addf %43, %47 : vector<8x768xf32>
    %c0_43 = arith.constant 0 : index
    %c40 = arith.constant 40 : index
    %49 = vector.load %arg1[%c0_43, %c40] : memref<16x896xf32, #tpu.memory_space<vmem>>, vector<16x768xf32>
    %c10 = arith.constant 10 : index
    %c0_44 = arith.constant 0 : index
    %c0_45 = arith.constant 0 : index
    %50 = vector.load %arg0[%c10, %c0_44, %c0_45] : memref<16x8x16xf32, #tpu.memory_space<vmem>>, vector<1x8x16xf32>
    %51 = vector.shape_cast %50 : vector<1x8x16xf32> to vector<8x16xf32>
    %cst_46 = arith.constant dense<0.000000e+00> : vector<8x768xf32>
    %52 = tpu.matmul %51, %49, %cst_46 {dimension_numbers = #tpu.dot_dimension_numbers<[1], [0], [0], [1], [0, 0, 1, 1], [], []>} : vector<8x16xf32>, vector<16x768xf32>, vector<8x768xf32> -> vector<8x768xf32>
    %53 = arith.addf %48, %52 : vector<8x768xf32>
    %c0_47 = arith.constant 0 : index
    %c41 = arith.constant 41 : index
    %54 = vector.load %arg1[%c0_47, %c41] : memref<16x896xf32, #tpu.memory_space<vmem>>, vector<16x768xf32>
    %c11 = arith.constant 11 : index
    %c0_48 = arith.constant 0 : index
    %c0_49 = arith.constant 0 : index
    %55 = vector.load %arg0[%c11, %c0_48, %c0_49] : memref<16x8x16xf32, #tpu.memory_space<vmem>>, vector<1x8x16xf32>
    %56 = vector.shape_cast %55 : vector<1x8x16xf32> to vector<8x16xf32>
    %cst_50 = arith.constant dense<0.000000e+00> : vector<8x768xf32>
    %57 = tpu.matmul %56, %54, %cst_50 {dimension_numbers = #tpu.dot_dimension_numbers<[1], [0], [0], [1], [0, 0, 1, 1], [], []>} : vector<8x16xf32>, vector<16x768xf32>, vector<8x768xf32> -> vector<8x768xf32>
    %58 = arith.addf %53, %57 : vector<8x768xf32>
    %c0_51 = arith.constant 0 : index
    %c57 = arith.constant 57 : index
    %59 = vector.load %arg1[%c0_51, %c57] : memref<16x896xf32, #tpu.memory_space<vmem>>, vector<16x768xf32>
    %c12 = arith.constant 12 : index
    %c0_52 = arith.constant 0 : index
    %c0_53 = arith.constant 0 : index
    %60 = vector.load %arg0[%c12, %c0_52, %c0_53] : memref<16x8x16xf32, #tpu.memory_space<vmem>>, vector<1x8x16xf32>
    %61 = vector.shape_cast %60 : vector<1x8x16xf32> to vector<8x16xf32>
    %cst_54 = arith.constant dense<0.000000e+00> : vector<8x768xf32>
    %62 = tpu.matmul %61, %59, %cst_54 {dimension_numbers = #tpu.dot_dimension_numbers<[1], [0], [0], [1], [0, 0, 1, 1], [], []>} : vector<8x16xf32>, vector<16x768xf32>, vector<8x768xf32> -> vector<8x768xf32>
    %63 = arith.addf %58, %62 : vector<8x768xf32>
    %c0_55 = arith.constant 0 : index
    %c58 = arith.constant 58 : index
    %64 = vector.load %arg1[%c0_55, %c58] : memref<16x896xf32, #tpu.memory_space<vmem>>, vector<16x768xf32>
    %c13 = arith.constant 13 : index
    %c0_56 = arith.constant 0 : index
    %c0_57 = arith.constant 0 : index
    %65 = vector.load %arg0[%c13, %c0_56, %c0_57] : memref<16x8x16xf32, #tpu.memory_space<vmem>>, vector<1x8x16xf32>
    %66 = vector.shape_cast %65 : vector<1x8x16xf32> to vector<8x16xf32>
    %cst_58 = arith.constant dense<0.000000e+00> : vector<8x768xf32>
    %67 = tpu.matmul %66, %64, %cst_58 {dimension_numbers = #tpu.dot_dimension_numbers<[1], [0], [0], [1], [0, 0, 1, 1], [], []>} : vector<8x16xf32>, vector<16x768xf32>, vector<8x768xf32> -> vector<8x768xf32>
    %68 = arith.addf %63, %67 : vector<8x768xf32>
    %c0_59 = arith.constant 0 : index
    %c59 = arith.constant 59 : index
    %69 = vector.load %arg1[%c0_59, %c59] : memref<16x896xf32, #tpu.memory_space<vmem>>, vector<16x768xf32>
    %c14 = arith.constant 14 : index
    %c0_60 = arith.constant 0 : index
    %c0_61 = arith.constant 0 : index
    %70 = vector.load %arg0[%c14, %c0_60, %c0_61] : memref<16x8x16xf32, #tpu.memory_space<vmem>>, vector<1x8x16xf32>
    %71 = vector.shape_cast %70 : vector<1x8x16xf32> to vector<8x16xf32>
    %cst_62 = arith.constant dense<0.000000e+00> : vector<8x768xf32>
    %72 = tpu.matmul %71, %69, %cst_62 {dimension_numbers = #tpu.dot_dimension_numbers<[1], [0], [0], [1], [0, 0, 1, 1], [], []>} : vector<8x16xf32>, vector<16x768xf32>, vector<8x768xf32> -> vector<8x768xf32>
    %73 = arith.addf %68, %72 : vector<8x768xf32>
    %c0_63 = arith.constant 0 : index
    %c60 = arith.constant 60 : index
    %74 = vector.load %arg1[%c0_63, %c60] : memref<16x896xf32, #tpu.memory_space<vmem>>, vector<16x768xf32>
    %c15 = arith.constant 15 : index
    %c0_64 = arith.constant 0 : index
    %c0_65 = arith.constant 0 : index
    %75 = vector.load %arg0[%c15, %c0_64, %c0_65] : memref<16x8x16xf32, #tpu.memory_space<vmem>>, vector<1x8x16xf32>
    %76 = vector.shape_cast %75 : vector<1x8x16xf32> to vector<8x16xf32>
    %cst_66 = arith.constant dense<0.000000e+00> : vector<8x768xf32>
    %77 = tpu.matmul %76, %74, %cst_66 {dimension_numbers = #tpu.dot_dimension_numbers<[1], [0], [0], [1], [0, 0, 1, 1], [], []>} : vector<8x16xf32>, vector<16x768xf32>, vector<8x768xf32> -> vector<8x768xf32>
    %78 = arith.addf %73, %77 : vector<8x768xf32>
    %c0_67 = arith.constant 0 : index
    %c0_68 = arith.constant 0 : index
    %79 = vector.load %arg2[%c0_67, %c0_68] : memref<8x1xf32, #tpu.memory_space<vmem>>, vector<8x1xf32>
    %80 = vector.broadcast %79 : vector<8x1xf32> to vector<8x768xf32>
    %81 = arith.addf %78, %80 : vector<8x768xf32>
    %c0_69 = arith.constant 0 : index
    %c0_70 = arith.constant 0 : index
    %82 = vector.load %arg5[%c0_69, %c0_70] : memref<1x768xf32, #tpu.memory_space<vmem>>, vector<1x768xf32>
    %83 = vector.broadcast %82 : vector<1x768xf32> to vector<8x768xf32>
    %84 = arith.mulf %81, %83 : vector<8x768xf32>
    %cst_71 = arith.constant dense<0.000000e+00> : vector<8xf32>
    %85 = vector.multi_reduction <add>, %84, %cst_71 [1] : vector<8x768xf32> to vector<8xf32>
    %86 = vector.shape_cast %85 : vector<8xf32> to vector<8x1xf32>
    %cst_72 = arith.constant 0.001953125 : f32
    %87 = vector.broadcast %cst_72 : f32 to vector<8x1xf32>
    %88 = arith.mulf %86, %87 : vector<8x1xf32>
    %89 = vector.broadcast %88 : vector<8x1xf32> to vector<8x768xf32>
    %90 = arith.subf %81, %89 : vector<8x768xf32>
    %91 = vector.broadcast %82 : vector<1x768xf32> to vector<8x768xf32>
    %92 = arith.mulf %90, %91 : vector<8x768xf32>
    %93 = arith.mulf %92, %92 : vector<8x768xf32>
    %cst_73 = arith.constant dense<0.000000e+00> : vector<8xf32>
    %94 = vector.multi_reduction <add>, %93, %cst_73 [1] : vector<8x768xf32> to vector<8xf32>
    %95 = vector.shape_cast %94 : vector<8xf32> to vector<8x1xf32>
    %cst_74 = arith.constant 0.001953125 : f32
    %96 = vector.broadcast %cst_74 : f32 to vector<8x1xf32>
    %97 = arith.mulf %95, %96 : vector<8x1xf32>
    %98 = vector.broadcast %88 : vector<8x1xf32> to vector<8x768xf32>
    %99 = arith.subf %81, %98 : vector<8x768xf32>
    %cst_75 = arith.constant 9.99999974E-6 : f32
    %100 = vector.broadcast %cst_75 : f32 to vector<8x1xf32>
    %101 = arith.addf %97, %100 : vector<8x1xf32>
    %102 = math.rsqrt %101 : vector<8x1xf32>
    %103 = vector.broadcast %102 : vector<8x1xf32> to vector<8x768xf32>
    %104 = arith.mulf %99, %103 : vector<8x768xf32>
    %c0_76 = arith.constant 0 : index
    %c0_77 = arith.constant 0 : index
    %105 = vector.load %arg3[%c0_76, %c0_77] : memref<8x1xf32, #tpu.memory_space<vmem>>, vector<8x1xf32>
    %106 = vector.broadcast %105 : vector<8x1xf32> to vector<8x768xf32>
    %107 = arith.mulf %104, %106 : vector<8x768xf32>
    %c0_78 = arith.constant 0 : index
    %c0_79 = arith.constant 0 : index
    %108 = vector.load %arg4[%c0_78, %c0_79] : memref<8x1xf32, #tpu.memory_space<vmem>>, vector<8x1xf32>
    %109 = vector.broadcast %108 : vector<8x1xf32> to vector<8x768xf32>
    %110 = arith.addf %107, %109 : vector<8x768xf32>
    %cst_80 = arith.constant 0.000000e+00 : f32
    %111 = vector.broadcast %cst_80 : f32 to vector<8x768xf32>
    %112 = arith.maximumf %110, %111 : vector<8x768xf32>
    %c0_81 = arith.constant 0 : index
    %c0_82 = arith.constant 0 : index
    %113 = vector.load %arg6[%c0_81, %c0_82] : memref<8x768xf32, #tpu.memory_space<vmem>>, vector<8x768xf32>
    tpu.vector_store %arg6[%c0_81, %c0_82], %112 {strides = array<i32>} : memref<8x768xf32, #tpu.memory_space<vmem>>, vector<8x768xf32>,
    return
  }
}

module attributes {stable_mosaic.version = 11 : i64} {
  func.func @kernel(%arg0: memref<16x8x8xf32, #tpu.memory_space<vmem>>, %arg1: memref<8x2688xf32, #tpu.memory_space<vmem>>, %arg2: memref<8x1xf32, #tpu.memory_space<vmem>>, %arg3: memref<8x2560xf32, #tpu.memory_space<vmem>>) attributes {dimension_semantics = [], scalar_prefetch = 0 : i64, scratch_operands = 0 : i64, tpu.core_type = #tpu.core_type<tc>} {
    %c0 = arith.constant 0 : index
    %c0_0 = arith.constant 0 : index
    %0 = vector.load %arg1[%c0, %c0_0] : memref<8x2688xf32, #tpu.memory_space<vmem>>, vector<8x2560xf32>
    %c0_1 = arith.constant 0 : index
    %c0_2 = arith.constant 0 : index
    %c0_3 = arith.constant 0 : index
    %1 = vector.load %arg0[%c0_1, %c0_2, %c0_3] : memref<16x8x8xf32, #tpu.memory_space<vmem>>, vector<1x8x8xf32>
    %2 = vector.shape_cast %1 : vector<1x8x8xf32> to vector<8x8xf32>
    %cst = arith.constant dense<0.000000e+00> : vector<8x2560xf32>
    %3 = tpu.matmul %2, %0, %cst {dimension_numbers = #tpu.dot_dimension_numbers<[1], [0], [0], [1], [0, 0, 1, 1], [], []>} : vector<8x8xf32>, vector<8x2560xf32>, vector<8x2560xf32> -> vector<8x2560xf32>
    %c0_4 = arith.constant 0 : index
    %c1 = arith.constant 1 : index
    %4 = vector.load %arg1[%c0_4, %c1] : memref<8x2688xf32, #tpu.memory_space<vmem>>, vector<8x2560xf32>
    %c1_5 = arith.constant 1 : index
    %c0_6 = arith.constant 0 : index
    %c0_7 = arith.constant 0 : index
    %5 = vector.load %arg0[%c1_5, %c0_6, %c0_7] : memref<16x8x8xf32, #tpu.memory_space<vmem>>, vector<1x8x8xf32>
    %6 = vector.shape_cast %5 : vector<1x8x8xf32> to vector<8x8xf32>
    %cst_8 = arith.constant dense<0.000000e+00> : vector<8x2560xf32>
    %7 = tpu.matmul %6, %4, %cst_8 {dimension_numbers = #tpu.dot_dimension_numbers<[1], [0], [0], [1], [0, 0, 1, 1], [], []>} : vector<8x8xf32>, vector<8x2560xf32>, vector<8x2560xf32> -> vector<8x2560xf32>
    %8 = arith.addf %3, %7 : vector<8x2560xf32>
    %c0_9 = arith.constant 0 : index
    %c2 = arith.constant 2 : index
    %9 = vector.load %arg1[%c0_9, %c2] : memref<8x2688xf32, #tpu.memory_space<vmem>>, vector<8x2560xf32>
    %c2_10 = arith.constant 2 : index
    %c0_11 = arith.constant 0 : index
    %c0_12 = arith.constant 0 : index
    %10 = vector.load %arg0[%c2_10, %c0_11, %c0_12] : memref<16x8x8xf32, #tpu.memory_space<vmem>>, vector<1x8x8xf32>
    %11 = vector.shape_cast %10 : vector<1x8x8xf32> to vector<8x8xf32>
    %cst_13 = arith.constant dense<0.000000e+00> : vector<8x2560xf32>
    %12 = tpu.matmul %11, %9, %cst_13 {dimension_numbers = #tpu.dot_dimension_numbers<[1], [0], [0], [1], [0, 0, 1, 1], [], []>} : vector<8x8xf32>, vector<8x2560xf32>, vector<8x2560xf32> -> vector<8x2560xf32>
    %13 = arith.addf %8, %12 : vector<8x2560xf32>
    %c0_14 = arith.constant 0 : index
    %c3 = arith.constant 3 : index
    %14 = vector.load %arg1[%c0_14, %c3] : memref<8x2688xf32, #tpu.memory_space<vmem>>, vector<8x2560xf32>
    %c3_15 = arith.constant 3 : index
    %c0_16 = arith.constant 0 : index
    %c0_17 = arith.constant 0 : index
    %15 = vector.load %arg0[%c3_15, %c0_16, %c0_17] : memref<16x8x8xf32, #tpu.memory_space<vmem>>, vector<1x8x8xf32>
    %16 = vector.shape_cast %15 : vector<1x8x8xf32> to vector<8x8xf32>
    %cst_18 = arith.constant dense<0.000000e+00> : vector<8x2560xf32>
    %17 = tpu.matmul %16, %14, %cst_18 {dimension_numbers = #tpu.dot_dimension_numbers<[1], [0], [0], [1], [0, 0, 1, 1], [], []>} : vector<8x8xf32>, vector<8x2560xf32>, vector<8x2560xf32> -> vector<8x2560xf32>
    %18 = arith.addf %13, %17 : vector<8x2560xf32>
    %c0_19 = arith.constant 0 : index
    %c35 = arith.constant 35 : index
    %19 = vector.load %arg1[%c0_19, %c35] : memref<8x2688xf32, #tpu.memory_space<vmem>>, vector<8x2560xf32>
    %c4 = arith.constant 4 : index
    %c0_20 = arith.constant 0 : index
    %c0_21 = arith.constant 0 : index
    %20 = vector.load %arg0[%c4, %c0_20, %c0_21] : memref<16x8x8xf32, #tpu.memory_space<vmem>>, vector<1x8x8xf32>
    %21 = vector.shape_cast %20 : vector<1x8x8xf32> to vector<8x8xf32>
    %cst_22 = arith.constant dense<0.000000e+00> : vector<8x2560xf32>
    %22 = tpu.matmul %21, %19, %cst_22 {dimension_numbers = #tpu.dot_dimension_numbers<[1], [0], [0], [1], [0, 0, 1, 1], [], []>} : vector<8x8xf32>, vector<8x2560xf32>, vector<8x2560xf32> -> vector<8x2560xf32>
    %23 = arith.addf %18, %22 : vector<8x2560xf32>
    %c0_23 = arith.constant 0 : index
    %c36 = arith.constant 36 : index
    %24 = vector.load %arg1[%c0_23, %c36] : memref<8x2688xf32, #tpu.memory_space<vmem>>, vector<8x2560xf32>
    %c5 = arith.constant 5 : index
    %c0_24 = arith.constant 0 : index
    %c0_25 = arith.constant 0 : index
    %25 = vector.load %arg0[%c5, %c0_24, %c0_25] : memref<16x8x8xf32, #tpu.memory_space<vmem>>, vector<1x8x8xf32>
    %26 = vector.shape_cast %25 : vector<1x8x8xf32> to vector<8x8xf32>
    %cst_26 = arith.constant dense<0.000000e+00> : vector<8x2560xf32>
    %27 = tpu.matmul %26, %24, %cst_26 {dimension_numbers = #tpu.dot_dimension_numbers<[1], [0], [0], [1], [0, 0, 1, 1], [], []>} : vector<8x8xf32>, vector<8x2560xf32>, vector<8x2560xf32> -> vector<8x2560xf32>
    %28 = arith.addf %23, %27 : vector<8x2560xf32>
    %c0_27 = arith.constant 0 : index
    %c37 = arith.constant 37 : index
    %29 = vector.load %arg1[%c0_27, %c37] : memref<8x2688xf32, #tpu.memory_space<vmem>>, vector<8x2560xf32>
    %c6 = arith.constant 6 : index
    %c0_28 = arith.constant 0 : index
    %c0_29 = arith.constant 0 : index
    %30 = vector.load %arg0[%c6, %c0_28, %c0_29] : memref<16x8x8xf32, #tpu.memory_space<vmem>>, vector<1x8x8xf32>
    %31 = vector.shape_cast %30 : vector<1x8x8xf32> to vector<8x8xf32>
    %cst_30 = arith.constant dense<0.000000e+00> : vector<8x2560xf32>
    %32 = tpu.matmul %31, %29, %cst_30 {dimension_numbers = #tpu.dot_dimension_numbers<[1], [0], [0], [1], [0, 0, 1, 1], [], []>} : vector<8x8xf32>, vector<8x2560xf32>, vector<8x2560xf32> -> vector<8x2560xf32>
    %33 = arith.addf %28, %32 : vector<8x2560xf32>
    %c0_31 = arith.constant 0 : index
    %c38 = arith.constant 38 : index
    %34 = vector.load %arg1[%c0_31, %c38] : memref<8x2688xf32, #tpu.memory_space<vmem>>, vector<8x2560xf32>
    %c7 = arith.constant 7 : index
    %c0_32 = arith.constant 0 : index
    %c0_33 = arith.constant 0 : index
    %35 = vector.load %arg0[%c7, %c0_32, %c0_33] : memref<16x8x8xf32, #tpu.memory_space<vmem>>, vector<1x8x8xf32>
    %36 = vector.shape_cast %35 : vector<1x8x8xf32> to vector<8x8xf32>
    %cst_34 = arith.constant dense<0.000000e+00> : vector<8x2560xf32>
    %37 = tpu.matmul %36, %34, %cst_34 {dimension_numbers = #tpu.dot_dimension_numbers<[1], [0], [0], [1], [0, 0, 1, 1], [], []>} : vector<8x8xf32>, vector<8x2560xf32>, vector<8x2560xf32> -> vector<8x2560xf32>
    %38 = arith.addf %33, %37 : vector<8x2560xf32>
    %c0_35 = arith.constant 0 : index
    %c70 = arith.constant 70 : index
    %39 = vector.load %arg1[%c0_35, %c70] : memref<8x2688xf32, #tpu.memory_space<vmem>>, vector<8x2560xf32>
    %c8 = arith.constant 8 : index
    %c0_36 = arith.constant 0 : index
    %c0_37 = arith.constant 0 : index
    %40 = vector.load %arg0[%c8, %c0_36, %c0_37] : memref<16x8x8xf32, #tpu.memory_space<vmem>>, vector<1x8x8xf32>
    %41 = vector.shape_cast %40 : vector<1x8x8xf32> to vector<8x8xf32>
    %cst_38 = arith.constant dense<0.000000e+00> : vector<8x2560xf32>
    %42 = tpu.matmul %41, %39, %cst_38 {dimension_numbers = #tpu.dot_dimension_numbers<[1], [0], [0], [1], [0, 0, 1, 1], [], []>} : vector<8x8xf32>, vector<8x2560xf32>, vector<8x2560xf32> -> vector<8x2560xf32>
    %43 = arith.addf %38, %42 : vector<8x2560xf32>
    %c0_39 = arith.constant 0 : index
    %c71 = arith.constant 71 : index
    %44 = vector.load %arg1[%c0_39, %c71] : memref<8x2688xf32, #tpu.memory_space<vmem>>, vector<8x2560xf32>
    %c9 = arith.constant 9 : index
    %c0_40 = arith.constant 0 : index
    %c0_41 = arith.constant 0 : index
    %45 = vector.load %arg0[%c9, %c0_40, %c0_41] : memref<16x8x8xf32, #tpu.memory_space<vmem>>, vector<1x8x8xf32>
    %46 = vector.shape_cast %45 : vector<1x8x8xf32> to vector<8x8xf32>
    %cst_42 = arith.constant dense<0.000000e+00> : vector<8x2560xf32>
    %47 = tpu.matmul %46, %44, %cst_42 {dimension_numbers = #tpu.dot_dimension_numbers<[1], [0], [0], [1], [0, 0, 1, 1], [], []>} : vector<8x8xf32>, vector<8x2560xf32>, vector<8x2560xf32> -> vector<8x2560xf32>
    %48 = arith.addf %43, %47 : vector<8x2560xf32>
    %c0_43 = arith.constant 0 : index
    %c72 = arith.constant 72 : index
    %49 = vector.load %arg1[%c0_43, %c72] : memref<8x2688xf32, #tpu.memory_space<vmem>>, vector<8x2560xf32>
    %c10 = arith.constant 10 : index
    %c0_44 = arith.constant 0 : index
    %c0_45 = arith.constant 0 : index
    %50 = vector.load %arg0[%c10, %c0_44, %c0_45] : memref<16x8x8xf32, #tpu.memory_space<vmem>>, vector<1x8x8xf32>
    %51 = vector.shape_cast %50 : vector<1x8x8xf32> to vector<8x8xf32>
    %cst_46 = arith.constant dense<0.000000e+00> : vector<8x2560xf32>
    %52 = tpu.matmul %51, %49, %cst_46 {dimension_numbers = #tpu.dot_dimension_numbers<[1], [0], [0], [1], [0, 0, 1, 1], [], []>} : vector<8x8xf32>, vector<8x2560xf32>, vector<8x2560xf32> -> vector<8x2560xf32>
    %53 = arith.addf %48, %52 : vector<8x2560xf32>
    %c0_47 = arith.constant 0 : index
    %c73 = arith.constant 73 : index
    %54 = vector.load %arg1[%c0_47, %c73] : memref<8x2688xf32, #tpu.memory_space<vmem>>, vector<8x2560xf32>
    %c11 = arith.constant 11 : index
    %c0_48 = arith.constant 0 : index
    %c0_49 = arith.constant 0 : index
    %55 = vector.load %arg0[%c11, %c0_48, %c0_49] : memref<16x8x8xf32, #tpu.memory_space<vmem>>, vector<1x8x8xf32>
    %56 = vector.shape_cast %55 : vector<1x8x8xf32> to vector<8x8xf32>
    %cst_50 = arith.constant dense<0.000000e+00> : vector<8x2560xf32>
    %57 = tpu.matmul %56, %54, %cst_50 {dimension_numbers = #tpu.dot_dimension_numbers<[1], [0], [0], [1], [0, 0, 1, 1], [], []>} : vector<8x8xf32>, vector<8x2560xf32>, vector<8x2560xf32> -> vector<8x2560xf32>
    %58 = arith.addf %53, %57 : vector<8x2560xf32>
    %c0_51 = arith.constant 0 : index
    %c105 = arith.constant 105 : index
    %59 = vector.load %arg1[%c0_51, %c105] : memref<8x2688xf32, #tpu.memory_space<vmem>>, vector<8x2560xf32>
    %c12 = arith.constant 12 : index
    %c0_52 = arith.constant 0 : index
    %c0_53 = arith.constant 0 : index
    %60 = vector.load %arg0[%c12, %c0_52, %c0_53] : memref<16x8x8xf32, #tpu.memory_space<vmem>>, vector<1x8x8xf32>
    %61 = vector.shape_cast %60 : vector<1x8x8xf32> to vector<8x8xf32>
    %cst_54 = arith.constant dense<0.000000e+00> : vector<8x2560xf32>
    %62 = tpu.matmul %61, %59, %cst_54 {dimension_numbers = #tpu.dot_dimension_numbers<[1], [0], [0], [1], [0, 0, 1, 1], [], []>} : vector<8x8xf32>, vector<8x2560xf32>, vector<8x2560xf32> -> vector<8x2560xf32>
    %63 = arith.addf %58, %62 : vector<8x2560xf32>
    %c0_55 = arith.constant 0 : index
    %c106 = arith.constant 106 : index
    %64 = vector.load %arg1[%c0_55, %c106] : memref<8x2688xf32, #tpu.memory_space<vmem>>, vector<8x2560xf32>
    %c13 = arith.constant 13 : index
    %c0_56 = arith.constant 0 : index
    %c0_57 = arith.constant 0 : index
    %65 = vector.load %arg0[%c13, %c0_56, %c0_57] : memref<16x8x8xf32, #tpu.memory_space<vmem>>, vector<1x8x8xf32>
    %66 = vector.shape_cast %65 : vector<1x8x8xf32> to vector<8x8xf32>
    %cst_58 = arith.constant dense<0.000000e+00> : vector<8x2560xf32>
    %67 = tpu.matmul %66, %64, %cst_58 {dimension_numbers = #tpu.dot_dimension_numbers<[1], [0], [0], [1], [0, 0, 1, 1], [], []>} : vector<8x8xf32>, vector<8x2560xf32>, vector<8x2560xf32> -> vector<8x2560xf32>
    %68 = arith.addf %63, %67 : vector<8x2560xf32>
    %c0_59 = arith.constant 0 : index
    %c107 = arith.constant 107 : index
    %69 = vector.load %arg1[%c0_59, %c107] : memref<8x2688xf32, #tpu.memory_space<vmem>>, vector<8x2560xf32>
    %c14 = arith.constant 14 : index
    %c0_60 = arith.constant 0 : index
    %c0_61 = arith.constant 0 : index
    %70 = vector.load %arg0[%c14, %c0_60, %c0_61] : memref<16x8x8xf32, #tpu.memory_space<vmem>>, vector<1x8x8xf32>
    %71 = vector.shape_cast %70 : vector<1x8x8xf32> to vector<8x8xf32>
    %cst_62 = arith.constant dense<0.000000e+00> : vector<8x2560xf32>
    %72 = tpu.matmul %71, %69, %cst_62 {dimension_numbers = #tpu.dot_dimension_numbers<[1], [0], [0], [1], [0, 0, 1, 1], [], []>} : vector<8x8xf32>, vector<8x2560xf32>, vector<8x2560xf32> -> vector<8x2560xf32>
    %73 = arith.addf %68, %72 : vector<8x2560xf32>
    %c0_63 = arith.constant 0 : index
    %c108 = arith.constant 108 : index
    %74 = vector.load %arg1[%c0_63, %c108] : memref<8x2688xf32, #tpu.memory_space<vmem>>, vector<8x2560xf32>
    %c15 = arith.constant 15 : index
    %c0_64 = arith.constant 0 : index
    %c0_65 = arith.constant 0 : index
    %75 = vector.load %arg0[%c15, %c0_64, %c0_65] : memref<16x8x8xf32, #tpu.memory_space<vmem>>, vector<1x8x8xf32>
    %76 = vector.shape_cast %75 : vector<1x8x8xf32> to vector<8x8xf32>
    %cst_66 = arith.constant dense<0.000000e+00> : vector<8x2560xf32>
    %77 = tpu.matmul %76, %74, %cst_66 {dimension_numbers = #tpu.dot_dimension_numbers<[1], [0], [0], [1], [0, 0, 1, 1], [], []>} : vector<8x8xf32>, vector<8x2560xf32>, vector<8x2560xf32> -> vector<8x2560xf32>
    %78 = arith.addf %73, %77 : vector<8x2560xf32>
    %c0_67 = arith.constant 0 : index
    %c0_68 = arith.constant 0 : index
    %79 = vector.load %arg2[%c0_67, %c0_68] : memref<8x1xf32, #tpu.memory_space<vmem>>, vector<8x1xf32>
    %80 = vector.broadcast %79 : vector<8x1xf32> to vector<8x2560xf32>
    %81 = arith.addf %78, %80 : vector<8x2560xf32>
    %82 = math.tanh %81 : vector<8x2560xf32>
    %c0_69 = arith.constant 0 : index
    %c0_70 = arith.constant 0 : index
    %83 = vector.load %arg3[%c0_69, %c0_70] : memref<8x2560xf32, #tpu.memory_space<vmem>>, vector<8x2560xf32>
    tpu.vector_store %arg3[%c0_69, %c0_70], %82 {strides = array<i32>} : memref<8x2560xf32, #tpu.memory_space<vmem>>, vector<8x2560xf32>,
    return
  }
}

</mosaic_0001>

<llo_original>
// kernel: netg_forward.3
$region0: #{netg_forward.3}
  #allocation0 [shape = 'u32[]', space=smem, size = 0x4, offset = 0x4, fixed_abs, tag = 'smem constant byte address 0x4 - core index']
  #allocation1 [shape = 'u32[72,128]{1,0:T(1,128)}', space=vmem, size = 0x9000, scoped, tag = 'internal scratch']
  %s0 = inlined_call_operand.vmem [shape: f32[16,16,8], index: 0, kind: input, shape index: {}]
  %s1 = inlined_call_operand.vmem [shape: f32[8,384], index: 1, kind: input, shape index: {}]
  %s2 = inlined_call_operand.vmem [shape: f32[16,1], index: 2, kind: input, shape index: {}]
  %s3 = inlined_call_operand.vmem [shape: f32[16,1], index: 3, kind: input, shape index: {}]
  %s4 = inlined_call_operand.vmem [shape: f32[16,1], index: 4, kind: input, shape index: {}]
  %s5 = inlined_call_operand.hbm [shape: f32[1,256], index: 5, kind: input, shape index: {}]
  %s6 = inlined_call_operand.vmem [shape: f32[16,256], index: 6, kind: output, shape index: {}]
  %s7 = sld [smem:[#allocation0]]
  $region38: #{netg_forward.3} parent=0
    _
  %s9 = ssub.s32 1, %s7
  %s10 = scalar_select 0, %s9, %s7
  $region1: #{netg_forward.3} parent=0
    #allocation2 [shape = 'u8[1024]{0}', space=vmem, size = 0x400, scoped, tag = 'input window, operand 5, single buffered']
    #allocation3 [shape = 's32[1]{0}', space=sflag, size = 0x4, scoped, tag = 'scoped memory for netg_forward.3']
    %11 = vsyncpa [#allocation3], 0
    // Predicated region
    $region2: #{netg_forward.3} parent=1 // pred_check
      _
    $region3: #{netg_forward.3} parent=1 // pred_check_branch
      %13 = sbr.rel (0) target = $region5
    $region4: #{netg_forward.3} parent=1 // pred_region
      _
    $region5: #{netg_forward.3} parent=1 // pred_fallthru
      _
    // Predicated region
    $region6: #{netg_forward.3} parent=1 // pred_check
      _
    $region7: #{netg_forward.3} parent=1 // pred_check_branch
      %15 = sbr.rel (0) target = $region9
    $region8: #{netg_forward.3} parent=1 // pred_region
      _
    $region9: #{netg_forward.3} parent=1 // pred_fallthru
      _
    // Predicated region
    $region10: #{netg_forward.3} parent=1 // pred_check
      _
    $region11: #{netg_forward.3} parent=1 // pred_check_branch
      %17 = sbr.rel (0) target = $region13
    $region12: #{netg_forward.3} parent=1 // pred_region
      _
    $region13: #{netg_forward.3} parent=1 // pred_fallthru
      _
    // Predicated region
    $region14: #{netg_forward.3} parent=1 // pred_check
      _
    $region15: #{netg_forward.3} parent=1 // pred_check_branch
      %19 = sbr.rel (0) target = $region17
    $region16: #{netg_forward.3} parent=1 // pred_region
      _
    $region17: #{netg_forward.3} parent=1 // pred_fallthru
      _
    // Predicated region
    $region18: #{netg_forward.3} parent=1 // pred_check
      _
    $region19: #{netg_forward.3} parent=1 // pred_check_branch
      %21 = sbr.rel (0) target = $region21
    $region20: #{netg_forward.3} parent=1 // pred_region
      _
    $region21: #{netg_forward.3} parent=1 // pred_fallthru
      _
    // Predicated region
    $region22: #{netg_forward.3} parent=1 // pred_check
      _
    $region23: #{netg_forward.3} parent=1 // pred_check_branch
      %23 = sbr.rel (0) target = $region25
    $region24: #{netg_forward.3} parent=1 // pred_region
      %25 = vsyncadd [#allocation3], 0
      %s27 = sshll.u32 %s5, 4
      %s28 = int_to_ptr.hbm [resolvable:$true] %s27
      %s29 = sshll.u32 [#allocation2], 4
      %s30 = int_to_ptr.vmem [resolvable:$true] %s29
      %32 = dma.hbm_to_vmem [thread:$0]  %s28, 32, %s30, [#allocation3]
    $region25: #{netg_forward.3} parent=1 // pred_fallthru
      _
    // Predicated region
    $region26: #{netg_forward.3} parent=1 // pred_check
      _
    $region27: #{netg_forward.3} parent=1 // pred_check_branch
      %34 = sbr.rel (0) target = $region29
    $region28: #{netg_forward.3} parent=1 // pred_region
      %36 = dma.done [#allocation3], 32
    $region29: #{netg_forward.3} parent=1 // pred_fallthru
      _
    %v37 = vld [vmem:[%s1] sm:$0xff]
    %v38 = vld [vmem:[%s1 + $0x8] sm:$0xff]
    %v39 = vld [vmem:[%s0] sm:$0xff]
    %v40 = vld [vmem:[%s0 + $0x8] sm:$0xff]
    %v41 = vld [vmem:[%s1] sm:$0xff]
    %v42 = vld [vmem:[%s1 + $0x8] sm:$0xff]
    %v43 = vld [vmem:[%s1 + $0x10] sm:$0xff]
    %s44 = scalar_lea.vmem %s0, 16
    %v45 = vld [vmem:[%s44] sm:$0xff]
    %v46 = vld [vmem:[%s44 + $0x8] sm:$0xff]
    %50 = vrot.lane.b32.xlu0 %v41, 127
    %v51 = vpop.permute.xlu0 %50
    %52 = vrot.lane.b32.xlu0 %v42, 127
    %v53 = vpop.permute.xlu0 %52
    %54 = vrot.lane.b32.xlu0 %v43, 127
    %v55 = vpop.permute.xlu0 %54
    %vm56 = vcmask 1039360
    %v57 = vsel %vm56, %v51, %v53
    %v58 = vsel %vm56, %v53, %v55
    %vm61 = vcmask 64512
    %v63 = vsel %vm61, %v45, 0
    %v66 = vsel %vm61, %v46, 0
    %68 = vmatpush.msra.mxu0 0.0
    %69 = vmatpush.msra.mxu0 0.0
    %70 = vmatpush.msra.mxu0 0.0
    %71 = vmatpush.msra.mxu0 0.0
    %72 = vmatpush.msra.mxu0 0.0
    %73 = vmatpush.msra.mxu0 0.0
    %74 = vmatpush.msra.mxu0 0.0
    %75 = vmatpush.msra.mxu0 0.0
    %76 = vmatpush.msra.mxu0 0.0
    %77 = vmatpush.msra.mxu0 0.0
    %78 = vmatpush.msra.mxu0 0.0
    %79 = vmatpush.msra.mxu0 0.0
    %80 = vmatpush.msra.mxu0 0.0
    %81 = vmatpush.msra.mxu0 0.0
    %82 = vmatpush.msra.mxu0 0.0
    %83 = vmatpush.msra.mxu0 %v57
    %84 = vmatmul.f32.gmra.mxu0 %v63
    %v85 = vpop.f32.mrf.mxu0
    %v86 = vadd.f32 0.0, %v85
    %87 = vmatmul.f32.gmra.mxu0 %v66
    %v88 = vpop.f32.mrf.mxu0
    %v89 = vadd.f32 0.0, %v88
    %90 = vdwg.mxu0
    %91 = vmatpush.msra.mxu0 0.0
    %92 = vmatpush.msra.mxu0 0.0
    %93 = vmatpush.msra.mxu0 0.0
    %94 = vmatpush.msra.mxu0 0.0
    %95 = vmatpush.msra.mxu0 0.0
    %96 = vmatpush.msra.mxu0 0.0
    %97 = vmatpush.msra.mxu0 0.0
    %98 = vmatpush.msra.mxu0 0.0
    %99 = vmatpush.msra.mxu0 0.0
    %100 = vmatpush.msra.mxu0 0.0
    %101 = vmatpush.msra.mxu0 0.0
    %102 = vmatpush.msra.mxu0 0.0
    %103 = vmatpush.msra.mxu0 0.0
    %104 = vmatpush.msra.mxu0 0.0
    %105 = vmatpush.msra.mxu0 0.0
    %106 = vmatpush.msra.mxu0 %v58
    %107 = vmatmul.f32.gmra.mxu0 %v63
    %v108 = vpop.f32.mrf.mxu0
    %v109 = vadd.f32 0.0, %v108
    %110 = vmatmul.f32.gmra.mxu0 %v66
    %v111 = vpop.f32.mrf.mxu0
    %v112 = vadd.f32 0.0, %v111
    %113 = vdwg.mxu0
    %v115 = vsel %vm61, %v39, 0
    %v118 = vsel %vm61, %v40, 0
    %120 = vmatpush.msra.mxu0 0.0
    %121 = vmatpush.msra.mxu0 0.0
    %122 = vmatpush.msra.mxu0 0.0
    %123 = vmatpush.msra.mxu0 0.0
    %124 = vmatpush.msra.mxu0 0.0
    %125 = vmatpush.msra.mxu0 0.0
    %126 = vmatpush.msra.mxu0 0.0
    %127 = vmatpush.msra.mxu0 0.0
    %128 = vmatpush.msra.mxu0 0.0
    %129 = vmatpush.msra.mxu0 0.0
    %130 = vmatpush.msra.mxu0 0.0
    %131 = vmatpush.msra.mxu0 0.0
    %132 = vmatpush.msra.mxu0 0.0
    %133 = vmatpush.msra.mxu0 0.0
    %134 = vmatpush.msra.mxu0 0.0
    %135 = vmatpush.msra.mxu0 %v37
    %136 = vmatmul.f32.gmra.mxu0 %v115
    %v137 = vpop.f32.mrf.mxu0
    %v138 = vadd.f32 %v86, %v137
    %139 = vmatmul.f32.gmra.mxu0 %v118
    %v140 = vpop.f32.mrf.mxu0
    %v141 = vadd.f32 %v89, %v140
    %142 = vdwg.mxu0
    %143 = vmatpush.msra.mxu0 0.0
    %144 = vmatpush.msra.mxu0 0.0
    %145 = vmatpush.msra.mxu0 0.0
    %146 = vmatpush.msra.mxu0 0.0
    %147 = vmatpush.msra.mxu0 0.0
    %148 = vmatpush.msra.mxu0 0.0
    %149 = vmatpush.msra.mxu0 0.0
    %150 = vmatpush.msra.mxu0 0.0
    %151 = vmatpush.msra.mxu0 0.0
    %152 = vmatpush.msra.mxu0 0.0
    %153 = vmatpush.msra.mxu0 0.0
    %154 = vmatpush.msra.mxu0 0.0
    %155 = vmatpush.msra.mxu0 0.0
    %156 = vmatpush.msra.mxu0 0.0
    %157 = vmatpush.msra.mxu0 0.0
    %158 = vmatpush.msra.mxu0 %v38
    %159 = vmatmul.f32.gmra.mxu0 %v115
    %v160 = vpop.f32.mrf.mxu0
    %v161 = vadd.f32 %v109, %v160
    %162 = vmatmul.f32.gmra.mxu0 %v118
    %v163 = vpop.f32.mrf.mxu0
    %v164 = vadd.f32 %v112, %v163
    %165 = vdwg.mxu0
    %s166 = scalar_lea.vmem %s0, 32
    %v167 = vld [vmem:[%s166] sm:$0xff]
    %v168 = vld [vmem:[%s166 + $0x8] sm:$0xff]
    %169 = vrot.lane.b32.xlu0 %v41, 126
    %v170 = vpop.permute.xlu0 %169
    %171 = vrot.lane.b32.xlu0 %v42, 126
    %v172 = vpop.permute.xlu0 %171
    %173 = vrot.lane.b32.xlu0 %v43, 126
    %v174 = vpop.permute.xlu0 %173
    %vm175 = vcmask 1031168
    %v176 = vsel %vm175, %v170, %v172
    %v177 = vsel %vm175, %v172, %v174
    %v181 = vsel %vm61, %v167, 0
    %v184 = vsel %vm61, %v168, 0
    %186 = vmatpush.msra.mxu0 0.0
    %187 = vmatpush.msra.mxu0 0.0
    %188 = vmatpush.msra.mxu0 0.0
    %189 = vmatpush.msra.mxu0 0.0
    %190 = vmatpush.msra.mxu0 0.0
    %191 = vmatpush.msra.mxu0 0.0
    %192 = vmatpush.msra.mxu0 0.0
    %193 = vmatpush.msra.mxu0 0.0
    %194 = vmatpush.msra.mxu0 0.0
    %195 = vmatpush.msra.mxu0 0.0
    %196 = vmatpush.msra.mxu0 0.0
    %197 = vmatpush.msra.mxu0 0.0
    %198 = vmatpush.msra.mxu0 0.0
    %199 = vmatpush.msra.mxu0 0.0
    %200 = vmatpush.msra.mxu0 0.0
    %201 = vmatpush.msra.mxu0 %v176
    %202 = vmatmul.f32.gmra.mxu0 %v181
    %v203 = vpop.f32.mrf.mxu0
    %v204 = vadd.f32 0.0, %v203
    %205 = vmatmul.f32.gmra.mxu0 %v184
    %v206 = vpop.f32.mrf.mxu0
    %v207 = vadd.f32 0.0, %v206
    %208 = vdwg.mxu0
    %209 = vmatpush.msra.mxu0 0.0
    %210 = vmatpush.msra.mxu0 0.0
    %211 = vmatpush.msra.mxu0 0.0
    %212 = vmatpush.msra.mxu0 0.0
    %213 = vmatpush.msra.mxu0 0.0
    %214 = vmatpush.msra.mxu0 0.0
    %215 = vmatpush.msra.mxu0 0.0
    %216 = vmatpush.msra.mxu0 0.0
    %217 = vmatpush.msra.mxu0 0.0
    %218 = vmatpush.msra.mxu0 0.0
    %219 = vmatpush.msra.mxu0 0.0
    %220 = vmatpush.msra.mxu0 0.0
    %221 = vmatpush.msra.mxu0 0.0
    %222 = vmatpush.msra.mxu0 0.0
    %223 = vmatpush.msra.mxu0 0.0
    %224 = vmatpush.msra.mxu0 %v177
    %225 = vmatmul.f32.gmra.mxu0 %v181
    %v226 = vpop.f32.mrf.mxu0
    %v227 = vadd.f32 0.0, %v226
    %228 = vmatmul.f32.gmra.mxu0 %v184
    %v229 = vpop.f32.mrf.mxu0
    %v230 = vadd.f32 0.0, %v229
    %231 = vdwg.mxu0
    %v232 = vadd.f32 %v138, %v204
    %v233 = vadd.f32 %v161, %v227
    %v234 = vadd.f32 %v141, %v207
    %v235 = vadd.f32 %v164, %v230
    %s236 = scalar_lea.vmem %s0, 48
    %v237 = vld [vmem:[%s236] sm:$0xff]
    %v238 = vld [vmem:[%s236 + $0x8] sm:$0xff]
    %239 = vrot.lane.b32.xlu0 %v41, 125
    %v240 = vpop.permute.xlu0 %239
    %241 = vrot.lane.b32.xlu0 %v42, 125
    %v242 = vpop.permute.xlu0 %241
    %243 = vrot.lane.b32.xlu0 %v43, 125
    %v244 = vpop.permute.xlu0 %243
    %vm245 = vcmask 1022976
    %v246 = vsel %vm245, %v240, %v242
    %v247 = vsel %vm245, %v242, %v244
    %v251 = vsel %vm61, %v237, 0
    %v254 = vsel %vm61, %v238, 0
    %256 = vmatpush.msra.mxu0 0.0
    %257 = vmatpush.msra.mxu0 0.0
    %258 = vmatpush.msra.mxu0 0.0
    %259 = vmatpush.msra.mxu0 0.0
    %260 = vmatpush.msra.mxu0 0.0
    %261 = vmatpush.msra.mxu0 0.0
    %262 = vmatpush.msra.mxu0 0.0
    %263 = vmatpush.msra.mxu0 0.0
    %264 = vmatpush.msra.mxu0 0.0
    %265 = vmatpush.msra.mxu0 0.0
    %266 = vmatpush.msra.mxu0 0.0
    %267 = vmatpush.msra.mxu0 0.0
    %268 = vmatpush.msra.mxu0 0.0
    %269 = vmatpush.msra.mxu0 0.0
    %270 = vmatpush.msra.mxu0 0.0
    %271 = vmatpush.msra.mxu0 %v246
    %272 = vmatmul.f32.gmra.mxu0 %v251
    %v273 = vpop.f32.mrf.mxu0
    %v274 = vadd.f32 0.0, %v273
    %275 = vmatmul.f32.gmra.mxu0 %v254
    %v276 = vpop.f32.mrf.mxu0
    %v277 = vadd.f32 0.0, %v276
    %278 = vdwg.mxu0
    %279 = vmatpush.msra.mxu0 0.0
    %280 = vmatpush.msra.mxu0 0.0
    %281 = vmatpush.msra.mxu0 0.0
    %282 = vmatpush.msra.mxu0 0.0
    %283 = vmatpush.msra.mxu0 0.0
    %284 = vmatpush.msra.mxu0 0.0
    %285 = vmatpush.msra.mxu0 0.0
    %286 = vmatpush.msra.mxu0 0.0
    %287 = vmatpush.msra.mxu0 0.0
    %288 = vmatpush.msra.mxu0 0.0
    %289 = vmatpush.msra.mxu0 0.0
    %290 = vmatpush.msra.mxu0 0.0
    %291 = vmatpush.msra.mxu0 0.0
    %292 = vmatpush.msra.mxu0 0.0
    %293 = vmatpush.msra.mxu0 0.0
    %294 = vmatpush.msra.mxu0 %v247
    %295 = vmatmul.f32.gmra.mxu0 %v251
    %v296 = vpop.f32.mrf.mxu0
    %v297 = vadd.f32 0.0, %v296
    %298 = vmatmul.f32.gmra.mxu0 %v254
    %v299 = vpop.f32.mrf.mxu0
    %v300 = vadd.f32 0.0, %v299
    %301 = vdwg.mxu0
    %v302 = vadd.f32 %v232, %v274
    %v303 = vadd.f32 %v233, %v297
    %v304 = vadd.f32 %v234, %v277
    %v305 = vadd.f32 %v235, %v300
    %s306 = scalar_lea.vmem %s0, 64
    %v307 = vld [vmem:[%s306] sm:$0xff]
    %v308 = vld [vmem:[%s306 + $0x8] sm:$0xff]
    %309 = vrot.lane.b32.xlu0 %v41, 117
    %v310 = vpop.permute.xlu0 %309
    %311 = vrot.lane.b32.xlu0 %v42, 117
    %v312 = vpop.permute.xlu0 %311
    %313 = vrot.lane.b32.xlu0 %v43, 117
    %v314 = vpop.permute.xlu0 %313
    %vm315 = vcmask 957440
    %v316 = vsel %vm315, %v310, %v312
    %v317 = vsel %vm315, %v312, %v314
    %v321 = vsel %vm61, %v307, 0
    %v324 = vsel %vm61, %v308, 0
    %326 = vmatpush.msra.mxu0 0.0
    %327 = vmatpush.msra.mxu0 0.0
    %328 = vmatpush.msra.mxu0 0.0
    %329 = vmatpush.msra.mxu0 0.0
    %330 = vmatpush.msra.mxu0 0.0
    %331 = vmatpush.msra.mxu0 0.0
    %332 = vmatpush.msra.mxu0 0.0
    %333 = vmatpush.msra.mxu0 0.0
    %334 = vmatpush.msra.mxu0 0.0
    %335 = vmatpush.msra.mxu0 0.0
    %336 = vmatpush.msra.mxu0 0.0
    %337 = vmatpush.msra.mxu0 0.0
    %338 = vmatpush.msra.mxu0 0.0
    %339 = vmatpush.msra.mxu0 0.0
    %340 = vmatpush.msra.mxu0 0.0
    %341 = vmatpush.msra.mxu0 %v316
    %342 = vmatmul.f32.gmra.mxu0 %v321
    %v343 = vpop.f32.mrf.mxu0
    %v344 = vadd.f32 0.0, %v343
    %345 = vmatmul.f32.gmra.mxu0 %v324
    %v346 = vpop.f32.mrf.mxu0
    %v347 = vadd.f32 0.0, %v346
    %348 = vdwg.mxu0
    %349 = vmatpush.msra.mxu0 0.0
    %350 = vmatpush.msra.mxu0 0.0
    %351 = vmatpush.msra.mxu0 0.0
    %352 = vmatpush.msra.mxu0 0.0
    %353 = vmatpush.msra.mxu0 0.0
    %354 = vmatpush.msra.mxu0 0.0
    %355 = vmatpush.msra.mxu0 0.0
    %356 = vmatpush.msra.mxu0 0.0
    %357 = vmatpush.msra.mxu0 0.0
    %358 = vmatpush.msra.mxu0 0.0
    %359 = vmatpush.msra.mxu0 0.0
    %360 = vmatpush.msra.mxu0 0.0
    %361 = vmatpush.msra.mxu0 0.0
    %362 = vmatpush.msra.mxu0 0.0
    %363 = vmatpush.msra.mxu0 0.0
    %364 = vmatpush.msra.mxu0 %v317
    %365 = vmatmul.f32.gmra.mxu0 %v321
    %v366 = vpop.f32.mrf.mxu0
    %v367 = vadd.f32 0.0, %v366
    %368 = vmatmul.f32.gmra.mxu0 %v324
    %v369 = vpop.f32.mrf.mxu0
    %v370 = vadd.f32 0.0, %v369
    %371 = vdwg.mxu0
    %v372 = vadd.f32 %v302, %v344
    %v373 = vadd.f32 %v303, %v367
    %v374 = vadd.f32 %v304, %v347
    %v375 = vadd.f32 %v305, %v370
    %s376 = scalar_lea.vmem %s0, 80
    %v377 = vld [vmem:[%s376] sm:$0xff]
    %v378 = vld [vmem:[%s376 + $0x8] sm:$0xff]
    %379 = vrot.lane.b32.xlu0 %v41, 116
    %v380 = vpop.permute.xlu0 %379
    %381 = vrot.lane.b32.xlu0 %v42, 116
    %v382 = vpop.permute.xlu0 %381
    %383 = vrot.lane.b32.xlu0 %v43, 116
    %v384 = vpop.permute.xlu0 %383
    %vm385 = vcmask 949248
    %v386 = vsel %vm385, %v380, %v382
    %v387 = vsel %vm385, %v382, %v384
    %v391 = vsel %vm61, %v377, 0
    %v394 = vsel %vm61, %v378, 0
    %396 = vmatpush.msra.mxu0 0.0
    %397 = vmatpush.msra.mxu0 0.0
    %398 = vmatpush.msra.mxu0 0.0
    %399 = vmatpush.msra.mxu0 0.0
    %400 = vmatpush.msra.mxu0 0.0
    %401 = vmatpush.msra.mxu0 0.0
    %402 = vmatpush.msra.mxu0 0.0
    %403 = vmatpush.msra.mxu0 0.0
    %404 = vmatpush.msra.mxu0 0.0
    %405 = vmatpush.msra.mxu0 0.0
    %406 = vmatpush.msra.mxu0 0.0
    %407 = vmatpush.msra.mxu0 0.0
    %408 = vmatpush.msra.mxu0 0.0
    %409 = vmatpush.msra.mxu0 0.0
    %410 = vmatpush.msra.mxu0 0.0
    %411 = vmatpush.msra.mxu0 %v386
    %412 = vmatmul.f32.gmra.mxu0 %v391
    %v413 = vpop.f32.mrf.mxu0
    %v414 = vadd.f32 0.0, %v413
    %415 = vmatmul.f32.gmra.mxu0 %v394
    %v416 = vpop.f32.mrf.mxu0
    %v417 = vadd.f32 0.0, %v416
    %418 = vdwg.mxu0
    %419 = vmatpush.msra.mxu0 0.0
    %420 = vmatpush.msra.mxu0 0.0
    %421 = vmatpush.msra.mxu0 0.0
    %422 = vmatpush.msra.mxu0 0.0
    %423 = vmatpush.msra.mxu0 0.0
    %424 = vmatpush.msra.mxu0 0.0
    %425 = vmatpush.msra.mxu0 0.0
    %426 = vmatpush.msra.mxu0 0.0
    %427 = vmatpush.msra.mxu0 0.0
    %428 = vmatpush.msra.mxu0 0.0
    %429 = vmatpush.msra.mxu0 0.0
    %430 = vmatpush.msra.mxu0 0.0
    %431 = vmatpush.msra.mxu0 0.0
    %432 = vmatpush.msra.mxu0 0.0
    %433 = vmatpush.msra.mxu0 0.0
    %434 = vmatpush.msra.mxu0 %v387
    %435 = vmatmul.f32.gmra.mxu0 %v391
    %v436 = vpop.f32.mrf.mxu0
    %v437 = vadd.f32 0.0, %v436
    %438 = vmatmul.f32.gmra.mxu0 %v394
    %v439 = vpop.f32.mrf.mxu0
    %v440 = vadd.f32 0.0, %v439
    %441 = vdwg.mxu0
    %v442 = vadd.f32 %v372, %v414
    %v443 = vadd.f32 %v373, %v437
    %v444 = vadd.f32 %v374, %v417
    %v445 = vadd.f32 %v375, %v440
    %s446 = scalar_lea.vmem %s0, 96
    %v447 = vld [vmem:[%s446] sm:$0xff]
    %v448 = vld [vmem:[%s446 + $0x8] sm:$0xff]
    %449 = vrot.lane.b32.xlu0 %v41, 115
    %v450 = vpop.permute.xlu0 %449
    %451 = vrot.lane.b32.xlu0 %v42, 115
    %v452 = vpop.permute.xlu0 %451
    %453 = vrot.lane.b32.xlu0 %v43, 115
    %v454 = vpop.permute.xlu0 %453
    %vm455 = vcmask 941056
    %v456 = vsel %vm455, %v450, %v452
    %v457 = vsel %vm455, %v452, %v454
    %v461 = vsel %vm61, %v447, 0
    %v464 = vsel %vm61, %v448, 0
    %466 = vmatpush.msra.mxu0 0.0
    %467 = vmatpush.msra.mxu0 0.0
    %468 = vmatpush.msra.mxu0 0.0
    %469 = vmatpush.msra.mxu0 0.0
    %470 = vmatpush.msra.mxu0 0.0
    %471 = vmatpush.msra.mxu0 0.0
    %472 = vmatpush.msra.mxu0 0.0
    %473 = vmatpush.msra.mxu0 0.0
    %474 = vmatpush.msra.mxu0 0.0
    %475 = vmatpush.msra.mxu0 0.0
    %476 = vmatpush.msra.mxu0 0.0
    %477 = vmatpush.msra.mxu0 0.0
    %478 = vmatpush.msra.mxu0 0.0
    %479 = vmatpush.msra.mxu0 0.0
    %480 = vmatpush.msra.mxu0 0.0
    %481 = vmatpush.msra.mxu0 %v456
    %482 = vmatmul.f32.gmra.mxu0 %v461
    %v483 = vpop.f32.mrf.mxu0
    %v484 = vadd.f32 0.0, %v483
    %485 = vmatmul.f32.gmra.mxu0 %v464
    %v486 = vpop.f32.mrf.mxu0
    %v487 = vadd.f32 0.0, %v486
    %488 = vdwg.mxu0
    %489 = vmatpush.msra.mxu0 0.0
    %490 = vmatpush.msra.mxu0 0.0
    %491 = vmatpush.msra.mxu0 0.0
    %492 = vmatpush.msra.mxu0 0.0
    %493 = vmatpush.msra.mxu0 0.0
    %494 = vmatpush.msra.mxu0 0.0
    %495 = vmatpush.msra.mxu0 0.0
    %496 = vmatpush.msra.mxu0 0.0
    %497 = vmatpush.msra.mxu0 0.0
    %498 = vmatpush.msra.mxu0 0.0
    %499 = vmatpush.msra.mxu0 0.0
    %500 = vmatpush.msra.mxu0 0.0
    %501 = vmatpush.msra.mxu0 0.0
    %502 = vmatpush.msra.mxu0 0.0
    %503 = vmatpush.msra.mxu0 0.0
    %504 = vmatpush.msra.mxu0 %v457
    %505 = vmatmul.f32.gmra.mxu0 %v461
    %v506 = vpop.f32.mrf.mxu0
    %v507 = vadd.f32 0.0, %v506
    %508 = vmatmul.f32.gmra.mxu0 %v464
    %v509 = vpop.f32.mrf.mxu0
    %v510 = vadd.f32 0.0, %v509
    %511 = vdwg.mxu0
    %v512 = vadd.f32 %v442, %v484
    %v513 = vadd.f32 %v443, %v507
    %v514 = vadd.f32 %v444, %v487
    %v515 = vadd.f32 %v445, %v510
    %s516 = scalar_lea.vmem %s0, 112
    %v517 = vld [vmem:[%s516] sm:$0xff]
    %v518 = vld [vmem:[%s516 + $0x8] sm:$0xff]
    %519 = vrot.lane.b32.xlu0 %v41, 114
    %v520 = vpop.permute.xlu0 %519
    %521 = vrot.lane.b32.xlu0 %v42, 114
    %v522 = vpop.permute.xlu0 %521
    %523 = vrot.lane.b32.xlu0 %v43, 114
    %v524 = vpop.permute.xlu0 %523
    %vm525 = vcmask 932864
    %v526 = vsel %vm525, %v520, %v522
    %v527 = vsel %vm525, %v522, %v524
    %v531 = vsel %vm61, %v517, 0
    %v534 = vsel %vm61, %v518, 0
    %536 = vmatpush.msra.mxu0 0.0
    %537 = vmatpush.msra.mxu0 0.0
    %538 = vmatpush.msra.mxu0 0.0
    %539 = vmatpush.msra.mxu0 0.0
    %540 = vmatpush.msra.mxu0 0.0
    %541 = vmatpush.msra.mxu0 0.0
    %542 = vmatpush.msra.mxu0 0.0
    %543 = vmatpush.msra.mxu0 0.0
    %544 = vmatpush.msra.mxu0 0.0
    %545 = vmatpush.msra.mxu0 0.0
    %546 = vmatpush.msra.mxu0 0.0
    %547 = vmatpush.msra.mxu0 0.0
    %548 = vmatpush.msra.mxu0 0.0
    %549 = vmatpush.msra.mxu0 0.0
    %550 = vmatpush.msra.mxu0 0.0
    %551 = vmatpush.msra.mxu0 %v526
    %552 = vmatmul.f32.gmra.mxu0 %v531
    %v553 = vpop.f32.mrf.mxu0
    %v554 = vadd.f32 0.0, %v553
    %555 = vmatmul.f32.gmra.mxu0 %v534
    %v556 = vpop.f32.mrf.mxu0
    %v557 = vadd.f32 0.0, %v556
    %558 = vdwg.mxu0
    %559 = vmatpush.msra.mxu0 0.0
    %560 = vmatpush.msra.mxu0 0.0
    %561 = vmatpush.msra.mxu0 0.0
    %562 = vmatpush.msra.mxu0 0.0
    %563 = vmatpush.msra.mxu0 0.0
    %564 = vmatpush.msra.mxu0 0.0
    %565 = vmatpush.msra.mxu0 0.0
    %566 = vmatpush.msra.mxu0 0.0
    %567 = vmatpush.msra.mxu0 0.0
    %568 = vmatpush.msra.mxu0 0.0
    %569 = vmatpush.msra.mxu0 0.0
    %570 = vmatpush.msra.mxu0 0.0
    %571 = vmatpush.msra.mxu0 0.0
    %572 = vmatpush.msra.mxu0 0.0
    %573 = vmatpush.msra.mxu0 0.0
    %574 = vmatpush.msra.mxu0 %v527
    %575 = vmatmul.f32.gmra.mxu0 %v531
    %v576 = vpop.f32.mrf.mxu0
    %v577 = vadd.f32 0.0, %v576
    %578 = vmatmul.f32.gmra.mxu0 %v534
    %v579 = vpop.f32.mrf.mxu0
    %v580 = vadd.f32 0.0, %v579
    %581 = vdwg.mxu0
    %v582 = vadd.f32 %v512, %v554
    %v583 = vadd.f32 %v513, %v577
    %v584 = vadd.f32 %v514, %v557
    %v585 = vadd.f32 %v515, %v580
    %s586 = scalar_lea.vmem %s0, 128
    %v587 = vld [vmem:[%s586] sm:$0xff]
    %v588 = vld [vmem:[%s586 + $0x8] sm:$0xff]
    %589 = vrot.lane.b32.xlu0 %v41, 106
    %v590 = vpop.permute.xlu0 %589
    %591 = vrot.lane.b32.xlu0 %v42, 106
    %v592 = vpop.permute.xlu0 %591
    %593 = vrot.lane.b32.xlu0 %v43, 106
    %v594 = vpop.permute.xlu0 %593
    %vm595 = vcmask 867328
    %v596 = vsel %vm595, %v590, %v592
    %v597 = vsel %vm595, %v592, %v594
    %v601 = vsel %vm61, %v587, 0
    %v604 = vsel %vm61, %v588, 0
    %606 = vmatpush.msra.mxu0 0.0
    %607 = vmatpush.msra.mxu0 0.0
    %608 = vmatpush.msra.mxu0 0.0
    %609 = vmatpush.msra.mxu0 0.0
    %610 = vmatpush.msra.mxu0 0.0
    %611 = vmatpush.msra.mxu0 0.0
    %612 = vmatpush.msra.mxu0 0.0
    %613 = vmatpush.msra.mxu0 0.0
    %614 = vmatpush.msra.mxu0 0.0
    %615 = vmatpush.msra.mxu0 0.0
    %616 = vmatpush.msra.mxu0 0.0
    %617 = vmatpush.msra.mxu0 0.0
    %618 = vmatpush.msra.mxu0 0.0
    %619 = vmatpush.msra.mxu0 0.0
    %620 = vmatpush.msra.mxu0 0.0
    %621 = vmatpush.msra.mxu0 %v596
    %622 = vmatmul.f32.gmra.mxu0 %v601
    %v623 = vpop.f32.mrf.mxu0
    %v624 = vadd.f32 0.0, %v623
    %625 = vmatmul.f32.gmra.mxu0 %v604
    %v626 = vpop.f32.mrf.mxu0
    %v627 = vadd.f32 0.0, %v626
    %628 = vdwg.mxu0
    %629 = vmatpush.msra.mxu0 0.0
    %630 = vmatpush.msra.mxu0 0.0
    %631 = vmatpush.msra.mxu0 0.0
    %632 = vmatpush.msra.mxu0 0.0
    %633 = vmatpush.msra.mxu0 0.0
    %634 = vmatpush.msra.mxu0 0.0
    %635 = vmatpush.msra.mxu0 0.0
    %636 = vmatpush.msra.mxu0 0.0
    %637 = vmatpush.msra.mxu0 0.0
    %638 = vmatpush.msra.mxu0 0.0
    %639 = vmatpush.msra.mxu0 0.0
    %640 = vmatpush.msra.mxu0 0.0
    %641 = vmatpush.msra.mxu0 0.0
    %642 = vmatpush.msra.mxu0 0.0
    %643 = vmatpush.msra.mxu0 0.0
    %644 = vmatpush.msra.mxu0 %v597
    %645 = vmatmul.f32.gmra.mxu0 %v601
    %v646 = vpop.f32.mrf.mxu0
    %v647 = vadd.f32 0.0, %v646
    %648 = vmatmul.f32.gmra.mxu0 %v604
    %v649 = vpop.f32.mrf.mxu0
    %v650 = vadd.f32 0.0, %v649
    %651 = vdwg.mxu0
    %v652 = vadd.f32 %v582, %v624
    %v653 = vadd.f32 %v583, %v647
    %v654 = vadd.f32 %v584, %v627
    %v655 = vadd.f32 %v585, %v650
    %s656 = scalar_lea.vmem %s0, 144
    %v657 = vld [vmem:[%s656] sm:$0xff]
    %v658 = vld [vmem:[%s656 + $0x8] sm:$0xff]
    %659 = vrot.lane.b32.xlu0 %v41, 105
    %v660 = vpop.permute.xlu0 %659
    %661 = vrot.lane.b32.xlu0 %v42, 105
    %v662 = vpop.permute.xlu0 %661
    %663 = vrot.lane.b32.xlu0 %v43, 105
    %v664 = vpop.permute.xlu0 %663
    %vm665 = vcmask 859136
    %v666 = vsel %vm665, %v660, %v662
    %v667 = vsel %vm665, %v662, %v664
    %v671 = vsel %vm61, %v657, 0
    %v674 = vsel %vm61, %v658, 0
    %676 = vmatpush.msra.mxu0 0.0
    %677 = vmatpush.msra.mxu0 0.0
    %678 = vmatpush.msra.mxu0 0.0
    %679 = vmatpush.msra.mxu0 0.0
    %680 = vmatpush.msra.mxu0 0.0
    %681 = vmatpush.msra.mxu0 0.0
    %682 = vmatpush.msra.mxu0 0.0
    %683 = vmatpush.msra.mxu0 0.0
    %684 = vmatpush.msra.mxu0 0.0
    %685 = vmatpush.msra.mxu0 0.0
    %686 = vmatpush.msra.mxu0 0.0
    %687 = vmatpush.msra.mxu0 0.0
    %688 = vmatpush.msra.mxu0 0.0
    %689 = vmatpush.msra.mxu0 0.0
    %690 = vmatpush.msra.mxu0 0.0
    %691 = vmatpush.msra.mxu0 %v666
    %692 = vmatmul.f32.gmra.mxu0 %v671
    %v693 = vpop.f32.mrf.mxu0
    %v694 = vadd.f32 0.0, %v693
    %695 = vmatmul.f32.gmra.mxu0 %v674
    %v696 = vpop.f32.mrf.mxu0
    %v697 = vadd.f32 0.0, %v696
    %698 = vdwg.mxu0
    %699 = vmatpush.msra.mxu0 0.0
    %700 = vmatpush.msra.mxu0 0.0
    %701 = vmatpush.msra.mxu0 0.0
    %702 = vmatpush.msra.mxu0 0.0
    %703 = vmatpush.msra.mxu0 0.0
    %704 = vmatpush.msra.mxu0 0.0
    %705 = vmatpush.msra.mxu0 0.0
    %706 = vmatpush.msra.mxu0 0.0
    %707 = vmatpush.msra.mxu0 0.0
    %708 = vmatpush.msra.mxu0 0.0
    %709 = vmatpush.msra.mxu0 0.0
    %710 = vmatpush.msra.mxu0 0.0
    %711 = vmatpush.msra.mxu0 0.0
    %712 = vmatpush.msra.mxu0 0.0
    %713 = vmatpush.msra.mxu0 0.0
    %714 = vmatpush.msra.mxu0 %v667
    %715 = vmatmul.f32.gmra.mxu0 %v671
    %v716 = vpop.f32.mrf.mxu0
    %v717 = vadd.f32 0.0, %v716
    %718 = vmatmul.f32.gmra.mxu0 %v674
    %v719 = vpop.f32.mrf.mxu0
    %v720 = vadd.f32 0.0, %v719
    %721 = vdwg.mxu0
    %v722 = vadd.f32 %v652, %v694
    %v723 = vadd.f32 %v653, %v717
    %v724 = vadd.f32 %v654, %v697
    %v725 = vadd.f32 %v655, %v720
    %s726 = scalar_lea.vmem %s0, 160
    %v727 = vld [vmem:[%s726] sm:$0xff]
    %v728 = vld [vmem:[%s726 + $0x8] sm:$0xff]
    %729 = vrot.lane.b32.xlu0 %v41, 104
    %v730 = vpop.permute.xlu0 %729
    %731 = vrot.lane.b32.xlu0 %v42, 104
    %v732 = vpop.permute.xlu0 %731
    %733 = vrot.lane.b32.xlu0 %v43, 104
    %v734 = vpop.permute.xlu0 %733
    %vm735 = vcmask 850944
    %v736 = vsel %vm735, %v730, %v732
    %v737 = vsel %vm735, %v732, %v734
    %v741 = vsel %vm61, %v727, 0
    %v744 = vsel %vm61, %v728, 0
    %746 = vmatpush.msra.mxu0 0.0
    %747 = vmatpush.msra.mxu0 0.0
    %748 = vmatpush.msra.mxu0 0.0
    %749 = vmatpush.msra.mxu0 0.0
    %750 = vmatpush.msra.mxu0 0.0
    %751 = vmatpush.msra.mxu0 0.0
    %752 = vmatpush.msra.mxu0 0.0
    %753 = vmatpush.msra.mxu0 0.0
    %754 = vmatpush.msra.mxu0 0.0
    %755 = vmatpush.msra.mxu0 0.0
    %756 = vmatpush.msra.mxu0 0.0
    %757 = vmatpush.msra.mxu0 0.0
    %758 = vmatpush.msra.mxu0 0.0
    %759 = vmatpush.msra.mxu0 0.0
    %760 = vmatpush.msra.mxu0 0.0
    %761 = vmatpush.msra.mxu0 %v736
    %762 = vmatmul.f32.gmra.mxu0 %v741
    %v763 = vpop.f32.mrf.mxu0
    %v764 = vadd.f32 0.0, %v763
    %765 = vmatmul.f32.gmra.mxu0 %v744
    %v766 = vpop.f32.mrf.mxu0
    %v767 = vadd.f32 0.0, %v766
    %768 = vdwg.mxu0
    %769 = vmatpush.msra.mxu0 0.0
    %770 = vmatpush.msra.mxu0 0.0
    %771 = vmatpush.msra.mxu0 0.0
    %772 = vmatpush.msra.mxu0 0.0
    %773 = vmatpush.msra.mxu0 0.0
    %774 = vmatpush.msra.mxu0 0.0
    %775 = vmatpush.msra.mxu0 0.0
    %776 = vmatpush.msra.mxu0 0.0
    %777 = vmatpush.msra.mxu0 0.0
    %778 = vmatpush.msra.mxu0 0.0
    %779 = vmatpush.msra.mxu0 0.0
    %780 = vmatpush.msra.mxu0 0.0
    %781 = vmatpush.msra.mxu0 0.0
    %782 = vmatpush.msra.mxu0 0.0
    %783 = vmatpush.msra.mxu0 0.0
    %784 = vmatpush.msra.mxu0 %v737
    %785 = vmatmul.f32.gmra.mxu0 %v741
    %v786 = vpop.f32.mrf.mxu0
    %v787 = vadd.f32 0.0, %v786
    %788 = vmatmul.f32.gmra.mxu0 %v744
    %v789 = vpop.f32.mrf.mxu0
    %v790 = vadd.f32 0.0, %v789
    %791 = vdwg.mxu0
    %v792 = vadd.f32 %v722, %v764
    %v793 = vadd.f32 %v723, %v787
    %v794 = vadd.f32 %v724, %v767
    %v795 = vadd.f32 %v725, %v790
    %s796 = scalar_lea.vmem %s0, 176
    %v797 = vld [vmem:[%s796] sm:$0xff]
    %v798 = vld [vmem:[%s796 + $0x8] sm:$0xff]
    %799 = vrot.lane.b32.xlu0 %v41, 103
    %v800 = vpop.permute.xlu0 %799
    %801 = vrot.lane.b32.xlu0 %v42, 103
    %v802 = vpop.permute.xlu0 %801
    %803 = vrot.lane.b32.xlu0 %v43, 103
    %v804 = vpop.permute.xlu0 %803
    %vm805 = vcmask 842752
    %v806 = vsel %vm805, %v800, %v802
    %v807 = vsel %vm805, %v802, %v804
    %v811 = vsel %vm61, %v797, 0
    %v814 = vsel %vm61, %v798, 0
    %816 = vmatpush.msra.mxu0 0.0
    %817 = vmatpush.msra.mxu0 0.0
    %818 = vmatpush.msra.mxu0 0.0
    %819 = vmatpush.msra.mxu0 0.0
    %820 = vmatpush.msra.mxu0 0.0
    %821 = vmatpush.msra.mxu0 0.0
    %822 = vmatpush.msra.mxu0 0.0
    %823 = vmatpush.msra.mxu0 0.0
    %824 = vmatpush.msra.mxu0 0.0
    %825 = vmatpush.msra.mxu0 0.0
    %826 = vmatpush.msra.mxu0 0.0
    %827 = vmatpush.msra.mxu0 0.0
    %828 = vmatpush.msra.mxu0 0.0
    %829 = vmatpush.msra.mxu0 0.0
    %830 = vmatpush.msra.mxu0 0.0
    %831 = vmatpush.msra.mxu0 %v806
    %832 = vmatmul.f32.gmra.mxu0 %v811
    %v833 = vpop.f32.mrf.mxu0
    %v834 = vadd.f32 0.0, %v833
    %835 = vmatmul.f32.gmra.mxu0 %v814
    %v836 = vpop.f32.mrf.mxu0
    %v837 = vadd.f32 0.0, %v836
    %838 = vdwg.mxu0
    %839 = vmatpush.msra.mxu0 0.0
    %840 = vmatpush.msra.mxu0 0.0
    %841 = vmatpush.msra.mxu0 0.0
    %842 = vmatpush.msra.mxu0 0.0
    %843 = vmatpush.msra.mxu0 0.0
    %844 = vmatpush.msra.mxu0 0.0
    %845 = vmatpush.msra.mxu0 0.0
    %846 = vmatpush.msra.mxu0 0.0
    %847 = vmatpush.msra.mxu0 0.0
    %848 = vmatpush.msra.mxu0 0.0
    %849 = vmatpush.msra.mxu0 0.0
    %850 = vmatpush.msra.mxu0 0.0
    %851 = vmatpush.msra.mxu0 0.0
    %852 = vmatpush.msra.mxu0 0.0
    %853 = vmatpush.msra.mxu0 0.0
    %854 = vmatpush.msra.mxu0 %v807
    %855 = vmatmul.f32.gmra.mxu0 %v811
    %v856 = vpop.f32.mrf.mxu0
    %v857 = vadd.f32 0.0, %v856
    %858 = vmatmul.f32.gmra.mxu0 %v814
    %v859 = vpop.f32.mrf.mxu0
    %v860 = vadd.f32 0.0, %v859
    %861 = vdwg.mxu0
    %v862 = vadd.f32 %v792, %v834
    %v863 = vadd.f32 %v793, %v857
    %v864 = vadd.f32 %v794, %v837
    %v865 = vadd.f32 %v795, %v860
    %s866 = scalar_lea.vmem %s0, 192
    %v867 = vld [vmem:[%s866] sm:$0xff]
    %v868 = vld [vmem:[%s866 + $0x8] sm:$0xff]
    %869 = vrot.lane.b32.xlu0 %v41, 95
    %v870 = vpop.permute.xlu0 %869
    %871 = vrot.lane.b32.xlu0 %v42, 95
    %v872 = vpop.permute.xlu0 %871
    %873 = vrot.lane.b32.xlu0 %v43, 95
    %v874 = vpop.permute.xlu0 %873
    %vm875 = vcmask 777216
    %v876 = vsel %vm875, %v870, %v872
    %v877 = vsel %vm875, %v872, %v874
    %v881 = vsel %vm61, %v867, 0
    %v884 = vsel %vm61, %v868, 0
    %886 = vmatpush.msra.mxu0 0.0
    %887 = vmatpush.msra.mxu0 0.0
    %888 = vmatpush.msra.mxu0 0.0
    %889 = vmatpush.msra.mxu0 0.0
    %890 = vmatpush.msra.mxu0 0.0
    %891 = vmatpush.msra.mxu0 0.0
    %892 = vmatpush.msra.mxu0 0.0
    %893 = vmatpush.msra.mxu0 0.0
    %894 = vmatpush.msra.mxu0 0.0
    %895 = vmatpush.msra.mxu0 0.0
    %896 = vmatpush.msra.mxu0 0.0
    %897 = vmatpush.msra.mxu0 0.0
    %898 = vmatpush.msra.mxu0 0.0
    %899 = vmatpush.msra.mxu0 0.0
    %900 = vmatpush.msra.mxu0 0.0
    %901 = vmatpush.msra.mxu0 %v876
    %902 = vmatmul.f32.gmra.mxu0 %v881
    %v903 = vpop.f32.mrf.mxu0
    %v904 = vadd.f32 0.0, %v903
    %905 = vmatmul.f32.gmra.mxu0 %v884
    %v906 = vpop.f32.mrf.mxu0
    %v907 = vadd.f32 0.0, %v906
    %908 = vdwg.mxu0
    %909 = vmatpush.msra.mxu0 0.0
    %910 = vmatpush.msra.mxu0 0.0
    %911 = vmatpush.msra.mxu0 0.0
    %912 = vmatpush.msra.mxu0 0.0
    %913 = vmatpush.msra.mxu0 0.0
    %914 = vmatpush.msra.mxu0 0.0
    %915 = vmatpush.msra.mxu0 0.0
    %916 = vmatpush.msra.mxu0 0.0
    %917 = vmatpush.msra.mxu0 0.0
    %918 = vmatpush.msra.mxu0 0.0
    %919 = vmatpush.msra.mxu0 0.0
    %920 = vmatpush.msra.mxu0 0.0
    %921 = vmatpush.msra.mxu0 0.0
    %922 = vmatpush.msra.mxu0 0.0
    %923 = vmatpush.msra.mxu0 0.0
    %924 = vmatpush.msra.mxu0 %v877
    %925 = vmatmul.f32.gmra.mxu0 %v881
    %v926 = vpop.f32.mrf.mxu0
    %v927 = vadd.f32 0.0, %v926
    %928 = vmatmul.f32.gmra.mxu0 %v884
    %v929 = vpop.f32.mrf.mxu0
    %v930 = vadd.f32 0.0, %v929
    %931 = vdwg.mxu0
    %v932 = vadd.f32 %v862, %v904
    %v933 = vadd.f32 %v863, %v927
    %v934 = vadd.f32 %v864, %v907
    %v935 = vadd.f32 %v865, %v930
    %s936 = scalar_lea.vmem %s0, 208
    %v937 = vld [vmem:[%s936] sm:$0xff]
    %v938 = vld [vmem:[%s936 + $0x8] sm:$0xff]
    %939 = vrot.lane.b32.xlu0 %v41, 94
    %v940 = vpop.permute.xlu0 %939
    %941 = vrot.lane.b32.xlu0 %v42, 94
    %v942 = vpop.permute.xlu0 %941
    %943 = vrot.lane.b32.xlu0 %v43, 94
    %v944 = vpop.permute.xlu0 %943
    %vm945 = vcmask 769024
    %v946 = vsel %vm945, %v940, %v942
    %v947 = vsel %vm945, %v942, %v944
    %v951 = vsel %vm61, %v937, 0
    %v954 = vsel %vm61, %v938, 0
    %956 = vmatpush.msra.mxu0 0.0
    %957 = vmatpush.msra.mxu0 0.0
    %958 = vmatpush.msra.mxu0 0.0
    %959 = vmatpush.msra.mxu0 0.0
    %960 = vmatpush.msra.mxu0 0.0
    %961 = vmatpush.msra.mxu0 0.0
    %962 = vmatpush.msra.mxu0 0.0
    %963 = vmatpush.msra.mxu0 0.0
    %964 = vmatpush.msra.mxu0 0.0
    %965 = vmatpush.msra.mxu0 0.0
    %966 = vmatpush.msra.mxu0 0.0
    %967 = vmatpush.msra.mxu0 0.0
    %968 = vmatpush.msra.mxu0 0.0
    %969 = vmatpush.msra.mxu0 0.0
    %970 = vmatpush.msra.mxu0 0.0
    %971 = vmatpush.msra.mxu0 %v946
    %972 = vmatmul.f32.gmra.mxu0 %v951
    %v973 = vpop.f32.mrf.mxu0
    %v974 = vadd.f32 0.0, %v973
    %975 = vmatmul.f32.gmra.mxu0 %v954
    %v976 = vpop.f32.mrf.mxu0
    %v977 = vadd.f32 0.0, %v976
    %978 = vdwg.mxu0
    %979 = vmatpush.msra.mxu0 0.0
    %980 = vmatpush.msra.mxu0 0.0
    %981 = vmatpush.msra.mxu0 0.0
    %982 = vmatpush.msra.mxu0 0.0
    %983 = vmatpush.msra.mxu0 0.0
    %984 = vmatpush.msra.mxu0 0.0
    %985 = vmatpush.msra.mxu0 0.0
    %986 = vmatpush.msra.mxu0 0.0
    %987 = vmatpush.msra.mxu0 0.0
    %988 = vmatpush.msra.mxu0 0.0
    %989 = vmatpush.msra.mxu0 0.0
    %990 = vmatpush.msra.mxu0 0.0
    %991 = vmatpush.msra.mxu0 0.0
    %992 = vmatpush.msra.mxu0 0.0
    %993 = vmatpush.msra.mxu0 0.0
    %994 = vmatpush.msra.mxu0 %v947
    %995 = vmatmul.f32.gmra.mxu0 %v951
    %v996 = vpop.f32.mrf.mxu0
    %v997 = vadd.f32 0.0, %v996
    %998 = vmatmul.f32.gmra.mxu0 %v954
    %v999 = vpop.f32.mrf.mxu0
    %v1000 = vadd.f32 0.0, %v999
    %1001 = vdwg.mxu0
    %v1002 = vadd.f32 %v932, %v974
    %v1003 = vadd.f32 %v933, %v997
    %v1004 = vadd.f32 %v934, %v977
    %v1005 = vadd.f32 %v935, %v1000
    %s1006 = scalar_lea.vmem %s0, 224
    %v1007 = vld [vmem:[%s1006] sm:$0xff]
    %v1008 = vld [vmem:[%s1006 + $0x8] sm:$0xff]
    %1009 = vrot.lane.b32.xlu0 %v41, 93
    %v1010 = vpop.permute.xlu0 %1009
    %1011 = vrot.lane.b32.xlu0 %v42, 93
    %v1012 = vpop.permute.xlu0 %1011
    %1013 = vrot.lane.b32.xlu0 %v43, 93
    %v1014 = vpop.permute.xlu0 %1013
    %vm1015 = vcmask 760832
    %v1016 = vsel %vm1015, %v1010, %v1012
    %v1017 = vsel %vm1015, %v1012, %v1014
    %v1021 = vsel %vm61, %v1007, 0
    %v1024 = vsel %vm61, %v1008, 0
    %1026 = vmatpush.msra.mxu0 0.0
    %1027 = vmatpush.msra.mxu0 0.0
    %1028 = vmatpush.msra.mxu0 0.0
    %1029 = vmatpush.msra.mxu0 0.0
    %1030 = vmatpush.msra.mxu0 0.0
    %1031 = vmatpush.msra.mxu0 0.0
    %1032 = vmatpush.msra.mxu0 0.0
    %1033 = vmatpush.msra.mxu0 0.0
    %1034 = vmatpush.msra.mxu0 0.0
    %1035 = vmatpush.msra.mxu0 0.0
    %1036 = vmatpush.msra.mxu0 0.0
    %1037 = vmatpush.msra.mxu0 0.0
    %1038 = vmatpush.msra.mxu0 0.0
    %1039 = vmatpush.msra.mxu0 0.0
    %1040 = vmatpush.msra.mxu0 0.0
    %1041 = vmatpush.msra.mxu0 %v1016
    %1042 = vmatmul.f32.gmra.mxu0 %v1021
    %v1043 = vpop.f32.mrf.mxu0
    %v1044 = vadd.f32 0.0, %v1043
    %1045 = vmatmul.f32.gmra.mxu0 %v1024
    %v1046 = vpop.f32.mrf.mxu0
    %v1047 = vadd.f32 0.0, %v1046
    %1048 = vdwg.mxu0
    %1049 = vmatpush.msra.mxu0 0.0
    %1050 = vmatpush.msra.mxu0 0.0
    %1051 = vmatpush.msra.mxu0 0.0
    %1052 = vmatpush.msra.mxu0 0.0
    %1053 = vmatpush.msra.mxu0 0.0
    %1054 = vmatpush.msra.mxu0 0.0
    %1055 = vmatpush.msra.mxu0 0.0
    %1056 = vmatpush.msra.mxu0 0.0
    %1057 = vmatpush.msra.mxu0 0.0
    %1058 = vmatpush.msra.mxu0 0.0
    %1059 = vmatpush.msra.mxu0 0.0
    %1060 = vmatpush.msra.mxu0 0.0
    %1061 = vmatpush.msra.mxu0 0.0
    %1062 = vmatpush.msra.mxu0 0.0
    %1063 = vmatpush.msra.mxu0 0.0
    %1064 = vmatpush.msra.mxu0 %v1017
    %1065 = vmatmul.f32.gmra.mxu0 %v1021
    %v1066 = vpop.f32.mrf.mxu0
    %v1067 = vadd.f32 0.0, %v1066
    %1068 = vmatmul.f32.gmra.mxu0 %v1024
    %v1069 = vpop.f32.mrf.mxu0
    %v1070 = vadd.f32 0.0, %v1069
    %1071 = vdwg.mxu0
    %v1072 = vadd.f32 %v1002, %v1044
    %v1073 = vadd.f32 %v1003, %v1067
    %v1074 = vadd.f32 %v1004, %v1047
    %v1075 = vadd.f32 %v1005, %v1070
    %s1076 = scalar_lea.vmem %s0, 240
    %v1077 = vld [vmem:[%s1076] sm:$0xff]
    %v1078 = vld [vmem:[%s1076 + $0x8] sm:$0xff]
    %1079 = vrot.lane.b32.xlu0 %v41, 92
    %v1080 = vpop.permute.xlu0 %1079
    %1081 = vrot.lane.b32.xlu0 %v42, 92
    %v1082 = vpop.permute.xlu0 %1081
    %1083 = vrot.lane.b32.xlu0 %v43, 92
    %v1084 = vpop.permute.xlu0 %1083
    %vm1085 = vcmask 752640
    %v1086 = vsel %vm1085, %v1080, %v1082
    %v1087 = vsel %vm1085, %v1082, %v1084
    %v1091 = vsel %vm61, %v1077, 0
    %v1094 = vsel %vm61, %v1078, 0
    %1096 = vmatpush.msra.mxu0 0.0
    %1097 = vmatpush.msra.mxu0 0.0
    %1098 = vmatpush.msra.mxu0 0.0
    %1099 = vmatpush.msra.mxu0 0.0
    %1100 = vmatpush.msra.mxu0 0.0
    %1101 = vmatpush.msra.mxu0 0.0
    %1102 = vmatpush.msra.mxu0 0.0
    %1103 = vmatpush.msra.mxu0 0.0
    %1104 = vmatpush.msra.mxu0 0.0
    %1105 = vmatpush.msra.mxu0 0.0
    %1106 = vmatpush.msra.mxu0 0.0
    %1107 = vmatpush.msra.mxu0 0.0
    %1108 = vmatpush.msra.mxu0 0.0
    %1109 = vmatpush.msra.mxu0 0.0
    %1110 = vmatpush.msra.mxu0 0.0
    %1111 = vmatpush.msra.mxu0 %v1086
    %1112 = vmatmul.f32.gmra.mxu0 %v1091
    %v1113 = vpop.f32.mrf.mxu0
    %v1114 = vadd.f32 0.0, %v1113
    %1115 = vmatmul.f32.gmra.mxu0 %v1094
    %v1116 = vpop.f32.mrf.mxu0
    %v1117 = vadd.f32 0.0, %v1116
    %1118 = vdwg.mxu0
    %1119 = vmatpush.msra.mxu0 0.0
    %1120 = vmatpush.msra.mxu0 0.0
    %1121 = vmatpush.msra.mxu0 0.0
    %1122 = vmatpush.msra.mxu0 0.0
    %1123 = vmatpush.msra.mxu0 0.0
    %1124 = vmatpush.msra.mxu0 0.0
    %1125 = vmatpush.msra.mxu0 0.0
    %1126 = vmatpush.msra.mxu0 0.0
    %1127 = vmatpush.msra.mxu0 0.0
    %1128 = vmatpush.msra.mxu0 0.0
    %1129 = vmatpush.msra.mxu0 0.0
    %1130 = vmatpush.msra.mxu0 0.0
    %1131 = vmatpush.msra.mxu0 0.0
    %1132 = vmatpush.msra.mxu0 0.0
    %1133 = vmatpush.msra.mxu0 0.0
    %1134 = vmatpush.msra.mxu0 %v1087
    %1135 = vmatmul.f32.gmra.mxu0 %v1091
    %v1136 = vpop.f32.mrf.mxu0
    %v1137 = vadd.f32 0.0, %v1136
    %1138 = vmatmul.f32.gmra.mxu0 %v1094
    %v1139 = vpop.f32.mrf.mxu0
    %v1140 = vadd.f32 0.0, %v1139
    %1141 = vdwg.mxu0
    %v1142 = vadd.f32 %v1072, %v1114
    %v1143 = vadd.f32 %v1073, %v1137
    %v1144 = vadd.f32 %v1074, %v1117
    %v1145 = vadd.f32 %v1075, %v1140
    %v1146 = vld [vmem:[%s2] sm:$0xff]
    %v1147 = vld [vmem:[%s2 + $0x8] sm:$0xff]
    %1149 = vset.pattern.permute.xlu0 0
    %1150 = vperm.xlu0 %1149, %v1146
    %v1151 = vpop.permute.xlu0 %1150
    %1154 = vset.pattern.permute.xlu0 0
    %1155 = vperm.xlu0 %1154, %v1147
    %v1156 = vpop.permute.xlu0 %1155
    %v1158 = vadd.f32 %v1142, %v1151
    %v1159 = vadd.f32 %v1143, %v1151
    %v1160 = vadd.f32 %v1144, %v1156
    %v1161 = vadd.f32 %v1145, %v1156
    %v1162 = vld [vmem:[#allocation2] sm:$0x3]
    %v1164 = vperm.slane %v1162, 0
    %v1165 = vperm.slane %v1162, 1
    %v1168 = vmul.f32 %v1158, %v1164
    %v1169 = vmul.f32 %v1159, %v1165
    %v1170 = vmul.f32 %v1160, %v1164
    %v1171 = vmul.f32 %v1161, %v1165
    %v1172 = vadd.f32 %v1168, %v1169
    %1173 = vadd.xlane.f32.xlu0 %v1172
    %v1174 = vpop.xlane.xlu0 %1173
    %v1175 = vadd.f32 %v1170, %v1171
    %1176 = vadd.xlane.f32.xlu0 %v1175
    %v1177 = vpop.xlane.xlu0 %1176
    %v1178 = vmul.f32 %v1174, 0.0078125
    %v1179 = vmul.f32 %v1177, 0.0078125
    %v1180 = vsub.f32 %v1158, %v1178
    %v1181 = vsub.f32 %v1159, %v1178
    %v1182 = vsub.f32 %v1160, %v1179
    %v1183 = vsub.f32 %v1161, %v1179
    %v1184 = vmul.f32 %v1180, %v1164
    %v1185 = vmul.f32 %v1181, %v1165
    %v1186 = vmul.f32 %v1182, %v1164
    %v1187 = vmul.f32 %v1183, %v1165
    %v1188 = vmul.f32 %v1184, %v1184
    %v1189 = vmul.f32 %v1185, %v1185
    %v1190 = vmul.f32 %v1186, %v1186
    %v1191 = vmul.f32 %v1187, %v1187
    %v1192 = vadd.f32 %v1188, %v1189
    %1193 = vadd.xlane.f32.xlu0 %v1192
    %v1194 = vpop.xlane.xlu0 %1193
    %v1195 = vadd.f32 %v1190, %v1191
    %1196 = vadd.xlane.f32.xlu0 %v1195
    %v1197 = vpop.xlane.xlu0 %1196
    %v1198 = vmul.f32 %v1194, 0.0078125
    %v1199 = vmul.f32 %v1197, 0.0078125
    %v1200 = vadd.f32 %v1198, 1e-05
    %v1201 = vadd.f32 %v1199, 1e-05
    %v1202 = vrsqrt.pop %v1200
    %v1203 = vmul.f32 %v1202, %v1200
    %v1204 = vmul.f32 %v1203, %v1202
    %v1205 = vmul.f32 0.5, %v1204
    %v1206 = vsub.f32 1.5, %v1205
    %v1207 = vmul.f32 %v1202, %v1206
    %vm1208 = vweird.f32 %v1200
    %vm1209 = vweird.f32 %v1202
    %vm1210 = vmor %vm1208, %vm1209
    %v1211 = vsel %vm1210, %v1202, %v1207
    %v1212 = vrsqrt.pop %v1201
    %v1213 = vmul.f32 %v1212, %v1201
    %v1214 = vmul.f32 %v1213, %v1212
    %v1215 = vmul.f32 0.5, %v1214
    %v1216 = vsub.f32 1.5, %v1215
    %v1217 = vmul.f32 %v1212, %v1216
    %vm1218 = vweird.f32 %v1201
    %vm1219 = vweird.f32 %v1212
    %vm1220 = vmor %vm1218, %vm1219
    %v1221 = vsel %vm1220, %v1212, %v1217
    %v1222 = vmul.f32 %v1180, %v1211
    %v1223 = vmul.f32 %v1181, %v1211
    %v1224 = vmul.f32 %v1182, %v1221
    %v1225 = vmul.f32 %v1183, %v1221
    %v1226 = vld [vmem:[%s3] sm:$0xff]
    %v1227 = vld [vmem:[%s3 + $0x8] sm:$0xff]
    %1229 = vset.pattern.permute.xlu0 0
    %1230 = vperm.xlu0 %1229, %v1226
    %v1231 = vpop.permute.xlu0 %1230
    %1234 = vset.pattern.permute.xlu0 0
    %1235 = vperm.xlu0 %1234, %v1227
    %v1236 = vpop.permute.xlu0 %1235
    %v1238 = vmul.f32 %v1222, %v1231
    %v1239 = vmul.f32 %v1223, %v1231
    %v1240 = vmul.f32 %v1224, %v1236
    %v1241 = vmul.f32 %v1225, %v1236
    %v1242 = vld [vmem:[%s4] sm:$0xff]
    %v1243 = vld [vmem:[%s4 + $0x8] sm:$0xff]
    %1245 = vset.pattern.permute.xlu0 0
    %1246 = vperm.xlu0 %1245, %v1242
    %v1247 = vpop.permute.xlu0 %1246
    %1250 = vset.pattern.permute.xlu0 0
    %1251 = vperm.xlu0 %1250, %v1243
    %v1252 = vpop.permute.xlu0 %1251
    %v1254 = vadd.f32 %v1238, %v1247
    %v1255 = vadd.f32 %v1239, %v1247
    %v1256 = vadd.f32 %v1240, %v1252
    %v1257 = vadd.f32 %v1241, %v1252
    %v1258 = vmax.f32 %v1254, 0.0
    %v1259 = vmax.f32 %v1255, 0.0
    %v1260 = vmax.f32 %v1256, 0.0
    %v1261 = vmax.f32 %v1257, 0.0
    %1262 = vst [vmem:[%s6] sm:$0xff] %v1258
    %1263 = vst [vmem:[%s6 + $0x8] sm:$0xff] %v1259
    %1264 = vst [vmem:[%s6 + $0x10] sm:$0xff] %v1260
    %1265 = vst [vmem:[%s6 + $0x18] sm:$0xff] %v1261
    // Predicated region
    $region30: #{netg_forward.3} parent=1 // pred_check
      _
    $region31: #{netg_forward.3} parent=1 // pred_check_branch
      %1267 = sbr.rel (0) target = $region33
    $region32: #{netg_forward.3} parent=1 // pred_region
      _
    $region33: #{netg_forward.3} parent=1 // pred_fallthru
      _
    // Predicated region
    $region34: #{netg_forward.3} parent=1 // pred_check
      _
    $region35: #{netg_forward.3} parent=1 // pred_check_branch
      %1269 = sbr.rel (0) target = $region37
    $region36: #{netg_forward.3} parent=1 // pred_region
      _
    $region37: #{netg_forward.3} parent=1 // pred_fallthru
      _
    %1270 = vsyncpa [#allocation3], 1

// kernel: netg_forward.4
$region0: #{netg_forward.4}
  #allocation0 [shape = 'u32[]', space=smem, size = 0x4, offset = 0x4, fixed_abs, tag = 'smem constant byte address 0x4 - core index']
  #allocation1 [shape = 'u32[72,128]{1,0:T(1,128)}', space=vmem, size = 0x9000, scoped, tag = 'internal scratch']
  %s0 = inlined_call_operand.vmem [shape: f32[16,8,16], index: 0, kind: input, shape index: {}]
  %s1 = inlined_call_operand.vmem [shape: f32[16,896], index: 1, kind: input, shape index: {}]
  %s2 = inlined_call_operand.vmem [shape: f32[8,1], index: 2, kind: input, shape index: {}]
  %s3 = inlined_call_operand.vmem [shape: f32[8,1], index: 3, kind: input, shape index: {}]
  %s4 = inlined_call_operand.vmem [shape: f32[8,1], index: 4, kind: input, shape index: {}]
  %s5 = inlined_call_operand.vmem [shape: f32[1,768], index: 5, kind: input, shape index: {}]
  %s6 = inlined_call_operand.vmem [shape: f32[8,768], index: 6, kind: output, shape index: {}]
  %s7 = sld [smem:[#allocation0]]
  $region34: #{netg_forward.4} parent=0
    _
  %s9 = ssub.s32 1, %s7
  %s10 = scalar_select 0, %s9, %s7
  // Predicated region
  $region2: #{netg_forward.4} parent=0 // pred_check
    _
  $region3: #{netg_forward.4} parent=0 // pred_check_branch
    %12 = sbr.rel (0) target = $region5
  $region4: #{netg_forward.4} parent=0 // pred_region
    _
  $region5: #{netg_forward.4} parent=0 // pred_fallthru
    _
  // Predicated region
  $region6: #{netg_forward.4} parent=0 // pred_check
    _
  $region7: #{netg_forward.4} parent=0 // pred_check_branch
    %14 = sbr.rel (0) target = $region9
  $region8: #{netg_forward.4} parent=0 // pred_region
    _
  $region9: #{netg_forward.4} parent=0 // pred_fallthru
    _
  // Predicated region
  $region10: #{netg_forward.4} parent=0 // pred_check
    _
  $region11: #{netg_forward.4} parent=0 // pred_check_branch
    %16 = sbr.rel (0) target = $region13
  $region12: #{netg_forward.4} parent=0 // pred_region
    _
  $region13: #{netg_forward.4} parent=0 // pred_fallthru
    _
  // Predicated region
  $region14: #{netg_forward.4} parent=0 // pred_check
    _
  $region15: #{netg_forward.4} parent=0 // pred_check_branch
    %18 = sbr.rel (0) target = $region17
  $region16: #{netg_forward.4} parent=0 // pred_region
    _
  $region17: #{netg_forward.4} parent=0 // pred_fallthru
    _
  // Predicated region
  $region18: #{netg_forward.4} parent=0 // pred_check
    _
  $region19: #{netg_forward.4} parent=0 // pred_check_branch
    %20 = sbr.rel (0) target = $region21
  $region20: #{netg_forward.4} parent=0 // pred_region
    _
  $region21: #{netg_forward.4} parent=0 // pred_fallthru
    _
  // Predicated region
  $region22: #{netg_forward.4} parent=0 // pred_check
    _
  $region23: #{netg_forward.4} parent=0 // pred_check_branch
    %22 = sbr.rel (0) target = $region25
  $region24: #{netg_forward.4} parent=0 // pred_region
    _
  $region25: #{netg_forward.4} parent=0 // pred_fallthru
    _
  %v23 = vld [vmem:[%s1] sm:$0xff]
  %v24 = vld [vmem:[%s1 + $0x8] sm:$0xff]
  %v25 = vld [vmem:[%s1 + $0x10] sm:$0xff]
  %v26 = vld [vmem:[%s1 + $0x18] sm:$0xff]
  %v27 = vld [vmem:[%s1 + $0x20] sm:$0xff]
  %v28 = vld [vmem:[%s1 + $0x28] sm:$0xff]
  %v29 = vld [vmem:[%s1 + $0x38] sm:$0xff]
  %v30 = vld [vmem:[%s1 + $0x40] sm:$0xff]
  %v31 = vld [vmem:[%s1 + $0x48] sm:$0xff]
  %v32 = vld [vmem:[%s1 + $0x50] sm:$0xff]
  %v33 = vld [vmem:[%s1 + $0x58] sm:$0xff]
  %v34 = vld [vmem:[%s1 + $0x60] sm:$0xff]
  %v35 = vld [vmem:[%s0] sm:$0xff]
  %v36 = vld [vmem:[%s1] sm:$0xff]
  %v37 = vld [vmem:[%s1 + $0x8] sm:$0xff]
  %v38 = vld [vmem:[%s1 + $0x10] sm:$0xff]
  %v39 = vld [vmem:[%s1 + $0x18] sm:$0xff]
  %v40 = vld [vmem:[%s1 + $0x20] sm:$0xff]
  %v41 = vld [vmem:[%s1 + $0x28] sm:$0xff]
  %v42 = vld [vmem:[%s1 + $0x30] sm:$0xff]
  %v43 = vld [vmem:[%s1 + $0x38] sm:$0xff]
  %v44 = vld [vmem:[%s1 + $0x40] sm:$0xff]
  %v45 = vld [vmem:[%s1 + $0x48] sm:$0xff]
  %v46 = vld [vmem:[%s1 + $0x50] sm:$0xff]
  %v47 = vld [vmem:[%s1 + $0x58] sm:$0xff]
  %v48 = vld [vmem:[%s1 + $0x60] sm:$0xff]
  %v49 = vld [vmem:[%s1 + $0x68] sm:$0xff]
  %s50 = scalar_lea.vmem %s0, 8
  %v51 = vld [vmem:[%s50] sm:$0xff]
  %66 = vrot.lane.b32.xlu0 %v36, 127
  %v67 = vpop.permute.xlu0 %66
  %68 = vrot.lane.b32.xlu0 %v37, 127
  %v69 = vpop.permute.xlu0 %68
  %70 = vrot.lane.b32.xlu0 %v38, 127
  %v71 = vpop.permute.xlu0 %70
  %72 = vrot.lane.b32.xlu0 %v39, 127
  %v73 = vpop.permute.xlu0 %72
  %74 = vrot.lane.b32.xlu0 %v40, 127
  %v75 = vpop.permute.xlu0 %74
  %76 = vrot.lane.b32.xlu0 %v41, 127
  %v77 = vpop.permute.xlu0 %76
  %78 = vrot.lane.b32.xlu0 %v42, 127
  %v79 = vpop.permute.xlu0 %78
  %80 = vrot.lane.b32.xlu0 %v43, 127
  %v81 = vpop.permute.xlu0 %80
  %82 = vrot.lane.b32.xlu0 %v44, 127
  %v83 = vpop.permute.xlu0 %82
  %84 = vrot.lane.b32.xlu0 %v45, 127
  %v85 = vpop.permute.xlu0 %84
  %86 = vrot.lane.b32.xlu0 %v46, 127
  %v87 = vpop.permute.xlu0 %86
  %88 = vrot.lane.b32.xlu0 %v47, 127
  %v89 = vpop.permute.xlu0 %88
  %90 = vrot.lane.b32.xlu0 %v48, 127
  %v91 = vpop.permute.xlu0 %90
  %92 = vrot.lane.b32.xlu0 %v49, 127
  %v93 = vpop.permute.xlu0 %92
  %vm94 = vcmask 1039360
  %v95 = vsel %vm94, %v67, %v69
  %v96 = vsel %vm94, %v69, %v71
  %v97 = vsel %vm94, %v71, %v73
  %v98 = vsel %vm94, %v73, %v75
  %v99 = vsel %vm94, %v75, %v77
  %v100 = vsel %vm94, %v77, %v79
  %v101 = vsel %vm94, %v81, %v83
  %v102 = vsel %vm94, %v83, %v85
  %v103 = vsel %vm94, %v85, %v87
  %v104 = vsel %vm94, %v87, %v89
  %v105 = vsel %vm94, %v89, %v91
  %v106 = vsel %vm94, %v91, %v93
  %vm119 = vcmask 130048
  %v121 = vsel %vm119, %v51, 0
  %123 = vmatpush.msra.mxu0 0.0
  %124 = vmatpush.msra.mxu0 0.0
  %125 = vmatpush.msra.mxu0 0.0
  %126 = vmatpush.msra.mxu0 0.0
  %127 = vmatpush.msra.mxu0 0.0
  %128 = vmatpush.msra.mxu0 0.0
  %129 = vmatpush.msra.mxu0 0.0
  %130 = vmatpush.msra.mxu0 0.0
  %131 = vmatpush.msra.mxu0 0.0
  %132 = vmatpush.msra.mxu0 0.0
  %133 = vmatpush.msra.mxu0 0.0
  %134 = vmatpush.msra.mxu0 0.0
  %135 = vmatpush.msra.mxu0 0.0
  %136 = vmatpush.msra.mxu0 0.0
  %137 = vmatpush.msra.mxu0 %v101
  %138 = vmatpush.msra.mxu0 %v95
  %139 = vmatmul.f32.gmra.mxu0 %v121
  %v140 = vpop.f32.mrf.mxu0
  %v141 = vadd.f32 0.0, %v140
  %142 = vdwg.mxu0
  %143 = vmatpush.msra.mxu0 0.0
  %144 = vmatpush.msra.mxu0 0.0
  %145 = vmatpush.msra.mxu0 0.0
  %146 = vmatpush.msra.mxu0 0.0
  %147 = vmatpush.msra.mxu0 0.0
  %148 = vmatpush.msra.mxu0 0.0
  %149 = vmatpush.msra.mxu0 0.0
  %150 = vmatpush.msra.mxu0 0.0
  %151 = vmatpush.msra.mxu0 0.0
  %152 = vmatpush.msra.mxu0 0.0
  %153 = vmatpush.msra.mxu0 0.0
  %154 = vmatpush.msra.mxu0 0.0
  %155 = vmatpush.msra.mxu0 0.0
  %156 = vmatpush.msra.mxu0 0.0
  %157 = vmatpush.msra.mxu0 %v102
  %158 = vmatpush.msra.mxu0 %v96
  %159 = vmatmul.f32.gmra.mxu0 %v121
  %v160 = vpop.f32.mrf.mxu0
  %v161 = vadd.f32 0.0, %v160
  %162 = vdwg.mxu0
  %163 = vmatpush.msra.mxu0 0.0
  %164 = vmatpush.msra.mxu0 0.0
  %165 = vmatpush.msra.mxu0 0.0
  %166 = vmatpush.msra.mxu0 0.0
  %167 = vmatpush.msra.mxu0 0.0
  %168 = vmatpush.msra.mxu0 0.0
  %169 = vmatpush.msra.mxu0 0.0
  %170 = vmatpush.msra.mxu0 0.0
  %171 = vmatpush.msra.mxu0 0.0
  %172 = vmatpush.msra.mxu0 0.0
  %173 = vmatpush.msra.mxu0 0.0
  %174 = vmatpush.msra.mxu0 0.0
  %175 = vmatpush.msra.mxu0 0.0
  %176 = vmatpush.msra.mxu0 0.0
  %177 = vmatpush.msra.mxu0 %v103
  %178 = vmatpush.msra.mxu0 %v97
  %179 = vmatmul.f32.gmra.mxu0 %v121
  %v180 = vpop.f32.mrf.mxu0
  %v181 = vadd.f32 0.0, %v180
  %182 = vdwg.mxu0
  %183 = vmatpush.msra.mxu0 0.0
  %184 = vmatpush.msra.mxu0 0.0
  %185 = vmatpush.msra.mxu0 0.0
  %186 = vmatpush.msra.mxu0 0.0
  %187 = vmatpush.msra.mxu0 0.0
  %188 = vmatpush.msra.mxu0 0.0
  %189 = vmatpush.msra.mxu0 0.0
  %190 = vmatpush.msra.mxu0 0.0
  %191 = vmatpush.msra.mxu0 0.0
  %192 = vmatpush.msra.mxu0 0.0
  %193 = vmatpush.msra.mxu0 0.0
  %194 = vmatpush.msra.mxu0 0.0
  %195 = vmatpush.msra.mxu0 0.0
  %196 = vmatpush.msra.mxu0 0.0
  %197 = vmatpush.msra.mxu0 %v104
  %198 = vmatpush.msra.mxu0 %v98
  %199 = vmatmul.f32.gmra.mxu0 %v121
  %v200 = vpop.f32.mrf.mxu0
  %v201 = vadd.f32 0.0, %v200
  %202 = vdwg.mxu0
  %203 = vmatpush.msra.mxu0 0.0
  %204 = vmatpush.msra.mxu0 0.0
  %205 = vmatpush.msra.mxu0 0.0
  %206 = vmatpush.msra.mxu0 0.0
  %207 = vmatpush.msra.mxu0 0.0
  %208 = vmatpush.msra.mxu0 0.0
  %209 = vmatpush.msra.mxu0 0.0
  %210 = vmatpush.msra.mxu0 0.0
  %211 = vmatpush.msra.mxu0 0.0
  %212 = vmatpush.msra.mxu0 0.0
  %213 = vmatpush.msra.mxu0 0.0
  %214 = vmatpush.msra.mxu0 0.0
  %215 = vmatpush.msra.mxu0 0.0
  %216 = vmatpush.msra.mxu0 0.0
  %217 = vmatpush.msra.mxu0 %v105
  %218 = vmatpush.msra.mxu0 %v99
  %219 = vmatmul.f32.gmra.mxu0 %v121
  %v220 = vpop.f32.mrf.mxu0
  %v221 = vadd.f32 0.0, %v220
  %222 = vdwg.mxu0
  %223 = vmatpush.msra.mxu0 0.0
  %224 = vmatpush.msra.mxu0 0.0
  %225 = vmatpush.msra.mxu0 0.0
  %226 = vmatpush.msra.mxu0 0.0
  %227 = vmatpush.msra.mxu0 0.0
  %228 = vmatpush.msra.mxu0 0.0
  %229 = vmatpush.msra.mxu0 0.0
  %230 = vmatpush.msra.mxu0 0.0
  %231 = vmatpush.msra.mxu0 0.0
  %232 = vmatpush.msra.mxu0 0.0
  %233 = vmatpush.msra.mxu0 0.0
  %234 = vmatpush.msra.mxu0 0.0
  %235 = vmatpush.msra.mxu0 0.0
  %236 = vmatpush.msra.mxu0 0.0
  %237 = vmatpush.msra.mxu0 %v106
  %238 = vmatpush.msra.mxu0 %v100
  %239 = vmatmul.f32.gmra.mxu0 %v121
  %v240 = vpop.f32.mrf.mxu0
  %v241 = vadd.f32 0.0, %v240
  %242 = vdwg.mxu0
  %v244 = vsel %vm119, %v35, 0
  %246 = vmatpush.msra.mxu0 0.0
  %247 = vmatpush.msra.mxu0 0.0
  %248 = vmatpush.msra.mxu0 0.0
  %249 = vmatpush.msra.mxu0 0.0
  %250 = vmatpush.msra.mxu0 0.0
  %251 = vmatpush.msra.mxu0 0.0
  %252 = vmatpush.msra.mxu0 0.0
  %253 = vmatpush.msra.mxu0 0.0
  %254 = vmatpush.msra.mxu0 0.0
  %255 = vmatpush.msra.mxu0 0.0
  %256 = vmatpush.msra.mxu0 0.0
  %257 = vmatpush.msra.mxu0 0.0
  %258 = vmatpush.msra.mxu0 0.0
  %259 = vmatpush.msra.mxu0 0.0
  %260 = vmatpush.msra.mxu0 %v29
  %261 = vmatpush.msra.mxu0 %v23
  %262 = vmatmul.f32.gmra.mxu0 %v244
  %v263 = vpop.f32.mrf.mxu0
  %v264 = vadd.f32 %v141, %v263
  %265 = vdwg.mxu0
  %266 = vmatpush.msra.mxu0 0.0
  %267 = vmatpush.msra.mxu0 0.0
  %268 = vmatpush.msra.mxu0 0.0
  %269 = vmatpush.msra.mxu0 0.0
  %270 = vmatpush.msra.mxu0 0.0
  %271 = vmatpush.msra.mxu0 0.0
  %272 = vmatpush.msra.mxu0 0.0
  %273 = vmatpush.msra.mxu0 0.0
  %274 = vmatpush.msra.mxu0 0.0
  %275 = vmatpush.msra.mxu0 0.0
  %276 = vmatpush.msra.mxu0 0.0
  %277 = vmatpush.msra.mxu0 0.0
  %278 = vmatpush.msra.mxu0 0.0
  %279 = vmatpush.msra.mxu0 0.0
  %280 = vmatpush.msra.mxu0 %v30
  %281 = vmatpush.msra.mxu0 %v24
  %282 = vmatmul.f32.gmra.mxu0 %v244
  %v283 = vpop.f32.mrf.mxu0
  %v284 = vadd.f32 %v161, %v283
  %285 = vdwg.mxu0
  %286 = vmatpush.msra.mxu0 0.0
  %287 = vmatpush.msra.mxu0 0.0
  %288 = vmatpush.msra.mxu0 0.0
  %289 = vmatpush.msra.mxu0 0.0
  %290 = vmatpush.msra.mxu0 0.0
  %291 = vmatpush.msra.mxu0 0.0
  %292 = vmatpush.msra.mxu0 0.0
  %293 = vmatpush.msra.mxu0 0.0
  %294 = vmatpush.msra.mxu0 0.0
  %295 = vmatpush.msra.mxu0 0.0
  %296 = vmatpush.msra.mxu0 0.0
  %297 = vmatpush.msra.mxu0 0.0
  %298 = vmatpush.msra.mxu0 0.0
  %299 = vmatpush.msra.mxu0 0.0
  %300 = vmatpush.msra.mxu0 %v31
  %301 = vmatpush.msra.mxu0 %v25
  %302 = vmatmul.f32.gmra.mxu0 %v244
  %v303 = vpop.f32.mrf.mxu0
  %v304 = vadd.f32 %v181, %v303
  %305 = vdwg.mxu0
  %306 = vmatpush.msra.mxu0 0.0
  %307 = vmatpush.msra.mxu0 0.0
  %308 = vmatpush.msra.mxu0 0.0
  %309 = vmatpush.msra.mxu0 0.0
  %310 = vmatpush.msra.mxu0 0.0
  %311 = vmatpush.msra.mxu0 0.0
  %312 = vmatpush.msra.mxu0 0.0
  %313 = vmatpush.msra.mxu0 0.0
  %314 = vmatpush.msra.mxu0 0.0
  %315 = vmatpush.msra.mxu0 0.0
  %316 = vmatpush.msra.mxu0 0.0
  %317 = vmatpush.msra.mxu0 0.0
  %318 = vmatpush.msra.mxu0 0.0
  %319 = vmatpush.msra.mxu0 0.0
  %320 = vmatpush.msra.mxu0 %v32
  %321 = vmatpush.msra.mxu0 %v26
  %322 = vmatmul.f32.gmra.mxu0 %v244
  %v323 = vpop.f32.mrf.mxu0
  %v324 = vadd.f32 %v201, %v323
  %325 = vdwg.mxu0
  %326 = vmatpush.msra.mxu0 0.0
  %327 = vmatpush.msra.mxu0 0.0
  %328 = vmatpush.msra.mxu0 0.0
  %329 = vmatpush.msra.mxu0 0.0
  %330 = vmatpush.msra.mxu0 0.0
  %331 = vmatpush.msra.mxu0 0.0
  %332 = vmatpush.msra.mxu0 0.0
  %333 = vmatpush.msra.mxu0 0.0
  %334 = vmatpush.msra.mxu0 0.0
  %335 = vmatpush.msra.mxu0 0.0
  %336 = vmatpush.msra.mxu0 0.0
  %337 = vmatpush.msra.mxu0 0.0
  %338 = vmatpush.msra.mxu0 0.0
  %339 = vmatpush.msra.mxu0 0.0
  %340 = vmatpush.msra.mxu0 %v33
  %341 = vmatpush.msra.mxu0 %v27
  %342 = vmatmul.f32.gmra.mxu0 %v244
  %v343 = vpop.f32.mrf.mxu0
  %v344 = vadd.f32 %v221, %v343
  %345 = vdwg.mxu0
  %346 = vmatpush.msra.mxu0 0.0
  %347 = vmatpush.msra.mxu0 0.0
  %348 = vmatpush.msra.mxu0 0.0
  %349 = vmatpush.msra.mxu0 0.0
  %350 = vmatpush.msra.mxu0 0.0
  %351 = vmatpush.msra.mxu0 0.0
  %352 = vmatpush.msra.mxu0 0.0
  %353 = vmatpush.msra.mxu0 0.0
  %354 = vmatpush.msra.mxu0 0.0
  %355 = vmatpush.msra.mxu0 0.0
  %356 = vmatpush.msra.mxu0 0.0
  %357 = vmatpush.msra.mxu0 0.0
  %358 = vmatpush.msra.mxu0 0.0
  %359 = vmatpush.msra.mxu0 0.0
  %360 = vmatpush.msra.mxu0 %v34
  %361 = vmatpush.msra.mxu0 %v28
  %362 = vmatmul.f32.gmra.mxu0 %v244
  %v363 = vpop.f32.mrf.mxu0
  %v364 = vadd.f32 %v241, %v363
  %365 = vdwg.mxu0
  %s366 = scalar_lea.vmem %s0, 16
  %v367 = vld [vmem:[%s366] sm:$0xff]
  %368 = vrot.lane.b32.xlu0 %v36, 126
  %v369 = vpop.permute.xlu0 %368
  %370 = vrot.lane.b32.xlu0 %v37, 126
  %v371 = vpop.permute.xlu0 %370
  %372 = vrot.lane.b32.xlu0 %v38, 126
  %v373 = vpop.permute.xlu0 %372
  %374 = vrot.lane.b32.xlu0 %v39, 126
  %v375 = vpop.permute.xlu0 %374
  %376 = vrot.lane.b32.xlu0 %v40, 126
  %v377 = vpop.permute.xlu0 %376
  %378 = vrot.lane.b32.xlu0 %v41, 126
  %v379 = vpop.permute.xlu0 %378
  %380 = vrot.lane.b32.xlu0 %v42, 126
  %v381 = vpop.permute.xlu0 %380
  %382 = vrot.lane.b32.xlu0 %v43, 126
  %v383 = vpop.permute.xlu0 %382
  %384 = vrot.lane.b32.xlu0 %v44, 126
  %v385 = vpop.permute.xlu0 %384
  %386 = vrot.lane.b32.xlu0 %v45, 126
  %v387 = vpop.permute.xlu0 %386
  %388 = vrot.lane.b32.xlu0 %v46, 126
  %v389 = vpop.permute.xlu0 %388
  %390 = vrot.lane.b32.xlu0 %v47, 126
  %v391 = vpop.permute.xlu0 %390
  %392 = vrot.lane.b32.xlu0 %v48, 126
  %v393 = vpop.permute.xlu0 %392
  %394 = vrot.lane.b32.xlu0 %v49, 126
  %v395 = vpop.permute.xlu0 %394
  %vm396 = vcmask 1031168
  %v397 = vsel %vm396, %v369, %v371
  %v398 = vsel %vm396, %v371, %v373
  %v399 = vsel %vm396, %v373, %v375
  %v400 = vsel %vm396, %v375, %v377
  %v401 = vsel %vm396, %v377, %v379
  %v402 = vsel %vm396, %v379, %v381
  %v403 = vsel %vm396, %v383, %v385
  %v404 = vsel %vm396, %v385, %v387
  %v405 = vsel %vm396, %v387, %v389
  %v406 = vsel %vm396, %v389, %v391
  %v407 = vsel %vm396, %v391, %v393
  %v408 = vsel %vm396, %v393, %v395
  %v422 = vsel %vm119, %v367, 0
  %424 = vmatpush.msra.mxu0 0.0
  %425 = vmatpush.msra.mxu0 0.0
  %426 = vmatpush.msra.mxu0 0.0
  %427 = vmatpush.msra.mxu0 0.0
  %428 = vmatpush.msra.mxu0 0.0
  %429 = vmatpush.msra.mxu0 0.0
  %430 = vmatpush.msra.mxu0 0.0
  %431 = vmatpush.msra.mxu0 0.0
  %432 = vmatpush.msra.mxu0 0.0
  %433 = vmatpush.msra.mxu0 0.0
  %434 = vmatpush.msra.mxu0 0.0
  %435 = vmatpush.msra.mxu0 0.0
  %436 = vmatpush.msra.mxu0 0.0
  %437 = vmatpush.msra.mxu0 0.0
  %438 = vmatpush.msra.mxu0 %v403
  %439 = vmatpush.msra.mxu0 %v397
  %440 = vmatmul.f32.gmra.mxu0 %v422
  %v441 = vpop.f32.mrf.mxu0
  %v442 = vadd.f32 0.0, %v441
  %443 = vdwg.mxu0
  %444 = vmatpush.msra.mxu0 0.0
  %445 = vmatpush.msra.mxu0 0.0
  %446 = vmatpush.msra.mxu0 0.0
  %447 = vmatpush.msra.mxu0 0.0
  %448 = vmatpush.msra.mxu0 0.0
  %449 = vmatpush.msra.mxu0 0.0
  %450 = vmatpush.msra.mxu0 0.0
  %451 = vmatpush.msra.mxu0 0.0
  %452 = vmatpush.msra.mxu0 0.0
  %453 = vmatpush.msra.mxu0 0.0
  %454 = vmatpush.msra.mxu0 0.0
  %455 = vmatpush.msra.mxu0 0.0
  %456 = vmatpush.msra.mxu0 0.0
  %457 = vmatpush.msra.mxu0 0.0
  %458 = vmatpush.msra.mxu0 %v404
  %459 = vmatpush.msra.mxu0 %v398
  %460 = vmatmul.f32.gmra.mxu0 %v422
  %v461 = vpop.f32.mrf.mxu0
  %v462 = vadd.f32 0.0, %v461
  %463 = vdwg.mxu0
  %464 = vmatpush.msra.mxu0 0.0
  %465 = vmatpush.msra.mxu0 0.0
  %466 = vmatpush.msra.mxu0 0.0
  %467 = vmatpush.msra.mxu0 0.0
  %468 = vmatpush.msra.mxu0 0.0
  %469 = vmatpush.msra.mxu0 0.0
  %470 = vmatpush.msra.mxu0 0.0
  %471 = vmatpush.msra.mxu0 0.0
  %472 = vmatpush.msra.mxu0 0.0
  %473 = vmatpush.msra.mxu0 0.0
  %474 = vmatpush.msra.mxu0 0.0
  %475 = vmatpush.msra.mxu0 0.0
  %476 = vmatpush.msra.mxu0 0.0
  %477 = vmatpush.msra.mxu0 0.0
  %478 = vmatpush.msra.mxu0 %v405
  %479 = vmatpush.msra.mxu0 %v399
  %480 = vmatmul.f32.gmra.mxu0 %v422
  %v481 = vpop.f32.mrf.mxu0
  %v482 = vadd.f32 0.0, %v481
  %483 = vdwg.mxu0
  %484 = vmatpush.msra.mxu0 0.0
  %485 = vmatpush.msra.mxu0 0.0
  %486 = vmatpush.msra.mxu0 0.0
  %487 = vmatpush.msra.mxu0 0.0
  %488 = vmatpush.msra.mxu0 0.0
  %489 = vmatpush.msra.mxu0 0.0
  %490 = vmatpush.msra.mxu0 0.0
  %491 = vmatpush.msra.mxu0 0.0
  %492 = vmatpush.msra.mxu0 0.0
  %493 = vmatpush.msra.mxu0 0.0
  %494 = vmatpush.msra.mxu0 0.0
  %495 = vmatpush.msra.mxu0 0.0
  %496 = vmatpush.msra.mxu0 0.0
  %497 = vmatpush.msra.mxu0 0.0
  %498 = vmatpush.msra.mxu0 %v406
  %499 = vmatpush.msra.mxu0 %v400
  %500 = vmatmul.f32.gmra.mxu0 %v422
  %v501 = vpop.f32.mrf.mxu0
  %v502 = vadd.f32 0.0, %v501
  %503 = vdwg.mxu0
  %504 = vmatpush.msra.mxu0 0.0
  %505 = vmatpush.msra.mxu0 0.0
  %506 = vmatpush.msra.mxu0 0.0
  %507 = vmatpush.msra.mxu0 0.0
  %508 = vmatpush.msra.mxu0 0.0
  %509 = vmatpush.msra.mxu0 0.0
  %510 = vmatpush.msra.mxu0 0.0
  %511 = vmatpush.msra.mxu0 0.0
  %512 = vmatpush.msra.mxu0 0.0
  %513 = vmatpush.msra.mxu0 0.0
  %514 = vmatpush.msra.mxu0 0.0
  %515 = vmatpush.msra.mxu0 0.0
  %516 = vmatpush.msra.mxu0 0.0
  %517 = vmatpush.msra.mxu0 0.0
  %518 = vmatpush.msra.mxu0 %v407
  %519 = vmatpush.msra.mxu0 %v401
  %520 = vmatmul.f32.gmra.mxu0 %v422
  %v521 = vpop.f32.mrf.mxu0
  %v522 = vadd.f32 0.0, %v521
  %523 = vdwg.mxu0
  %524 = vmatpush.msra.mxu0 0.0
  %525 = vmatpush.msra.mxu0 0.0
  %526 = vmatpush.msra.mxu0 0.0
  %527 = vmatpush.msra.mxu0 0.0
  %528 = vmatpush.msra.mxu0 0.0
  %529 = vmatpush.msra.mxu0 0.0
  %530 = vmatpush.msra.mxu0 0.0
  %531 = vmatpush.msra.mxu0 0.0
  %532 = vmatpush.msra.mxu0 0.0
  %533 = vmatpush.msra.mxu0 0.0
  %534 = vmatpush.msra.mxu0 0.0
  %535 = vmatpush.msra.mxu0 0.0
  %536 = vmatpush.msra.mxu0 0.0
  %537 = vmatpush.msra.mxu0 0.0
  %538 = vmatpush.msra.mxu0 %v408
  %539 = vmatpush.msra.mxu0 %v402
  %540 = vmatmul.f32.gmra.mxu0 %v422
  %v541 = vpop.f32.mrf.mxu0
  %v542 = vadd.f32 0.0, %v541
  %543 = vdwg.mxu0
  %v544 = vadd.f32 %v264, %v442
  %v545 = vadd.f32 %v284, %v462
  %v546 = vadd.f32 %v304, %v482
  %v547 = vadd.f32 %v324, %v502
  %v548 = vadd.f32 %v344, %v522
  %v549 = vadd.f32 %v364, %v542
  %s550 = scalar_lea.vmem %s0, 24
  %v551 = vld [vmem:[%s550] sm:$0xff]
  %552 = vrot.lane.b32.xlu0 %v36, 125
  %v553 = vpop.permute.xlu0 %552
  %554 = vrot.lane.b32.xlu0 %v37, 125
  %v555 = vpop.permute.xlu0 %554
  %556 = vrot.lane.b32.xlu0 %v38, 125
  %v557 = vpop.permute.xlu0 %556
  %558 = vrot.lane.b32.xlu0 %v39, 125
  %v559 = vpop.permute.xlu0 %558
  %560 = vrot.lane.b32.xlu0 %v40, 125
  %v561 = vpop.permute.xlu0 %560
  %562 = vrot.lane.b32.xlu0 %v41, 125
  %v563 = vpop.permute.xlu0 %562
  %564 = vrot.lane.b32.xlu0 %v42, 125
  %v565 = vpop.permute.xlu0 %564
  %566 = vrot.lane.b32.xlu0 %v43, 125
  %v567 = vpop.permute.xlu0 %566
  %568 = vrot.lane.b32.xlu0 %v44, 125
  %v569 = vpop.permute.xlu0 %568
  %570 = vrot.lane.b32.xlu0 %v45, 125
  %v571 = vpop.permute.xlu0 %570
  %572 = vrot.lane.b32.xlu0 %v46, 125
  %v573 = vpop.permute.xlu0 %572
  %574 = vrot.lane.b32.xlu0 %v47, 125
  %v575 = vpop.permute.xlu0 %574
  %576 = vrot.lane.b32.xlu0 %v48, 125
  %v577 = vpop.permute.xlu0 %576
  %578 = vrot.lane.b32.xlu0 %v49, 125
  %v579 = vpop.permute.xlu0 %578
  %vm580 = vcmask 1022976
  %v581 = vsel %vm580, %v553, %v555
  %v582 = vsel %vm580, %v555, %v557
  %v583 = vsel %vm580, %v557, %v559
  %v584 = vsel %vm580, %v559, %v561
  %v585 = vsel %vm580, %v561, %v563
  %v586 = vsel %vm580, %v563, %v565
  %v587 = vsel %vm580, %v567, %v569
  %v588 = vsel %vm580, %v569, %v571
  %v589 = vsel %vm580, %v571, %v573
  %v590 = vsel %vm580, %v573, %v575
  %v591 = vsel %vm580, %v575, %v577
  %v592 = vsel %vm580, %v577, %v579
  %v606 = vsel %vm119, %v551, 0
  %608 = vmatpush.msra.mxu0 0.0
  %609 = vmatpush.msra.mxu0 0.0
  %610 = vmatpush.msra.mxu0 0.0
  %611 = vmatpush.msra.mxu0 0.0
  %612 = vmatpush.msra.mxu0 0.0
  %613 = vmatpush.msra.mxu0 0.0
  %614 = vmatpush.msra.mxu0 0.0
  %615 = vmatpush.msra.mxu0 0.0
  %616 = vmatpush.msra.mxu0 0.0
  %617 = vmatpush.msra.mxu0 0.0
  %618 = vmatpush.msra.mxu0 0.0
  %619 = vmatpush.msra.mxu0 0.0
  %620 = vmatpush.msra.mxu0 0.0
  %621 = vmatpush.msra.mxu0 0.0
  %622 = vmatpush.msra.mxu0 %v587
  %623 = vmatpush.msra.mxu0 %v581
  %624 = vmatmul.f32.gmra.mxu0 %v606
  %v625 = vpop.f32.mrf.mxu0
  %v626 = vadd.f32 0.0, %v625
  %627 = vdwg.mxu0
  %628 = vmatpush.msra.mxu0 0.0
  %629 = vmatpush.msra.mxu0 0.0
  %630 = vmatpush.msra.mxu0 0.0
  %631 = vmatpush.msra.mxu0 0.0
  %632 = vmatpush.msra.mxu0 0.0
  %633 = vmatpush.msra.mxu0 0.0
  %634 = vmatpush.msra.mxu0 0.0
  %635 = vmatpush.msra.mxu0 0.0
  %636 = vmatpush.msra.mxu0 0.0
  %637 = vmatpush.msra.mxu0 0.0
  %638 = vmatpush.msra.mxu0 0.0
  %639 = vmatpush.msra.mxu0 0.0
  %640 = vmatpush.msra.mxu0 0.0
  %641 = vmatpush.msra.mxu0 0.0
  %642 = vmatpush.msra.mxu0 %v588
  %643 = vmatpush.msra.mxu0 %v582
  %644 = vmatmul.f32.gmra.mxu0 %v606
  %v645 = vpop.f32.mrf.mxu0
  %v646 = vadd.f32 0.0, %v645
  %647 = vdwg.mxu0
  %648 = vmatpush.msra.mxu0 0.0
  %649 = vmatpush.msra.mxu0 0.0
  %650 = vmatpush.msra.mxu0 0.0
  %651 = vmatpush.msra.mxu0 0.0
  %652 = vmatpush.msra.mxu0 0.0
  %653 = vmatpush.msra.mxu0 0.0
  %654 = vmatpush.msra.mxu0 0.0
  %655 = vmatpush.msra.mxu0 0.0
  %656 = vmatpush.msra.mxu0 0.0
  %657 = vmatpush.msra.mxu0 0.0
  %658 = vmatpush.msra.mxu0 0.0
  %659 = vmatpush.msra.mxu0 0.0
  %660 = vmatpush.msra.mxu0 0.0
  %661 = vmatpush.msra.mxu0 0.0
  %662 = vmatpush.msra.mxu0 %v589
  %663 = vmatpush.msra.mxu0 %v583
  %664 = vmatmul.f32.gmra.mxu0 %v606
  %v665 = vpop.f32.mrf.mxu0
  %v666 = vadd.f32 0.0, %v665
  %667 = vdwg.mxu0
  %668 = vmatpush.msra.mxu0 0.0
  %669 = vmatpush.msra.mxu0 0.0
  %670 = vmatpush.msra.mxu0 0.0
  %671 = vmatpush.msra.mxu0 0.0
  %672 = vmatpush.msra.mxu0 0.0
  %673 = vmatpush.msra.mxu0 0.0
  %674 = vmatpush.msra.mxu0 0.0
  %675 = vmatpush.msra.mxu0 0.0
  %676 = vmatpush.msra.mxu0 0.0
  %677 = vmatpush.msra.mxu0 0.0
  %678 = vmatpush.msra.mxu0 0.0
  %679 = vmatpush.msra.mxu0 0.0
  %680 = vmatpush.msra.mxu0 0.0
  %681 = vmatpush.msra.mxu0 0.0
  %682 = vmatpush.msra.mxu0 %v590
  %683 = vmatpush.msra.mxu0 %v584
  %684 = vmatmul.f32.gmra.mxu0 %v606
  %v685 = vpop.f32.mrf.mxu0
  %v686 = vadd.f32 0.0, %v685
  %687 = vdwg.mxu0
  %688 = vmatpush.msra.mxu0 0.0
  %689 = vmatpush.msra.mxu0 0.0
  %690 = vmatpush.msra.mxu0 0.0
  %691 = vmatpush.msra.mxu0 0.0
  %692 = vmatpush.msra.mxu0 0.0
  %693 = vmatpush.msra.mxu0 0.0
  %694 = vmatpush.msra.mxu0 0.0
  %695 = vmatpush.msra.mxu0 0.0
  %696 = vmatpush.msra.mxu0 0.0
  %697 = vmatpush.msra.mxu0 0.0
  %698 = vmatpush.msra.mxu0 0.0
  %699 = vmatpush.msra.mxu0 0.0
  %700 = vmatpush.msra.mxu0 0.0
  %701 = vmatpush.msra.mxu0 0.0
  %702 = vmatpush.msra.mxu0 %v591
  %703 = vmatpush.msra.mxu0 %v585
  %704 = vmatmul.f32.gmra.mxu0 %v606
  %v705 = vpop.f32.mrf.mxu0
  %v706 = vadd.f32 0.0, %v705
  %707 = vdwg.mxu0
  %708 = vmatpush.msra.mxu0 0.0
  %709 = vmatpush.msra.mxu0 0.0
  %710 = vmatpush.msra.mxu0 0.0
  %711 = vmatpush.msra.mxu0 0.0
  %712 = vmatpush.msra.mxu0 0.0
  %713 = vmatpush.msra.mxu0 0.0
  %714 = vmatpush.msra.mxu0 0.0
  %715 = vmatpush.msra.mxu0 0.0
  %716 = vmatpush.msra.mxu0 0.0
  %717 = vmatpush.msra.mxu0 0.0
  %718 = vmatpush.msra.mxu0 0.0
  %719 = vmatpush.msra.mxu0 0.0
  %720 = vmatpush.msra.mxu0 0.0
  %721 = vmatpush.msra.mxu0 0.0
  %722 = vmatpush.msra.mxu0 %v592
  %723 = vmatpush.msra.mxu0 %v586
  %724 = vmatmul.f32.gmra.mxu0 %v606
  %v725 = vpop.f32.mrf.mxu0
  %v726 = vadd.f32 0.0, %v725
  %727 = vdwg.mxu0
  %v728 = vadd.f32 %v544, %v626
  %v729 = vadd.f32 %v545, %v646
  %v730 = vadd.f32 %v546, %v666
  %v731 = vadd.f32 %v547, %v686
  %v732 = vadd.f32 %v548, %v706
  %v733 = vadd.f32 %v549, %v726
  %s734 = scalar_lea.vmem %s0, 32
  %v735 = vld [vmem:[%s734] sm:$0xff]
  %736 = vrot.lane.b32.xlu0 %v36, 109
  %v737 = vpop.permute.xlu0 %736
  %738 = vrot.lane.b32.xlu0 %v37, 109
  %v739 = vpop.permute.xlu0 %738
  %740 = vrot.lane.b32.xlu0 %v38, 109
  %v741 = vpop.permute.xlu0 %740
  %742 = vrot.lane.b32.xlu0 %v39, 109
  %v743 = vpop.permute.xlu0 %742
  %744 = vrot.lane.b32.xlu0 %v40, 109
  %v745 = vpop.permute.xlu0 %744
  %746 = vrot.lane.b32.xlu0 %v41, 109
  %v747 = vpop.permute.xlu0 %746
  %748 = vrot.lane.b32.xlu0 %v42, 109
  %v749 = vpop.permute.xlu0 %748
  %750 = vrot.lane.b32.xlu0 %v43, 109
  %v751 = vpop.permute.xlu0 %750
  %752 = vrot.lane.b32.xlu0 %v44, 109
  %v753 = vpop.permute.xlu0 %752
  %754 = vrot.lane.b32.xlu0 %v45, 109
  %v755 = vpop.permute.xlu0 %754
  %756 = vrot.lane.b32.xlu0 %v46, 109
  %v757 = vpop.permute.xlu0 %756
  %758 = vrot.lane.b32.xlu0 %v47, 109
  %v759 = vpop.permute.xlu0 %758
  %760 = vrot.lane.b32.xlu0 %v48, 109
  %v761 = vpop.permute.xlu0 %760
  %762 = vrot.lane.b32.xlu0 %v49, 109
  %v763 = vpop.permute.xlu0 %762
  %vm764 = vcmask 891904
  %v765 = vsel %vm764, %v737, %v739
  %v766 = vsel %vm764, %v739, %v741
  %v767 = vsel %vm764, %v741, %v743
  %v768 = vsel %vm764, %v743, %v745
  %v769 = vsel %vm764, %v745, %v747
  %v770 = vsel %vm764, %v747, %v749
  %v771 = vsel %vm764, %v751, %v753
  %v772 = vsel %vm764, %v753, %v755
  %v773 = vsel %vm764, %v755, %v757
  %v774 = vsel %vm764, %v757, %v759
  %v775 = vsel %vm764, %v759, %v761
  %v776 = vsel %vm764, %v761, %v763
  %v790 = vsel %vm119, %v735, 0
  %792 = vmatpush.msra.mxu0 0.0
  %793 = vmatpush.msra.mxu0 0.0
  %794 = vmatpush.msra.mxu0 0.0
  %795 = vmatpush.msra.mxu0 0.0
  %796 = vmatpush.msra.mxu0 0.0
  %797 = vmatpush.msra.mxu0 0.0
  %798 = vmatpush.msra.mxu0 0.0
  %799 = vmatpush.msra.mxu0 0.0
  %800 = vmatpush.msra.mxu0 0.0
  %801 = vmatpush.msra.mxu0 0.0
  %802 = vmatpush.msra.mxu0 0.0
  %803 = vmatpush.msra.mxu0 0.0
  %804 = vmatpush.msra.mxu0 0.0
  %805 = vmatpush.msra.mxu0 0.0
  %806 = vmatpush.msra.mxu0 %v771
  %807 = vmatpush.msra.mxu0 %v765
  %808 = vmatmul.f32.gmra.mxu0 %v790
  %v809 = vpop.f32.mrf.mxu0
  %v810 = vadd.f32 0.0, %v809
  %811 = vdwg.mxu0
  %812 = vmatpush.msra.mxu0 0.0
  %813 = vmatpush.msra.mxu0 0.0
  %814 = vmatpush.msra.mxu0 0.0
  %815 = vmatpush.msra.mxu0 0.0
  %816 = vmatpush.msra.mxu0 0.0
  %817 = vmatpush.msra.mxu0 0.0
  %818 = vmatpush.msra.mxu0 0.0
  %819 = vmatpush.msra.mxu0 0.0
  %820 = vmatpush.msra.mxu0 0.0
  %821 = vmatpush.msra.mxu0 0.0
  %822 = vmatpush.msra.mxu0 0.0
  %823 = vmatpush.msra.mxu0 0.0
  %824 = vmatpush.msra.mxu0 0.0
  %825 = vmatpush.msra.mxu0 0.0
  %826 = vmatpush.msra.mxu0 %v772
  %827 = vmatpush.msra.mxu0 %v766
  %828 = vmatmul.f32.gmra.mxu0 %v790
  %v829 = vpop.f32.mrf.mxu0
  %v830 = vadd.f32 0.0, %v829
  %831 = vdwg.mxu0
  %832 = vmatpush.msra.mxu0 0.0
  %833 = vmatpush.msra.mxu0 0.0
  %834 = vmatpush.msra.mxu0 0.0
  %835 = vmatpush.msra.mxu0 0.0
  %836 = vmatpush.msra.mxu0 0.0
  %837 = vmatpush.msra.mxu0 0.0
  %838 = vmatpush.msra.mxu0 0.0
  %839 = vmatpush.msra.mxu0 0.0
  %840 = vmatpush.msra.mxu0 0.0
  %841 = vmatpush.msra.mxu0 0.0
  %842 = vmatpush.msra.mxu0 0.0
  %843 = vmatpush.msra.mxu0 0.0
  %844 = vmatpush.msra.mxu0 0.0
  %845 = vmatpush.msra.mxu0 0.0
  %846 = vmatpush.msra.mxu0 %v773
  %847 = vmatpush.msra.mxu0 %v767
  %848 = vmatmul.f32.gmra.mxu0 %v790
  %v849 = vpop.f32.mrf.mxu0
  %v850 = vadd.f32 0.0, %v849
  %851 = vdwg.mxu0
  %852 = vmatpush.msra.mxu0 0.0
  %853 = vmatpush.msra.mxu0 0.0
  %854 = vmatpush.msra.mxu0 0.0
  %855 = vmatpush.msra.mxu0 0.0
  %856 = vmatpush.msra.mxu0 0.0
  %857 = vmatpush.msra.mxu0 0.0
  %858 = vmatpush.msra.mxu0 0.0
  %859 = vmatpush.msra.mxu0 0.0
  %860 = vmatpush.msra.mxu0 0.0
  %861 = vmatpush.msra.mxu0 0.0
  %862 = vmatpush.msra.mxu0 0.0
  %863 = vmatpush.msra.mxu0 0.0
  %864 = vmatpush.msra.mxu0 0.0
  %865 = vmatpush.msra.mxu0 0.0
  %866 = vmatpush.msra.mxu0 %v774
  %867 = vmatpush.msra.mxu0 %v768
  %868 = vmatmul.f32.gmra.mxu0 %v790
  %v869 = vpop.f32.mrf.mxu0
  %v870 = vadd.f32 0.0, %v869
  %871 = vdwg.mxu0
  %872 = vmatpush.msra.mxu0 0.0
  %873 = vmatpush.msra.mxu0 0.0
  %874 = vmatpush.msra.mxu0 0.0
  %875 = vmatpush.msra.mxu0 0.0
  %876 = vmatpush.msra.mxu0 0.0
  %877 = vmatpush.msra.mxu0 0.0
  %878 = vmatpush.msra.mxu0 0.0
  %879 = vmatpush.msra.mxu0 0.0
  %880 = vmatpush.msra.mxu0 0.0
  %881 = vmatpush.msra.mxu0 0.0
  %882 = vmatpush.msra.mxu0 0.0
  %883 = vmatpush.msra.mxu0 0.0
  %884 = vmatpush.msra.mxu0 0.0
  %885 = vmatpush.msra.mxu0 0.0
  %886 = vmatpush.msra.mxu0 %v775
  %887 = vmatpush.msra.mxu0 %v769
  %888 = vmatmul.f32.gmra.mxu0 %v790
  %v889 = vpop.f32.mrf.mxu0
  %v890 = vadd.f32 0.0, %v889
  %891 = vdwg.mxu0
  %892 = vmatpush.msra.mxu0 0.0
  %893 = vmatpush.msra.mxu0 0.0
  %894 = vmatpush.msra.mxu0 0.0
  %895 = vmatpush.msra.mxu0 0.0
  %896 = vmatpush.msra.mxu0 0.0
  %897 = vmatpush.msra.mxu0 0.0
  %898 = vmatpush.msra.mxu0 0.0
  %899 = vmatpush.msra.mxu0 0.0
  %900 = vmatpush.msra.mxu0 0.0
  %901 = vmatpush.msra.mxu0 0.0
  %902 = vmatpush.msra.mxu0 0.0
  %903 = vmatpush.msra.mxu0 0.0
  %904 = vmatpush.msra.mxu0 0.0
  %905 = vmatpush.msra.mxu0 0.0
  %906 = vmatpush.msra.mxu0 %v776
  %907 = vmatpush.msra.mxu0 %v770
  %908 = vmatmul.f32.gmra.mxu0 %v790
  %v909 = vpop.f32.mrf.mxu0
  %v910 = vadd.f32 0.0, %v909
  %911 = vdwg.mxu0
  %v912 = vadd.f32 %v728, %v810
  %v913 = vadd.f32 %v729, %v830
  %v914 = vadd.f32 %v730, %v850
  %v915 = vadd.f32 %v731, %v870
  %v916 = vadd.f32 %v732, %v890
  %v917 = vadd.f32 %v733, %v910
  %s918 = scalar_lea.vmem %s0, 40
  %v919 = vld [vmem:[%s918] sm:$0xff]
  %920 = vrot.lane.b32.xlu0 %v36, 108
  %v921 = vpop.permute.xlu0 %920
  %922 = vrot.lane.b32.xlu0 %v37, 108
  %v923 = vpop.permute.xlu0 %922
  %924 = vrot.lane.b32.xlu0 %v38, 108
  %v925 = vpop.permute.xlu0 %924
  %926 = vrot.lane.b32.xlu0 %v39, 108
  %v927 = vpop.permute.xlu0 %926
  %928 = vrot.lane.b32.xlu0 %v40, 108
  %v929 = vpop.permute.xlu0 %928
  %930 = vrot.lane.b32.xlu0 %v41, 108
  %v931 = vpop.permute.xlu0 %930
  %932 = vrot.lane.b32.xlu0 %v42, 108
  %v933 = vpop.permute.xlu0 %932
  %934 = vrot.lane.b32.xlu0 %v43, 108
  %v935 = vpop.permute.xlu0 %934
  %936 = vrot.lane.b32.xlu0 %v44, 108
  %v937 = vpop.permute.xlu0 %936
  %938 = vrot.lane.b32.xlu0 %v45, 108
  %v939 = vpop.permute.xlu0 %938
  %940 = vrot.lane.b32.xlu0 %v46, 108
  %v941 = vpop.permute.xlu0 %940
  %942 = vrot.lane.b32.xlu0 %v47, 108
  %v943 = vpop.permute.xlu0 %942
  %944 = vrot.lane.b32.xlu0 %v48, 108
  %v945 = vpop.permute.xlu0 %944
  %946 = vrot.lane.b32.xlu0 %v49, 108
  %v947 = vpop.permute.xlu0 %946
  %vm948 = vcmask 883712
  %v949 = vsel %vm948, %v921, %v923
  %v950 = vsel %vm948, %v923, %v925
  %v951 = vsel %vm948, %v925, %v927
  %v952 = vsel %vm948, %v927, %v929
  %v953 = vsel %vm948, %v929, %v931
  %v954 = vsel %vm948, %v931, %v933
  %v955 = vsel %vm948, %v935, %v937
  %v956 = vsel %vm948, %v937, %v939
  %v957 = vsel %vm948, %v939, %v941
  %v958 = vsel %vm948, %v941, %v943
  %v959 = vsel %vm948, %v943, %v945
  %v960 = vsel %vm948, %v945, %v947
  %v974 = vsel %vm119, %v919, 0
  %976 = vmatpush.msra.mxu0 0.0
  %977 = vmatpush.msra.mxu0 0.0
  %978 = vmatpush.msra.mxu0 0.0
  %979 = vmatpush.msra.mxu0 0.0
  %980 = vmatpush.msra.mxu0 0.0
  %981 = vmatpush.msra.mxu0 0.0
  %982 = vmatpush.msra.mxu0 0.0
  %983 = vmatpush.msra.mxu0 0.0
  %984 = vmatpush.msra.mxu0 0.0
  %985 = vmatpush.msra.mxu0 0.0
  %986 = vmatpush.msra.mxu0 0.0
  %987 = vmatpush.msra.mxu0 0.0
  %988 = vmatpush.msra.mxu0 0.0
  %989 = vmatpush.msra.mxu0 0.0
  %990 = vmatpush.msra.mxu0 %v955
  %991 = vmatpush.msra.mxu0 %v949
  %992 = vmatmul.f32.gmra.mxu0 %v974
  %v993 = vpop.f32.mrf.mxu0
  %v994 = vadd.f32 0.0, %v993
  %995 = vdwg.mxu0
  %996 = vmatpush.msra.mxu0 0.0
  %997 = vmatpush.msra.mxu0 0.0
  %998 = vmatpush.msra.mxu0 0.0
  %999 = vmatpush.msra.mxu0 0.0
  %1000 = vmatpush.msra.mxu0 0.0
  %1001 = vmatpush.msra.mxu0 0.0
  %1002 = vmatpush.msra.mxu0 0.0
  %1003 = vmatpush.msra.mxu0 0.0
  %1004 = vmatpush.msra.mxu0 0.0
  %1005 = vmatpush.msra.mxu0 0.0
  %1006 = vmatpush.msra.mxu0 0.0
  %1007 = vmatpush.msra.mxu0 0.0
  %1008 = vmatpush.msra.mxu0 0.0
  %1009 = vmatpush.msra.mxu0 0.0
  %1010 = vmatpush.msra.mxu0 %v956
  %1011 = vmatpush.msra.mxu0 %v950
  %1012 = vmatmul.f32.gmra.mxu0 %v974
  %v1013 = vpop.f32.mrf.mxu0
  %v1014 = vadd.f32 0.0, %v1013
  %1015 = vdwg.mxu0
  %1016 = vmatpush.msra.mxu0 0.0
  %1017 = vmatpush.msra.mxu0 0.0
  %1018 = vmatpush.msra.mxu0 0.0
  %1019 = vmatpush.msra.mxu0 0.0
  %1020 = vmatpush.msra.mxu0 0.0
  %1021 = vmatpush.msra.mxu0 0.0
  %1022 = vmatpush.msra.mxu0 0.0
  %1023 = vmatpush.msra.mxu0 0.0
  %1024 = vmatpush.msra.mxu0 0.0
  %1025 = vmatpush.msra.mxu0 0.0
  %1026 = vmatpush.msra.mxu0 0.0
  %1027 = vmatpush.msra.mxu0 0.0
  %1028 = vmatpush.msra.mxu0 0.0
  %1029 = vmatpush.msra.mxu0 0.0
  %1030 = vmatpush.msra.mxu0 %v957
  %1031 = vmatpush.msra.mxu0 %v951
  %1032 = vmatmul.f32.gmra.mxu0 %v974
  %v1033 = vpop.f32.mrf.mxu0
  %v1034 = vadd.f32 0.0, %v1033
  %1035 = vdwg.mxu0
  %1036 = vmatpush.msra.mxu0 0.0
  %1037 = vmatpush.msra.mxu0 0.0
  %1038 = vmatpush.msra.mxu0 0.0
  %1039 = vmatpush.msra.mxu0 0.0
  %1040 = vmatpush.msra.mxu0 0.0
  %1041 = vmatpush.msra.mxu0 0.0
  %1042 = vmatpush.msra.mxu0 0.0
  %1043 = vmatpush.msra.mxu0 0.0
  %1044 = vmatpush.msra.mxu0 0.0
  %1045 = vmatpush.msra.mxu0 0.0
  %1046 = vmatpush.msra.mxu0 0.0
  %1047 = vmatpush.msra.mxu0 0.0
  %1048 = vmatpush.msra.mxu0 0.0
  %1049 = vmatpush.msra.mxu0 0.0
  %1050 = vmatpush.msra.mxu0 %v958
  %1051 = vmatpush.msra.mxu0 %v952
  %1052 = vmatmul.f32.gmra.mxu0 %v974
  %v1053 = vpop.f32.mrf.mxu0
  %v1054 = vadd.f32 0.0, %v1053
  %1055 = vdwg.mxu0
  %1056 = vmatpush.msra.mxu0 0.0
  %1057 = vmatpush.msra.mxu0 0.0
  %1058 = vmatpush.msra.mxu0 0.0
  %1059 = vmatpush.msra.mxu0 0.0
  %1060 = vmatpush.msra.mxu0 0.0
  %1061 = vmatpush.msra.mxu0 0.0
  %1062 = vmatpush.msra.mxu0 0.0
  %1063 = vmatpush.msra.mxu0 0.0
  %1064 = vmatpush.msra.mxu0 0.0
  %1065 = vmatpush.msra.mxu0 0.0
  %1066 = vmatpush.msra.mxu0 0.0
  %1067 = vmatpush.msra.mxu0 0.0
  %1068 = vmatpush.msra.mxu0 0.0
  %1069 = vmatpush.msra.mxu0 0.0
  %1070 = vmatpush.msra.mxu0 %v959
  %1071 = vmatpush.msra.mxu0 %v953
  %1072 = vmatmul.f32.gmra.mxu0 %v974
  %v1073 = vpop.f32.mrf.mxu0
  %v1074 = vadd.f32 0.0, %v1073
  %1075 = vdwg.mxu0
  %1076 = vmatpush.msra.mxu0 0.0
  %1077 = vmatpush.msra.mxu0 0.0
  %1078 = vmatpush.msra.mxu0 0.0
  %1079 = vmatpush.msra.mxu0 0.0
  %1080 = vmatpush.msra.mxu0 0.0
  %1081 = vmatpush.msra.mxu0 0.0
  %1082 = vmatpush.msra.mxu0 0.0
  %1083 = vmatpush.msra.mxu0 0.0
  %1084 = vmatpush.msra.mxu0 0.0
  %1085 = vmatpush.msra.mxu0 0.0
  %1086 = vmatpush.msra.mxu0 0.0
  %1087 = vmatpush.msra.mxu0 0.0
  %1088 = vmatpush.msra.mxu0 0.0
  %1089 = vmatpush.msra.mxu0 0.0
  %1090 = vmatpush.msra.mxu0 %v960
  %1091 = vmatpush.msra.mxu0 %v954
  %1092 = vmatmul.f32.gmra.mxu0 %v974
  %v1093 = vpop.f32.mrf.mxu0
  %v1094 = vadd.f32 0.0, %v1093
  %1095 = vdwg.mxu0
  %v1096 = vadd.f32 %v912, %v994
  %v1097 = vadd.f32 %v913, %v1014
  %v1098 = vadd.f32 %v914, %v1034
  %v1099 = vadd.f32 %v915, %v1054
  %v1100 = vadd.f32 %v916, %v1074
  %v1101 = vadd.f32 %v917, %v1094
  %s1102 = scalar_lea.vmem %s0, 48
  %v1103 = vld [vmem:[%s1102] sm:$0xff]
  %1104 = vrot.lane.b32.xlu0 %v36, 107
  %v1105 = vpop.permute.xlu0 %1104
  %1106 = vrot.lane.b32.xlu0 %v37, 107
  %v1107 = vpop.permute.xlu0 %1106
  %1108 = vrot.lane.b32.xlu0 %v38, 107
  %v1109 = vpop.permute.xlu0 %1108
  %1110 = vrot.lane.b32.xlu0 %v39, 107
  %v1111 = vpop.permute.xlu0 %1110
  %1112 = vrot.lane.b32.xlu0 %v40, 107
  %v1113 = vpop.permute.xlu0 %1112
  %1114 = vrot.lane.b32.xlu0 %v41, 107
  %v1115 = vpop.permute.xlu0 %1114
  %1116 = vrot.lane.b32.xlu0 %v42, 107
  %v1117 = vpop.permute.xlu0 %1116
  %1118 = vrot.lane.b32.xlu0 %v43, 107
  %v1119 = vpop.permute.xlu0 %1118
  %1120 = vrot.lane.b32.xlu0 %v44, 107
  %v1121 = vpop.permute.xlu0 %1120
  %1122 = vrot.lane.b32.xlu0 %v45, 107
  %v1123 = vpop.permute.xlu0 %1122
  %1124 = vrot.lane.b32.xlu0 %v46, 107
  %v1125 = vpop.permute.xlu0 %1124
  %1126 = vrot.lane.b32.xlu0 %v47, 107
  %v1127 = vpop.permute.xlu0 %1126
  %1128 = vrot.lane.b32.xlu0 %v48, 107
  %v1129 = vpop.permute.xlu0 %1128
  %1130 = vrot.lane.b32.xlu0 %v49, 107
  %v1131 = vpop.permute.xlu0 %1130
  %vm1132 = vcmask 875520
  %v1133 = vsel %vm1132, %v1105, %v1107
  %v1134 = vsel %vm1132, %v1107, %v1109
  %v1135 = vsel %vm1132, %v1109, %v1111
  %v1136 = vsel %vm1132, %v1111, %v1113
  %v1137 = vsel %vm1132, %v1113, %v1115
  %v1138 = vsel %vm1132, %v1115, %v1117
  %v1139 = vsel %vm1132, %v1119, %v1121
  %v1140 = vsel %vm1132, %v1121, %v1123
  %v1141 = vsel %vm1132, %v1123, %v1125
  %v1142 = vsel %vm1132, %v1125, %v1127
  %v1143 = vsel %vm1132, %v1127, %v1129
  %v1144 = vsel %vm1132, %v1129, %v1131
  %v1158 = vsel %vm119, %v1103, 0
  %1160 = vmatpush.msra.mxu0 0.0
  %1161 = vmatpush.msra.mxu0 0.0
  %1162 = vmatpush.msra.mxu0 0.0
  %1163 = vmatpush.msra.mxu0 0.0
  %1164 = vmatpush.msra.mxu0 0.0
  %1165 = vmatpush.msra.mxu0 0.0
  %1166 = vmatpush.msra.mxu0 0.0
  %1167 = vmatpush.msra.mxu0 0.0
  %1168 = vmatpush.msra.mxu0 0.0
  %1169 = vmatpush.msra.mxu0 0.0
  %1170 = vmatpush.msra.mxu0 0.0
  %1171 = vmatpush.msra.mxu0 0.0
  %1172 = vmatpush.msra.mxu0 0.0
  %1173 = vmatpush.msra.mxu0 0.0
  %1174 = vmatpush.msra.mxu0 %v1139
  %1175 = vmatpush.msra.mxu0 %v1133
  %1176 = vmatmul.f32.gmra.mxu0 %v1158
  %v1177 = vpop.f32.mrf.mxu0
  %v1178 = vadd.f32 0.0, %v1177
  %1179 = vdwg.mxu0
  %1180 = vmatpush.msra.mxu0 0.0
  %1181 = vmatpush.msra.mxu0 0.0
  %1182 = vmatpush.msra.mxu0 0.0
  %1183 = vmatpush.msra.mxu0 0.0
  %1184 = vmatpush.msra.mxu0 0.0
  %1185 = vmatpush.msra.mxu0 0.0
  %1186 = vmatpush.msra.mxu0 0.0
  %1187 = vmatpush.msra.mxu0 0.0
  %1188 = vmatpush.msra.mxu0 0.0
  %1189 = vmatpush.msra.mxu0 0.0
  %1190 = vmatpush.msra.mxu0 0.0
  %1191 = vmatpush.msra.mxu0 0.0
  %1192 = vmatpush.msra.mxu0 0.0
  %1193 = vmatpush.msra.mxu0 0.0
  %1194 = vmatpush.msra.mxu0 %v1140
  %1195 = vmatpush.msra.mxu0 %v1134
  %1196 = vmatmul.f32.gmra.mxu0 %v1158
  %v1197 = vpop.f32.mrf.mxu0
  %v1198 = vadd.f32 0.0, %v1197
  %1199 = vdwg.mxu0
  %1200 = vmatpush.msra.mxu0 0.0
  %1201 = vmatpush.msra.mxu0 0.0
  %1202 = vmatpush.msra.mxu0 0.0
  %1203 = vmatpush.msra.mxu0 0.0
  %1204 = vmatpush.msra.mxu0 0.0
  %1205 = vmatpush.msra.mxu0 0.0
  %1206 = vmatpush.msra.mxu0 0.0
  %1207 = vmatpush.msra.mxu0 0.0
  %1208 = vmatpush.msra.mxu0 0.0
  %1209 = vmatpush.msra.mxu0 0.0
  %1210 = vmatpush.msra.mxu0 0.0
  %1211 = vmatpush.msra.mxu0 0.0
  %1212 = vmatpush.msra.mxu0 0.0
  %1213 = vmatpush.msra.mxu0 0.0
  %1214 = vmatpush.msra.mxu0 %v1141
  %1215 = vmatpush.msra.mxu0 %v1135
  %1216 = vmatmul.f32.gmra.mxu0 %v1158
  %v1217 = vpop.f32.mrf.mxu0
  %v1218 = vadd.f32 0.0, %v1217
  %1219 = vdwg.mxu0
  %1220 = vmatpush.msra.mxu0 0.0
  %1221 = vmatpush.msra.mxu0 0.0
  %1222 = vmatpush.msra.mxu0 0.0
  %1223 = vmatpush.msra.mxu0 0.0
  %1224 = vmatpush.msra.mxu0 0.0
  %1225 = vmatpush.msra.mxu0 0.0
  %1226 = vmatpush.msra.mxu0 0.0
  %1227 = vmatpush.msra.mxu0 0.0
  %1228 = vmatpush.msra.mxu0 0.0
  %1229 = vmatpush.msra.mxu0 0.0
  %1230 = vmatpush.msra.mxu0 0.0
  %1231 = vmatpush.msra.mxu0 0.0
  %1232 = vmatpush.msra.mxu0 0.0
  %1233 = vmatpush.msra.mxu0 0.0
  %1234 = vmatpush.msra.mxu0 %v1142
  %1235 = vmatpush.msra.mxu0 %v1136
  %1236 = vmatmul.f32.gmra.mxu0 %v1158
  %v1237 = vpop.f32.mrf.mxu0
  %v1238 = vadd.f32 0.0, %v1237
  %1239 = vdwg.mxu0
  %1240 = vmatpush.msra.mxu0 0.0
  %1241 = vmatpush.msra.mxu0 0.0
  %1242 = vmatpush.msra.mxu0 0.0
  %1243 = vmatpush.msra.mxu0 0.0
  %1244 = vmatpush.msra.mxu0 0.0
  %1245 = vmatpush.msra.mxu0 0.0
  %1246 = vmatpush.msra.mxu0 0.0
  %1247 = vmatpush.msra.mxu0 0.0
  %1248 = vmatpush.msra.mxu0 0.0
  %1249 = vmatpush.msra.mxu0 0.0
  %1250 = vmatpush.msra.mxu0 0.0
  %1251 = vmatpush.msra.mxu0 0.0
  %1252 = vmatpush.msra.mxu0 0.0
  %1253 = vmatpush.msra.mxu0 0.0
  %1254 = vmatpush.msra.mxu0 %v1143
  %1255 = vmatpush.msra.mxu0 %v1137
  %1256 = vmatmul.f32.gmra.mxu0 %v1158
  %v1257 = vpop.f32.mrf.mxu0
  %v1258 = vadd.f32 0.0, %v1257
  %1259 = vdwg.mxu0
  %1260 = vmatpush.msra.mxu0 0.0
  %1261 = vmatpush.msra.mxu0 0.0
  %1262 = vmatpush.msra.mxu0 0.0
  %1263 = vmatpush.msra.mxu0 0.0
  %1264 = vmatpush.msra.mxu0 0.0
  %1265 = vmatpush.msra.mxu0 0.0
  %1266 = vmatpush.msra.mxu0 0.0
  %1267 = vmatpush.msra.mxu0 0.0
  %1268 = vmatpush.msra.mxu0 0.0
  %1269 = vmatpush.msra.mxu0 0.0
  %1270 = vmatpush.msra.mxu0 0.0
  %1271 = vmatpush.msra.mxu0 0.0
  %1272 = vmatpush.msra.mxu0 0.0
  %1273 = vmatpush.msra.mxu0 0.0
  %1274 = vmatpush.msra.mxu0 %v1144
  %1275 = vmatpush.msra.mxu0 %v1138
  %1276 = vmatmul.f32.gmra.mxu0 %v1158
  %v1277 = vpop.f32.mrf.mxu0
  %v1278 = vadd.f32 0.0, %v1277
  %1279 = vdwg.mxu0
  %v1280 = vadd.f32 %v1096, %v1178
  %v1281 = vadd.f32 %v1097, %v1198
  %v1282 = vadd.f32 %v1098, %v1218
  %v1283 = vadd.f32 %v1099, %v1238
  %v1284 = vadd.f32 %v1100, %v1258
  %v1285 = vadd.f32 %v1101, %v1278
  %s1286 = scalar_lea.vmem %s0, 56
  %v1287 = vld [vmem:[%s1286] sm:$0xff]
  %1288 = vrot.lane.b32.xlu0 %v36, 106
  %v1289 = vpop.permute.xlu0 %1288
  %1290 = vrot.lane.b32.xlu0 %v37, 106
  %v1291 = vpop.permute.xlu0 %1290
  %1292 = vrot.lane.b32.xlu0 %v38, 106
  %v1293 = vpop.permute.xlu0 %1292
  %1294 = vrot.lane.b32.xlu0 %v39, 106
  %v1295 = vpop.permute.xlu0 %1294
  %1296 = vrot.lane.b32.xlu0 %v40, 106
  %v1297 = vpop.permute.xlu0 %1296
  %1298 = vrot.lane.b32.xlu0 %v41, 106
  %v1299 = vpop.permute.xlu0 %1298
  %1300 = vrot.lane.b32.xlu0 %v42, 106
  %v1301 = vpop.permute.xlu0 %1300
  %1302 = vrot.lane.b32.xlu0 %v43, 106
  %v1303 = vpop.permute.xlu0 %1302
  %1304 = vrot.lane.b32.xlu0 %v44, 106
  %v1305 = vpop.permute.xlu0 %1304
  %1306 = vrot.lane.b32.xlu0 %v45, 106
  %v1307 = vpop.permute.xlu0 %1306
  %1308 = vrot.lane.b32.xlu0 %v46, 106
  %v1309 = vpop.permute.xlu0 %1308
  %1310 = vrot.lane.b32.xlu0 %v47, 106
  %v1311 = vpop.permute.xlu0 %1310
  %1312 = vrot.lane.b32.xlu0 %v48, 106
  %v1313 = vpop.permute.xlu0 %1312
  %1314 = vrot.lane.b32.xlu0 %v49, 106
  %v1315 = vpop.permute.xlu0 %1314
  %vm1316 = vcmask 867328
  %v1317 = vsel %vm1316, %v1289, %v1291
  %v1318 = vsel %vm1316, %v1291, %v1293
  %v1319 = vsel %vm1316, %v1293, %v1295
  %v1320 = vsel %vm1316, %v1295, %v1297
  %v1321 = vsel %vm1316, %v1297, %v1299
  %v1322 = vsel %vm1316, %v1299, %v1301
  %v1323 = vsel %vm1316, %v1303, %v1305
  %v1324 = vsel %vm1316, %v1305, %v1307
  %v1325 = vsel %vm1316, %v1307, %v1309
  %v1326 = vsel %vm1316, %v1309, %v1311
  %v1327 = vsel %vm1316, %v1311, %v1313
  %v1328 = vsel %vm1316, %v1313, %v1315
  %v1342 = vsel %vm119, %v1287, 0
  %1344 = vmatpush.msra.mxu0 0.0
  %1345 = vmatpush.msra.mxu0 0.0
  %1346 = vmatpush.msra.mxu0 0.0
  %1347 = vmatpush.msra.mxu0 0.0
  %1348 = vmatpush.msra.mxu0 0.0
  %1349 = vmatpush.msra.mxu0 0.0
  %1350 = vmatpush.msra.mxu0 0.0
  %1351 = vmatpush.msra.mxu0 0.0
  %1352 = vmatpush.msra.mxu0 0.0
  %1353 = vmatpush.msra.mxu0 0.0
  %1354 = vmatpush.msra.mxu0 0.0
  %1355 = vmatpush.msra.mxu0 0.0
  %1356 = vmatpush.msra.mxu0 0.0
  %1357 = vmatpush.msra.mxu0 0.0
  %1358 = vmatpush.msra.mxu0 %v1323
  %1359 = vmatpush.msra.mxu0 %v1317
  %1360 = vmatmul.f32.gmra.mxu0 %v1342
  %v1361 = vpop.f32.mrf.mxu0
  %v1362 = vadd.f32 0.0, %v1361
  %1363 = vdwg.mxu0
  %1364 = vmatpush.msra.mxu0 0.0
  %1365 = vmatpush.msra.mxu0 0.0
  %1366 = vmatpush.msra.mxu0 0.0
  %1367 = vmatpush.msra.mxu0 0.0
  %1368 = vmatpush.msra.mxu0 0.0
  %1369 = vmatpush.msra.mxu0 0.0
  %1370 = vmatpush.msra.mxu0 0.0
  %1371 = vmatpush.msra.mxu0 0.0
  %1372 = vmatpush.msra.mxu0 0.0
  %1373 = vmatpush.msra.mxu0 0.0
  %1374 = vmatpush.msra.mxu0 0.0
  %1375 = vmatpush.msra.mxu0 0.0
  %1376 = vmatpush.msra.mxu0 0.0
  %1377 = vmatpush.msra.mxu0 0.0
  %1378 = vmatpush.msra.mxu0 %v1324
  %1379 = vmatpush.msra.mxu0 %v1318
  %1380 = vmatmul.f32.gmra.mxu0 %v1342
  %v1381 = vpop.f32.mrf.mxu0
  %v1382 = vadd.f32 0.0, %v1381
  %1383 = vdwg.mxu0
  %1384 = vmatpush.msra.mxu0 0.0
  %1385 = vmatpush.msra.mxu0 0.0
  %1386 = vmatpush.msra.mxu0 0.0
  %1387 = vmatpush.msra.mxu0 0.0
  %1388 = vmatpush.msra.mxu0 0.0
  %1389 = vmatpush.msra.mxu0 0.0
  %1390 = vmatpush.msra.mxu0 0.0
  %1391 = vmatpush.msra.mxu0 0.0
  %1392 = vmatpush.msra.mxu0 0.0
  %1393 = vmatpush.msra.mxu0 0.0
  %1394 = vmatpush.msra.mxu0 0.0
  %1395 = vmatpush.msra.mxu0 0.0
  %1396 = vmatpush.msra.mxu0 0.0
  %1397 = vmatpush.msra.mxu0 0.0
  %1398 = vmatpush.msra.mxu0 %v1325
  %1399 = vmatpush.msra.mxu0 %v1319
  %1400 = vmatmul.f32.gmra.mxu0 %v1342
  %v1401 = vpop.f32.mrf.mxu0
  %v1402 = vadd.f32 0.0, %v1401
  %1403 = vdwg.mxu0
  %1404 = vmatpush.msra.mxu0 0.0
  %1405 = vmatpush.msra.mxu0 0.0
  %1406 = vmatpush.msra.mxu0 0.0
  %1407 = vmatpush.msra.mxu0 0.0
  %1408 = vmatpush.msra.mxu0 0.0
  %1409 = vmatpush.msra.mxu0 0.0
  %1410 = vmatpush.msra.mxu0 0.0
  %1411 = vmatpush.msra.mxu0 0.0
  %1412 = vmatpush.msra.mxu0 0.0
  %1413 = vmatpush.msra.mxu0 0.0
  %1414 = vmatpush.msra.mxu0 0.0
  %1415 = vmatpush.msra.mxu0 0.0
  %1416 = vmatpush.msra.mxu0 0.0
  %1417 = vmatpush.msra.mxu0 0.0
  %1418 = vmatpush.msra.mxu0 %v1326
  %1419 = vmatpush.msra.mxu0 %v1320
  %1420 = vmatmul.f32.gmra.mxu0 %v1342
  %v1421 = vpop.f32.mrf.mxu0
  %v1422 = vadd.f32 0.0, %v1421
  %1423 = vdwg.mxu0
  %1424 = vmatpush.msra.mxu0 0.0
  %1425 = vmatpush.msra.mxu0 0.0
  %1426 = vmatpush.msra.mxu0 0.0
  %1427 = vmatpush.msra.mxu0 0.0
  %1428 = vmatpush.msra.mxu0 0.0
  %1429 = vmatpush.msra.mxu0 0.0
  %1430 = vmatpush.msra.mxu0 0.0
  %1431 = vmatpush.msra.mxu0 0.0
  %1432 = vmatpush.msra.mxu0 0.0
  %1433 = vmatpush.msra.mxu0 0.0
  %1434 = vmatpush.msra.mxu0 0.0
  %1435 = vmatpush.msra.mxu0 0.0
  %1436 = vmatpush.msra.mxu0 0.0
  %1437 = vmatpush.msra.mxu0 0.0
  %1438 = vmatpush.msra.mxu0 %v1327
  %1439 = vmatpush.msra.mxu0 %v1321
  %1440 = vmatmul.f32.gmra.mxu0 %v1342
  %v1441 = vpop.f32.mrf.mxu0
  %v1442 = vadd.f32 0.0, %v1441
  %1443 = vdwg.mxu0
  %1444 = vmatpush.msra.mxu0 0.0
  %1445 = vmatpush.msra.mxu0 0.0
  %1446 = vmatpush.msra.mxu0 0.0
  %1447 = vmatpush.msra.mxu0 0.0
  %1448 = vmatpush.msra.mxu0 0.0
  %1449 = vmatpush.msra.mxu0 0.0
  %1450 = vmatpush.msra.mxu0 0.0
  %1451 = vmatpush.msra.mxu0 0.0
  %1452 = vmatpush.msra.mxu0 0.0
  %1453 = vmatpush.msra.mxu0 0.0
  %1454 = vmatpush.msra.mxu0 0.0
  %1455 = vmatpush.msra.mxu0 0.0
  %1456 = vmatpush.msra.mxu0 0.0
  %1457 = vmatpush.msra.mxu0 0.0
  %1458 = vmatpush.msra.mxu0 %v1328
  %1459 = vmatpush.msra.mxu0 %v1322
  %1460 = vmatmul.f32.gmra.mxu0 %v1342
  %v1461 = vpop.f32.mrf.mxu0
  %v1462 = vadd.f32 0.0, %v1461
  %1463 = vdwg.mxu0
  %v1464 = vadd.f32 %v1280, %v1362
  %v1465 = vadd.f32 %v1281, %v1382
  %v1466 = vadd.f32 %v1282, %v1402
  %v1467 = vadd.f32 %v1283, %v1422
  %v1468 = vadd.f32 %v1284, %v1442
  %v1469 = vadd.f32 %v1285, %v1462
  %s1470 = scalar_lea.vmem %s0, 64
  %v1471 = vld [vmem:[%s1470] sm:$0xff]
  %1472 = vrot.lane.b32.xlu0 %v36, 90
  %v1473 = vpop.permute.xlu0 %1472
  %1474 = vrot.lane.b32.xlu0 %v37, 90
  %v1475 = vpop.permute.xlu0 %1474
  %1476 = vrot.lane.b32.xlu0 %v38, 90
  %v1477 = vpop.permute.xlu0 %1476
  %1478 = vrot.lane.b32.xlu0 %v39, 90
  %v1479 = vpop.permute.xlu0 %1478
  %1480 = vrot.lane.b32.xlu0 %v40, 90
  %v1481 = vpop.permute.xlu0 %1480
  %1482 = vrot.lane.b32.xlu0 %v41, 90
  %v1483 = vpop.permute.xlu0 %1482
  %1484 = vrot.lane.b32.xlu0 %v42, 90
  %v1485 = vpop.permute.xlu0 %1484
  %1486 = vrot.lane.b32.xlu0 %v43, 90
  %v1487 = vpop.permute.xlu0 %1486
  %1488 = vrot.lane.b32.xlu0 %v44, 90
  %v1489 = vpop.permute.xlu0 %1488
  %1490 = vrot.lane.b32.xlu0 %v45, 90
  %v1491 = vpop.permute.xlu0 %1490
  %1492 = vrot.lane.b32.xlu0 %v46, 90
  %v1493 = vpop.permute.xlu0 %1492
  %1494 = vrot.lane.b32.xlu0 %v47, 90
  %v1495 = vpop.permute.xlu0 %1494
  %1496 = vrot.lane.b32.xlu0 %v48, 90
  %v1497 = vpop.permute.xlu0 %1496
  %1498 = vrot.lane.b32.xlu0 %v49, 90
  %v1499 = vpop.permute.xlu0 %1498
  %vm1500 = vcmask 736256
  %v1501 = vsel %vm1500, %v1473, %v1475
  %v1502 = vsel %vm1500, %v1475, %v1477
  %v1503 = vsel %vm1500, %v1477, %v1479
  %v1504 = vsel %vm1500, %v1479, %v1481
  %v1505 = vsel %vm1500, %v1481, %v1483
  %v1506 = vsel %vm1500, %v1483, %v1485
  %v1507 = vsel %vm1500, %v1487, %v1489
  %v1508 = vsel %vm1500, %v1489, %v1491
  %v1509 = vsel %vm1500, %v1491, %v1493
  %v1510 = vsel %vm1500, %v1493, %v1495
  %v1511 = vsel %vm1500, %v1495, %v1497
  %v1512 = vsel %vm1500, %v1497, %v1499
  %v1526 = vsel %vm119, %v1471, 0
  %1528 = vmatpush.msra.mxu0 0.0
  %1529 = vmatpush.msra.mxu0 0.0
  %1530 = vmatpush.msra.mxu0 0.0
  %1531 = vmatpush.msra.mxu0 0.0
  %1532 = vmatpush.msra.mxu0 0.0
  %1533 = vmatpush.msra.mxu0 0.0
  %1534 = vmatpush.msra.mxu0 0.0
  %1535 = vmatpush.msra.mxu0 0.0
  %1536 = vmatpush.msra.mxu0 0.0
  %1537 = vmatpush.msra.mxu0 0.0
  %1538 = vmatpush.msra.mxu0 0.0
  %1539 = vmatpush.msra.mxu0 0.0
  %1540 = vmatpush.msra.mxu0 0.0
  %1541 = vmatpush.msra.mxu0 0.0
  %1542 = vmatpush.msra.mxu0 %v1507
  %1543 = vmatpush.msra.mxu0 %v1501
  %1544 = vmatmul.f32.gmra.mxu0 %v1526
  %v1545 = vpop.f32.mrf.mxu0
  %v1546 = vadd.f32 0.0, %v1545
  %1547 = vdwg.mxu0
  %1548 = vmatpush.msra.mxu0 0.0
  %1549 = vmatpush.msra.mxu0 0.0
  %1550 = vmatpush.msra.mxu0 0.0
  %1551 = vmatpush.msra.mxu0 0.0
  %1552 = vmatpush.msra.mxu0 0.0
  %1553 = vmatpush.msra.mxu0 0.0
  %1554 = vmatpush.msra.mxu0 0.0
  %1555 = vmatpush.msra.mxu0 0.0
  %1556 = vmatpush.msra.mxu0 0.0
  %1557 = vmatpush.msra.mxu0 0.0
  %1558 = vmatpush.msra.mxu0 0.0
  %1559 = vmatpush.msra.mxu0 0.0
  %1560 = vmatpush.msra.mxu0 0.0
  %1561 = vmatpush.msra.mxu0 0.0
  %1562 = vmatpush.msra.mxu0 %v1508
  %1563 = vmatpush.msra.mxu0 %v1502
  %1564 = vmatmul.f32.gmra.mxu0 %v1526
  %v1565 = vpop.f32.mrf.mxu0
  %v1566 = vadd.f32 0.0, %v1565
  %1567 = vdwg.mxu0
  %1568 = vmatpush.msra.mxu0 0.0
  %1569 = vmatpush.msra.mxu0 0.0
  %1570 = vmatpush.msra.mxu0 0.0
  %1571 = vmatpush.msra.mxu0 0.0
  %1572 = vmatpush.msra.mxu0 0.0
  %1573 = vmatpush.msra.mxu0 0.0
  %1574 = vmatpush.msra.mxu0 0.0
  %1575 = vmatpush.msra.mxu0 0.0
  %1576 = vmatpush.msra.mxu0 0.0
  %1577 = vmatpush.msra.mxu0 0.0
  %1578 = vmatpush.msra.mxu0 0.0
  %1579 = vmatpush.msra.mxu0 0.0
  %1580 = vmatpush.msra.mxu0 0.0
  %1581 = vmatpush.msra.mxu0 0.0
  %1582 = vmatpush.msra.mxu0 %v1509
  %1583 = vmatpush.msra.mxu0 %v1503
  %1584 = vmatmul.f32.gmra.mxu0 %v1526
  %v1585 = vpop.f32.mrf.mxu0
  %v1586 = vadd.f32 0.0, %v1585
  %1587 = vdwg.mxu0
  %1588 = vmatpush.msra.mxu0 0.0
  %1589 = vmatpush.msra.mxu0 0.0
  %1590 = vmatpush.msra.mxu0 0.0
  %1591 = vmatpush.msra.mxu0 0.0
  %1592 = vmatpush.msra.mxu0 0.0
  %1593 = vmatpush.msra.mxu0 0.0
  %1594 = vmatpush.msra.mxu0 0.0
  %1595 = vmatpush.msra.mxu0 0.0
  %1596 = vmatpush.msra.mxu0 0.0
  %1597 = vmatpush.msra.mxu0 0.0
  %1598 = vmatpush.msra.mxu0 0.0
  %1599 = vmatpush.msra.mxu0 0.0
  %1600 = vmatpush.msra.mxu0 0.0
  %1601 = vmatpush.msra.mxu0 0.0
  %1602 = vmatpush.msra.mxu0 %v1510
  %1603 = vmatpush.msra.mxu0 %v1504
  %1604 = vmatmul.f32.gmra.mxu0 %v1526
  %v1605 = vpop.f32.mrf.mxu0
  %v1606 = vadd.f32 0.0, %v1605
  %1607 = vdwg.mxu0
  %1608 = vmatpush.msra.mxu0 0.0
  %1609 = vmatpush.msra.mxu0 0.0
  %1610 = vmatpush.msra.mxu0 0.0
  %1611 = vmatpush.msra.mxu0 0.0
  %1612 = vmatpush.msra.mxu0 0.0
  %1613 = vmatpush.msra.mxu0 0.0
  %1614 = vmatpush.msra.mxu0 0.0
  %1615 = vmatpush.msra.mxu0 0.0
  %1616 = vmatpush.msra.mxu0 0.0
  %1617 = vmatpush.msra.mxu0 0.0
  %1618 = vmatpush.msra.mxu0 0.0
  %1619 = vmatpush.msra.mxu0 0.0
  %1620 = vmatpush.msra.mxu0 0.0
  %1621 = vmatpush.msra.mxu0 0.0
  %1622 = vmatpush.msra.mxu0 %v1511
  %1623 = vmatpush.msra.mxu0 %v1505
  %1624 = vmatmul.f32.gmra.mxu0 %v1526
  %v1625 = vpop.f32.mrf.mxu0
  %v1626 = vadd.f32 0.0, %v1625
  %1627 = vdwg.mxu0
  %1628 = vmatpush.msra.mxu0 0.0
  %1629 = vmatpush.msra.mxu0 0.0
  %1630 = vmatpush.msra.mxu0 0.0
  %1631 = vmatpush.msra.mxu0 0.0
  %1632 = vmatpush.msra.mxu0 0.0
  %1633 = vmatpush.msra.mxu0 0.0
  %1634 = vmatpush.msra.mxu0 0.0
  %1635 = vmatpush.msra.mxu0 0.0
  %1636 = vmatpush.msra.mxu0 0.0
  %1637 = vmatpush.msra.mxu0 0.0
  %1638 = vmatpush.msra.mxu0 0.0
  %1639 = vmatpush.msra.mxu0 0.0
  %1640 = vmatpush.msra.mxu0 0.0
  %1641 = vmatpush.msra.mxu0 0.0
  %1642 = vmatpush.msra.mxu0 %v1512
  %1643 = vmatpush.msra.mxu0 %v1506
  %1644 = vmatmul.f32.gmra.mxu0 %v1526
  %v1645 = vpop.f32.mrf.mxu0
  %v1646 = vadd.f32 0.0, %v1645
  %1647 = vdwg.mxu0
  %v1648 = vadd.f32 %v1464, %v1546
  %v1649 = vadd.f32 %v1465, %v1566
  %v1650 = vadd.f32 %v1466, %v1586
  %v1651 = vadd.f32 %v1467, %v1606
  %v1652 = vadd.f32 %v1468, %v1626
  %v1653 = vadd.f32 %v1469, %v1646
  %s1654 = scalar_lea.vmem %s0, 72
  %v1655 = vld [vmem:[%s1654] sm:$0xff]
  %1656 = vrot.lane.b32.xlu0 %v36, 89
  %v1657 = vpop.permute.xlu0 %1656
  %1658 = vrot.lane.b32.xlu0 %v37, 89
  %v1659 = vpop.permute.xlu0 %1658
  %1660 = vrot.lane.b32.xlu0 %v38, 89
  %v1661 = vpop.permute.xlu0 %1660
  %1662 = vrot.lane.b32.xlu0 %v39, 89
  %v1663 = vpop.permute.xlu0 %1662
  %1664 = vrot.lane.b32.xlu0 %v40, 89
  %v1665 = vpop.permute.xlu0 %1664
  %1666 = vrot.lane.b32.xlu0 %v41, 89
  %v1667 = vpop.permute.xlu0 %1666
  %1668 = vrot.lane.b32.xlu0 %v42, 89
  %v1669 = vpop.permute.xlu0 %1668
  %1670 = vrot.lane.b32.xlu0 %v43, 89
  %v1671 = vpop.permute.xlu0 %1670
  %1672 = vrot.lane.b32.xlu0 %v44, 89
  %v1673 = vpop.permute.xlu0 %1672
  %1674 = vrot.lane.b32.xlu0 %v45, 89
  %v1675 = vpop.permute.xlu0 %1674
  %1676 = vrot.lane.b32.xlu0 %v46, 89
  %v1677 = vpop.permute.xlu0 %1676
  %1678 = vrot.lane.b32.xlu0 %v47, 89
  %v1679 = vpop.permute.xlu0 %1678
  %1680 = vrot.lane.b32.xlu0 %v48, 89
  %v1681 = vpop.permute.xlu0 %1680
  %1682 = vrot.lane.b32.xlu0 %v49, 89
  %v1683 = vpop.permute.xlu0 %1682
  %vm1684 = vcmask 728064
  %v1685 = vsel %vm1684, %v1657, %v1659
  %v1686 = vsel %vm1684, %v1659, %v1661
  %v1687 = vsel %vm1684, %v1661, %v1663
  %v1688 = vsel %vm1684, %v1663, %v1665
  %v1689 = vsel %vm1684, %v1665, %v1667
  %v1690 = vsel %vm1684, %v1667, %v1669
  %v1691 = vsel %vm1684, %v1671, %v1673
  %v1692 = vsel %vm1684, %v1673, %v1675
  %v1693 = vsel %vm1684, %v1675, %v1677
  %v1694 = vsel %vm1684, %v1677, %v1679
  %v1695 = vsel %vm1684, %v1679, %v1681
  %v1696 = vsel %vm1684, %v1681, %v1683
  %v1710 = vsel %vm119, %v1655, 0
  %1712 = vmatpush.msra.mxu0 0.0
  %1713 = vmatpush.msra.mxu0 0.0
  %1714 = vmatpush.msra.mxu0 0.0
  %1715 = vmatpush.msra.mxu0 0.0
  %1716 = vmatpush.msra.mxu0 0.0
  %1717 = vmatpush.msra.mxu0 0.0
  %1718 = vmatpush.msra.mxu0 0.0
  %1719 = vmatpush.msra.mxu0 0.0
  %1720 = vmatpush.msra.mxu0 0.0
  %1721 = vmatpush.msra.mxu0 0.0
  %1722 = vmatpush.msra.mxu0 0.0
  %1723 = vmatpush.msra.mxu0 0.0
  %1724 = vmatpush.msra.mxu0 0.0
  %1725 = vmatpush.msra.mxu0 0.0
  %1726 = vmatpush.msra.mxu0 %v1691
  %1727 = vmatpush.msra.mxu0 %v1685
  %1728 = vmatmul.f32.gmra.mxu0 %v1710
  %v1729 = vpop.f32.mrf.mxu0
  %v1730 = vadd.f32 0.0, %v1729
  %1731 = vdwg.mxu0
  %1732 = vmatpush.msra.mxu0 0.0
  %1733 = vmatpush.msra.mxu0 0.0
  %1734 = vmatpush.msra.mxu0 0.0
  %1735 = vmatpush.msra.mxu0 0.0
  %1736 = vmatpush.msra.mxu0 0.0
  %1737 = vmatpush.msra.mxu0 0.0
  %1738 = vmatpush.msra.mxu0 0.0
  %1739 = vmatpush.msra.mxu0 0.0
  %1740 = vmatpush.msra.mxu0 0.0
  %1741 = vmatpush.msra.mxu0 0.0
  %1742 = vmatpush.msra.mxu0 0.0
  %1743 = vmatpush.msra.mxu0 0.0
  %1744 = vmatpush.msra.mxu0 0.0
  %1745 = vmatpush.msra.mxu0 0.0
  %1746 = vmatpush.msra.mxu0 %v1692
  %1747 = vmatpush.msra.mxu0 %v1686
  %1748 = vmatmul.f32.gmra.mxu0 %v1710
  %v1749 = vpop.f32.mrf.mxu0
  %v1750 = vadd.f32 0.0, %v1749
  %1751 = vdwg.mxu0
  %1752 = vmatpush.msra.mxu0 0.0
  %1753 = vmatpush.msra.mxu0 0.0
  %1754 = vmatpush.msra.mxu0 0.0
  %1755 = vmatpush.msra.mxu0 0.0
  %1756 = vmatpush.msra.mxu0 0.0
  %1757 = vmatpush.msra.mxu0 0.0
  %1758 = vmatpush.msra.mxu0 0.0
  %1759 = vmatpush.msra.mxu0 0.0
  %1760 = vmatpush.msra.mxu0 0.0
  %1761 = vmatpush.msra.mxu0 0.0
  %1762 = vmatpush.msra.mxu0 0.0
  %1763 = vmatpush.msra.mxu0 0.0
  %1764 = vmatpush.msra.mxu0 0.0
  %1765 = vmatpush.msra.mxu0 0.0
  %1766 = vmatpush.msra.mxu0 %v1693
  %1767 = vmatpush.msra.mxu0 %v1687
  %1768 = vmatmul.f32.gmra.mxu0 %v1710
  %v1769 = vpop.f32.mrf.mxu0
  %v1770 = vadd.f32 0.0, %v1769
  %1771 = vdwg.mxu0
  %1772 = vmatpush.msra.mxu0 0.0
  %1773 = vmatpush.msra.mxu0 0.0
  %1774 = vmatpush.msra.mxu0 0.0
  %1775 = vmatpush.msra.mxu0 0.0
  %1776 = vmatpush.msra.mxu0 0.0
  %1777 = vmatpush.msra.mxu0 0.0
  %1778 = vmatpush.msra.mxu0 0.0
  %1779 = vmatpush.msra.mxu0 0.0
  %1780 = vmatpush.msra.mxu0 0.0
  %1781 = vmatpush.msra.mxu0 0.0
  %1782 = vmatpush.msra.mxu0 0.0
  %1783 = vmatpush.msra.mxu0 0.0
  %1784 = vmatpush.msra.mxu0 0.0
  %1785 = vmatpush.msra.mxu0 0.0
  %1786 = vmatpush.msra.mxu0 %v1694
  %1787 = vmatpush.msra.mxu0 %v1688
  %1788 = vmatmul.f32.gmra.mxu0 %v1710
  %v1789 = vpop.f32.mrf.mxu0
  %v1790 = vadd.f32 0.0, %v1789
  %1791 = vdwg.mxu0
  %1792 = vmatpush.msra.mxu0 0.0
  %1793 = vmatpush.msra.mxu0 0.0
  %1794 = vmatpush.msra.mxu0 0.0
  %1795 = vmatpush.msra.mxu0 0.0
  %1796 = vmatpush.msra.mxu0 0.0
  %1797 = vmatpush.msra.mxu0 0.0
  %1798 = vmatpush.msra.mxu0 0.0
  %1799 = vmatpush.msra.mxu0 0.0
  %1800 = vmatpush.msra.mxu0 0.0
  %1801 = vmatpush.msra.mxu0 0.0
  %1802 = vmatpush.msra.mxu0 0.0
  %1803 = vmatpush.msra.mxu0 0.0
  %1804 = vmatpush.msra.mxu0 0.0
  %1805 = vmatpush.msra.mxu0 0.0
  %1806 = vmatpush.msra.mxu0 %v1695
  %1807 = vmatpush.msra.mxu0 %v1689
  %1808 = vmatmul.f32.gmra.mxu0 %v1710
  %v1809 = vpop.f32.mrf.mxu0
  %v1810 = vadd.f32 0.0, %v1809
  %1811 = vdwg.mxu0
  %1812 = vmatpush.msra.mxu0 0.0
  %1813 = vmatpush.msra.mxu0 0.0
  %1814 = vmatpush.msra.mxu0 0.0
  %1815 = vmatpush.msra.mxu0 0.0
  %1816 = vmatpush.msra.mxu0 0.0
  %1817 = vmatpush.msra.mxu0 0.0
  %1818 = vmatpush.msra.mxu0 0.0
  %1819 = vmatpush.msra.mxu0 0.0
  %1820 = vmatpush.msra.mxu0 0.0
  %1821 = vmatpush.msra.mxu0 0.0
  %1822 = vmatpush.msra.mxu0 0.0
  %1823 = vmatpush.msra.mxu0 0.0
  %1824 = vmatpush.msra.mxu0 0.0
  %1825 = vmatpush.msra.mxu0 0.0
  %1826 = vmatpush.msra.mxu0 %v1696
  %1827 = vmatpush.msra.mxu0 %v1690
  %1828 = vmatmul.f32.gmra.mxu0 %v1710
  %v1829 = vpop.f32.mrf.mxu0
  %v1830 = vadd.f32 0.0, %v1829
  %1831 = vdwg.mxu0
  %v1832 = vadd.f32 %v1648, %v1730
  %v1833 = vadd.f32 %v1649, %v1750
  %v1834 = vadd.f32 %v1650, %v1770
  %v1835 = vadd.f32 %v1651, %v1790
  %v1836 = vadd.f32 %v1652, %v1810
  %v1837 = vadd.f32 %v1653, %v1830
  %s1838 = scalar_lea.vmem %s0, 80
  %v1839 = vld [vmem:[%s1838] sm:$0xff]
  %1840 = vrot.lane.b32.xlu0 %v36, 88
  %v1841 = vpop.permute.xlu0 %1840
  %1842 = vrot.lane.b32.xlu0 %v37, 88
  %v1843 = vpop.permute.xlu0 %1842
  %1844 = vrot.lane.b32.xlu0 %v38, 88
  %v1845 = vpop.permute.xlu0 %1844
  %1846 = vrot.lane.b32.xlu0 %v39, 88
  %v1847 = vpop.permute.xlu0 %1846
  %1848 = vrot.lane.b32.xlu0 %v40, 88
  %v1849 = vpop.permute.xlu0 %1848
  %1850 = vrot.lane.b32.xlu0 %v41, 88
  %v1851 = vpop.permute.xlu0 %1850
  %1852 = vrot.lane.b32.xlu0 %v42, 88
  %v1853 = vpop.permute.xlu0 %1852
  %1854 = vrot.lane.b32.xlu0 %v43, 88
  %v1855 = vpop.permute.xlu0 %1854
  %1856 = vrot.lane.b32.xlu0 %v44, 88
  %v1857 = vpop.permute.xlu0 %1856
  %1858 = vrot.lane.b32.xlu0 %v45, 88
  %v1859 = vpop.permute.xlu0 %1858
  %1860 = vrot.lane.b32.xlu0 %v46, 88
  %v1861 = vpop.permute.xlu0 %1860
  %1862 = vrot.lane.b32.xlu0 %v47, 88
  %v1863 = vpop.permute.xlu0 %1862
  %1864 = vrot.lane.b32.xlu0 %v48, 88
  %v1865 = vpop.permute.xlu0 %1864
  %1866 = vrot.lane.b32.xlu0 %v49, 88
  %v1867 = vpop.permute.xlu0 %1866
  %vm1868 = vcmask 719872
  %v1869 = vsel %vm1868, %v1841, %v1843
  %v1870 = vsel %vm1868, %v1843, %v1845
  %v1871 = vsel %vm1868, %v1845, %v1847
  %v1872 = vsel %vm1868, %v1847, %v1849
  %v1873 = vsel %vm1868, %v1849, %v1851
  %v1874 = vsel %vm1868, %v1851, %v1853
  %v1875 = vsel %vm1868, %v1855, %v1857
  %v1876 = vsel %vm1868, %v1857, %v1859
  %v1877 = vsel %vm1868, %v1859, %v1861
  %v1878 = vsel %vm1868, %v1861, %v1863
  %v1879 = vsel %vm1868, %v1863, %v1865
  %v1880 = vsel %vm1868, %v1865, %v1867
  %v1894 = vsel %vm119, %v1839, 0
  %1896 = vmatpush.msra.mxu0 0.0
  %1897 = vmatpush.msra.mxu0 0.0
  %1898 = vmatpush.msra.mxu0 0.0
  %1899 = vmatpush.msra.mxu0 0.0
  %1900 = vmatpush.msra.mxu0 0.0
  %1901 = vmatpush.msra.mxu0 0.0
  %1902 = vmatpush.msra.mxu0 0.0
  %1903 = vmatpush.msra.mxu0 0.0
  %1904 = vmatpush.msra.mxu0 0.0
  %1905 = vmatpush.msra.mxu0 0.0
  %1906 = vmatpush.msra.mxu0 0.0
  %1907 = vmatpush.msra.mxu0 0.0
  %1908 = vmatpush.msra.mxu0 0.0
  %1909 = vmatpush.msra.mxu0 0.0
  %1910 = vmatpush.msra.mxu0 %v1875
  %1911 = vmatpush.msra.mxu0 %v1869
  %1912 = vmatmul.f32.gmra.mxu0 %v1894
  %v1913 = vpop.f32.mrf.mxu0
  %v1914 = vadd.f32 0.0, %v1913
  %1915 = vdwg.mxu0
  %1916 = vmatpush.msra.mxu0 0.0
  %1917 = vmatpush.msra.mxu0 0.0
  %1918 = vmatpush.msra.mxu0 0.0
  %1919 = vmatpush.msra.mxu0 0.0
  %1920 = vmatpush.msra.mxu0 0.0
  %1921 = vmatpush.msra.mxu0 0.0
  %1922 = vmatpush.msra.mxu0 0.0
  %1923 = vmatpush.msra.mxu0 0.0
  %1924 = vmatpush.msra.mxu0 0.0
  %1925 = vmatpush.msra.mxu0 0.0
  %1926 = vmatpush.msra.mxu0 0.0
  %1927 = vmatpush.msra.mxu0 0.0
  %1928 = vmatpush.msra.mxu0 0.0
  %1929 = vmatpush.msra.mxu0 0.0
  %1930 = vmatpush.msra.mxu0 %v1876
  %1931 = vmatpush.msra.mxu0 %v1870
  %1932 = vmatmul.f32.gmra.mxu0 %v1894
  %v1933 = vpop.f32.mrf.mxu0
  %v1934 = vadd.f32 0.0, %v1933
  %1935 = vdwg.mxu0
  %1936 = vmatpush.msra.mxu0 0.0
  %1937 = vmatpush.msra.mxu0 0.0
  %1938 = vmatpush.msra.mxu0 0.0
  %1939 = vmatpush.msra.mxu0 0.0
  %1940 = vmatpush.msra.mxu0 0.0
  %1941 = vmatpush.msra.mxu0 0.0
  %1942 = vmatpush.msra.mxu0 0.0
  %1943 = vmatpush.msra.mxu0 0.0
  %1944 = vmatpush.msra.mxu0 0.0
  %1945 = vmatpush.msra.mxu0 0.0
  %1946 = vmatpush.msra.mxu0 0.0
  %1947 = vmatpush.msra.mxu0 0.0
  %1948 = vmatpush.msra.mxu0 0.0
  %1949 = vmatpush.msra.mxu0 0.0
  %1950 = vmatpush.msra.mxu0 %v1877
  %1951 = vmatpush.msra.mxu0 %v1871
  %1952 = vmatmul.f32.gmra.mxu0 %v1894
  %v1953 = vpop.f32.mrf.mxu0
  %v1954 = vadd.f32 0.0, %v1953
  %1955 = vdwg.mxu0
  %1956 = vmatpush.msra.mxu0 0.0
  %1957 = vmatpush.msra.mxu0 0.0
  %1958 = vmatpush.msra.mxu0 0.0
  %1959 = vmatpush.msra.mxu0 0.0
  %1960 = vmatpush.msra.mxu0 0.0
  %1961 = vmatpush.msra.mxu0 0.0
  %1962 = vmatpush.msra.mxu0 0.0
  %1963 = vmatpush.msra.mxu0 0.0
  %1964 = vmatpush.msra.mxu0 0.0
  %1965 = vmatpush.msra.mxu0 0.0
  %1966 = vmatpush.msra.mxu0 0.0
  %1967 = vmatpush.msra.mxu0 0.0
  %1968 = vmatpush.msra.mxu0 0.0
  %1969 = vmatpush.msra.mxu0 0.0
  %1970 = vmatpush.msra.mxu0 %v1878
  %1971 = vmatpush.msra.mxu0 %v1872
  %1972 = vmatmul.f32.gmra.mxu0 %v1894
  %v1973 = vpop.f32.mrf.mxu0
  %v1974 = vadd.f32 0.0, %v1973
  %1975 = vdwg.mxu0
  %1976 = vmatpush.msra.mxu0 0.0
  %1977 = vmatpush.msra.mxu0 0.0
  %1978 = vmatpush.msra.mxu0 0.0
  %1979 = vmatpush.msra.mxu0 0.0
  %1980 = vmatpush.msra.mxu0 0.0
  %1981 = vmatpush.msra.mxu0 0.0
  %1982 = vmatpush.msra.mxu0 0.0
  %1983 = vmatpush.msra.mxu0 0.0
  %1984 = vmatpush.msra.mxu0 0.0
  %1985 = vmatpush.msra.mxu0 0.0
  %1986 = vmatpush.msra.mxu0 0.0
  %1987 = vmatpush.msra.mxu0 0.0
  %1988 = vmatpush.msra.mxu0 0.0
  %1989 = vmatpush.msra.mxu0 0.0
  %1990 = vmatpush.msra.mxu0 %v1879
  %1991 = vmatpush.msra.mxu0 %v1873
  %1992 = vmatmul.f32.gmra.mxu0 %v1894
  %v1993 = vpop.f32.mrf.mxu0
  %v1994 = vadd.f32 0.0, %v1993
  %1995 = vdwg.mxu0
  %1996 = vmatpush.msra.mxu0 0.0
  %1997 = vmatpush.msra.mxu0 0.0
  %1998 = vmatpush.msra.mxu0 0.0
  %1999 = vmatpush.msra.mxu0 0.0
  %2000 = vmatpush.msra.mxu0 0.0
  %2001 = vmatpush.msra.mxu0 0.0
  %2002 = vmatpush.msra.mxu0 0.0
  %2003 = vmatpush.msra.mxu0 0.0
  %2004 = vmatpush.msra.mxu0 0.0
  %2005 = vmatpush.msra.mxu0 0.0
  %2006 = vmatpush.msra.mxu0 0.0
  %2007 = vmatpush.msra.mxu0 0.0
  %2008 = vmatpush.msra.mxu0 0.0
  %2009 = vmatpush.msra.mxu0 0.0
  %2010 = vmatpush.msra.mxu0 %v1880
  %2011 = vmatpush.msra.mxu0 %v1874
  %2012 = vmatmul.f32.gmra.mxu0 %v1894
  %v2013 = vpop.f32.mrf.mxu0
  %v2014 = vadd.f32 0.0, %v2013
  %2015 = vdwg.mxu0
  %v2016 = vadd.f32 %v1832, %v1914
  %v2017 = vadd.f32 %v1833, %v1934
  %v2018 = vadd.f32 %v1834, %v1954
  %v2019 = vadd.f32 %v1835, %v1974
  %v2020 = vadd.f32 %v1836, %v1994
  %v2021 = vadd.f32 %v1837, %v2014
  %s2022 = scalar_lea.vmem %s0, 88
  %v2023 = vld [vmem:[%s2022] sm:$0xff]
  %2024 = vrot.lane.b32.xlu0 %v36, 87
  %v2025 = vpop.permute.xlu0 %2024
  %2026 = vrot.lane.b32.xlu0 %v37, 87
  %v2027 = vpop.permute.xlu0 %2026
  %2028 = vrot.lane.b32.xlu0 %v38, 87
  %v2029 = vpop.permute.xlu0 %2028
  %2030 = vrot.lane.b32.xlu0 %v39, 87
  %v2031 = vpop.permute.xlu0 %2030
  %2032 = vrot.lane.b32.xlu0 %v40, 87
  %v2033 = vpop.permute.xlu0 %2032
  %2034 = vrot.lane.b32.xlu0 %v41, 87
  %v2035 = vpop.permute.xlu0 %2034
  %2036 = vrot.lane.b32.xlu0 %v42, 87
  %v2037 = vpop.permute.xlu0 %2036
  %2038 = vrot.lane.b32.xlu0 %v43, 87
  %v2039 = vpop.permute.xlu0 %2038
  %2040 = vrot.lane.b32.xlu0 %v44, 87
  %v2041 = vpop.permute.xlu0 %2040
  %2042 = vrot.lane.b32.xlu0 %v45, 87
  %v2043 = vpop.permute.xlu0 %2042
  %2044 = vrot.lane.b32.xlu0 %v46, 87
  %v2045 = vpop.permute.xlu0 %2044
  %2046 = vrot.lane.b32.xlu0 %v47, 87
  %v2047 = vpop.permute.xlu0 %2046
  %2048 = vrot.lane.b32.xlu0 %v48, 87
  %v2049 = vpop.permute.xlu0 %2048
  %2050 = vrot.lane.b32.xlu0 %v49, 87
  %v2051 = vpop.permute.xlu0 %2050
  %vm2052 = vcmask 711680
  %v2053 = vsel %vm2052, %v2025, %v2027
  %v2054 = vsel %vm2052, %v2027, %v2029
  %v2055 = vsel %vm2052, %v2029, %v2031
  %v2056 = vsel %vm2052, %v2031, %v2033
  %v2057 = vsel %vm2052, %v2033, %v2035
  %v2058 = vsel %vm2052, %v2035, %v2037
  %v2059 = vsel %vm2052, %v2039, %v2041
  %v2060 = vsel %vm2052, %v2041, %v2043
  %v2061 = vsel %vm2052, %v2043, %v2045
  %v2062 = vsel %vm2052, %v2045, %v2047
  %v2063 = vsel %vm2052, %v2047, %v2049
  %v2064 = vsel %vm2052, %v2049, %v2051
  %v2078 = vsel %vm119, %v2023, 0
  %2080 = vmatpush.msra.mxu0 0.0
  %2081 = vmatpush.msra.mxu0 0.0
  %2082 = vmatpush.msra.mxu0 0.0
  %2083 = vmatpush.msra.mxu0 0.0
  %2084 = vmatpush.msra.mxu0 0.0
  %2085 = vmatpush.msra.mxu0 0.0
  %2086 = vmatpush.msra.mxu0 0.0
  %2087 = vmatpush.msra.mxu0 0.0
  %2088 = vmatpush.msra.mxu0 0.0
  %2089 = vmatpush.msra.mxu0 0.0
  %2090 = vmatpush.msra.mxu0 0.0
  %2091 = vmatpush.msra.mxu0 0.0
  %2092 = vmatpush.msra.mxu0 0.0
  %2093 = vmatpush.msra.mxu0 0.0
  %2094 = vmatpush.msra.mxu0 %v2059
  %2095 = vmatpush.msra.mxu0 %v2053
  %2096 = vmatmul.f32.gmra.mxu0 %v2078
  %v2097 = vpop.f32.mrf.mxu0
  %v2098 = vadd.f32 0.0, %v2097
  %2099 = vdwg.mxu0
  %2100 = vmatpush.msra.mxu0 0.0
  %2101 = vmatpush.msra.mxu0 0.0
  %2102 = vmatpush.msra.mxu0 0.0
  %2103 = vmatpush.msra.mxu0 0.0
  %2104 = vmatpush.msra.mxu0 0.0
  %2105 = vmatpush.msra.mxu0 0.0
  %2106 = vmatpush.msra.mxu0 0.0
  %2107 = vmatpush.msra.mxu0 0.0
  %2108 = vmatpush.msra.mxu0 0.0
  %2109 = vmatpush.msra.mxu0 0.0
  %2110 = vmatpush.msra.mxu0 0.0
  %2111 = vmatpush.msra.mxu0 0.0
  %2112 = vmatpush.msra.mxu0 0.0
  %2113 = vmatpush.msra.mxu0 0.0
  %2114 = vmatpush.msra.mxu0 %v2060
  %2115 = vmatpush.msra.mxu0 %v2054
  %2116 = vmatmul.f32.gmra.mxu0 %v2078
  %v2117 = vpop.f32.mrf.mxu0
  %v2118 = vadd.f32 0.0, %v2117
  %2119 = vdwg.mxu0
  %2120 = vmatpush.msra.mxu0 0.0
  %2121 = vmatpush.msra.mxu0 0.0
  %2122 = vmatpush.msra.mxu0 0.0
  %2123 = vmatpush.msra.mxu0 0.0
  %2124 = vmatpush.msra.mxu0 0.0
  %2125 = vmatpush.msra.mxu0 0.0
  %2126 = vmatpush.msra.mxu0 0.0
  %2127 = vmatpush.msra.mxu0 0.0
  %2128 = vmatpush.msra.mxu0 0.0
  %2129 = vmatpush.msra.mxu0 0.0
  %2130 = vmatpush.msra.mxu0 0.0
  %2131 = vmatpush.msra.mxu0 0.0
  %2132 = vmatpush.msra.mxu0 0.0
  %2133 = vmatpush.msra.mxu0 0.0
  %2134 = vmatpush.msra.mxu0 %v2061
  %2135 = vmatpush.msra.mxu0 %v2055
  %2136 = vmatmul.f32.gmra.mxu0 %v2078
  %v2137 = vpop.f32.mrf.mxu0
  %v2138 = vadd.f32 0.0, %v2137
  %2139 = vdwg.mxu0
  %2140 = vmatpush.msra.mxu0 0.0
  %2141 = vmatpush.msra.mxu0 0.0
  %2142 = vmatpush.msra.mxu0 0.0
  %2143 = vmatpush.msra.mxu0 0.0
  %2144 = vmatpush.msra.mxu0 0.0
  %2145 = vmatpush.msra.mxu0 0.0
  %2146 = vmatpush.msra.mxu0 0.0
  %2147 = vmatpush.msra.mxu0 0.0
  %2148 = vmatpush.msra.mxu0 0.0
  %2149 = vmatpush.msra.mxu0 0.0
  %2150 = vmatpush.msra.mxu0 0.0
  %2151 = vmatpush.msra.mxu0 0.0
  %2152 = vmatpush.msra.mxu0 0.0
  %2153 = vmatpush.msra.mxu0 0.0
  %2154 = vmatpush.msra.mxu0 %v2062
  %2155 = vmatpush.msra.mxu0 %v2056
  %2156 = vmatmul.f32.gmra.mxu0 %v2078
  %v2157 = vpop.f32.mrf.mxu0
  %v2158 = vadd.f32 0.0, %v2157
  %2159 = vdwg.mxu0
  %2160 = vmatpush.msra.mxu0 0.0
  %2161 = vmatpush.msra.mxu0 0.0
  %2162 = vmatpush.msra.mxu0 0.0
  %2163 = vmatpush.msra.mxu0 0.0
  %2164 = vmatpush.msra.mxu0 0.0
  %2165 = vmatpush.msra.mxu0 0.0
  %2166 = vmatpush.msra.mxu0 0.0
  %2167 = vmatpush.msra.mxu0 0.0
  %2168 = vmatpush.msra.mxu0 0.0
  %2169 = vmatpush.msra.mxu0 0.0
  %2170 = vmatpush.msra.mxu0 0.0
  %2171 = vmatpush.msra.mxu0 0.0
  %2172 = vmatpush.msra.mxu0 0.0
  %2173 = vmatpush.msra.mxu0 0.0
  %2174 = vmatpush.msra.mxu0 %v2063
  %2175 = vmatpush.msra.mxu0 %v2057
  %2176 = vmatmul.f32.gmra.mxu0 %v2078
  %v2177 = vpop.f32.mrf.mxu0
  %v2178 = vadd.f32 0.0, %v2177
  %2179 = vdwg.mxu0
  %2180 = vmatpush.msra.mxu0 0.0
  %2181 = vmatpush.msra.mxu0 0.0
  %2182 = vmatpush.msra.mxu0 0.0
  %2183 = vmatpush.msra.mxu0 0.0
  %2184 = vmatpush.msra.mxu0 0.0
  %2185 = vmatpush.msra.mxu0 0.0
  %2186 = vmatpush.msra.mxu0 0.0
  %2187 = vmatpush.msra.mxu0 0.0
  %2188 = vmatpush.msra.mxu0 0.0
  %2189 = vmatpush.msra.mxu0 0.0
  %2190 = vmatpush.msra.mxu0 0.0
  %2191 = vmatpush.msra.mxu0 0.0
  %2192 = vmatpush.msra.mxu0 0.0
  %2193 = vmatpush.msra.mxu0 0.0
  %2194 = vmatpush.msra.mxu0 %v2064
  %2195 = vmatpush.msra.mxu0 %v2058
  %2196 = vmatmul.f32.gmra.mxu0 %v2078
  %v2197 = vpop.f32.mrf.mxu0
  %v2198 = vadd.f32 0.0, %v2197
  %2199 = vdwg.mxu0
  %v2200 = vadd.f32 %v2016, %v2098
  %v2201 = vadd.f32 %v2017, %v2118
  %v2202 = vadd.f32 %v2018, %v2138
  %v2203 = vadd.f32 %v2019, %v2158
  %v2204 = vadd.f32 %v2020, %v2178
  %v2205 = vadd.f32 %v2021, %v2198
  %s2206 = scalar_lea.vmem %s0, 96
  %v2207 = vld [vmem:[%s2206] sm:$0xff]
  %2208 = vrot.lane.b32.xlu0 %v36, 71
  %v2209 = vpop.permute.xlu0 %2208
  %2210 = vrot.lane.b32.xlu0 %v37, 71
  %v2211 = vpop.permute.xlu0 %2210
  %2212 = vrot.lane.b32.xlu0 %v38, 71
  %v2213 = vpop.permute.xlu0 %2212
  %2214 = vrot.lane.b32.xlu0 %v39, 71
  %v2215 = vpop.permute.xlu0 %2214
  %2216 = vrot.lane.b32.xlu0 %v40, 71
  %v2217 = vpop.permute.xlu0 %2216
  %2218 = vrot.lane.b32.xlu0 %v41, 71
  %v2219 = vpop.permute.xlu0 %2218
  %2220 = vrot.lane.b32.xlu0 %v42, 71
  %v2221 = vpop.permute.xlu0 %2220
  %2222 = vrot.lane.b32.xlu0 %v43, 71
  %v2223 = vpop.permute.xlu0 %2222
  %2224 = vrot.lane.b32.xlu0 %v44, 71
  %v2225 = vpop.permute.xlu0 %2224
  %2226 = vrot.lane.b32.xlu0 %v45, 71
  %v2227 = vpop.permute.xlu0 %2226
  %2228 = vrot.lane.b32.xlu0 %v46, 71
  %v2229 = vpop.permute.xlu0 %2228
  %2230 = vrot.lane.b32.xlu0 %v47, 71
  %v2231 = vpop.permute.xlu0 %2230
  %2232 = vrot.lane.b32.xlu0 %v48, 71
  %v2233 = vpop.permute.xlu0 %2232
  %2234 = vrot.lane.b32.xlu0 %v49, 71
  %v2235 = vpop.permute.xlu0 %2234
  %vm2236 = vcmask 580608
  %v2237 = vsel %vm2236, %v2209, %v2211
  %v2238 = vsel %vm2236, %v2211, %v2213
  %v2239 = vsel %vm2236, %v2213, %v2215
  %v2240 = vsel %vm2236, %v2215, %v2217
  %v2241 = vsel %vm2236, %v2217, %v2219
  %v2242 = vsel %vm2236, %v2219, %v2221
  %v2243 = vsel %vm2236, %v2223, %v2225
  %v2244 = vsel %vm2236, %v2225, %v2227
  %v2245 = vsel %vm2236, %v2227, %v2229
  %v2246 = vsel %vm2236, %v2229, %v2231
  %v2247 = vsel %vm2236, %v2231, %v2233
  %v2248 = vsel %vm2236, %v2233, %v2235
  %v2262 = vsel %vm119, %v2207, 0
  %2264 = vmatpush.msra.mxu0 0.0
  %2265 = vmatpush.msra.mxu0 0.0
  %2266 = vmatpush.msra.mxu0 0.0
  %2267 = vmatpush.msra.mxu0 0.0
  %2268 = vmatpush.msra.mxu0 0.0
  %2269 = vmatpush.msra.mxu0 0.0
  %2270 = vmatpush.msra.mxu0 0.0
  %2271 = vmatpush.msra.mxu0 0.0
  %2272 = vmatpush.msra.mxu0 0.0
  %2273 = vmatpush.msra.mxu0 0.0
  %2274 = vmatpush.msra.mxu0 0.0
  %2275 = vmatpush.msra.mxu0 0.0
  %2276 = vmatpush.msra.mxu0 0.0
  %2277 = vmatpush.msra.mxu0 0.0
  %2278 = vmatpush.msra.mxu0 %v2243
  %2279 = vmatpush.msra.mxu0 %v2237
  %2280 = vmatmul.f32.gmra.mxu0 %v2262
  %v2281 = vpop.f32.mrf.mxu0
  %v2282 = vadd.f32 0.0, %v2281
  %2283 = vdwg.mxu0
  %2284 = vmatpush.msra.mxu0 0.0
  %2285 = vmatpush.msra.mxu0 0.0
  %2286 = vmatpush.msra.mxu0 0.0
  %2287 = vmatpush.msra.mxu0 0.0
  %2288 = vmatpush.msra.mxu0 0.0
  %2289 = vmatpush.msra.mxu0 0.0
  %2290 = vmatpush.msra.mxu0 0.0
  %2291 = vmatpush.msra.mxu0 0.0
  %2292 = vmatpush.msra.mxu0 0.0
  %2293 = vmatpush.msra.mxu0 0.0
  %2294 = vmatpush.msra.mxu0 0.0
  %2295 = vmatpush.msra.mxu0 0.0
  %2296 = vmatpush.msra.mxu0 0.0
  %2297 = vmatpush.msra.mxu0 0.0
  %2298 = vmatpush.msra.mxu0 %v2244
  %2299 = vmatpush.msra.mxu0 %v2238
  %2300 = vmatmul.f32.gmra.mxu0 %v2262
  %v2301 = vpop.f32.mrf.mxu0
  %v2302 = vadd.f32 0.0, %v2301
  %2303 = vdwg.mxu0
  %2304 = vmatpush.msra.mxu0 0.0
  %2305 = vmatpush.msra.mxu0 0.0
  %2306 = vmatpush.msra.mxu0 0.0
  %2307 = vmatpush.msra.mxu0 0.0
  %2308 = vmatpush.msra.mxu0 0.0
  %2309 = vmatpush.msra.mxu0 0.0
  %2310 = vmatpush.msra.mxu0 0.0
  %2311 = vmatpush.msra.mxu0 0.0
  %2312 = vmatpush.msra.mxu0 0.0
  %2313 = vmatpush.msra.mxu0 0.0
  %2314 = vmatpush.msra.mxu0 0.0
  %2315 = vmatpush.msra.mxu0 0.0
  %2316 = vmatpush.msra.mxu0 0.0
  %2317 = vmatpush.msra.mxu0 0.0
  %2318 = vmatpush.msra.mxu0 %v2245
  %2319 = vmatpush.msra.mxu0 %v2239
  %2320 = vmatmul.f32.gmra.mxu0 %v2262
  %v2321 = vpop.f32.mrf.mxu0
  %v2322 = vadd.f32 0.0, %v2321
  %2323 = vdwg.mxu0
  %2324 = vmatpush.msra.mxu0 0.0
  %2325 = vmatpush.msra.mxu0 0.0
  %2326 = vmatpush.msra.mxu0 0.0
  %2327 = vmatpush.msra.mxu0 0.0
  %2328 = vmatpush.msra.mxu0 0.0
  %2329 = vmatpush.msra.mxu0 0.0
  %2330 = vmatpush.msra.mxu0 0.0
  %2331 = vmatpush.msra.mxu0 0.0
  %2332 = vmatpush.msra.mxu0 0.0
  %2333 = vmatpush.msra.mxu0 0.0
  %2334 = vmatpush.msra.mxu0 0.0
  %2335 = vmatpush.msra.mxu0 0.0
  %2336 = vmatpush.msra.mxu0 0.0
  %2337 = vmatpush.msra.mxu0 0.0
  %2338 = vmatpush.msra.mxu0 %v2246
  %2339 = vmatpush.msra.mxu0 %v2240
  %2340 = vmatmul.f32.gmra.mxu0 %v2262
  %v2341 = vpop.f32.mrf.mxu0
  %v2342 = vadd.f32 0.0, %v2341
  %2343 = vdwg.mxu0
  %2344 = vmatpush.msra.mxu0 0.0
  %2345 = vmatpush.msra.mxu0 0.0
  %2346 = vmatpush.msra.mxu0 0.0
  %2347 = vmatpush.msra.mxu0 0.0
  %2348 = vmatpush.msra.mxu0 0.0
  %2349 = vmatpush.msra.mxu0 0.0
  %2350 = vmatpush.msra.mxu0 0.0
  %2351 = vmatpush.msra.mxu0 0.0
  %2352 = vmatpush.msra.mxu0 0.0
  %2353 = vmatpush.msra.mxu0 0.0
  %2354 = vmatpush.msra.mxu0 0.0
  %2355 = vmatpush.msra.mxu0 0.0
  %2356 = vmatpush.msra.mxu0 0.0
  %2357 = vmatpush.msra.mxu0 0.0
  %2358 = vmatpush.msra.mxu0 %v2247
  %2359 = vmatpush.msra.mxu0 %v2241
  %2360 = vmatmul.f32.gmra.mxu0 %v2262
  %v2361 = vpop.f32.mrf.mxu0
  %v2362 = vadd.f32 0.0, %v2361
  %2363 = vdwg.mxu0
  %2364 = vmatpush.msra.mxu0 0.0
  %2365 = vmatpush.msra.mxu0 0.0
  %2366 = vmatpush.msra.mxu0 0.0
  %2367 = vmatpush.msra.mxu0 0.0
  %2368 = vmatpush.msra.mxu0 0.0
  %2369 = vmatpush.msra.mxu0 0.0
  %2370 = vmatpush.msra.mxu0 0.0
  %2371 = vmatpush.msra.mxu0 0.0
  %2372 = vmatpush.msra.mxu0 0.0
  %2373 = vmatpush.msra.mxu0 0.0
  %2374 = vmatpush.msra.mxu0 0.0
  %2375 = vmatpush.msra.mxu0 0.0
  %2376 = vmatpush.msra.mxu0 0.0
  %2377 = vmatpush.msra.mxu0 0.0
  %2378 = vmatpush.msra.mxu0 %v2248
  %2379 = vmatpush.msra.mxu0 %v2242
  %2380 = vmatmul.f32.gmra.mxu0 %v2262
  %v2381 = vpop.f32.mrf.mxu0
  %v2382 = vadd.f32 0.0, %v2381
  %2383 = vdwg.mxu0
  %v2384 = vadd.f32 %v2200, %v2282
  %v2385 = vadd.f32 %v2201, %v2302
  %v2386 = vadd.f32 %v2202, %v2322
  %v2387 = vadd.f32 %v2203, %v2342
  %v2388 = vadd.f32 %v2204, %v2362
  %v2389 = vadd.f32 %v2205, %v2382
  %s2390 = scalar_lea.vmem %s0, 104
  %v2391 = vld [vmem:[%s2390] sm:$0xff]
  %2392 = vrot.lane.b32.xlu0 %v36, 70
  %v2393 = vpop.permute.xlu0 %2392
  %2394 = vrot.lane.b32.xlu0 %v37, 70
  %v2395 = vpop.permute.xlu0 %2394
  %2396 = vrot.lane.b32.xlu0 %v38, 70
  %v2397 = vpop.permute.xlu0 %2396
  %2398 = vrot.lane.b32.xlu0 %v39, 70
  %v2399 = vpop.permute.xlu0 %2398
  %2400 = vrot.lane.b32.xlu0 %v40, 70
  %v2401 = vpop.permute.xlu0 %2400
  %2402 = vrot.lane.b32.xlu0 %v41, 70
  %v2403 = vpop.permute.xlu0 %2402
  %2404 = vrot.lane.b32.xlu0 %v42, 70
  %v2405 = vpop.permute.xlu0 %2404
  %2406 = vrot.lane.b32.xlu0 %v43, 70
  %v2407 = vpop.permute.xlu0 %2406
  %2408 = vrot.lane.b32.xlu0 %v44, 70
  %v2409 = vpop.permute.xlu0 %2408
  %2410 = vrot.lane.b32.xlu0 %v45, 70
  %v2411 = vpop.permute.xlu0 %2410
  %2412 = vrot.lane.b32.xlu0 %v46, 70
  %v2413 = vpop.permute.xlu0 %2412
  %2414 = vrot.lane.b32.xlu0 %v47, 70
  %v2415 = vpop.permute.xlu0 %2414
  %2416 = vrot.lane.b32.xlu0 %v48, 70
  %v2417 = vpop.permute.xlu0 %2416
  %2418 = vrot.lane.b32.xlu0 %v49, 70
  %v2419 = vpop.permute.xlu0 %2418
  %vm2420 = vcmask 572416
  %v2421 = vsel %vm2420, %v2393, %v2395
  %v2422 = vsel %vm2420, %v2395, %v2397
  %v2423 = vsel %vm2420, %v2397, %v2399
  %v2424 = vsel %vm2420, %v2399, %v2401
  %v2425 = vsel %vm2420, %v2401, %v2403
  %v2426 = vsel %vm2420, %v2403, %v2405
  %v2427 = vsel %vm2420, %v2407, %v2409
  %v2428 = vsel %vm2420, %v2409, %v2411
  %v2429 = vsel %vm2420, %v2411, %v2413
  %v2430 = vsel %vm2420, %v2413, %v2415
  %v2431 = vsel %vm2420, %v2415, %v2417
  %v2432 = vsel %vm2420, %v2417, %v2419
  %v2446 = vsel %vm119, %v2391, 0
  %2448 = vmatpush.msra.mxu0 0.0
  %2449 = vmatpush.msra.mxu0 0.0
  %2450 = vmatpush.msra.mxu0 0.0
  %2451 = vmatpush.msra.mxu0 0.0
  %2452 = vmatpush.msra.mxu0 0.0
  %2453 = vmatpush.msra.mxu0 0.0
  %2454 = vmatpush.msra.mxu0 0.0
  %2455 = vmatpush.msra.mxu0 0.0
  %2456 = vmatpush.msra.mxu0 0.0
  %2457 = vmatpush.msra.mxu0 0.0
  %2458 = vmatpush.msra.mxu0 0.0
  %2459 = vmatpush.msra.mxu0 0.0
  %2460 = vmatpush.msra.mxu0 0.0
  %2461 = vmatpush.msra.mxu0 0.0
  %2462 = vmatpush.msra.mxu0 %v2427
  %2463 = vmatpush.msra.mxu0 %v2421
  %2464 = vmatmul.f32.gmra.mxu0 %v2446
  %v2465 = vpop.f32.mrf.mxu0
  %v2466 = vadd.f32 0.0, %v2465
  %2467 = vdwg.mxu0
  %2468 = vmatpush.msra.mxu0 0.0
  %2469 = vmatpush.msra.mxu0 0.0
  %2470 = vmatpush.msra.mxu0 0.0
  %2471 = vmatpush.msra.mxu0 0.0
  %2472 = vmatpush.msra.mxu0 0.0
  %2473 = vmatpush.msra.mxu0 0.0
  %2474 = vmatpush.msra.mxu0 0.0
  %2475 = vmatpush.msra.mxu0 0.0
  %2476 = vmatpush.msra.mxu0 0.0
  %2477 = vmatpush.msra.mxu0 0.0
  %2478 = vmatpush.msra.mxu0 0.0
  %2479 = vmatpush.msra.mxu0 0.0
  %2480 = vmatpush.msra.mxu0 0.0
  %2481 = vmatpush.msra.mxu0 0.0
  %2482 = vmatpush.msra.mxu0 %v2428
  %2483 = vmatpush.msra.mxu0 %v2422
  %2484 = vmatmul.f32.gmra.mxu0 %v2446
  %v2485 = vpop.f32.mrf.mxu0
  %v2486 = vadd.f32 0.0, %v2485
  %2487 = vdwg.mxu0
  %2488 = vmatpush.msra.mxu0 0.0
  %2489 = vmatpush.msra.mxu0 0.0
  %2490 = vmatpush.msra.mxu0 0.0
  %2491 = vmatpush.msra.mxu0 0.0
  %2492 = vmatpush.msra.mxu0 0.0
  %2493 = vmatpush.msra.mxu0 0.0
  %2494 = vmatpush.msra.mxu0 0.0
  %2495 = vmatpush.msra.mxu0 0.0
  %2496 = vmatpush.msra.mxu0 0.0
  %2497 = vmatpush.msra.mxu0 0.0
  %2498 = vmatpush.msra.mxu0 0.0
  %2499 = vmatpush.msra.mxu0 0.0
  %2500 = vmatpush.msra.mxu0 0.0
  %2501 = vmatpush.msra.mxu0 0.0
  %2502 = vmatpush.msra.mxu0 %v2429
  %2503 = vmatpush.msra.mxu0 %v2423
  %2504 = vmatmul.f32.gmra.mxu0 %v2446
  %v2505 = vpop.f32.mrf.mxu0
  %v2506 = vadd.f32 0.0, %v2505
  %2507 = vdwg.mxu0
  %2508 = vmatpush.msra.mxu0 0.0
  %2509 = vmatpush.msra.mxu0 0.0
  %2510 = vmatpush.msra.mxu0 0.0
  %2511 = vmatpush.msra.mxu0 0.0
  %2512 = vmatpush.msra.mxu0 0.0
  %2513 = vmatpush.msra.mxu0 0.0
  %2514 = vmatpush.msra.mxu0 0.0
  %2515 = vmatpush.msra.mxu0 0.0
  %2516 = vmatpush.msra.mxu0 0.0
  %2517 = vmatpush.msra.mxu0 0.0
  %2518 = vmatpush.msra.mxu0 0.0
  %2519 = vmatpush.msra.mxu0 0.0
  %2520 = vmatpush.msra.mxu0 0.0
  %2521 = vmatpush.msra.mxu0 0.0
  %2522 = vmatpush.msra.mxu0 %v2430
  %2523 = vmatpush.msra.mxu0 %v2424
  %2524 = vmatmul.f32.gmra.mxu0 %v2446
  %v2525 = vpop.f32.mrf.mxu0
  %v2526 = vadd.f32 0.0, %v2525
  %2527 = vdwg.mxu0
  %2528 = vmatpush.msra.mxu0 0.0
  %2529 = vmatpush.msra.mxu0 0.0
  %2530 = vmatpush.msra.mxu0 0.0
  %2531 = vmatpush.msra.mxu0 0.0
  %2532 = vmatpush.msra.mxu0 0.0
  %2533 = vmatpush.msra.mxu0 0.0
  %2534 = vmatpush.msra.mxu0 0.0
  %2535 = vmatpush.msra.mxu0 0.0
  %2536 = vmatpush.msra.mxu0 0.0
  %2537 = vmatpush.msra.mxu0 0.0
  %2538 = vmatpush.msra.mxu0 0.0
  %2539 = vmatpush.msra.mxu0 0.0
  %2540 = vmatpush.msra.mxu0 0.0
  %2541 = vmatpush.msra.mxu0 0.0
  %2542 = vmatpush.msra.mxu0 %v2431
  %2543 = vmatpush.msra.mxu0 %v2425
  %2544 = vmatmul.f32.gmra.mxu0 %v2446
  %v2545 = vpop.f32.mrf.mxu0
  %v2546 = vadd.f32 0.0, %v2545
  %2547 = vdwg.mxu0
  %2548 = vmatpush.msra.mxu0 0.0
  %2549 = vmatpush.msra.mxu0 0.0
  %2550 = vmatpush.msra.mxu0 0.0
  %2551 = vmatpush.msra.mxu0 0.0
  %2552 = vmatpush.msra.mxu0 0.0
  %2553 = vmatpush.msra.mxu0 0.0
  %2554 = vmatpush.msra.mxu0 0.0
  %2555 = vmatpush.msra.mxu0 0.0
  %2556 = vmatpush.msra.mxu0 0.0
  %2557 = vmatpush.msra.mxu0 0.0
  %2558 = vmatpush.msra.mxu0 0.0
  %2559 = vmatpush.msra.mxu0 0.0
  %2560 = vmatpush.msra.mxu0 0.0
  %2561 = vmatpush.msra.mxu0 0.0
  %2562 = vmatpush.msra.mxu0 %v2432
  %2563 = vmatpush.msra.mxu0 %v2426
  %2564 = vmatmul.f32.gmra.mxu0 %v2446
  %v2565 = vpop.f32.mrf.mxu0
  %v2566 = vadd.f32 0.0, %v2565
  %2567 = vdwg.mxu0
  %v2568 = vadd.f32 %v2384, %v2466
  %v2569 = vadd.f32 %v2385, %v2486
  %v2570 = vadd.f32 %v2386, %v2506
  %v2571 = vadd.f32 %v2387, %v2526
  %v2572 = vadd.f32 %v2388, %v2546
  %v2573 = vadd.f32 %v2389, %v2566
  %s2574 = scalar_lea.vmem %s0, 112
  %v2575 = vld [vmem:[%s2574] sm:$0xff]
  %2576 = vrot.lane.b32.xlu0 %v36, 69
  %v2577 = vpop.permute.xlu0 %2576
  %2578 = vrot.lane.b32.xlu0 %v37, 69
  %v2579 = vpop.permute.xlu0 %2578
  %2580 = vrot.lane.b32.xlu0 %v38, 69
  %v2581 = vpop.permute.xlu0 %2580
  %2582 = vrot.lane.b32.xlu0 %v39, 69
  %v2583 = vpop.permute.xlu0 %2582
  %2584 = vrot.lane.b32.xlu0 %v40, 69
  %v2585 = vpop.permute.xlu0 %2584
  %2586 = vrot.lane.b32.xlu0 %v41, 69
  %v2587 = vpop.permute.xlu0 %2586
  %2588 = vrot.lane.b32.xlu0 %v42, 69
  %v2589 = vpop.permute.xlu0 %2588
  %2590 = vrot.lane.b32.xlu0 %v43, 69
  %v2591 = vpop.permute.xlu0 %2590
  %2592 = vrot.lane.b32.xlu0 %v44, 69
  %v2593 = vpop.permute.xlu0 %2592
  %2594 = vrot.lane.b32.xlu0 %v45, 69
  %v2595 = vpop.permute.xlu0 %2594
  %2596 = vrot.lane.b32.xlu0 %v46, 69
  %v2597 = vpop.permute.xlu0 %2596
  %2598 = vrot.lane.b32.xlu0 %v47, 69
  %v2599 = vpop.permute.xlu0 %2598
  %2600 = vrot.lane.b32.xlu0 %v48, 69
  %v2601 = vpop.permute.xlu0 %2600
  %2602 = vrot.lane.b32.xlu0 %v49, 69
  %v2603 = vpop.permute.xlu0 %2602
  %vm2604 = vcmask 564224
  %v2605 = vsel %vm2604, %v2577, %v2579
  %v2606 = vsel %vm2604, %v2579, %v2581
  %v2607 = vsel %vm2604, %v2581, %v2583
  %v2608 = vsel %vm2604, %v2583, %v2585
  %v2609 = vsel %vm2604, %v2585, %v2587
  %v2610 = vsel %vm2604, %v2587, %v2589
  %v2611 = vsel %vm2604, %v2591, %v2593
  %v2612 = vsel %vm2604, %v2593, %v2595
  %v2613 = vsel %vm2604, %v2595, %v2597
  %v2614 = vsel %vm2604, %v2597, %v2599
  %v2615 = vsel %vm2604, %v2599, %v2601
  %v2616 = vsel %vm2604, %v2601, %v2603
  %v2630 = vsel %vm119, %v2575, 0
  %2632 = vmatpush.msra.mxu0 0.0
  %2633 = vmatpush.msra.mxu0 0.0
  %2634 = vmatpush.msra.mxu0 0.0
  %2635 = vmatpush.msra.mxu0 0.0
  %2636 = vmatpush.msra.mxu0 0.0
  %2637 = vmatpush.msra.mxu0 0.0
  %2638 = vmatpush.msra.mxu0 0.0
  %2639 = vmatpush.msra.mxu0 0.0
  %2640 = vmatpush.msra.mxu0 0.0
  %2641 = vmatpush.msra.mxu0 0.0
  %2642 = vmatpush.msra.mxu0 0.0
  %2643 = vmatpush.msra.mxu0 0.0
  %2644 = vmatpush.msra.mxu0 0.0
  %2645 = vmatpush.msra.mxu0 0.0
  %2646 = vmatpush.msra.mxu0 %v2611
  %2647 = vmatpush.msra.mxu0 %v2605
  %2648 = vmatmul.f32.gmra.mxu0 %v2630
  %v2649 = vpop.f32.mrf.mxu0
  %v2650 = vadd.f32 0.0, %v2649
  %2651 = vdwg.mxu0
  %2652 = vmatpush.msra.mxu0 0.0
  %2653 = vmatpush.msra.mxu0 0.0
  %2654 = vmatpush.msra.mxu0 0.0
  %2655 = vmatpush.msra.mxu0 0.0
  %2656 = vmatpush.msra.mxu0 0.0
  %2657 = vmatpush.msra.mxu0 0.0
  %2658 = vmatpush.msra.mxu0 0.0
  %2659 = vmatpush.msra.mxu0 0.0
  %2660 = vmatpush.msra.mxu0 0.0
  %2661 = vmatpush.msra.mxu0 0.0
  %2662 = vmatpush.msra.mxu0 0.0
  %2663 = vmatpush.msra.mxu0 0.0
  %2664 = vmatpush.msra.mxu0 0.0
  %2665 = vmatpush.msra.mxu0 0.0
  %2666 = vmatpush.msra.mxu0 %v2612
  %2667 = vmatpush.msra.mxu0 %v2606
  %2668 = vmatmul.f32.gmra.mxu0 %v2630
  %v2669 = vpop.f32.mrf.mxu0
  %v2670 = vadd.f32 0.0, %v2669
  %2671 = vdwg.mxu0
  %2672 = vmatpush.msra.mxu0 0.0
  %2673 = vmatpush.msra.mxu0 0.0
  %2674 = vmatpush.msra.mxu0 0.0
  %2675 = vmatpush.msra.mxu0 0.0
  %2676 = vmatpush.msra.mxu0 0.0
  %2677 = vmatpush.msra.mxu0 0.0
  %2678 = vmatpush.msra.mxu0 0.0
  %2679 = vmatpush.msra.mxu0 0.0
  %2680 = vmatpush.msra.mxu0 0.0
  %2681 = vmatpush.msra.mxu0 0.0
  %2682 = vmatpush.msra.mxu0 0.0
  %2683 = vmatpush.msra.mxu0 0.0
  %2684 = vmatpush.msra.mxu0 0.0
  %2685 = vmatpush.msra.mxu0 0.0
  %2686 = vmatpush.msra.mxu0 %v2613
  %2687 = vmatpush.msra.mxu0 %v2607
  %2688 = vmatmul.f32.gmra.mxu0 %v2630
  %v2689 = vpop.f32.mrf.mxu0
  %v2690 = vadd.f32 0.0, %v2689
  %2691 = vdwg.mxu0
  %2692 = vmatpush.msra.mxu0 0.0
  %2693 = vmatpush.msra.mxu0 0.0
  %2694 = vmatpush.msra.mxu0 0.0
  %2695 = vmatpush.msra.mxu0 0.0
  %2696 = vmatpush.msra.mxu0 0.0
  %2697 = vmatpush.msra.mxu0 0.0
  %2698 = vmatpush.msra.mxu0 0.0
  %2699 = vmatpush.msra.mxu0 0.0
  %2700 = vmatpush.msra.mxu0 0.0
  %2701 = vmatpush.msra.mxu0 0.0
  %2702 = vmatpush.msra.mxu0 0.0
  %2703 = vmatpush.msra.mxu0 0.0
  %2704 = vmatpush.msra.mxu0 0.0
  %2705 = vmatpush.msra.mxu0 0.0
  %2706 = vmatpush.msra.mxu0 %v2614
  %2707 = vmatpush.msra.mxu0 %v2608
  %2708 = vmatmul.f32.gmra.mxu0 %v2630
  %v2709 = vpop.f32.mrf.mxu0
  %v2710 = vadd.f32 0.0, %v2709
  %2711 = vdwg.mxu0
  %2712 = vmatpush.msra.mxu0 0.0
  %2713 = vmatpush.msra.mxu0 0.0
  %2714 = vmatpush.msra.mxu0 0.0
  %2715 = vmatpush.msra.mxu0 0.0
  %2716 = vmatpush.msra.mxu0 0.0
  %2717 = vmatpush.msra.mxu0 0.0
  %2718 = vmatpush.msra.mxu0 0.0
  %2719 = vmatpush.msra.mxu0 0.0
  %2720 = vmatpush.msra.mxu0 0.0
  %2721 = vmatpush.msra.mxu0 0.0
  %2722 = vmatpush.msra.mxu0 0.0
  %2723 = vmatpush.msra.mxu0 0.0
  %2724 = vmatpush.msra.mxu0 0.0
  %2725 = vmatpush.msra.mxu0 0.0
  %2726 = vmatpush.msra.mxu0 %v2615
  %2727 = vmatpush.msra.mxu0 %v2609
  %2728 = vmatmul.f32.gmra.mxu0 %v2630
  %v2729 = vpop.f32.mrf.mxu0
  %v2730 = vadd.f32 0.0, %v2729
  %2731 = vdwg.mxu0
  %2732 = vmatpush.msra.mxu0 0.0
  %2733 = vmatpush.msra.mxu0 0.0
  %2734 = vmatpush.msra.mxu0 0.0
  %2735 = vmatpush.msra.mxu0 0.0
  %2736 = vmatpush.msra.mxu0 0.0
  %2737 = vmatpush.msra.mxu0 0.0
  %2738 = vmatpush.msra.mxu0 0.0
  %2739 = vmatpush.msra.mxu0 0.0
  %2740 = vmatpush.msra.mxu0 0.0
  %2741 = vmatpush.msra.mxu0 0.0
  %2742 = vmatpush.msra.mxu0 0.0
  %2743 = vmatpush.msra.mxu0 0.0
  %2744 = vmatpush.msra.mxu0 0.0
  %2745 = vmatpush.msra.mxu0 0.0
  %2746 = vmatpush.msra.mxu0 %v2616
  %2747 = vmatpush.msra.mxu0 %v2610
  %2748 = vmatmul.f32.gmra.mxu0 %v2630
  %v2749 = vpop.f32.mrf.mxu0
  %v2750 = vadd.f32 0.0, %v2749
  %2751 = vdwg.mxu0
  %v2752 = vadd.f32 %v2568, %v2650
  %v2753 = vadd.f32 %v2569, %v2670
  %v2754 = vadd.f32 %v2570, %v2690
  %v2755 = vadd.f32 %v2571, %v2710
  %v2756 = vadd.f32 %v2572, %v2730
  %v2757 = vadd.f32 %v2573, %v2750
  %s2758 = scalar_lea.vmem %s0, 120
  %v2759 = vld [vmem:[%s2758] sm:$0xff]
  %2760 = vrot.lane.b32.xlu0 %v36, 68
  %v2761 = vpop.permute.xlu0 %2760
  %2762 = vrot.lane.b32.xlu0 %v37, 68
  %v2763 = vpop.permute.xlu0 %2762
  %2764 = vrot.lane.b32.xlu0 %v38, 68
  %v2765 = vpop.permute.xlu0 %2764
  %2766 = vrot.lane.b32.xlu0 %v39, 68
  %v2767 = vpop.permute.xlu0 %2766
  %2768 = vrot.lane.b32.xlu0 %v40, 68
  %v2769 = vpop.permute.xlu0 %2768
  %2770 = vrot.lane.b32.xlu0 %v41, 68
  %v2771 = vpop.permute.xlu0 %2770
  %2772 = vrot.lane.b32.xlu0 %v42, 68
  %v2773 = vpop.permute.xlu0 %2772
  %2774 = vrot.lane.b32.xlu0 %v43, 68
  %v2775 = vpop.permute.xlu0 %2774
  %2776 = vrot.lane.b32.xlu0 %v44, 68
  %v2777 = vpop.permute.xlu0 %2776
  %2778 = vrot.lane.b32.xlu0 %v45, 68
  %v2779 = vpop.permute.xlu0 %2778
  %2780 = vrot.lane.b32.xlu0 %v46, 68
  %v2781 = vpop.permute.xlu0 %2780
  %2782 = vrot.lane.b32.xlu0 %v47, 68
  %v2783 = vpop.permute.xlu0 %2782
  %2784 = vrot.lane.b32.xlu0 %v48, 68
  %v2785 = vpop.permute.xlu0 %2784
  %2786 = vrot.lane.b32.xlu0 %v49, 68
  %v2787 = vpop.permute.xlu0 %2786
  %vm2788 = vcmask 556032
  %v2789 = vsel %vm2788, %v2761, %v2763
  %v2790 = vsel %vm2788, %v2763, %v2765
  %v2791 = vsel %vm2788, %v2765, %v2767
  %v2792 = vsel %vm2788, %v2767, %v2769
  %v2793 = vsel %vm2788, %v2769, %v2771
  %v2794 = vsel %vm2788, %v2771, %v2773
  %v2795 = vsel %vm2788, %v2775, %v2777
  %v2796 = vsel %vm2788, %v2777, %v2779
  %v2797 = vsel %vm2788, %v2779, %v2781
  %v2798 = vsel %vm2788, %v2781, %v2783
  %v2799 = vsel %vm2788, %v2783, %v2785
  %v2800 = vsel %vm2788, %v2785, %v2787
  %v2814 = vsel %vm119, %v2759, 0
  %2816 = vmatpush.msra.mxu0 0.0
  %2817 = vmatpush.msra.mxu0 0.0
  %2818 = vmatpush.msra.mxu0 0.0
  %2819 = vmatpush.msra.mxu0 0.0
  %2820 = vmatpush.msra.mxu0 0.0
  %2821 = vmatpush.msra.mxu0 0.0
  %2822 = vmatpush.msra.mxu0 0.0
  %2823 = vmatpush.msra.mxu0 0.0
  %2824 = vmatpush.msra.mxu0 0.0
  %2825 = vmatpush.msra.mxu0 0.0
  %2826 = vmatpush.msra.mxu0 0.0
  %2827 = vmatpush.msra.mxu0 0.0
  %2828 = vmatpush.msra.mxu0 0.0
  %2829 = vmatpush.msra.mxu0 0.0
  %2830 = vmatpush.msra.mxu0 %v2795
  %2831 = vmatpush.msra.mxu0 %v2789
  %2832 = vmatmul.f32.gmra.mxu0 %v2814
  %v2833 = vpop.f32.mrf.mxu0
  %v2834 = vadd.f32 0.0, %v2833
  %2835 = vdwg.mxu0
  %2836 = vmatpush.msra.mxu0 0.0
  %2837 = vmatpush.msra.mxu0 0.0
  %2838 = vmatpush.msra.mxu0 0.0
  %2839 = vmatpush.msra.mxu0 0.0
  %2840 = vmatpush.msra.mxu0 0.0
  %2841 = vmatpush.msra.mxu0 0.0
  %2842 = vmatpush.msra.mxu0 0.0
  %2843 = vmatpush.msra.mxu0 0.0
  %2844 = vmatpush.msra.mxu0 0.0
  %2845 = vmatpush.msra.mxu0 0.0
  %2846 = vmatpush.msra.mxu0 0.0
  %2847 = vmatpush.msra.mxu0 0.0
  %2848 = vmatpush.msra.mxu0 0.0
  %2849 = vmatpush.msra.mxu0 0.0
  %2850 = vmatpush.msra.mxu0 %v2796
  %2851 = vmatpush.msra.mxu0 %v2790
  %2852 = vmatmul.f32.gmra.mxu0 %v2814
  %v2853 = vpop.f32.mrf.mxu0
  %v2854 = vadd.f32 0.0, %v2853
  %2855 = vdwg.mxu0
  %2856 = vmatpush.msra.mxu0 0.0
  %2857 = vmatpush.msra.mxu0 0.0
  %2858 = vmatpush.msra.mxu0 0.0
  %2859 = vmatpush.msra.mxu0 0.0
  %2860 = vmatpush.msra.mxu0 0.0
  %2861 = vmatpush.msra.mxu0 0.0
  %2862 = vmatpush.msra.mxu0 0.0
  %2863 = vmatpush.msra.mxu0 0.0
  %2864 = vmatpush.msra.mxu0 0.0
  %2865 = vmatpush.msra.mxu0 0.0
  %2866 = vmatpush.msra.mxu0 0.0
  %2867 = vmatpush.msra.mxu0 0.0
  %2868 = vmatpush.msra.mxu0 0.0
  %2869 = vmatpush.msra.mxu0 0.0
  %2870 = vmatpush.msra.mxu0 %v2797
  %2871 = vmatpush.msra.mxu0 %v2791
  %2872 = vmatmul.f32.gmra.mxu0 %v2814
  %v2873 = vpop.f32.mrf.mxu0
  %v2874 = vadd.f32 0.0, %v2873
  %2875 = vdwg.mxu0
  %2876 = vmatpush.msra.mxu0 0.0
  %2877 = vmatpush.msra.mxu0 0.0
  %2878 = vmatpush.msra.mxu0 0.0
  %2879 = vmatpush.msra.mxu0 0.0
  %2880 = vmatpush.msra.mxu0 0.0
  %2881 = vmatpush.msra.mxu0 0.0
  %2882 = vmatpush.msra.mxu0 0.0
  %2883 = vmatpush.msra.mxu0 0.0
  %2884 = vmatpush.msra.mxu0 0.0
  %2885 = vmatpush.msra.mxu0 0.0
  %2886 = vmatpush.msra.mxu0 0.0
  %2887 = vmatpush.msra.mxu0 0.0
  %2888 = vmatpush.msra.mxu0 0.0
  %2889 = vmatpush.msra.mxu0 0.0
  %2890 = vmatpush.msra.mxu0 %v2798
  %2891 = vmatpush.msra.mxu0 %v2792
  %2892 = vmatmul.f32.gmra.mxu0 %v2814
  %v2893 = vpop.f32.mrf.mxu0
  %v2894 = vadd.f32 0.0, %v2893
  %2895 = vdwg.mxu0
  %2896 = vmatpush.msra.mxu0 0.0
  %2897 = vmatpush.msra.mxu0 0.0
  %2898 = vmatpush.msra.mxu0 0.0
  %2899 = vmatpush.msra.mxu0 0.0
  %2900 = vmatpush.msra.mxu0 0.0
  %2901 = vmatpush.msra.mxu0 0.0
  %2902 = vmatpush.msra.mxu0 0.0
  %2903 = vmatpush.msra.mxu0 0.0
  %2904 = vmatpush.msra.mxu0 0.0
  %2905 = vmatpush.msra.mxu0 0.0
  %2906 = vmatpush.msra.mxu0 0.0
  %2907 = vmatpush.msra.mxu0 0.0
  %2908 = vmatpush.msra.mxu0 0.0
  %2909 = vmatpush.msra.mxu0 0.0
  %2910 = vmatpush.msra.mxu0 %v2799
  %2911 = vmatpush.msra.mxu0 %v2793
  %2912 = vmatmul.f32.gmra.mxu0 %v2814
  %v2913 = vpop.f32.mrf.mxu0
  %v2914 = vadd.f32 0.0, %v2913
  %2915 = vdwg.mxu0
  %2916 = vmatpush.msra.mxu0 0.0
  %2917 = vmatpush.msra.mxu0 0.0
  %2918 = vmatpush.msra.mxu0 0.0
  %2919 = vmatpush.msra.mxu0 0.0
  %2920 = vmatpush.msra.mxu0 0.0
  %2921 = vmatpush.msra.mxu0 0.0
  %2922 = vmatpush.msra.mxu0 0.0
  %2923 = vmatpush.msra.mxu0 0.0
  %2924 = vmatpush.msra.mxu0 0.0
  %2925 = vmatpush.msra.mxu0 0.0
  %2926 = vmatpush.msra.mxu0 0.0
  %2927 = vmatpush.msra.mxu0 0.0
  %2928 = vmatpush.msra.mxu0 0.0
  %2929 = vmatpush.msra.mxu0 0.0
  %2930 = vmatpush.msra.mxu0 %v2800
  %2931 = vmatpush.msra.mxu0 %v2794
  %2932 = vmatmul.f32.gmra.mxu0 %v2814
  %v2933 = vpop.f32.mrf.mxu0
  %v2934 = vadd.f32 0.0, %v2933
  %2935 = vdwg.mxu0
  %v2936 = vadd.f32 %v2752, %v2834
  %v2937 = vadd.f32 %v2753, %v2854
  %v2938 = vadd.f32 %v2754, %v2874
  %v2939 = vadd.f32 %v2755, %v2894
  %v2940 = vadd.f32 %v2756, %v2914
  %v2941 = vadd.f32 %v2757, %v2934
  %v2942 = vld [vmem:[%s2] sm:$0xff]
  %2944 = vset.pattern.permute.xlu0 0
  %2945 = vperm.xlu0 %2944, %v2942
  %v2946 = vpop.permute.xlu0 %2945
  %v2948 = vadd.f32 %v2936, %v2946
  %v2949 = vadd.f32 %v2937, %v2946
  %v2950 = vadd.f32 %v2938, %v2946
  %v2951 = vadd.f32 %v2939, %v2946
  %v2952 = vadd.f32 %v2940, %v2946
  %v2953 = vadd.f32 %v2941, %v2946
  %v2954 = vld [vmem:[%s5] sm:$0x3f]
  %v2956 = vperm.slane %v2954, 0
  %v2957 = vperm.slane %v2954, 1
  %v2958 = vperm.slane %v2954, 2
  %v2959 = vperm.slane %v2954, 3
  %v2960 = vperm.slane %v2954, 4
  %v2961 = vperm.slane %v2954, 5
  %v2968 = vmul.f32 %v2948, %v2956
  %v2969 = vmul.f32 %v2949, %v2957
  %v2970 = vmul.f32 %v2950, %v2958
  %v2971 = vmul.f32 %v2951, %v2959
  %v2972 = vmul.f32 %v2952, %v2960
  %v2973 = vmul.f32 %v2953, %v2961
  %v2974 = vadd.f32 %v2968, %v2969
  %v2975 = vadd.f32 %v2974, %v2970
  %v2976 = vadd.f32 %v2975, %v2971
  %v2977 = vadd.f32 %v2976, %v2972
  %v2978 = vadd.f32 %v2977, %v2973
  %2979 = vadd.xlane.f32.xlu0 %v2978
  %v2980 = vpop.xlane.xlu0 %2979
  %v2981 = vmul.f32 %v2980, 0.001953125
  %v2982 = vsub.f32 %v2948, %v2981
  %v2983 = vsub.f32 %v2949, %v2981
  %v2984 = vsub.f32 %v2950, %v2981
  %v2985 = vsub.f32 %v2951, %v2981
  %v2986 = vsub.f32 %v2952, %v2981
  %v2987 = vsub.f32 %v2953, %v2981
  %v2988 = vmul.f32 %v2982, %v2956
  %v2989 = vmul.f32 %v2983, %v2957
  %v2990 = vmul.f32 %v2984, %v2958
  %v2991 = vmul.f32 %v2985, %v2959
  %v2992 = vmul.f32 %v2986, %v2960
  %v2993 = vmul.f32 %v2987, %v2961
  %v2994 = vmul.f32 %v2988, %v2988
  %v2995 = vmul.f32 %v2989, %v2989
  %v2996 = vmul.f32 %v2990, %v2990
  %v2997 = vmul.f32 %v2991, %v2991
  %v2998 = vmul.f32 %v2992, %v2992
  %v2999 = vmul.f32 %v2993, %v2993
  %v3000 = vadd.f32 %v2994, %v2995
  %v3001 = vadd.f32 %v3000, %v2996
  %v3002 = vadd.f32 %v3001, %v2997
  %v3003 = vadd.f32 %v3002, %v2998
  %v3004 = vadd.f32 %v3003, %v2999
  %3005 = vadd.xlane.f32.xlu0 %v3004
  %v3006 = vpop.xlane.xlu0 %3005
  %v3007 = vmul.f32 %v3006, 0.001953125
  %v3008 = vadd.f32 %v3007, 1e-05
  %v3009 = vrsqrt.pop %v3008
  %v3010 = vmul.f32 %v3009, %v3008
  %v3011 = vmul.f32 %v3010, %v3009
  %v3012 = vmul.f32 0.5, %v3011
  %v3013 = vsub.f32 1.5, %v3012
  %v3014 = vmul.f32 %v3009, %v3013
  %vm3015 = vweird.f32 %v3008
  %vm3016 = vweird.f32 %v3009
  %vm3017 = vmor %vm3015, %vm3016
  %v3018 = vsel %vm3017, %v3009, %v3014
  %v3019 = vmul.f32 %v2982, %v3018
  %v3020 = vmul.f32 %v2983, %v3018
  %v3021 = vmul.f32 %v2984, %v3018
  %v3022 = vmul.f32 %v2985, %v3018
  %v3023 = vmul.f32 %v2986, %v3018
  %v3024 = vmul.f32 %v2987, %v3018
  %v3025 = vld [vmem:[%s3] sm:$0xff]
  %3027 = vset.pattern.permute.xlu0 0
  %3028 = vperm.xlu0 %3027, %v3025
  %v3029 = vpop.permute.xlu0 %3028
  %v3031 = vmul.f32 %v3019, %v3029
  %v3032 = vmul.f32 %v3020, %v3029
  %v3033 = vmul.f32 %v3021, %v3029
  %v3034 = vmul.f32 %v3022, %v3029
  %v3035 = vmul.f32 %v3023, %v3029
  %v3036 = vmul.f32 %v3024, %v3029
  %v3037 = vld [vmem:[%s4] sm:$0xff]
  %3039 = vset.pattern.permute.xlu0 0
  %3040 = vperm.xlu0 %3039, %v3037
  %v3041 = vpop.permute.xlu0 %3040
  %v3043 = vadd.f32 %v3031, %v3041
  %v3044 = vadd.f32 %v3032, %v3041
  %v3045 = vadd.f32 %v3033, %v3041
  %v3046 = vadd.f32 %v3034, %v3041
  %v3047 = vadd.f32 %v3035, %v3041
  %v3048 = vadd.f32 %v3036, %v3041
  %v3049 = vmax.f32 %v3043, 0.0
  %v3050 = vmax.f32 %v3044, 0.0
  %v3051 = vmax.f32 %v3045, 0.0
  %v3052 = vmax.f32 %v3046, 0.0
  %v3053 = vmax.f32 %v3047, 0.0
  %v3054 = vmax.f32 %v3048, 0.0
  %3055 = vst [vmem:[%s6] sm:$0xff] %v3049
  %3056 = vst [vmem:[%s6 + $0x8] sm:$0xff] %v3050
  %3057 = vst [vmem:[%s6 + $0x10] sm:$0xff] %v3051
  %3058 = vst [vmem:[%s6 + $0x18] sm:$0xff] %v3052
  %3059 = vst [vmem:[%s6 + $0x20] sm:$0xff] %v3053
  %3060 = vst [vmem:[%s6 + $0x28] sm:$0xff] %v3054
  // Predicated region
  $region26: #{netg_forward.4} parent=0 // pred_check
    _
  $region27: #{netg_forward.4} parent=0 // pred_check_branch
    %3062 = sbr.rel (0) target = $region29
  $region28: #{netg_forward.4} parent=0 // pred_region
    _
  $region29: #{netg_forward.4} parent=0 // pred_fallthru
    _
  // Predicated region
  $region30: #{netg_forward.4} parent=0 // pred_check
    _
  $region31: #{netg_forward.4} parent=0 // pred_check_branch
    %3064 = sbr.rel (0) target = $region33
  $region32: #{netg_forward.4} parent=0 // pred_region
    _
  $region33: #{netg_forward.4} parent=0 // pred_fallthru
    _

// kernel: netg_forward.5
$region0: #{netg_forward.5}
  #allocation0 [shape = 'u32[]', space=smem, size = 0x4, offset = 0x4, fixed_abs, tag = 'smem constant byte address 0x4 - core index']
  #allocation1 [shape = 'u32[72,128]{1,0:T(1,128)}', space=vmem, size = 0x9000, scoped, tag = 'internal scratch']
  %s0 = inlined_call_operand.vmem [shape: f32[16,8,8], index: 0, kind: input, shape index: {}]
  %s1 = inlined_call_operand.vmem [shape: f32[8,2688], index: 1, kind: input, shape index: {}]
  %s2 = inlined_call_operand.vmem [shape: f32[8,1], index: 2, kind: input, shape index: {}]
  %s3 = inlined_call_operand.vmem [shape: f32[8,2560], index: 3, kind: output, shape index: {}]
  %s4 = sld [smem:[#allocation0]]
  $region22: #{netg_forward.5} parent=0
    _
  %s6 = ssub.s32 1, %s4
  %s7 = scalar_select 0, %s6, %s4
  // Predicated region
  $region2: #{netg_forward.5} parent=0 // pred_check
    _
  $region3: #{netg_forward.5} parent=0 // pred_check_branch
    %9 = sbr.rel (0) target = $region5
  $region4: #{netg_forward.5} parent=0 // pred_region
    _
  $region5: #{netg_forward.5} parent=0 // pred_fallthru
    _
  // Predicated region
  $region6: #{netg_forward.5} parent=0 // pred_check
    _
  $region7: #{netg_forward.5} parent=0 // pred_check_branch
    %11 = sbr.rel (0) target = $region9
  $region8: #{netg_forward.5} parent=0 // pred_region
    _
  $region9: #{netg_forward.5} parent=0 // pred_fallthru
    _
  // Predicated region
  $region10: #{netg_forward.5} parent=0 // pred_check
    _
  $region11: #{netg_forward.5} parent=0 // pred_check_branch
    %13 = sbr.rel (0) target = $region13
  $region12: #{netg_forward.5} parent=0 // pred_region
    _
  $region13: #{netg_forward.5} parent=0 // pred_fallthru
    _
  %v14 = vld [vmem:[%s1] sm:$0xff]
  %v15 = vld [vmem:[%s1 + $0x8] sm:$0xff]
  %v16 = vld [vmem:[%s1 + $0x10] sm:$0xff]
  %v17 = vld [vmem:[%s1 + $0x18] sm:$0xff]
  %v18 = vld [vmem:[%s1 + $0x20] sm:$0xff]
  %v19 = vld [vmem:[%s1 + $0x28] sm:$0xff]
  %v20 = vld [vmem:[%s1 + $0x30] sm:$0xff]
  %v21 = vld [vmem:[%s1 + $0x38] sm:$0xff]
  %v22 = vld [vmem:[%s1 + $0x40] sm:$0xff]
  %v23 = vld [vmem:[%s1 + $0x48] sm:$0xff]
  %v24 = vld [vmem:[%s1 + $0x50] sm:$0xff]
  %v25 = vld [vmem:[%s1 + $0x58] sm:$0xff]
  %v26 = vld [vmem:[%s1 + $0x60] sm:$0xff]
  %v27 = vld [vmem:[%s1 + $0x68] sm:$0xff]
  %v28 = vld [vmem:[%s1 + $0x70] sm:$0xff]
  %v29 = vld [vmem:[%s1 + $0x78] sm:$0xff]
  %v30 = vld [vmem:[%s1 + $0x80] sm:$0xff]
  %v31 = vld [vmem:[%s1 + $0x88] sm:$0xff]
  %v32 = vld [vmem:[%s1 + $0x90] sm:$0xff]
  %v33 = vld [vmem:[%s1 + $0x98] sm:$0xff]
  %v34 = vld [vmem:[%s0] sm:$0xff]
  %v35 = vld [vmem:[%s1] sm:$0xff]
  %v36 = vld [vmem:[%s1 + $0x8] sm:$0xff]
  %v37 = vld [vmem:[%s1 + $0x10] sm:$0xff]
  %v38 = vld [vmem:[%s1 + $0x18] sm:$0xff]
  %v39 = vld [vmem:[%s1 + $0x20] sm:$0xff]
  %v40 = vld [vmem:[%s1 + $0x28] sm:$0xff]
  %v41 = vld [vmem:[%s1 + $0x30] sm:$0xff]
  %v42 = vld [vmem:[%s1 + $0x38] sm:$0xff]
  %v43 = vld [vmem:[%s1 + $0x40] sm:$0xff]
  %v44 = vld [vmem:[%s1 + $0x48] sm:$0xff]
  %v45 = vld [vmem:[%s1 + $0x50] sm:$0xff]
  %v46 = vld [vmem:[%s1 + $0x58] sm:$0xff]
  %v47 = vld [vmem:[%s1 + $0x60] sm:$0xff]
  %v48 = vld [vmem:[%s1 + $0x68] sm:$0xff]
  %v49 = vld [vmem:[%s1 + $0x70] sm:$0xff]
  %v50 = vld [vmem:[%s1 + $0x78] sm:$0xff]
  %v51 = vld [vmem:[%s1 + $0x80] sm:$0xff]
  %v52 = vld [vmem:[%s1 + $0x88] sm:$0xff]
  %v53 = vld [vmem:[%s1 + $0x90] sm:$0xff]
  %v54 = vld [vmem:[%s1 + $0x98] sm:$0xff]
  %v55 = vld [vmem:[%s1 + $0xa0] sm:$0xff]
  %s56 = scalar_lea.vmem %s0, 8
  %v57 = vld [vmem:[%s56] sm:$0xff]
  %79 = vrot.lane.b32.xlu0 %v35, 127
  %v80 = vpop.permute.xlu0 %79
  %81 = vrot.lane.b32.xlu0 %v36, 127
  %v82 = vpop.permute.xlu0 %81
  %83 = vrot.lane.b32.xlu0 %v37, 127
  %v84 = vpop.permute.xlu0 %83
  %85 = vrot.lane.b32.xlu0 %v38, 127
  %v86 = vpop.permute.xlu0 %85
  %87 = vrot.lane.b32.xlu0 %v39, 127
  %v88 = vpop.permute.xlu0 %87
  %89 = vrot.lane.b32.xlu0 %v40, 127
  %v90 = vpop.permute.xlu0 %89
  %91 = vrot.lane.b32.xlu0 %v41, 127
  %v92 = vpop.permute.xlu0 %91
  %93 = vrot.lane.b32.xlu0 %v42, 127
  %v94 = vpop.permute.xlu0 %93
  %95 = vrot.lane.b32.xlu0 %v43, 127
  %v96 = vpop.permute.xlu0 %95
  %97 = vrot.lane.b32.xlu0 %v44, 127
  %v98 = vpop.permute.xlu0 %97
  %99 = vrot.lane.b32.xlu0 %v45, 127
  %v100 = vpop.permute.xlu0 %99
  %101 = vrot.lane.b32.xlu0 %v46, 127
  %v102 = vpop.permute.xlu0 %101
  %103 = vrot.lane.b32.xlu0 %v47, 127
  %v104 = vpop.permute.xlu0 %103
  %105 = vrot.lane.b32.xlu0 %v48, 127
  %v106 = vpop.permute.xlu0 %105
  %107 = vrot.lane.b32.xlu0 %v49, 127
  %v108 = vpop.permute.xlu0 %107
  %109 = vrot.lane.b32.xlu0 %v50, 127
  %v110 = vpop.permute.xlu0 %109
  %111 = vrot.lane.b32.xlu0 %v51, 127
  %v112 = vpop.permute.xlu0 %111
  %113 = vrot.lane.b32.xlu0 %v52, 127
  %v114 = vpop.permute.xlu0 %113
  %115 = vrot.lane.b32.xlu0 %v53, 127
  %v116 = vpop.permute.xlu0 %115
  %117 = vrot.lane.b32.xlu0 %v54, 127
  %v118 = vpop.permute.xlu0 %117
  %119 = vrot.lane.b32.xlu0 %v55, 127
  %v120 = vpop.permute.xlu0 %119
  %vm121 = vcmask 1039360
  %v122 = vsel %vm121, %v80, %v82
  %v123 = vsel %vm121, %v82, %v84
  %v124 = vsel %vm121, %v84, %v86
  %v125 = vsel %vm121, %v86, %v88
  %v126 = vsel %vm121, %v88, %v90
  %v127 = vsel %vm121, %v90, %v92
  %v128 = vsel %vm121, %v92, %v94
  %v129 = vsel %vm121, %v94, %v96
  %v130 = vsel %vm121, %v96, %v98
  %v131 = vsel %vm121, %v98, %v100
  %v132 = vsel %vm121, %v100, %v102
  %v133 = vsel %vm121, %v102, %v104
  %v134 = vsel %vm121, %v104, %v106
  %v135 = vsel %vm121, %v106, %v108
  %v136 = vsel %vm121, %v108, %v110
  %v137 = vsel %vm121, %v110, %v112
  %v138 = vsel %vm121, %v112, %v114
  %v139 = vsel %vm121, %v114, %v116
  %v140 = vsel %vm121, %v116, %v118
  %v141 = vsel %vm121, %v118, %v120
  %vm162 = vcmask 64512
  %v164 = vsel %vm162, %v57, 0
  %166 = vmatpush.msra.mxu0 0.0
  %167 = vmatpush.msra.mxu0 0.0
  %168 = vmatpush.msra.mxu0 0.0
  %169 = vmatpush.msra.mxu0 0.0
  %170 = vmatpush.msra.mxu0 0.0
  %171 = vmatpush.msra.mxu0 0.0
  %172 = vmatpush.msra.mxu0 0.0
  %173 = vmatpush.msra.mxu0 0.0
  %174 = vmatpush.msra.mxu0 0.0
  %175 = vmatpush.msra.mxu0 0.0
  %176 = vmatpush.msra.mxu0 0.0
  %177 = vmatpush.msra.mxu0 0.0
  %178 = vmatpush.msra.mxu0 0.0
  %179 = vmatpush.msra.mxu0 0.0
  %180 = vmatpush.msra.mxu0 0.0
  %181 = vmatpush.msra.mxu0 %v122
  %182 = vmatmul.f32.gmra.mxu0 %v164
  %v183 = vpop.f32.mrf.mxu0
  %v184 = vadd.f32 0.0, %v183
  %185 = vdwg.mxu0
  %186 = vmatpush.msra.mxu0 0.0
  %187 = vmatpush.msra.mxu0 0.0
  %188 = vmatpush.msra.mxu0 0.0
  %189 = vmatpush.msra.mxu0 0.0
  %190 = vmatpush.msra.mxu0 0.0
  %191 = vmatpush.msra.mxu0 0.0
  %192 = vmatpush.msra.mxu0 0.0
  %193 = vmatpush.msra.mxu0 0.0
  %194 = vmatpush.msra.mxu0 0.0
  %195 = vmatpush.msra.mxu0 0.0
  %196 = vmatpush.msra.mxu0 0.0
  %197 = vmatpush.msra.mxu0 0.0
  %198 = vmatpush.msra.mxu0 0.0
  %199 = vmatpush.msra.mxu0 0.0
  %200 = vmatpush.msra.mxu0 0.0
  %201 = vmatpush.msra.mxu0 %v123
  %202 = vmatmul.f32.gmra.mxu0 %v164
  %v203 = vpop.f32.mrf.mxu0
  %v204 = vadd.f32 0.0, %v203
  %205 = vdwg.mxu0
  %206 = vmatpush.msra.mxu0 0.0
  %207 = vmatpush.msra.mxu0 0.0
  %208 = vmatpush.msra.mxu0 0.0
  %209 = vmatpush.msra.mxu0 0.0
  %210 = vmatpush.msra.mxu0 0.0
  %211 = vmatpush.msra.mxu0 0.0
  %212 = vmatpush.msra.mxu0 0.0
  %213 = vmatpush.msra.mxu0 0.0
  %214 = vmatpush.msra.mxu0 0.0
  %215 = vmatpush.msra.mxu0 0.0
  %216 = vmatpush.msra.mxu0 0.0
  %217 = vmatpush.msra.mxu0 0.0
  %218 = vmatpush.msra.mxu0 0.0
  %219 = vmatpush.msra.mxu0 0.0
  %220 = vmatpush.msra.mxu0 0.0
  %221 = vmatpush.msra.mxu0 %v124
  %222 = vmatmul.f32.gmra.mxu0 %v164
  %v223 = vpop.f32.mrf.mxu0
  %v224 = vadd.f32 0.0, %v223
  %225 = vdwg.mxu0
  %226 = vmatpush.msra.mxu0 0.0
  %227 = vmatpush.msra.mxu0 0.0
  %228 = vmatpush.msra.mxu0 0.0
  %229 = vmatpush.msra.mxu0 0.0
  %230 = vmatpush.msra.mxu0 0.0
  %231 = vmatpush.msra.mxu0 0.0
  %232 = vmatpush.msra.mxu0 0.0
  %233 = vmatpush.msra.mxu0 0.0
  %234 = vmatpush.msra.mxu0 0.0
  %235 = vmatpush.msra.mxu0 0.0
  %236 = vmatpush.msra.mxu0 0.0
  %237 = vmatpush.msra.mxu0 0.0
  %238 = vmatpush.msra.mxu0 0.0
  %239 = vmatpush.msra.mxu0 0.0
  %240 = vmatpush.msra.mxu0 0.0
  %241 = vmatpush.msra.mxu0 %v125
  %242 = vmatmul.f32.gmra.mxu0 %v164
  %v243 = vpop.f32.mrf.mxu0
  %v244 = vadd.f32 0.0, %v243
  %245 = vdwg.mxu0
  %246 = vmatpush.msra.mxu0 0.0
  %247 = vmatpush.msra.mxu0 0.0
  %248 = vmatpush.msra.mxu0 0.0
  %249 = vmatpush.msra.mxu0 0.0
  %250 = vmatpush.msra.mxu0 0.0
  %251 = vmatpush.msra.mxu0 0.0
  %252 = vmatpush.msra.mxu0 0.0
  %253 = vmatpush.msra.mxu0 0.0
  %254 = vmatpush.msra.mxu0 0.0
  %255 = vmatpush.msra.mxu0 0.0
  %256 = vmatpush.msra.mxu0 0.0
  %257 = vmatpush.msra.mxu0 0.0
  %258 = vmatpush.msra.mxu0 0.0
  %259 = vmatpush.msra.mxu0 0.0
  %260 = vmatpush.msra.mxu0 0.0
  %261 = vmatpush.msra.mxu0 %v126
  %262 = vmatmul.f32.gmra.mxu0 %v164
  %v263 = vpop.f32.mrf.mxu0
  %v264 = vadd.f32 0.0, %v263
  %265 = vdwg.mxu0
  %266 = vmatpush.msra.mxu0 0.0
  %267 = vmatpush.msra.mxu0 0.0
  %268 = vmatpush.msra.mxu0 0.0
  %269 = vmatpush.msra.mxu0 0.0
  %270 = vmatpush.msra.mxu0 0.0
  %271 = vmatpush.msra.mxu0 0.0
  %272 = vmatpush.msra.mxu0 0.0
  %273 = vmatpush.msra.mxu0 0.0
  %274 = vmatpush.msra.mxu0 0.0
  %275 = vmatpush.msra.mxu0 0.0
  %276 = vmatpush.msra.mxu0 0.0
  %277 = vmatpush.msra.mxu0 0.0
  %278 = vmatpush.msra.mxu0 0.0
  %279 = vmatpush.msra.mxu0 0.0
  %280 = vmatpush.msra.mxu0 0.0
  %281 = vmatpush.msra.mxu0 %v127
  %282 = vmatmul.f32.gmra.mxu0 %v164
  %v283 = vpop.f32.mrf.mxu0
  %v284 = vadd.f32 0.0, %v283
  %285 = vdwg.mxu0
  %286 = vmatpush.msra.mxu0 0.0
  %287 = vmatpush.msra.mxu0 0.0
  %288 = vmatpush.msra.mxu0 0.0
  %289 = vmatpush.msra.mxu0 0.0
  %290 = vmatpush.msra.mxu0 0.0
  %291 = vmatpush.msra.mxu0 0.0
  %292 = vmatpush.msra.mxu0 0.0
  %293 = vmatpush.msra.mxu0 0.0
  %294 = vmatpush.msra.mxu0 0.0
  %295 = vmatpush.msra.mxu0 0.0
  %296 = vmatpush.msra.mxu0 0.0
  %297 = vmatpush.msra.mxu0 0.0
  %298 = vmatpush.msra.mxu0 0.0
  %299 = vmatpush.msra.mxu0 0.0
  %300 = vmatpush.msra.mxu0 0.0
  %301 = vmatpush.msra.mxu0 %v128
  %302 = vmatmul.f32.gmra.mxu0 %v164
  %v303 = vpop.f32.mrf.mxu0
  %v304 = vadd.f32 0.0, %v303
  %305 = vdwg.mxu0
  %306 = vmatpush.msra.mxu0 0.0
  %307 = vmatpush.msra.mxu0 0.0
  %308 = vmatpush.msra.mxu0 0.0
  %309 = vmatpush.msra.mxu0 0.0
  %310 = vmatpush.msra.mxu0 0.0
  %311 = vmatpush.msra.mxu0 0.0
  %312 = vmatpush.msra.mxu0 0.0
  %313 = vmatpush.msra.mxu0 0.0
  %314 = vmatpush.msra.mxu0 0.0
  %315 = vmatpush.msra.mxu0 0.0
  %316 = vmatpush.msra.mxu0 0.0
  %317 = vmatpush.msra.mxu0 0.0
  %318 = vmatpush.msra.mxu0 0.0
  %319 = vmatpush.msra.mxu0 0.0
  %320 = vmatpush.msra.mxu0 0.0
  %321 = vmatpush.msra.mxu0 %v129
  %322 = vmatmul.f32.gmra.mxu0 %v164
  %v323 = vpop.f32.mrf.mxu0
  %v324 = vadd.f32 0.0, %v323
  %325 = vdwg.mxu0
  %326 = vmatpush.msra.mxu0 0.0
  %327 = vmatpush.msra.mxu0 0.0
  %328 = vmatpush.msra.mxu0 0.0
  %329 = vmatpush.msra.mxu0 0.0
  %330 = vmatpush.msra.mxu0 0.0
  %331 = vmatpush.msra.mxu0 0.0
  %332 = vmatpush.msra.mxu0 0.0
  %333 = vmatpush.msra.mxu0 0.0
  %334 = vmatpush.msra.mxu0 0.0
  %335 = vmatpush.msra.mxu0 0.0
  %336 = vmatpush.msra.mxu0 0.0
  %337 = vmatpush.msra.mxu0 0.0
  %338 = vmatpush.msra.mxu0 0.0
  %339 = vmatpush.msra.mxu0 0.0
  %340 = vmatpush.msra.mxu0 0.0
  %341 = vmatpush.msra.mxu0 %v130
  %342 = vmatmul.f32.gmra.mxu0 %v164
  %v343 = vpop.f32.mrf.mxu0
  %v344 = vadd.f32 0.0, %v343
  %345 = vdwg.mxu0
  %346 = vmatpush.msra.mxu0 0.0
  %347 = vmatpush.msra.mxu0 0.0
  %348 = vmatpush.msra.mxu0 0.0
  %349 = vmatpush.msra.mxu0 0.0
  %350 = vmatpush.msra.mxu0 0.0
  %351 = vmatpush.msra.mxu0 0.0
  %352 = vmatpush.msra.mxu0 0.0
  %353 = vmatpush.msra.mxu0 0.0
  %354 = vmatpush.msra.mxu0 0.0
  %355 = vmatpush.msra.mxu0 0.0
  %356 = vmatpush.msra.mxu0 0.0
  %357 = vmatpush.msra.mxu0 0.0
  %358 = vmatpush.msra.mxu0 0.0
  %359 = vmatpush.msra.mxu0 0.0
  %360 = vmatpush.msra.mxu0 0.0
  %361 = vmatpush.msra.mxu0 %v131
  %362 = vmatmul.f32.gmra.mxu0 %v164
  %v363 = vpop.f32.mrf.mxu0
  %v364 = vadd.f32 0.0, %v363
  %365 = vdwg.mxu0
  %366 = vmatpush.msra.mxu0 0.0
  %367 = vmatpush.msra.mxu0 0.0
  %368 = vmatpush.msra.mxu0 0.0
  %369 = vmatpush.msra.mxu0 0.0
  %370 = vmatpush.msra.mxu0 0.0
  %371 = vmatpush.msra.mxu0 0.0
  %372 = vmatpush.msra.mxu0 0.0
  %373 = vmatpush.msra.mxu0 0.0
  %374 = vmatpush.msra.mxu0 0.0
  %375 = vmatpush.msra.mxu0 0.0
  %376 = vmatpush.msra.mxu0 0.0
  %377 = vmatpush.msra.mxu0 0.0
  %378 = vmatpush.msra.mxu0 0.0
  %379 = vmatpush.msra.mxu0 0.0
  %380 = vmatpush.msra.mxu0 0.0
  %381 = vmatpush.msra.mxu0 %v132
  %382 = vmatmul.f32.gmra.mxu0 %v164
  %v383 = vpop.f32.mrf.mxu0
  %v384 = vadd.f32 0.0, %v383
  %385 = vdwg.mxu0
  %386 = vmatpush.msra.mxu0 0.0
  %387 = vmatpush.msra.mxu0 0.0
  %388 = vmatpush.msra.mxu0 0.0
  %389 = vmatpush.msra.mxu0 0.0
  %390 = vmatpush.msra.mxu0 0.0
  %391 = vmatpush.msra.mxu0 0.0
  %392 = vmatpush.msra.mxu0 0.0
  %393 = vmatpush.msra.mxu0 0.0
  %394 = vmatpush.msra.mxu0 0.0
  %395 = vmatpush.msra.mxu0 0.0
  %396 = vmatpush.msra.mxu0 0.0
  %397 = vmatpush.msra.mxu0 0.0
  %398 = vmatpush.msra.mxu0 0.0
  %399 = vmatpush.msra.mxu0 0.0
  %400 = vmatpush.msra.mxu0 0.0
  %401 = vmatpush.msra.mxu0 %v133
  %402 = vmatmul.f32.gmra.mxu0 %v164
  %v403 = vpop.f32.mrf.mxu0
  %v404 = vadd.f32 0.0, %v403
  %405 = vdwg.mxu0
  %406 = vmatpush.msra.mxu0 0.0
  %407 = vmatpush.msra.mxu0 0.0
  %408 = vmatpush.msra.mxu0 0.0
  %409 = vmatpush.msra.mxu0 0.0
  %410 = vmatpush.msra.mxu0 0.0
  %411 = vmatpush.msra.mxu0 0.0
  %412 = vmatpush.msra.mxu0 0.0
  %413 = vmatpush.msra.mxu0 0.0
  %414 = vmatpush.msra.mxu0 0.0
  %415 = vmatpush.msra.mxu0 0.0
  %416 = vmatpush.msra.mxu0 0.0
  %417 = vmatpush.msra.mxu0 0.0
  %418 = vmatpush.msra.mxu0 0.0
  %419 = vmatpush.msra.mxu0 0.0
  %420 = vmatpush.msra.mxu0 0.0
  %421 = vmatpush.msra.mxu0 %v134
  %422 = vmatmul.f32.gmra.mxu0 %v164
  %v423 = vpop.f32.mrf.mxu0
  %v424 = vadd.f32 0.0, %v423
  %425 = vdwg.mxu0
  %426 = vmatpush.msra.mxu0 0.0
  %427 = vmatpush.msra.mxu0 0.0
  %428 = vmatpush.msra.mxu0 0.0
  %429 = vmatpush.msra.mxu0 0.0
  %430 = vmatpush.msra.mxu0 0.0
  %431 = vmatpush.msra.mxu0 0.0
  %432 = vmatpush.msra.mxu0 0.0
  %433 = vmatpush.msra.mxu0 0.0
  %434 = vmatpush.msra.mxu0 0.0
  %435 = vmatpush.msra.mxu0 0.0
  %436 = vmatpush.msra.mxu0 0.0
  %437 = vmatpush.msra.mxu0 0.0
  %438 = vmatpush.msra.mxu0 0.0
  %439 = vmatpush.msra.mxu0 0.0
  %440 = vmatpush.msra.mxu0 0.0
  %441 = vmatpush.msra.mxu0 %v135
  %442 = vmatmul.f32.gmra.mxu0 %v164
  %v443 = vpop.f32.mrf.mxu0
  %v444 = vadd.f32 0.0, %v443
  %445 = vdwg.mxu0
  %446 = vmatpush.msra.mxu0 0.0
  %447 = vmatpush.msra.mxu0 0.0
  %448 = vmatpush.msra.mxu0 0.0
  %449 = vmatpush.msra.mxu0 0.0
  %450 = vmatpush.msra.mxu0 0.0
  %451 = vmatpush.msra.mxu0 0.0
  %452 = vmatpush.msra.mxu0 0.0
  %453 = vmatpush.msra.mxu0 0.0
  %454 = vmatpush.msra.mxu0 0.0
  %455 = vmatpush.msra.mxu0 0.0
  %456 = vmatpush.msra.mxu0 0.0
  %457 = vmatpush.msra.mxu0 0.0
  %458 = vmatpush.msra.mxu0 0.0
  %459 = vmatpush.msra.mxu0 0.0
  %460 = vmatpush.msra.mxu0 0.0
  %461 = vmatpush.msra.mxu0 %v136
  %462 = vmatmul.f32.gmra.mxu0 %v164
  %v463 = vpop.f32.mrf.mxu0
  %v464 = vadd.f32 0.0, %v463
  %465 = vdwg.mxu0
  %466 = vmatpush.msra.mxu0 0.0
  %467 = vmatpush.msra.mxu0 0.0
  %468 = vmatpush.msra.mxu0 0.0
  %469 = vmatpush.msra.mxu0 0.0
  %470 = vmatpush.msra.mxu0 0.0
  %471 = vmatpush.msra.mxu0 0.0
  %472 = vmatpush.msra.mxu0 0.0
  %473 = vmatpush.msra.mxu0 0.0
  %474 = vmatpush.msra.mxu0 0.0
  %475 = vmatpush.msra.mxu0 0.0
  %476 = vmatpush.msra.mxu0 0.0
  %477 = vmatpush.msra.mxu0 0.0
  %478 = vmatpush.msra.mxu0 0.0
  %479 = vmatpush.msra.mxu0 0.0
  %480 = vmatpush.msra.mxu0 0.0
  %481 = vmatpush.msra.mxu0 %v137
  %482 = vmatmul.f32.gmra.mxu0 %v164
  %v483 = vpop.f32.mrf.mxu0
  %v484 = vadd.f32 0.0, %v483
  %485 = vdwg.mxu0
  %486 = vmatpush.msra.mxu0 0.0
  %487 = vmatpush.msra.mxu0 0.0
  %488 = vmatpush.msra.mxu0 0.0
  %489 = vmatpush.msra.mxu0 0.0
  %490 = vmatpush.msra.mxu0 0.0
  %491 = vmatpush.msra.mxu0 0.0
  %492 = vmatpush.msra.mxu0 0.0
  %493 = vmatpush.msra.mxu0 0.0
  %494 = vmatpush.msra.mxu0 0.0
  %495 = vmatpush.msra.mxu0 0.0
  %496 = vmatpush.msra.mxu0 0.0
  %497 = vmatpush.msra.mxu0 0.0
  %498 = vmatpush.msra.mxu0 0.0
  %499 = vmatpush.msra.mxu0 0.0
  %500 = vmatpush.msra.mxu0 0.0
  %501 = vmatpush.msra.mxu0 %v138
  %502 = vmatmul.f32.gmra.mxu0 %v164
  %v503 = vpop.f32.mrf.mxu0
  %v504 = vadd.f32 0.0, %v503
  %505 = vdwg.mxu0
  %506 = vmatpush.msra.mxu0 0.0
  %507 = vmatpush.msra.mxu0 0.0
  %508 = vmatpush.msra.mxu0 0.0
  %509 = vmatpush.msra.mxu0 0.0
  %510 = vmatpush.msra.mxu0 0.0
  %511 = vmatpush.msra.mxu0 0.0
  %512 = vmatpush.msra.mxu0 0.0
  %513 = vmatpush.msra.mxu0 0.0
  %514 = vmatpush.msra.mxu0 0.0
  %515 = vmatpush.msra.mxu0 0.0
  %516 = vmatpush.msra.mxu0 0.0
  %517 = vmatpush.msra.mxu0 0.0
  %518 = vmatpush.msra.mxu0 0.0
  %519 = vmatpush.msra.mxu0 0.0
  %520 = vmatpush.msra.mxu0 0.0
  %521 = vmatpush.msra.mxu0 %v139
  %522 = vmatmul.f32.gmra.mxu0 %v164
  %v523 = vpop.f32.mrf.mxu0
  %v524 = vadd.f32 0.0, %v523
  %525 = vdwg.mxu0
  %526 = vmatpush.msra.mxu0 0.0
  %527 = vmatpush.msra.mxu0 0.0
  %528 = vmatpush.msra.mxu0 0.0
  %529 = vmatpush.msra.mxu0 0.0
  %530 = vmatpush.msra.mxu0 0.0
  %531 = vmatpush.msra.mxu0 0.0
  %532 = vmatpush.msra.mxu0 0.0
  %533 = vmatpush.msra.mxu0 0.0
  %534 = vmatpush.msra.mxu0 0.0
  %535 = vmatpush.msra.mxu0 0.0
  %536 = vmatpush.msra.mxu0 0.0
  %537 = vmatpush.msra.mxu0 0.0
  %538 = vmatpush.msra.mxu0 0.0
  %539 = vmatpush.msra.mxu0 0.0
  %540 = vmatpush.msra.mxu0 0.0
  %541 = vmatpush.msra.mxu0 %v140
  %542 = vmatmul.f32.gmra.mxu0 %v164
  %v543 = vpop.f32.mrf.mxu0
  %v544 = vadd.f32 0.0, %v543
  %545 = vdwg.mxu0
  %546 = vmatpush.msra.mxu0 0.0
  %547 = vmatpush.msra.mxu0 0.0
  %548 = vmatpush.msra.mxu0 0.0
  %549 = vmatpush.msra.mxu0 0.0
  %550 = vmatpush.msra.mxu0 0.0
  %551 = vmatpush.msra.mxu0 0.0
  %552 = vmatpush.msra.mxu0 0.0
  %553 = vmatpush.msra.mxu0 0.0
  %554 = vmatpush.msra.mxu0 0.0
  %555 = vmatpush.msra.mxu0 0.0
  %556 = vmatpush.msra.mxu0 0.0
  %557 = vmatpush.msra.mxu0 0.0
  %558 = vmatpush.msra.mxu0 0.0
  %559 = vmatpush.msra.mxu0 0.0
  %560 = vmatpush.msra.mxu0 0.0
  %561 = vmatpush.msra.mxu0 %v141
  %562 = vmatmul.f32.gmra.mxu0 %v164
  %v563 = vpop.f32.mrf.mxu0
  %v564 = vadd.f32 0.0, %v563
  %565 = vdwg.mxu0
  %v567 = vsel %vm162, %v34, 0
  %569 = vmatpush.msra.mxu0 0.0
  %570 = vmatpush.msra.mxu0 0.0
  %571 = vmatpush.msra.mxu0 0.0
  %572 = vmatpush.msra.mxu0 0.0
  %573 = vmatpush.msra.mxu0 0.0
  %574 = vmatpush.msra.mxu0 0.0
  %575 = vmatpush.msra.mxu0 0.0
  %576 = vmatpush.msra.mxu0 0.0
  %577 = vmatpush.msra.mxu0 0.0
  %578 = vmatpush.msra.mxu0 0.0
  %579 = vmatpush.msra.mxu0 0.0
  %580 = vmatpush.msra.mxu0 0.0
  %581 = vmatpush.msra.mxu0 0.0
  %582 = vmatpush.msra.mxu0 0.0
  %583 = vmatpush.msra.mxu0 0.0
  %584 = vmatpush.msra.mxu0 %v14
  %585 = vmatmul.f32.gmra.mxu0 %v567
  %v586 = vpop.f32.mrf.mxu0
  %v587 = vadd.f32 %v184, %v586
  %588 = vdwg.mxu0
  %589 = vmatpush.msra.mxu0 0.0
  %590 = vmatpush.msra.mxu0 0.0
  %591 = vmatpush.msra.mxu0 0.0
  %592 = vmatpush.msra.mxu0 0.0
  %593 = vmatpush.msra.mxu0 0.0
  %594 = vmatpush.msra.mxu0 0.0
  %595 = vmatpush.msra.mxu0 0.0
  %596 = vmatpush.msra.mxu0 0.0
  %597 = vmatpush.msra.mxu0 0.0
  %598 = vmatpush.msra.mxu0 0.0
  %599 = vmatpush.msra.mxu0 0.0
  %600 = vmatpush.msra.mxu0 0.0
  %601 = vmatpush.msra.mxu0 0.0
  %602 = vmatpush.msra.mxu0 0.0
  %603 = vmatpush.msra.mxu0 0.0
  %604 = vmatpush.msra.mxu0 %v15
  %605 = vmatmul.f32.gmra.mxu0 %v567
  %v606 = vpop.f32.mrf.mxu0
  %v607 = vadd.f32 %v204, %v606
  %608 = vdwg.mxu0
  %609 = vmatpush.msra.mxu0 0.0
  %610 = vmatpush.msra.mxu0 0.0
  %611 = vmatpush.msra.mxu0 0.0
  %612 = vmatpush.msra.mxu0 0.0
  %613 = vmatpush.msra.mxu0 0.0
  %614 = vmatpush.msra.mxu0 0.0
  %615 = vmatpush.msra.mxu0 0.0
  %616 = vmatpush.msra.mxu0 0.0
  %617 = vmatpush.msra.mxu0 0.0
  %618 = vmatpush.msra.mxu0 0.0
  %619 = vmatpush.msra.mxu0 0.0
  %620 = vmatpush.msra.mxu0 0.0
  %621 = vmatpush.msra.mxu0 0.0
  %622 = vmatpush.msra.mxu0 0.0
  %623 = vmatpush.msra.mxu0 0.0
  %624 = vmatpush.msra.mxu0 %v16
  %625 = vmatmul.f32.gmra.mxu0 %v567
  %v626 = vpop.f32.mrf.mxu0
  %v627 = vadd.f32 %v224, %v626
  %628 = vdwg.mxu0
  %629 = vmatpush.msra.mxu0 0.0
  %630 = vmatpush.msra.mxu0 0.0
  %631 = vmatpush.msra.mxu0 0.0
  %632 = vmatpush.msra.mxu0 0.0
  %633 = vmatpush.msra.mxu0 0.0
  %634 = vmatpush.msra.mxu0 0.0
  %635 = vmatpush.msra.mxu0 0.0
  %636 = vmatpush.msra.mxu0 0.0
  %637 = vmatpush.msra.mxu0 0.0
  %638 = vmatpush.msra.mxu0 0.0
  %639 = vmatpush.msra.mxu0 0.0
  %640 = vmatpush.msra.mxu0 0.0
  %641 = vmatpush.msra.mxu0 0.0
  %642 = vmatpush.msra.mxu0 0.0
  %643 = vmatpush.msra.mxu0 0.0
  %644 = vmatpush.msra.mxu0 %v17
  %645 = vmatmul.f32.gmra.mxu0 %v567
  %v646 = vpop.f32.mrf.mxu0
  %v647 = vadd.f32 %v244, %v646
  %648 = vdwg.mxu0
  %649 = vmatpush.msra.mxu0 0.0
  %650 = vmatpush.msra.mxu0 0.0
  %651 = vmatpush.msra.mxu0 0.0
  %652 = vmatpush.msra.mxu0 0.0
  %653 = vmatpush.msra.mxu0 0.0
  %654 = vmatpush.msra.mxu0 0.0
  %655 = vmatpush.msra.mxu0 0.0
  %656 = vmatpush.msra.mxu0 0.0
  %657 = vmatpush.msra.mxu0 0.0
  %658 = vmatpush.msra.mxu0 0.0
  %659 = vmatpush.msra.mxu0 0.0
  %660 = vmatpush.msra.mxu0 0.0
  %661 = vmatpush.msra.mxu0 0.0
  %662 = vmatpush.msra.mxu0 0.0
  %663 = vmatpush.msra.mxu0 0.0
  %664 = vmatpush.msra.mxu0 %v18
  %665 = vmatmul.f32.gmra.mxu0 %v567
  %v666 = vpop.f32.mrf.mxu0
  %v667 = vadd.f32 %v264, %v666
  %668 = vdwg.mxu0
  %669 = vmatpush.msra.mxu0 0.0
  %670 = vmatpush.msra.mxu0 0.0
  %671 = vmatpush.msra.mxu0 0.0
  %672 = vmatpush.msra.mxu0 0.0
  %673 = vmatpush.msra.mxu0 0.0
  %674 = vmatpush.msra.mxu0 0.0
  %675 = vmatpush.msra.mxu0 0.0
  %676 = vmatpush.msra.mxu0 0.0
  %677 = vmatpush.msra.mxu0 0.0
  %678 = vmatpush.msra.mxu0 0.0
  %679 = vmatpush.msra.mxu0 0.0
  %680 = vmatpush.msra.mxu0 0.0
  %681 = vmatpush.msra.mxu0 0.0
  %682 = vmatpush.msra.mxu0 0.0
  %683 = vmatpush.msra.mxu0 0.0
  %684 = vmatpush.msra.mxu0 %v19
  %685 = vmatmul.f32.gmra.mxu0 %v567
  %v686 = vpop.f32.mrf.mxu0
  %v687 = vadd.f32 %v284, %v686
  %688 = vdwg.mxu0
  %689 = vmatpush.msra.mxu0 0.0
  %690 = vmatpush.msra.mxu0 0.0
  %691 = vmatpush.msra.mxu0 0.0
  %692 = vmatpush.msra.mxu0 0.0
  %693 = vmatpush.msra.mxu0 0.0
  %694 = vmatpush.msra.mxu0 0.0
  %695 = vmatpush.msra.mxu0 0.0
  %696 = vmatpush.msra.mxu0 0.0
  %697 = vmatpush.msra.mxu0 0.0
  %698 = vmatpush.msra.mxu0 0.0
  %699 = vmatpush.msra.mxu0 0.0
  %700 = vmatpush.msra.mxu0 0.0
  %701 = vmatpush.msra.mxu0 0.0
  %702 = vmatpush.msra.mxu0 0.0
  %703 = vmatpush.msra.mxu0 0.0
  %704 = vmatpush.msra.mxu0 %v20
  %705 = vmatmul.f32.gmra.mxu0 %v567
  %v706 = vpop.f32.mrf.mxu0
  %v707 = vadd.f32 %v304, %v706
  %708 = vdwg.mxu0
  %709 = vmatpush.msra.mxu0 0.0
  %710 = vmatpush.msra.mxu0 0.0
  %711 = vmatpush.msra.mxu0 0.0
  %712 = vmatpush.msra.mxu0 0.0
  %713 = vmatpush.msra.mxu0 0.0
  %714 = vmatpush.msra.mxu0 0.0
  %715 = vmatpush.msra.mxu0 0.0
  %716 = vmatpush.msra.mxu0 0.0
  %717 = vmatpush.msra.mxu0 0.0
  %718 = vmatpush.msra.mxu0 0.0
  %719 = vmatpush.msra.mxu0 0.0
  %720 = vmatpush.msra.mxu0 0.0
  %721 = vmatpush.msra.mxu0 0.0
  %722 = vmatpush.msra.mxu0 0.0
  %723 = vmatpush.msra.mxu0 0.0
  %724 = vmatpush.msra.mxu0 %v21
  %725 = vmatmul.f32.gmra.mxu0 %v567
  %v726 = vpop.f32.mrf.mxu0
  %v727 = vadd.f32 %v324, %v726
  %728 = vdwg.mxu0
  %729 = vmatpush.msra.mxu0 0.0
  %730 = vmatpush.msra.mxu0 0.0
  %731 = vmatpush.msra.mxu0 0.0
  %732 = vmatpush.msra.mxu0 0.0
  %733 = vmatpush.msra.mxu0 0.0
  %734 = vmatpush.msra.mxu0 0.0
  %735 = vmatpush.msra.mxu0 0.0
  %736 = vmatpush.msra.mxu0 0.0
  %737 = vmatpush.msra.mxu0 0.0
  %738 = vmatpush.msra.mxu0 0.0
  %739 = vmatpush.msra.mxu0 0.0
  %740 = vmatpush.msra.mxu0 0.0
  %741 = vmatpush.msra.mxu0 0.0
  %742 = vmatpush.msra.mxu0 0.0
  %743 = vmatpush.msra.mxu0 0.0
  %744 = vmatpush.msra.mxu0 %v22
  %745 = vmatmul.f32.gmra.mxu0 %v567
  %v746 = vpop.f32.mrf.mxu0
  %v747 = vadd.f32 %v344, %v746
  %748 = vdwg.mxu0
  %749 = vmatpush.msra.mxu0 0.0
  %750 = vmatpush.msra.mxu0 0.0
  %751 = vmatpush.msra.mxu0 0.0
  %752 = vmatpush.msra.mxu0 0.0
  %753 = vmatpush.msra.mxu0 0.0
  %754 = vmatpush.msra.mxu0 0.0
  %755 = vmatpush.msra.mxu0 0.0
  %756 = vmatpush.msra.mxu0 0.0
  %757 = vmatpush.msra.mxu0 0.0
  %758 = vmatpush.msra.mxu0 0.0
  %759 = vmatpush.msra.mxu0 0.0
  %760 = vmatpush.msra.mxu0 0.0
  %761 = vmatpush.msra.mxu0 0.0
  %762 = vmatpush.msra.mxu0 0.0
  %763 = vmatpush.msra.mxu0 0.0
  %764 = vmatpush.msra.mxu0 %v23
  %765 = vmatmul.f32.gmra.mxu0 %v567
  %v766 = vpop.f32.mrf.mxu0
  %v767 = vadd.f32 %v364, %v766
  %768 = vdwg.mxu0
  %769 = vmatpush.msra.mxu0 0.0
  %770 = vmatpush.msra.mxu0 0.0
  %771 = vmatpush.msra.mxu0 0.0
  %772 = vmatpush.msra.mxu0 0.0
  %773 = vmatpush.msra.mxu0 0.0
  %774 = vmatpush.msra.mxu0 0.0
  %775 = vmatpush.msra.mxu0 0.0
  %776 = vmatpush.msra.mxu0 0.0
  %777 = vmatpush.msra.mxu0 0.0
  %778 = vmatpush.msra.mxu0 0.0
  %779 = vmatpush.msra.mxu0 0.0
  %780 = vmatpush.msra.mxu0 0.0
  %781 = vmatpush.msra.mxu0 0.0
  %782 = vmatpush.msra.mxu0 0.0
  %783 = vmatpush.msra.mxu0 0.0
  %784 = vmatpush.msra.mxu0 %v24
  %785 = vmatmul.f32.gmra.mxu0 %v567
  %v786 = vpop.f32.mrf.mxu0
  %v787 = vadd.f32 %v384, %v786
  %788 = vdwg.mxu0
  %789 = vmatpush.msra.mxu0 0.0
  %790 = vmatpush.msra.mxu0 0.0
  %791 = vmatpush.msra.mxu0 0.0
  %792 = vmatpush.msra.mxu0 0.0
  %793 = vmatpush.msra.mxu0 0.0
  %794 = vmatpush.msra.mxu0 0.0
  %795 = vmatpush.msra.mxu0 0.0
  %796 = vmatpush.msra.mxu0 0.0
  %797 = vmatpush.msra.mxu0 0.0
  %798 = vmatpush.msra.mxu0 0.0
  %799 = vmatpush.msra.mxu0 0.0
  %800 = vmatpush.msra.mxu0 0.0
  %801 = vmatpush.msra.mxu0 0.0
  %802 = vmatpush.msra.mxu0 0.0
  %803 = vmatpush.msra.mxu0 0.0
  %804 = vmatpush.msra.mxu0 %v25
  %805 = vmatmul.f32.gmra.mxu0 %v567
  %v806 = vpop.f32.mrf.mxu0
  %v807 = vadd.f32 %v404, %v806
  %808 = vdwg.mxu0
  %809 = vmatpush.msra.mxu0 0.0
  %810 = vmatpush.msra.mxu0 0.0
  %811 = vmatpush.msra.mxu0 0.0
  %812 = vmatpush.msra.mxu0 0.0
  %813 = vmatpush.msra.mxu0 0.0
  %814 = vmatpush.msra.mxu0 0.0
  %815 = vmatpush.msra.mxu0 0.0
  %816 = vmatpush.msra.mxu0 0.0
  %817 = vmatpush.msra.mxu0 0.0
  %818 = vmatpush.msra.mxu0 0.0
  %819 = vmatpush.msra.mxu0 0.0
  %820 = vmatpush.msra.mxu0 0.0
  %821 = vmatpush.msra.mxu0 0.0
  %822 = vmatpush.msra.mxu0 0.0
  %823 = vmatpush.msra.mxu0 0.0
  %824 = vmatpush.msra.mxu0 %v26
  %825 = vmatmul.f32.gmra.mxu0 %v567
  %v826 = vpop.f32.mrf.mxu0
  %v827 = vadd.f32 %v424, %v826
  %828 = vdwg.mxu0
  %829 = vmatpush.msra.mxu0 0.0
  %830 = vmatpush.msra.mxu0 0.0
  %831 = vmatpush.msra.mxu0 0.0
  %832 = vmatpush.msra.mxu0 0.0
  %833 = vmatpush.msra.mxu0 0.0
  %834 = vmatpush.msra.mxu0 0.0
  %835 = vmatpush.msra.mxu0 0.0
  %836 = vmatpush.msra.mxu0 0.0
  %837 = vmatpush.msra.mxu0 0.0
  %838 = vmatpush.msra.mxu0 0.0
  %839 = vmatpush.msra.mxu0 0.0
  %840 = vmatpush.msra.mxu0 0.0
  %841 = vmatpush.msra.mxu0 0.0
  %842 = vmatpush.msra.mxu0 0.0
  %843 = vmatpush.msra.mxu0 0.0
  %844 = vmatpush.msra.mxu0 %v27
  %845 = vmatmul.f32.gmra.mxu0 %v567
  %v846 = vpop.f32.mrf.mxu0
  %v847 = vadd.f32 %v444, %v846
  %848 = vdwg.mxu0
  %849 = vmatpush.msra.mxu0 0.0
  %850 = vmatpush.msra.mxu0 0.0
  %851 = vmatpush.msra.mxu0 0.0
  %852 = vmatpush.msra.mxu0 0.0
  %853 = vmatpush.msra.mxu0 0.0
  %854 = vmatpush.msra.mxu0 0.0
  %855 = vmatpush.msra.mxu0 0.0
  %856 = vmatpush.msra.mxu0 0.0
  %857 = vmatpush.msra.mxu0 0.0
  %858 = vmatpush.msra.mxu0 0.0
  %859 = vmatpush.msra.mxu0 0.0
  %860 = vmatpush.msra.mxu0 0.0
  %861 = vmatpush.msra.mxu0 0.0
  %862 = vmatpush.msra.mxu0 0.0
  %863 = vmatpush.msra.mxu0 0.0
  %864 = vmatpush.msra.mxu0 %v28
  %865 = vmatmul.f32.gmra.mxu0 %v567
  %v866 = vpop.f32.mrf.mxu0
  %v867 = vadd.f32 %v464, %v866
  %868 = vdwg.mxu0
  %869 = vmatpush.msra.mxu0 0.0
  %870 = vmatpush.msra.mxu0 0.0
  %871 = vmatpush.msra.mxu0 0.0
  %872 = vmatpush.msra.mxu0 0.0
  %873 = vmatpush.msra.mxu0 0.0
  %874 = vmatpush.msra.mxu0 0.0
  %875 = vmatpush.msra.mxu0 0.0
  %876 = vmatpush.msra.mxu0 0.0
  %877 = vmatpush.msra.mxu0 0.0
  %878 = vmatpush.msra.mxu0 0.0
  %879 = vmatpush.msra.mxu0 0.0
  %880 = vmatpush.msra.mxu0 0.0
  %881 = vmatpush.msra.mxu0 0.0
  %882 = vmatpush.msra.mxu0 0.0
  %883 = vmatpush.msra.mxu0 0.0
  %884 = vmatpush.msra.mxu0 %v29
  %885 = vmatmul.f32.gmra.mxu0 %v567
  %v886 = vpop.f32.mrf.mxu0
  %v887 = vadd.f32 %v484, %v886
  %888 = vdwg.mxu0
  %889 = vmatpush.msra.mxu0 0.0
  %890 = vmatpush.msra.mxu0 0.0
  %891 = vmatpush.msra.mxu0 0.0
  %892 = vmatpush.msra.mxu0 0.0
  %893 = vmatpush.msra.mxu0 0.0
  %894 = vmatpush.msra.mxu0 0.0
  %895 = vmatpush.msra.mxu0 0.0
  %896 = vmatpush.msra.mxu0 0.0
  %897 = vmatpush.msra.mxu0 0.0
  %898 = vmatpush.msra.mxu0 0.0
  %899 = vmatpush.msra.mxu0 0.0
  %900 = vmatpush.msra.mxu0 0.0
  %901 = vmatpush.msra.mxu0 0.0
  %902 = vmatpush.msra.mxu0 0.0
  %903 = vmatpush.msra.mxu0 0.0
  %904 = vmatpush.msra.mxu0 %v30
  %905 = vmatmul.f32.gmra.mxu0 %v567
  %v906 = vpop.f32.mrf.mxu0
  %v907 = vadd.f32 %v504, %v906
  %908 = vdwg.mxu0
  %909 = vmatpush.msra.mxu0 0.0
  %910 = vmatpush.msra.mxu0 0.0
  %911 = vmatpush.msra.mxu0 0.0
  %912 = vmatpush.msra.mxu0 0.0
  %913 = vmatpush.msra.mxu0 0.0
  %914 = vmatpush.msra.mxu0 0.0
  %915 = vmatpush.msra.mxu0 0.0
  %916 = vmatpush.msra.mxu0 0.0
  %917 = vmatpush.msra.mxu0 0.0
  %918 = vmatpush.msra.mxu0 0.0
  %919 = vmatpush.msra.mxu0 0.0
  %920 = vmatpush.msra.mxu0 0.0
  %921 = vmatpush.msra.mxu0 0.0
  %922 = vmatpush.msra.mxu0 0.0
  %923 = vmatpush.msra.mxu0 0.0
  %924 = vmatpush.msra.mxu0 %v31
  %925 = vmatmul.f32.gmra.mxu0 %v567
  %v926 = vpop.f32.mrf.mxu0
  %v927 = vadd.f32 %v524, %v926
  %928 = vdwg.mxu0
  %929 = vmatpush.msra.mxu0 0.0
  %930 = vmatpush.msra.mxu0 0.0
  %931 = vmatpush.msra.mxu0 0.0
  %932 = vmatpush.msra.mxu0 0.0
  %933 = vmatpush.msra.mxu0 0.0
  %934 = vmatpush.msra.mxu0 0.0
  %935 = vmatpush.msra.mxu0 0.0
  %936 = vmatpush.msra.mxu0 0.0
  %937 = vmatpush.msra.mxu0 0.0
  %938 = vmatpush.msra.mxu0 0.0
  %939 = vmatpush.msra.mxu0 0.0
  %940 = vmatpush.msra.mxu0 0.0
  %941 = vmatpush.msra.mxu0 0.0
  %942 = vmatpush.msra.mxu0 0.0
  %943 = vmatpush.msra.mxu0 0.0
  %944 = vmatpush.msra.mxu0 %v32
  %945 = vmatmul.f32.gmra.mxu0 %v567
  %v946 = vpop.f32.mrf.mxu0
  %v947 = vadd.f32 %v544, %v946
  %948 = vdwg.mxu0
  %949 = vmatpush.msra.mxu0 0.0
  %950 = vmatpush.msra.mxu0 0.0
  %951 = vmatpush.msra.mxu0 0.0
  %952 = vmatpush.msra.mxu0 0.0
  %953 = vmatpush.msra.mxu0 0.0
  %954 = vmatpush.msra.mxu0 0.0
  %955 = vmatpush.msra.mxu0 0.0
  %956 = vmatpush.msra.mxu0 0.0
  %957 = vmatpush.msra.mxu0 0.0
  %958 = vmatpush.msra.mxu0 0.0
  %959 = vmatpush.msra.mxu0 0.0
  %960 = vmatpush.msra.mxu0 0.0
  %961 = vmatpush.msra.mxu0 0.0
  %962 = vmatpush.msra.mxu0 0.0
  %963 = vmatpush.msra.mxu0 0.0
  %964 = vmatpush.msra.mxu0 %v33
  %965 = vmatmul.f32.gmra.mxu0 %v567
  %v966 = vpop.f32.mrf.mxu0
  %v967 = vadd.f32 %v564, %v966
  %968 = vdwg.mxu0
  %s969 = scalar_lea.vmem %s0, 16
  %v970 = vld [vmem:[%s969] sm:$0xff]
  %971 = vrot.lane.b32.xlu0 %v35, 126
  %v972 = vpop.permute.xlu0 %971
  %973 = vrot.lane.b32.xlu0 %v36, 126
  %v974 = vpop.permute.xlu0 %973
  %975 = vrot.lane.b32.xlu0 %v37, 126
  %v976 = vpop.permute.xlu0 %975
  %977 = vrot.lane.b32.xlu0 %v38, 126
  %v978 = vpop.permute.xlu0 %977
  %979 = vrot.lane.b32.xlu0 %v39, 126
  %v980 = vpop.permute.xlu0 %979
  %981 = vrot.lane.b32.xlu0 %v40, 126
  %v982 = vpop.permute.xlu0 %981
  %983 = vrot.lane.b32.xlu0 %v41, 126
  %v984 = vpop.permute.xlu0 %983
  %985 = vrot.lane.b32.xlu0 %v42, 126
  %v986 = vpop.permute.xlu0 %985
  %987 = vrot.lane.b32.xlu0 %v43, 126
  %v988 = vpop.permute.xlu0 %987
  %989 = vrot.lane.b32.xlu0 %v44, 126
  %v990 = vpop.permute.xlu0 %989
  %991 = vrot.lane.b32.xlu0 %v45, 126
  %v992 = vpop.permute.xlu0 %991
  %993 = vrot.lane.b32.xlu0 %v46, 126
  %v994 = vpop.permute.xlu0 %993
  %995 = vrot.lane.b32.xlu0 %v47, 126
  %v996 = vpop.permute.xlu0 %995
  %997 = vrot.lane.b32.xlu0 %v48, 126
  %v998 = vpop.permute.xlu0 %997
  %999 = vrot.lane.b32.xlu0 %v49, 126
  %v1000 = vpop.permute.xlu0 %999
  %1001 = vrot.lane.b32.xlu0 %v50, 126
  %v1002 = vpop.permute.xlu0 %1001
  %1003 = vrot.lane.b32.xlu0 %v51, 126
  %v1004 = vpop.permute.xlu0 %1003
  %1005 = vrot.lane.b32.xlu0 %v52, 126
  %v1006 = vpop.permute.xlu0 %1005
  %1007 = vrot.lane.b32.xlu0 %v53, 126
  %v1008 = vpop.permute.xlu0 %1007
  %1009 = vrot.lane.b32.xlu0 %v54, 126
  %v1010 = vpop.permute.xlu0 %1009
  %1011 = vrot.lane.b32.xlu0 %v55, 126
  %v1012 = vpop.permute.xlu0 %1011
  %vm1013 = vcmask 1031168
  %v1014 = vsel %vm1013, %v972, %v974
  %v1015 = vsel %vm1013, %v974, %v976
  %v1016 = vsel %vm1013, %v976, %v978
  %v1017 = vsel %vm1013, %v978, %v980
  %v1018 = vsel %vm1013, %v980, %v982
  %v1019 = vsel %vm1013, %v982, %v984
  %v1020 = vsel %vm1013, %v984, %v986
  %v1021 = vsel %vm1013, %v986, %v988
  %v1022 = vsel %vm1013, %v988, %v990
  %v1023 = vsel %vm1013, %v990, %v992
  %v1024 = vsel %vm1013, %v992, %v994
  %v1025 = vsel %vm1013, %v994, %v996
  %v1026 = vsel %vm1013, %v996, %v998
  %v1027 = vsel %vm1013, %v998, %v1000
  %v1028 = vsel %vm1013, %v1000, %v1002
  %v1029 = vsel %vm1013, %v1002, %v1004
  %v1030 = vsel %vm1013, %v1004, %v1006
  %v1031 = vsel %vm1013, %v1006, %v1008
  %v1032 = vsel %vm1013, %v1008, %v1010
  %v1033 = vsel %vm1013, %v1010, %v1012
  %v1055 = vsel %vm162, %v970, 0
  %1057 = vmatpush.msra.mxu0 0.0
  %1058 = vmatpush.msra.mxu0 0.0
  %1059 = vmatpush.msra.mxu0 0.0
  %1060 = vmatpush.msra.mxu0 0.0
  %1061 = vmatpush.msra.mxu0 0.0
  %1062 = vmatpush.msra.mxu0 0.0
  %1063 = vmatpush.msra.mxu0 0.0
  %1064 = vmatpush.msra.mxu0 0.0
  %1065 = vmatpush.msra.mxu0 0.0
  %1066 = vmatpush.msra.mxu0 0.0
  %1067 = vmatpush.msra.mxu0 0.0
  %1068 = vmatpush.msra.mxu0 0.0
  %1069 = vmatpush.msra.mxu0 0.0
  %1070 = vmatpush.msra.mxu0 0.0
  %1071 = vmatpush.msra.mxu0 0.0
  %1072 = vmatpush.msra.mxu0 %v1014
  %1073 = vmatmul.f32.gmra.mxu0 %v1055
  %v1074 = vpop.f32.mrf.mxu0
  %v1075 = vadd.f32 0.0, %v1074
  %1076 = vdwg.mxu0
  %1077 = vmatpush.msra.mxu0 0.0
  %1078 = vmatpush.msra.mxu0 0.0
  %1079 = vmatpush.msra.mxu0 0.0
  %1080 = vmatpush.msra.mxu0 0.0
  %1081 = vmatpush.msra.mxu0 0.0
  %1082 = vmatpush.msra.mxu0 0.0
  %1083 = vmatpush.msra.mxu0 0.0
  %1084 = vmatpush.msra.mxu0 0.0
  %1085 = vmatpush.msra.mxu0 0.0
  %1086 = vmatpush.msra.mxu0 0.0
  %1087 = vmatpush.msra.mxu0 0.0
  %1088 = vmatpush.msra.mxu0 0.0
  %1089 = vmatpush.msra.mxu0 0.0
  %1090 = vmatpush.msra.mxu0 0.0
  %1091 = vmatpush.msra.mxu0 0.0
  %1092 = vmatpush.msra.mxu0 %v1015
  %1093 = vmatmul.f32.gmra.mxu0 %v1055
  %v1094 = vpop.f32.mrf.mxu0
  %v1095 = vadd.f32 0.0, %v1094
  %1096 = vdwg.mxu0
  %1097 = vmatpush.msra.mxu0 0.0
  %1098 = vmatpush.msra.mxu0 0.0
  %1099 = vmatpush.msra.mxu0 0.0
  %1100 = vmatpush.msra.mxu0 0.0
  %1101 = vmatpush.msra.mxu0 0.0
  %1102 = vmatpush.msra.mxu0 0.0
  %1103 = vmatpush.msra.mxu0 0.0
  %1104 = vmatpush.msra.mxu0 0.0
  %1105 = vmatpush.msra.mxu0 0.0
  %1106 = vmatpush.msra.mxu0 0.0
  %1107 = vmatpush.msra.mxu0 0.0
  %1108 = vmatpush.msra.mxu0 0.0
  %1109 = vmatpush.msra.mxu0 0.0
  %1110 = vmatpush.msra.mxu0 0.0
  %1111 = vmatpush.msra.mxu0 0.0
  %1112 = vmatpush.msra.mxu0 %v1016
  %1113 = vmatmul.f32.gmra.mxu0 %v1055
  %v1114 = vpop.f32.mrf.mxu0
  %v1115 = vadd.f32 0.0, %v1114
  %1116 = vdwg.mxu0
  %1117 = vmatpush.msra.mxu0 0.0
  %1118 = vmatpush.msra.mxu0 0.0
  %1119 = vmatpush.msra.mxu0 0.0
  %1120 = vmatpush.msra.mxu0 0.0
  %1121 = vmatpush.msra.mxu0 0.0
  %1122 = vmatpush.msra.mxu0 0.0
  %1123 = vmatpush.msra.mxu0 0.0
  %1124 = vmatpush.msra.mxu0 0.0
  %1125 = vmatpush.msra.mxu0 0.0
  %1126 = vmatpush.msra.mxu0 0.0
  %1127 = vmatpush.msra.mxu0 0.0
  %1128 = vmatpush.msra.mxu0 0.0
  %1129 = vmatpush.msra.mxu0 0.0
  %1130 = vmatpush.msra.mxu0 0.0
  %1131 = vmatpush.msra.mxu0 0.0
  %1132 = vmatpush.msra.mxu0 %v1017
  %1133 = vmatmul.f32.gmra.mxu0 %v1055
  %v1134 = vpop.f32.mrf.mxu0
  %v1135 = vadd.f32 0.0, %v1134
  %1136 = vdwg.mxu0
  %1137 = vmatpush.msra.mxu0 0.0
  %1138 = vmatpush.msra.mxu0 0.0
  %1139 = vmatpush.msra.mxu0 0.0
  %1140 = vmatpush.msra.mxu0 0.0
  %1141 = vmatpush.msra.mxu0 0.0
  %1142 = vmatpush.msra.mxu0 0.0
  %1143 = vmatpush.msra.mxu0 0.0
  %1144 = vmatpush.msra.mxu0 0.0
  %1145 = vmatpush.msra.mxu0 0.0
  %1146 = vmatpush.msra.mxu0 0.0
  %1147 = vmatpush.msra.mxu0 0.0
  %1148 = vmatpush.msra.mxu0 0.0
  %1149 = vmatpush.msra.mxu0 0.0
  %1150 = vmatpush.msra.mxu0 0.0
  %1151 = vmatpush.msra.mxu0 0.0
  %1152 = vmatpush.msra.mxu0 %v1018
  %1153 = vmatmul.f32.gmra.mxu0 %v1055
  %v1154 = vpop.f32.mrf.mxu0
  %v1155 = vadd.f32 0.0, %v1154
  %1156 = vdwg.mxu0
  %1157 = vmatpush.msra.mxu0 0.0
  %1158 = vmatpush.msra.mxu0 0.0
  %1159 = vmatpush.msra.mxu0 0.0
  %1160 = vmatpush.msra.mxu0 0.0
  %1161 = vmatpush.msra.mxu0 0.0
  %1162 = vmatpush.msra.mxu0 0.0
  %1163 = vmatpush.msra.mxu0 0.0
  %1164 = vmatpush.msra.mxu0 0.0
  %1165 = vmatpush.msra.mxu0 0.0
  %1166 = vmatpush.msra.mxu0 0.0
  %1167 = vmatpush.msra.mxu0 0.0
  %1168 = vmatpush.msra.mxu0 0.0
  %1169 = vmatpush.msra.mxu0 0.0
  %1170 = vmatpush.msra.mxu0 0.0
  %1171 = vmatpush.msra.mxu0 0.0
  %1172 = vmatpush.msra.mxu0 %v1019
  %1173 = vmatmul.f32.gmra.mxu0 %v1055
  %v1174 = vpop.f32.mrf.mxu0
  %v1175 = vadd.f32 0.0, %v1174
  %1176 = vdwg.mxu0
  %1177 = vmatpush.msra.mxu0 0.0
  %1178 = vmatpush.msra.mxu0 0.0
  %1179 = vmatpush.msra.mxu0 0.0
  %1180 = vmatpush.msra.mxu0 0.0
  %1181 = vmatpush.msra.mxu0 0.0
  %1182 = vmatpush.msra.mxu0 0.0
  %1183 = vmatpush.msra.mxu0 0.0
  %1184 = vmatpush.msra.mxu0 0.0
  %1185 = vmatpush.msra.mxu0 0.0
  %1186 = vmatpush.msra.mxu0 0.0
  %1187 = vmatpush.msra.mxu0 0.0
  %1188 = vmatpush.msra.mxu0 0.0
  %1189 = vmatpush.msra.mxu0 0.0
  %1190 = vmatpush.msra.mxu0 0.0
  %1191 = vmatpush.msra.mxu0 0.0
  %1192 = vmatpush.msra.mxu0 %v1020
  %1193 = vmatmul.f32.gmra.mxu0 %v1055
  %v1194 = vpop.f32.mrf.mxu0
  %v1195 = vadd.f32 0.0, %v1194
  %1196 = vdwg.mxu0
  %1197 = vmatpush.msra.mxu0 0.0
  %1198 = vmatpush.msra.mxu0 0.0
  %1199 = vmatpush.msra.mxu0 0.0
  %1200 = vmatpush.msra.mxu0 0.0
  %1201 = vmatpush.msra.mxu0 0.0
  %1202 = vmatpush.msra.mxu0 0.0
  %1203 = vmatpush.msra.mxu0 0.0
  %1204 = vmatpush.msra.mxu0 0.0
  %1205 = vmatpush.msra.mxu0 0.0
  %1206 = vmatpush.msra.mxu0 0.0
  %1207 = vmatpush.msra.mxu0 0.0
  %1208 = vmatpush.msra.mxu0 0.0
  %1209 = vmatpush.msra.mxu0 0.0
  %1210 = vmatpush.msra.mxu0 0.0
  %1211 = vmatpush.msra.mxu0 0.0
  %1212 = vmatpush.msra.mxu0 %v1021
  %1213 = vmatmul.f32.gmra.mxu0 %v1055
  %v1214 = vpop.f32.mrf.mxu0
  %v1215 = vadd.f32 0.0, %v1214
  %1216 = vdwg.mxu0
  %1217 = vmatpush.msra.mxu0 0.0
  %1218 = vmatpush.msra.mxu0 0.0
  %1219 = vmatpush.msra.mxu0 0.0
  %1220 = vmatpush.msra.mxu0 0.0
  %1221 = vmatpush.msra.mxu0 0.0
  %1222 = vmatpush.msra.mxu0 0.0
  %1223 = vmatpush.msra.mxu0 0.0
  %1224 = vmatpush.msra.mxu0 0.0
  %1225 = vmatpush.msra.mxu0 0.0
  %1226 = vmatpush.msra.mxu0 0.0
  %1227 = vmatpush.msra.mxu0 0.0
  %1228 = vmatpush.msra.mxu0 0.0
  %1229 = vmatpush.msra.mxu0 0.0
  %1230 = vmatpush.msra.mxu0 0.0
  %1231 = vmatpush.msra.mxu0 0.0
  %1232 = vmatpush.msra.mxu0 %v1022
  %1233 = vmatmul.f32.gmra.mxu0 %v1055
  %v1234 = vpop.f32.mrf.mxu0
  %v1235 = vadd.f32 0.0, %v1234
  %1236 = vdwg.mxu0
  %1237 = vmatpush.msra.mxu0 0.0
  %1238 = vmatpush.msra.mxu0 0.0
  %1239 = vmatpush.msra.mxu0 0.0
  %1240 = vmatpush.msra.mxu0 0.0
  %1241 = vmatpush.msra.mxu0 0.0
  %1242 = vmatpush.msra.mxu0 0.0
  %1243 = vmatpush.msra.mxu0 0.0
  %1244 = vmatpush.msra.mxu0 0.0
  %1245 = vmatpush.msra.mxu0 0.0
  %1246 = vmatpush.msra.mxu0 0.0
  %1247 = vmatpush.msra.mxu0 0.0
  %1248 = vmatpush.msra.mxu0 0.0
  %1249 = vmatpush.msra.mxu0 0.0
  %1250 = vmatpush.msra.mxu0 0.0
  %1251 = vmatpush.msra.mxu0 0.0
  %1252 = vmatpush.msra.mxu0 %v1023
  %1253 = vmatmul.f32.gmra.mxu0 %v1055
  %v1254 = vpop.f32.mrf.mxu0
  %v1255 = vadd.f32 0.0, %v1254
  %1256 = vdwg.mxu0
  %1257 = vmatpush.msra.mxu0 0.0
  %1258 = vmatpush.msra.mxu0 0.0
  %1259 = vmatpush.msra.mxu0 0.0
  %1260 = vmatpush.msra.mxu0 0.0
  %1261 = vmatpush.msra.mxu0 0.0
  %1262 = vmatpush.msra.mxu0 0.0
  %1263 = vmatpush.msra.mxu0 0.0
  %1264 = vmatpush.msra.mxu0 0.0
  %1265 = vmatpush.msra.mxu0 0.0
  %1266 = vmatpush.msra.mxu0 0.0
  %1267 = vmatpush.msra.mxu0 0.0
  %1268 = vmatpush.msra.mxu0 0.0
  %1269 = vmatpush.msra.mxu0 0.0
  %1270 = vmatpush.msra.mxu0 0.0
  %1271 = vmatpush.msra.mxu0 0.0
  %1272 = vmatpush.msra.mxu0 %v1024
  %1273 = vmatmul.f32.gmra.mxu0 %v1055
  %v1274 = vpop.f32.mrf.mxu0
  %v1275 = vadd.f32 0.0, %v1274
  %1276 = vdwg.mxu0
  %1277 = vmatpush.msra.mxu0 0.0
  %1278 = vmatpush.msra.mxu0 0.0
  %1279 = vmatpush.msra.mxu0 0.0
  %1280 = vmatpush.msra.mxu0 0.0
  %1281 = vmatpush.msra.mxu0 0.0
  %1282 = vmatpush.msra.mxu0 0.0
  %1283 = vmatpush.msra.mxu0 0.0
  %1284 = vmatpush.msra.mxu0 0.0
  %1285 = vmatpush.msra.mxu0 0.0
  %1286 = vmatpush.msra.mxu0 0.0
  %1287 = vmatpush.msra.mxu0 0.0
  %1288 = vmatpush.msra.mxu0 0.0
  %1289 = vmatpush.msra.mxu0 0.0
  %1290 = vmatpush.msra.mxu0 0.0
  %1291 = vmatpush.msra.mxu0 0.0
  %1292 = vmatpush.msra.mxu0 %v1025
  %1293 = vmatmul.f32.gmra.mxu0 %v1055
  %v1294 = vpop.f32.mrf.mxu0
  %v1295 = vadd.f32 0.0, %v1294
  %1296 = vdwg.mxu0
  %1297 = vmatpush.msra.mxu0 0.0
  %1298 = vmatpush.msra.mxu0 0.0
  %1299 = vmatpush.msra.mxu0 0.0
  %1300 = vmatpush.msra.mxu0 0.0
  %1301 = vmatpush.msra.mxu0 0.0
  %1302 = vmatpush.msra.mxu0 0.0
  %1303 = vmatpush.msra.mxu0 0.0
  %1304 = vmatpush.msra.mxu0 0.0
  %1305 = vmatpush.msra.mxu0 0.0
  %1306 = vmatpush.msra.mxu0 0.0
  %1307 = vmatpush.msra.mxu0 0.0
  %1308 = vmatpush.msra.mxu0 0.0
  %1309 = vmatpush.msra.mxu0 0.0
  %1310 = vmatpush.msra.mxu0 0.0
  %1311 = vmatpush.msra.mxu0 0.0
  %1312 = vmatpush.msra.mxu0 %v1026
  %1313 = vmatmul.f32.gmra.mxu0 %v1055
  %v1314 = vpop.f32.mrf.mxu0
  %v1315 = vadd.f32 0.0, %v1314
  %1316 = vdwg.mxu0
  %1317 = vmatpush.msra.mxu0 0.0
  %1318 = vmatpush.msra.mxu0 0.0
  %1319 = vmatpush.msra.mxu0 0.0
  %1320 = vmatpush.msra.mxu0 0.0
  %1321 = vmatpush.msra.mxu0 0.0
  %1322 = vmatpush.msra.mxu0 0.0
  %1323 = vmatpush.msra.mxu0 0.0
  %1324 = vmatpush.msra.mxu0 0.0
  %1325 = vmatpush.msra.mxu0 0.0
  %1326 = vmatpush.msra.mxu0 0.0
  %1327 = vmatpush.msra.mxu0 0.0
  %1328 = vmatpush.msra.mxu0 0.0
  %1329 = vmatpush.msra.mxu0 0.0
  %1330 = vmatpush.msra.mxu0 0.0
  %1331 = vmatpush.msra.mxu0 0.0
  %1332 = vmatpush.msra.mxu0 %v1027
  %1333 = vmatmul.f32.gmra.mxu0 %v1055
  %v1334 = vpop.f32.mrf.mxu0
  %v1335 = vadd.f32 0.0, %v1334
  %1336 = vdwg.mxu0
  %1337 = vmatpush.msra.mxu0 0.0
  %1338 = vmatpush.msra.mxu0 0.0
  %1339 = vmatpush.msra.mxu0 0.0
  %1340 = vmatpush.msra.mxu0 0.0
  %1341 = vmatpush.msra.mxu0 0.0
  %1342 = vmatpush.msra.mxu0 0.0
  %1343 = vmatpush.msra.mxu0 0.0
  %1344 = vmatpush.msra.mxu0 0.0
  %1345 = vmatpush.msra.mxu0 0.0
  %1346 = vmatpush.msra.mxu0 0.0
  %1347 = vmatpush.msra.mxu0 0.0
  %1348 = vmatpush.msra.mxu0 0.0
  %1349 = vmatpush.msra.mxu0 0.0
  %1350 = vmatpush.msra.mxu0 0.0
  %1351 = vmatpush.msra.mxu0 0.0
  %1352 = vmatpush.msra.mxu0 %v1028
  %1353 = vmatmul.f32.gmra.mxu0 %v1055
  %v1354 = vpop.f32.mrf.mxu0
  %v1355 = vadd.f32 0.0, %v1354
  %1356 = vdwg.mxu0
  %1357 = vmatpush.msra.mxu0 0.0
  %1358 = vmatpush.msra.mxu0 0.0
  %1359 = vmatpush.msra.mxu0 0.0
  %1360 = vmatpush.msra.mxu0 0.0
  %1361 = vmatpush.msra.mxu0 0.0
  %1362 = vmatpush.msra.mxu0 0.0
  %1363 = vmatpush.msra.mxu0 0.0
  %1364 = vmatpush.msra.mxu0 0.0
  %1365 = vmatpush.msra.mxu0 0.0
  %1366 = vmatpush.msra.mxu0 0.0
  %1367 = vmatpush.msra.mxu0 0.0
  %1368 = vmatpush.msra.mxu0 0.0
  %1369 = vmatpush.msra.mxu0 0.0
  %1370 = vmatpush.msra.mxu0 0.0
  %1371 = vmatpush.msra.mxu0 0.0
  %1372 = vmatpush.msra.mxu0 %v1029
  %1373 = vmatmul.f32.gmra.mxu0 %v1055
  %v1374 = vpop.f32.mrf.mxu0
  %v1375 = vadd.f32 0.0, %v1374
  %1376 = vdwg.mxu0
  %1377 = vmatpush.msra.mxu0 0.0
  %1378 = vmatpush.msra.mxu0 0.0
  %1379 = vmatpush.msra.mxu0 0.0
  %1380 = vmatpush.msra.mxu0 0.0
  %1381 = vmatpush.msra.mxu0 0.0
  %1382 = vmatpush.msra.mxu0 0.0
  %1383 = vmatpush.msra.mxu0 0.0
  %1384 = vmatpush.msra.mxu0 0.0
  %1385 = vmatpush.msra.mxu0 0.0
  %1386 = vmatpush.msra.mxu0 0.0
  %1387 = vmatpush.msra.mxu0 0.0
  %1388 = vmatpush.msra.mxu0 0.0
  %1389 = vmatpush.msra.mxu0 0.0
  %1390 = vmatpush.msra.mxu0 0.0
  %1391 = vmatpush.msra.mxu0 0.0
  %1392 = vmatpush.msra.mxu0 %v1030
  %1393 = vmatmul.f32.gmra.mxu0 %v1055
  %v1394 = vpop.f32.mrf.mxu0
  %v1395 = vadd.f32 0.0, %v1394
  %1396 = vdwg.mxu0
  %1397 = vmatpush.msra.mxu0 0.0
  %1398 = vmatpush.msra.mxu0 0.0
  %1399 = vmatpush.msra.mxu0 0.0
  %1400 = vmatpush.msra.mxu0 0.0
  %1401 = vmatpush.msra.mxu0 0.0
  %1402 = vmatpush.msra.mxu0 0.0
  %1403 = vmatpush.msra.mxu0 0.0
  %1404 = vmatpush.msra.mxu0 0.0
  %1405 = vmatpush.msra.mxu0 0.0
  %1406 = vmatpush.msra.mxu0 0.0
  %1407 = vmatpush.msra.mxu0 0.0
  %1408 = vmatpush.msra.mxu0 0.0
  %1409 = vmatpush.msra.mxu0 0.0
  %1410 = vmatpush.msra.mxu0 0.0
  %1411 = vmatpush.msra.mxu0 0.0
  %1412 = vmatpush.msra.mxu0 %v1031
  %1413 = vmatmul.f32.gmra.mxu0 %v1055
  %v1414 = vpop.f32.mrf.mxu0
  %v1415 = vadd.f32 0.0, %v1414
  %1416 = vdwg.mxu0
  %1417 = vmatpush.msra.mxu0 0.0
  %1418 = vmatpush.msra.mxu0 0.0
  %1419 = vmatpush.msra.mxu0 0.0
  %1420 = vmatpush.msra.mxu0 0.0
  %1421 = vmatpush.msra.mxu0 0.0
  %1422 = vmatpush.msra.mxu0 0.0
  %1423 = vmatpush.msra.mxu0 0.0
  %1424 = vmatpush.msra.mxu0 0.0
  %1425 = vmatpush.msra.mxu0 0.0
  %1426 = vmatpush.msra.mxu0 0.0
  %1427 = vmatpush.msra.mxu0 0.0
  %1428 = vmatpush.msra.mxu0 0.0
  %1429 = vmatpush.msra.mxu0 0.0
  %1430 = vmatpush.msra.mxu0 0.0
  %1431 = vmatpush.msra.mxu0 0.0
  %1432 = vmatpush.msra.mxu0 %v1032
  %1433 = vmatmul.f32.gmra.mxu0 %v1055
  %v1434 = vpop.f32.mrf.mxu0
  %v1435 = vadd.f32 0.0, %v1434
  %1436 = vdwg.mxu0
  %1437 = vmatpush.msra.mxu0 0.0
  %1438 = vmatpush.msra.mxu0 0.0
  %1439 = vmatpush.msra.mxu0 0.0
  %1440 = vmatpush.msra.mxu0 0.0
  %1441 = vmatpush.msra.mxu0 0.0
  %1442 = vmatpush.msra.mxu0 0.0
  %1443 = vmatpush.msra.mxu0 0.0
  %1444 = vmatpush.msra.mxu0 0.0
  %1445 = vmatpush.msra.mxu0 0.0
  %1446 = vmatpush.msra.mxu0 0.0
  %1447 = vmatpush.msra.mxu0 0.0
  %1448 = vmatpush.msra.mxu0 0.0
  %1449 = vmatpush.msra.mxu0 0.0
  %1450 = vmatpush.msra.mxu0 0.0
  %1451 = vmatpush.msra.mxu0 0.0
  %1452 = vmatpush.msra.mxu0 %v1033
  %1453 = vmatmul.f32.gmra.mxu0 %v1055
  %v1454 = vpop.f32.mrf.mxu0
  %v1455 = vadd.f32 0.0, %v1454
  %1456 = vdwg.mxu0
  %v1457 = vadd.f32 %v587, %v1075
  %v1458 = vadd.f32 %v607, %v1095
  %v1459 = vadd.f32 %v627, %v1115
  %v1460 = vadd.f32 %v647, %v1135
  %v1461 = vadd.f32 %v667, %v1155
  %v1462 = vadd.f32 %v687, %v1175
  %v1463 = vadd.f32 %v707, %v1195
  %v1464 = vadd.f32 %v727, %v1215
  %v1465 = vadd.f32 %v747, %v1235
  %v1466 = vadd.f32 %v767, %v1255
  %v1467 = vadd.f32 %v787, %v1275
  %v1468 = vadd.f32 %v807, %v1295
  %v1469 = vadd.f32 %v827, %v1315
  %v1470 = vadd.f32 %v847, %v1335
  %v1471 = vadd.f32 %v867, %v1355
  %v1472 = vadd.f32 %v887, %v1375
  %v1473 = vadd.f32 %v907, %v1395
  %v1474 = vadd.f32 %v927, %v1415
  %v1475 = vadd.f32 %v947, %v1435
  %v1476 = vadd.f32 %v967, %v1455
  %s1477 = scalar_lea.vmem %s0, 24
  %v1478 = vld [vmem:[%s1477] sm:$0xff]
  %1479 = vrot.lane.b32.xlu0 %v35, 125
  %v1480 = vpop.permute.xlu0 %1479
  %1481 = vrot.lane.b32.xlu0 %v36, 125
  %v1482 = vpop.permute.xlu0 %1481
  %1483 = vrot.lane.b32.xlu0 %v37, 125
  %v1484 = vpop.permute.xlu0 %1483
  %1485 = vrot.lane.b32.xlu0 %v38, 125
  %v1486 = vpop.permute.xlu0 %1485
  %1487 = vrot.lane.b32.xlu0 %v39, 125
  %v1488 = vpop.permute.xlu0 %1487
  %1489 = vrot.lane.b32.xlu0 %v40, 125
  %v1490 = vpop.permute.xlu0 %1489
  %1491 = vrot.lane.b32.xlu0 %v41, 125
  %v1492 = vpop.permute.xlu0 %1491
  %1493 = vrot.lane.b32.xlu0 %v42, 125
  %v1494 = vpop.permute.xlu0 %1493
  %1495 = vrot.lane.b32.xlu0 %v43, 125
  %v1496 = vpop.permute.xlu0 %1495
  %1497 = vrot.lane.b32.xlu0 %v44, 125
  %v1498 = vpop.permute.xlu0 %1497
  %1499 = vrot.lane.b32.xlu0 %v45, 125
  %v1500 = vpop.permute.xlu0 %1499
  %1501 = vrot.lane.b32.xlu0 %v46, 125
  %v1502 = vpop.permute.xlu0 %1501
  %1503 = vrot.lane.b32.xlu0 %v47, 125
  %v1504 = vpop.permute.xlu0 %1503
  %1505 = vrot.lane.b32.xlu0 %v48, 125
  %v1506 = vpop.permute.xlu0 %1505
  %1507 = vrot.lane.b32.xlu0 %v49, 125
  %v1508 = vpop.permute.xlu0 %1507
  %1509 = vrot.lane.b32.xlu0 %v50, 125
  %v1510 = vpop.permute.xlu0 %1509
  %1511 = vrot.lane.b32.xlu0 %v51, 125
  %v1512 = vpop.permute.xlu0 %1511
  %1513 = vrot.lane.b32.xlu0 %v52, 125
  %v1514 = vpop.permute.xlu0 %1513
  %1515 = vrot.lane.b32.xlu0 %v53, 125
  %v1516 = vpop.permute.xlu0 %1515
  %1517 = vrot.lane.b32.xlu0 %v54, 125
  %v1518 = vpop.permute.xlu0 %1517
  %1519 = vrot.lane.b32.xlu0 %v55, 125
  %v1520 = vpop.permute.xlu0 %1519
  %vm1521 = vcmask 1022976
  %v1522 = vsel %vm1521, %v1480, %v1482
  %v1523 = vsel %vm1521, %v1482, %v1484
  %v1524 = vsel %vm1521, %v1484, %v1486
  %v1525 = vsel %vm1521, %v1486, %v1488
  %v1526 = vsel %vm1521, %v1488, %v1490
  %v1527 = vsel %vm1521, %v1490, %v1492
  %v1528 = vsel %vm1521, %v1492, %v1494
  %v1529 = vsel %vm1521, %v1494, %v1496
  %v1530 = vsel %vm1521, %v1496, %v1498
  %v1531 = vsel %vm1521, %v1498, %v1500
  %v1532 = vsel %vm1521, %v1500, %v1502
  %v1533 = vsel %vm1521, %v1502, %v1504
  %v1534 = vsel %vm1521, %v1504, %v1506
  %v1535 = vsel %vm1521, %v1506, %v1508
  %v1536 = vsel %vm1521, %v1508, %v1510
  %v1537 = vsel %vm1521, %v1510, %v1512
  %v1538 = vsel %vm1521, %v1512, %v1514
  %v1539 = vsel %vm1521, %v1514, %v1516
  %v1540 = vsel %vm1521, %v1516, %v1518
  %v1541 = vsel %vm1521, %v1518, %v1520
  %v1563 = vsel %vm162, %v1478, 0
  %1565 = vmatpush.msra.mxu0 0.0
  %1566 = vmatpush.msra.mxu0 0.0
  %1567 = vmatpush.msra.mxu0 0.0
  %1568 = vmatpush.msra.mxu0 0.0
  %1569 = vmatpush.msra.mxu0 0.0
  %1570 = vmatpush.msra.mxu0 0.0
  %1571 = vmatpush.msra.mxu0 0.0
  %1572 = vmatpush.msra.mxu0 0.0
  %1573 = vmatpush.msra.mxu0 0.0
  %1574 = vmatpush.msra.mxu0 0.0
  %1575 = vmatpush.msra.mxu0 0.0
  %1576 = vmatpush.msra.mxu0 0.0
  %1577 = vmatpush.msra.mxu0 0.0
  %1578 = vmatpush.msra.mxu0 0.0
  %1579 = vmatpush.msra.mxu0 0.0
  %1580 = vmatpush.msra.mxu0 %v1522
  %1581 = vmatmul.f32.gmra.mxu0 %v1563
  %v1582 = vpop.f32.mrf.mxu0
  %v1583 = vadd.f32 0.0, %v1582
  %1584 = vdwg.mxu0
  %1585 = vmatpush.msra.mxu0 0.0
  %1586 = vmatpush.msra.mxu0 0.0
  %1587 = vmatpush.msra.mxu0 0.0
  %1588 = vmatpush.msra.mxu0 0.0
  %1589 = vmatpush.msra.mxu0 0.0
  %1590 = vmatpush.msra.mxu0 0.0
  %1591 = vmatpush.msra.mxu0 0.0
  %1592 = vmatpush.msra.mxu0 0.0
  %1593 = vmatpush.msra.mxu0 0.0
  %1594 = vmatpush.msra.mxu0 0.0
  %1595 = vmatpush.msra.mxu0 0.0
  %1596 = vmatpush.msra.mxu0 0.0
  %1597 = vmatpush.msra.mxu0 0.0
  %1598 = vmatpush.msra.mxu0 0.0
  %1599 = vmatpush.msra.mxu0 0.0
  %1600 = vmatpush.msra.mxu0 %v1523
  %1601 = vmatmul.f32.gmra.mxu0 %v1563
  %v1602 = vpop.f32.mrf.mxu0
  %v1603 = vadd.f32 0.0, %v1602
  %1604 = vdwg.mxu0
  %1605 = vmatpush.msra.mxu0 0.0
  %1606 = vmatpush.msra.mxu0 0.0
  %1607 = vmatpush.msra.mxu0 0.0
  %1608 = vmatpush.msra.mxu0 0.0
  %1609 = vmatpush.msra.mxu0 0.0
  %1610 = vmatpush.msra.mxu0 0.0
  %1611 = vmatpush.msra.mxu0 0.0
  %1612 = vmatpush.msra.mxu0 0.0
  %1613 = vmatpush.msra.mxu0 0.0
  %1614 = vmatpush.msra.mxu0 0.0
  %1615 = vmatpush.msra.mxu0 0.0
  %1616 = vmatpush.msra.mxu0 0.0
  %1617 = vmatpush.msra.mxu0 0.0
  %1618 = vmatpush.msra.mxu0 0.0
  %1619 = vmatpush.msra.mxu0 0.0
  %1620 = vmatpush.msra.mxu0 %v1524
  %1621 = vmatmul.f32.gmra.mxu0 %v1563
  %v1622 = vpop.f32.mrf.mxu0
  %v1623 = vadd.f32 0.0, %v1622
  %1624 = vdwg.mxu0
  %1625 = vmatpush.msra.mxu0 0.0
  %1626 = vmatpush.msra.mxu0 0.0
  %1627 = vmatpush.msra.mxu0 0.0
  %1628 = vmatpush.msra.mxu0 0.0
  %1629 = vmatpush.msra.mxu0 0.0
  %1630 = vmatpush.msra.mxu0 0.0
  %1631 = vmatpush.msra.mxu0 0.0
  %1632 = vmatpush.msra.mxu0 0.0
  %1633 = vmatpush.msra.mxu0 0.0
  %1634 = vmatpush.msra.mxu0 0.0
  %1635 = vmatpush.msra.mxu0 0.0
  %1636 = vmatpush.msra.mxu0 0.0
  %1637 = vmatpush.msra.mxu0 0.0
  %1638 = vmatpush.msra.mxu0 0.0
  %1639 = vmatpush.msra.mxu0 0.0
  %1640 = vmatpush.msra.mxu0 %v1525
  %1641 = vmatmul.f32.gmra.mxu0 %v1563
  %v1642 = vpop.f32.mrf.mxu0
  %v1643 = vadd.f32 0.0, %v1642
  %1644 = vdwg.mxu0
  %1645 = vmatpush.msra.mxu0 0.0
  %1646 = vmatpush.msra.mxu0 0.0
  %1647 = vmatpush.msra.mxu0 0.0
  %1648 = vmatpush.msra.mxu0 0.0
  %1649 = vmatpush.msra.mxu0 0.0
  %1650 = vmatpush.msra.mxu0 0.0
  %1651 = vmatpush.msra.mxu0 0.0
  %1652 = vmatpush.msra.mxu0 0.0
  %1653 = vmatpush.msra.mxu0 0.0
  %1654 = vmatpush.msra.mxu0 0.0
  %1655 = vmatpush.msra.mxu0 0.0
  %1656 = vmatpush.msra.mxu0 0.0
  %1657 = vmatpush.msra.mxu0 0.0
  %1658 = vmatpush.msra.mxu0 0.0
  %1659 = vmatpush.msra.mxu0 0.0
  %1660 = vmatpush.msra.mxu0 %v1526
  %1661 = vmatmul.f32.gmra.mxu0 %v1563
  %v1662 = vpop.f32.mrf.mxu0
  %v1663 = vadd.f32 0.0, %v1662
  %1664 = vdwg.mxu0
  %1665 = vmatpush.msra.mxu0 0.0
  %1666 = vmatpush.msra.mxu0 0.0
  %1667 = vmatpush.msra.mxu0 0.0
  %1668 = vmatpush.msra.mxu0 0.0
  %1669 = vmatpush.msra.mxu0 0.0
  %1670 = vmatpush.msra.mxu0 0.0
  %1671 = vmatpush.msra.mxu0 0.0
  %1672 = vmatpush.msra.mxu0 0.0
  %1673 = vmatpush.msra.mxu0 0.0
  %1674 = vmatpush.msra.mxu0 0.0
  %1675 = vmatpush.msra.mxu0 0.0
  %1676 = vmatpush.msra.mxu0 0.0
  %1677 = vmatpush.msra.mxu0 0.0
  %1678 = vmatpush.msra.mxu0 0.0
  %1679 = vmatpush.msra.mxu0 0.0
  %1680 = vmatpush.msra.mxu0 %v1527
  %1681 = vmatmul.f32.gmra.mxu0 %v1563
  %v1682 = vpop.f32.mrf.mxu0
  %v1683 = vadd.f32 0.0, %v1682
  %1684 = vdwg.mxu0
  %1685 = vmatpush.msra.mxu0 0.0
  %1686 = vmatpush.msra.mxu0 0.0
  %1687 = vmatpush.msra.mxu0 0.0
  %1688 = vmatpush.msra.mxu0 0.0
  %1689 = vmatpush.msra.mxu0 0.0
  %1690 = vmatpush.msra.mxu0 0.0
  %1691 = vmatpush.msra.mxu0 0.0
  %1692 = vmatpush.msra.mxu0 0.0
  %1693 = vmatpush.msra.mxu0 0.0
  %1694 = vmatpush.msra.mxu0 0.0
  %1695 = vmatpush.msra.mxu0 0.0
  %1696 = vmatpush.msra.mxu0 0.0
  %1697 = vmatpush.msra.mxu0 0.0
  %1698 = vmatpush.msra.mxu0 0.0
  %1699 = vmatpush.msra.mxu0 0.0
  %1700 = vmatpush.msra.mxu0 %v1528
  %1701 = vmatmul.f32.gmra.mxu0 %v1563
  %v1702 = vpop.f32.mrf.mxu0
  %v1703 = vadd.f32 0.0, %v1702
  %1704 = vdwg.mxu0
  %1705 = vmatpush.msra.mxu0 0.0
  %1706 = vmatpush.msra.mxu0 0.0
  %1707 = vmatpush.msra.mxu0 0.0
  %1708 = vmatpush.msra.mxu0 0.0
  %1709 = vmatpush.msra.mxu0 0.0
  %1710 = vmatpush.msra.mxu0 0.0
  %1711 = vmatpush.msra.mxu0 0.0
  %1712 = vmatpush.msra.mxu0 0.0
  %1713 = vmatpush.msra.mxu0 0.0
  %1714 = vmatpush.msra.mxu0 0.0
  %1715 = vmatpush.msra.mxu0 0.0
  %1716 = vmatpush.msra.mxu0 0.0
  %1717 = vmatpush.msra.mxu0 0.0
  %1718 = vmatpush.msra.mxu0 0.0
  %1719 = vmatpush.msra.mxu0 0.0
  %1720 = vmatpush.msra.mxu0 %v1529
  %1721 = vmatmul.f32.gmra.mxu0 %v1563
  %v1722 = vpop.f32.mrf.mxu0
  %v1723 = vadd.f32 0.0, %v1722
  %1724 = vdwg.mxu0
  %1725 = vmatpush.msra.mxu0 0.0
  %1726 = vmatpush.msra.mxu0 0.0
  %1727 = vmatpush.msra.mxu0 0.0
  %1728 = vmatpush.msra.mxu0 0.0
  %1729 = vmatpush.msra.mxu0 0.0
  %1730 = vmatpush.msra.mxu0 0.0
  %1731 = vmatpush.msra.mxu0 0.0
  %1732 = vmatpush.msra.mxu0 0.0
  %1733 = vmatpush.msra.mxu0 0.0
  %1734 = vmatpush.msra.mxu0 0.0
  %1735 = vmatpush.msra.mxu0 0.0
  %1736 = vmatpush.msra.mxu0 0.0
  %1737 = vmatpush.msra.mxu0 0.0
  %1738 = vmatpush.msra.mxu0 0.0
  %1739 = vmatpush.msra.mxu0 0.0
  %1740 = vmatpush.msra.mxu0 %v1530
  %1741 = vmatmul.f32.gmra.mxu0 %v1563
  %v1742 = vpop.f32.mrf.mxu0
  %v1743 = vadd.f32 0.0, %v1742
  %1744 = vdwg.mxu0
  %1745 = vmatpush.msra.mxu0 0.0
  %1746 = vmatpush.msra.mxu0 0.0
  %1747 = vmatpush.msra.mxu0 0.0
  %1748 = vmatpush.msra.mxu0 0.0
  %1749 = vmatpush.msra.mxu0 0.0
  %1750 = vmatpush.msra.mxu0 0.0
  %1751 = vmatpush.msra.mxu0 0.0
  %1752 = vmatpush.msra.mxu0 0.0
  %1753 = vmatpush.msra.mxu0 0.0
  %1754 = vmatpush.msra.mxu0 0.0
  %1755 = vmatpush.msra.mxu0 0.0
  %1756 = vmatpush.msra.mxu0 0.0
  %1757 = vmatpush.msra.mxu0 0.0
  %1758 = vmatpush.msra.mxu0 0.0
  %1759 = vmatpush.msra.mxu0 0.0
  %1760 = vmatpush.msra.mxu0 %v1531
  %1761 = vmatmul.f32.gmra.mxu0 %v1563
  %v1762 = vpop.f32.mrf.mxu0
  %v1763 = vadd.f32 0.0, %v1762
  %1764 = vdwg.mxu0
  %1765 = vmatpush.msra.mxu0 0.0
  %1766 = vmatpush.msra.mxu0 0.0
  %1767 = vmatpush.msra.mxu0 0.0
  %1768 = vmatpush.msra.mxu0 0.0
  %1769 = vmatpush.msra.mxu0 0.0
  %1770 = vmatpush.msra.mxu0 0.0
  %1771 = vmatpush.msra.mxu0 0.0
  %1772 = vmatpush.msra.mxu0 0.0
  %1773 = vmatpush.msra.mxu0 0.0
  %1774 = vmatpush.msra.mxu0 0.0
  %1775 = vmatpush.msra.mxu0 0.0
  %1776 = vmatpush.msra.mxu0 0.0
  %1777 = vmatpush.msra.mxu0 0.0
  %1778 = vmatpush.msra.mxu0 0.0
  %1779 = vmatpush.msra.mxu0 0.0
  %1780 = vmatpush.msra.mxu0 %v1532
  %1781 = vmatmul.f32.gmra.mxu0 %v1563
  %v1782 = vpop.f32.mrf.mxu0
  %v1783 = vadd.f32 0.0, %v1782
  %1784 = vdwg.mxu0
  %1785 = vmatpush.msra.mxu0 0.0
  %1786 = vmatpush.msra.mxu0 0.0
  %1787 = vmatpush.msra.mxu0 0.0
  %1788 = vmatpush.msra.mxu0 0.0
  %1789 = vmatpush.msra.mxu0 0.0
  %1790 = vmatpush.msra.mxu0 0.0
  %1791 = vmatpush.msra.mxu0 0.0
  %1792 = vmatpush.msra.mxu0 0.0
  %1793 = vmatpush.msra.mxu0 0.0
  %1794 = vmatpush.msra.mxu0 0.0
  %1795 = vmatpush.msra.mxu0 0.0
  %1796 = vmatpush.msra.mxu0 0.0
  %1797 = vmatpush.msra.mxu0 0.0
  %1798 = vmatpush.msra.mxu0 0.0
  %1799 = vmatpush.msra.mxu0 0.0
  %1800 = vmatpush.msra.mxu0 %v1533
  %1801 = vmatmul.f32.gmra.mxu0 %v1563
  %v1802 = vpop.f32.mrf.mxu0
  %v1803 = vadd.f32 0.0, %v1802
  %1804 = vdwg.mxu0
  %1805 = vmatpush.msra.mxu0 0.0
  %1806 = vmatpush.msra.mxu0 0.0
  %1807 = vmatpush.msra.mxu0 0.0
  %1808 = vmatpush.msra.mxu0 0.0
  %1809 = vmatpush.msra.mxu0 0.0
  %1810 = vmatpush.msra.mxu0 0.0
  %1811 = vmatpush.msra.mxu0 0.0
  %1812 = vmatpush.msra.mxu0 0.0
  %1813 = vmatpush.msra.mxu0 0.0
  %1814 = vmatpush.msra.mxu0 0.0
  %1815 = vmatpush.msra.mxu0 0.0
  %1816 = vmatpush.msra.mxu0 0.0
  %1817 = vmatpush.msra.mxu0 0.0
  %1818 = vmatpush.msra.mxu0 0.0
  %1819 = vmatpush.msra.mxu0 0.0
  %1820 = vmatpush.msra.mxu0 %v1534
  %1821 = vmatmul.f32.gmra.mxu0 %v1563
  %v1822 = vpop.f32.mrf.mxu0
  %v1823 = vadd.f32 0.0, %v1822
  %1824 = vdwg.mxu0
  %1825 = vmatpush.msra.mxu0 0.0
  %1826 = vmatpush.msra.mxu0 0.0
  %1827 = vmatpush.msra.mxu0 0.0
  %1828 = vmatpush.msra.mxu0 0.0
  %1829 = vmatpush.msra.mxu0 0.0
  %1830 = vmatpush.msra.mxu0 0.0
  %1831 = vmatpush.msra.mxu0 0.0
  %1832 = vmatpush.msra.mxu0 0.0
  %1833 = vmatpush.msra.mxu0 0.0
  %1834 = vmatpush.msra.mxu0 0.0
  %1835 = vmatpush.msra.mxu0 0.0
  %1836 = vmatpush.msra.mxu0 0.0
  %1837 = vmatpush.msra.mxu0 0.0
  %1838 = vmatpush.msra.mxu0 0.0
  %1839 = vmatpush.msra.mxu0 0.0
  %1840 = vmatpush.msra.mxu0 %v1535
  %1841 = vmatmul.f32.gmra.mxu0 %v1563
  %v1842 = vpop.f32.mrf.mxu0
  %v1843 = vadd.f32 0.0, %v1842
  %1844 = vdwg.mxu0
  %1845 = vmatpush.msra.mxu0 0.0
  %1846 = vmatpush.msra.mxu0 0.0
  %1847 = vmatpush.msra.mxu0 0.0
  %1848 = vmatpush.msra.mxu0 0.0
  %1849 = vmatpush.msra.mxu0 0.0
  %1850 = vmatpush.msra.mxu0 0.0
  %1851 = vmatpush.msra.mxu0 0.0
  %1852 = vmatpush.msra.mxu0 0.0
  %1853 = vmatpush.msra.mxu0 0.0
  %1854 = vmatpush.msra.mxu0 0.0
  %1855 = vmatpush.msra.mxu0 0.0
  %1856 = vmatpush.msra.mxu0 0.0
  %1857 = vmatpush.msra.mxu0 0.0
  %1858 = vmatpush.msra.mxu0 0.0
  %1859 = vmatpush.msra.mxu0 0.0
  %1860 = vmatpush.msra.mxu0 %v1536
  %1861 = vmatmul.f32.gmra.mxu0 %v1563
  %v1862 = vpop.f32.mrf.mxu0
  %v1863 = vadd.f32 0.0, %v1862
  %1864 = vdwg.mxu0
  %1865 = vmatpush.msra.mxu0 0.0
  %1866 = vmatpush.msra.mxu0 0.0
  %1867 = vmatpush.msra.mxu0 0.0
  %1868 = vmatpush.msra.mxu0 0.0
  %1869 = vmatpush.msra.mxu0 0.0
  %1870 = vmatpush.msra.mxu0 0.0
  %1871 = vmatpush.msra.mxu0 0.0
  %1872 = vmatpush.msra.mxu0 0.0
  %1873 = vmatpush.msra.mxu0 0.0
  %1874 = vmatpush.msra.mxu0 0.0
  %1875 = vmatpush.msra.mxu0 0.0
  %1876 = vmatpush.msra.mxu0 0.0
  %1877 = vmatpush.msra.mxu0 0.0
  %1878 = vmatpush.msra.mxu0 0.0
  %1879 = vmatpush.msra.mxu0 0.0
  %1880 = vmatpush.msra.mxu0 %v1537
  %1881 = vmatmul.f32.gmra.mxu0 %v1563
  %v1882 = vpop.f32.mrf.mxu0
  %v1883 = vadd.f32 0.0, %v1882
  %1884 = vdwg.mxu0
  %1885 = vmatpush.msra.mxu0 0.0
  %1886 = vmatpush.msra.mxu0 0.0
  %1887 = vmatpush.msra.mxu0 0.0
  %1888 = vmatpush.msra.mxu0 0.0
  %1889 = vmatpush.msra.mxu0 0.0
  %1890 = vmatpush.msra.mxu0 0.0
  %1891 = vmatpush.msra.mxu0 0.0
  %1892 = vmatpush.msra.mxu0 0.0
  %1893 = vmatpush.msra.mxu0 0.0
  %1894 = vmatpush.msra.mxu0 0.0
  %1895 = vmatpush.msra.mxu0 0.0
  %1896 = vmatpush.msra.mxu0 0.0
  %1897 = vmatpush.msra.mxu0 0.0
  %1898 = vmatpush.msra.mxu0 0.0
  %1899 = vmatpush.msra.mxu0 0.0
  %1900 = vmatpush.msra.mxu0 %v1538
  %1901 = vmatmul.f32.gmra.mxu0 %v1563
  %v1902 = vpop.f32.mrf.mxu0
  %v1903 = vadd.f32 0.0, %v1902
  %1904 = vdwg.mxu0
  %1905 = vmatpush.msra.mxu0 0.0
  %1906 = vmatpush.msra.mxu0 0.0
  %1907 = vmatpush.msra.mxu0 0.0
  %1908 = vmatpush.msra.mxu0 0.0
  %1909 = vmatpush.msra.mxu0 0.0
  %1910 = vmatpush.msra.mxu0 0.0
  %1911 = vmatpush.msra.mxu0 0.0
  %1912 = vmatpush.msra.mxu0 0.0
  %1913 = vmatpush.msra.mxu0 0.0
  %1914 = vmatpush.msra.mxu0 0.0
  %1915 = vmatpush.msra.mxu0 0.0
  %1916 = vmatpush.msra.mxu0 0.0
  %1917 = vmatpush.msra.mxu0 0.0
  %1918 = vmatpush.msra.mxu0 0.0
  %1919 = vmatpush.msra.mxu0 0.0
  %1920 = vmatpush.msra.mxu0 %v1539
  %1921 = vmatmul.f32.gmra.mxu0 %v1563
  %v1922 = vpop.f32.mrf.mxu0
  %v1923 = vadd.f32 0.0, %v1922
  %1924 = vdwg.mxu0
  %1925 = vmatpush.msra.mxu0 0.0
  %1926 = vmatpush.msra.mxu0 0.0
  %1927 = vmatpush.msra.mxu0 0.0
  %1928 = vmatpush.msra.mxu0 0.0
  %1929 = vmatpush.msra.mxu0 0.0
  %1930 = vmatpush.msra.mxu0 0.0
  %1931 = vmatpush.msra.mxu0 0.0
  %1932 = vmatpush.msra.mxu0 0.0
  %1933 = vmatpush.msra.mxu0 0.0
  %1934 = vmatpush.msra.mxu0 0.0
  %1935 = vmatpush.msra.mxu0 0.0
  %1936 = vmatpush.msra.mxu0 0.0
  %1937 = vmatpush.msra.mxu0 0.0
  %1938 = vmatpush.msra.mxu0 0.0
  %1939 = vmatpush.msra.mxu0 0.0
  %1940 = vmatpush.msra.mxu0 %v1540
  %1941 = vmatmul.f32.gmra.mxu0 %v1563
  %v1942 = vpop.f32.mrf.mxu0
  %v1943 = vadd.f32 0.0, %v1942
  %1944 = vdwg.mxu0
  %1945 = vmatpush.msra.mxu0 0.0
  %1946 = vmatpush.msra.mxu0 0.0
  %1947 = vmatpush.msra.mxu0 0.0
  %1948 = vmatpush.msra.mxu0 0.0
  %1949 = vmatpush.msra.mxu0 0.0
  %1950 = vmatpush.msra.mxu0 0.0
  %1951 = vmatpush.msra.mxu0 0.0
  %1952 = vmatpush.msra.mxu0 0.0
  %1953 = vmatpush.msra.mxu0 0.0
  %1954 = vmatpush.msra.mxu0 0.0
  %1955 = vmatpush.msra.mxu0 0.0
  %1956 = vmatpush.msra.mxu0 0.0
  %1957 = vmatpush.msra.mxu0 0.0
  %1958 = vmatpush.msra.mxu0 0.0
  %1959 = vmatpush.msra.mxu0 0.0
  %1960 = vmatpush.msra.mxu0 %v1541
  %1961 = vmatmul.f32.gmra.mxu0 %v1563
  %v1962 = vpop.f32.mrf.mxu0
  %v1963 = vadd.f32 0.0, %v1962
  %1964 = vdwg.mxu0
  %v1965 = vadd.f32 %v1457, %v1583
  %v1966 = vadd.f32 %v1458, %v1603
  %v1967 = vadd.f32 %v1459, %v1623
  %v1968 = vadd.f32 %v1460, %v1643
  %v1969 = vadd.f32 %v1461, %v1663
  %v1970 = vadd.f32 %v1462, %v1683
  %v1971 = vadd.f32 %v1463, %v1703
  %v1972 = vadd.f32 %v1464, %v1723
  %v1973 = vadd.f32 %v1465, %v1743
  %v1974 = vadd.f32 %v1466, %v1763
  %v1975 = vadd.f32 %v1467, %v1783
  %v1976 = vadd.f32 %v1468, %v1803
  %v1977 = vadd.f32 %v1469, %v1823
  %v1978 = vadd.f32 %v1470, %v1843
  %v1979 = vadd.f32 %v1471, %v1863
  %v1980 = vadd.f32 %v1472, %v1883
  %v1981 = vadd.f32 %v1473, %v1903
  %v1982 = vadd.f32 %v1474, %v1923
  %v1983 = vadd.f32 %v1475, %v1943
  %v1984 = vadd.f32 %v1476, %v1963
  %s1985 = scalar_lea.vmem %s0, 32
  %v1986 = vld [vmem:[%s1985] sm:$0xff]
  %1987 = vrot.lane.b32.xlu0 %v35, 93
  %v1988 = vpop.permute.xlu0 %1987
  %1989 = vrot.lane.b32.xlu0 %v36, 93
  %v1990 = vpop.permute.xlu0 %1989
  %1991 = vrot.lane.b32.xlu0 %v37, 93
  %v1992 = vpop.permute.xlu0 %1991
  %1993 = vrot.lane.b32.xlu0 %v38, 93
  %v1994 = vpop.permute.xlu0 %1993
  %1995 = vrot.lane.b32.xlu0 %v39, 93
  %v1996 = vpop.permute.xlu0 %1995
  %1997 = vrot.lane.b32.xlu0 %v40, 93
  %v1998 = vpop.permute.xlu0 %1997
  %1999 = vrot.lane.b32.xlu0 %v41, 93
  %v2000 = vpop.permute.xlu0 %1999
  %2001 = vrot.lane.b32.xlu0 %v42, 93
  %v2002 = vpop.permute.xlu0 %2001
  %2003 = vrot.lane.b32.xlu0 %v43, 93
  %v2004 = vpop.permute.xlu0 %2003
  %2005 = vrot.lane.b32.xlu0 %v44, 93
  %v2006 = vpop.permute.xlu0 %2005
  %2007 = vrot.lane.b32.xlu0 %v45, 93
  %v2008 = vpop.permute.xlu0 %2007
  %2009 = vrot.lane.b32.xlu0 %v46, 93
  %v2010 = vpop.permute.xlu0 %2009
  %2011 = vrot.lane.b32.xlu0 %v47, 93
  %v2012 = vpop.permute.xlu0 %2011
  %2013 = vrot.lane.b32.xlu0 %v48, 93
  %v2014 = vpop.permute.xlu0 %2013
  %2015 = vrot.lane.b32.xlu0 %v49, 93
  %v2016 = vpop.permute.xlu0 %2015
  %2017 = vrot.lane.b32.xlu0 %v50, 93
  %v2018 = vpop.permute.xlu0 %2017
  %2019 = vrot.lane.b32.xlu0 %v51, 93
  %v2020 = vpop.permute.xlu0 %2019
  %2021 = vrot.lane.b32.xlu0 %v52, 93
  %v2022 = vpop.permute.xlu0 %2021
  %2023 = vrot.lane.b32.xlu0 %v53, 93
  %v2024 = vpop.permute.xlu0 %2023
  %2025 = vrot.lane.b32.xlu0 %v54, 93
  %v2026 = vpop.permute.xlu0 %2025
  %2027 = vrot.lane.b32.xlu0 %v55, 93
  %v2028 = vpop.permute.xlu0 %2027
  %vm2029 = vcmask 760832
  %v2030 = vsel %vm2029, %v1988, %v1990
  %v2031 = vsel %vm2029, %v1990, %v1992
  %v2032 = vsel %vm2029, %v1992, %v1994
  %v2033 = vsel %vm2029, %v1994, %v1996
  %v2034 = vsel %vm2029, %v1996, %v1998
  %v2035 = vsel %vm2029, %v1998, %v2000
  %v2036 = vsel %vm2029, %v2000, %v2002
  %v2037 = vsel %vm2029, %v2002, %v2004
  %v2038 = vsel %vm2029, %v2004, %v2006
  %v2039 = vsel %vm2029, %v2006, %v2008
  %v2040 = vsel %vm2029, %v2008, %v2010
  %v2041 = vsel %vm2029, %v2010, %v2012
  %v2042 = vsel %vm2029, %v2012, %v2014
  %v2043 = vsel %vm2029, %v2014, %v2016
  %v2044 = vsel %vm2029, %v2016, %v2018
  %v2045 = vsel %vm2029, %v2018, %v2020
  %v2046 = vsel %vm2029, %v2020, %v2022
  %v2047 = vsel %vm2029, %v2022, %v2024
  %v2048 = vsel %vm2029, %v2024, %v2026
  %v2049 = vsel %vm2029, %v2026, %v2028
  %v2071 = vsel %vm162, %v1986, 0
  %2073 = vmatpush.msra.mxu0 0.0
  %2074 = vmatpush.msra.mxu0 0.0
  %2075 = vmatpush.msra.mxu0 0.0
  %2076 = vmatpush.msra.mxu0 0.0
  %2077 = vmatpush.msra.mxu0 0.0
  %2078 = vmatpush.msra.mxu0 0.0
  %2079 = vmatpush.msra.mxu0 0.0
  %2080 = vmatpush.msra.mxu0 0.0
  %2081 = vmatpush.msra.mxu0 0.0
  %2082 = vmatpush.msra.mxu0 0.0
  %2083 = vmatpush.msra.mxu0 0.0
  %2084 = vmatpush.msra.mxu0 0.0
  %2085 = vmatpush.msra.mxu0 0.0
  %2086 = vmatpush.msra.mxu0 0.0
  %2087 = vmatpush.msra.mxu0 0.0
  %2088 = vmatpush.msra.mxu0 %v2030
  %2089 = vmatmul.f32.gmra.mxu0 %v2071
  %v2090 = vpop.f32.mrf.mxu0
  %v2091 = vadd.f32 0.0, %v2090
  %2092 = vdwg.mxu0
  %2093 = vmatpush.msra.mxu0 0.0
  %2094 = vmatpush.msra.mxu0 0.0
  %2095 = vmatpush.msra.mxu0 0.0
  %2096 = vmatpush.msra.mxu0 0.0
  %2097 = vmatpush.msra.mxu0 0.0
  %2098 = vmatpush.msra.mxu0 0.0
  %2099 = vmatpush.msra.mxu0 0.0
  %2100 = vmatpush.msra.mxu0 0.0
  %2101 = vmatpush.msra.mxu0 0.0
  %2102 = vmatpush.msra.mxu0 0.0
  %2103 = vmatpush.msra.mxu0 0.0
  %2104 = vmatpush.msra.mxu0 0.0
  %2105 = vmatpush.msra.mxu0 0.0
  %2106 = vmatpush.msra.mxu0 0.0
  %2107 = vmatpush.msra.mxu0 0.0
  %2108 = vmatpush.msra.mxu0 %v2031
  %2109 = vmatmul.f32.gmra.mxu0 %v2071
  %v2110 = vpop.f32.mrf.mxu0
  %v2111 = vadd.f32 0.0, %v2110
  %2112 = vdwg.mxu0
  %2113 = vmatpush.msra.mxu0 0.0
  %2114 = vmatpush.msra.mxu0 0.0
  %2115 = vmatpush.msra.mxu0 0.0
  %2116 = vmatpush.msra.mxu0 0.0
  %2117 = vmatpush.msra.mxu0 0.0
  %2118 = vmatpush.msra.mxu0 0.0
  %2119 = vmatpush.msra.mxu0 0.0
  %2120 = vmatpush.msra.mxu0 0.0
  %2121 = vmatpush.msra.mxu0 0.0
  %2122 = vmatpush.msra.mxu0 0.0
  %2123 = vmatpush.msra.mxu0 0.0
  %2124 = vmatpush.msra.mxu0 0.0
  %2125 = vmatpush.msra.mxu0 0.0
  %2126 = vmatpush.msra.mxu0 0.0
  %2127 = vmatpush.msra.mxu0 0.0
  %2128 = vmatpush.msra.mxu0 %v2032
  %2129 = vmatmul.f32.gmra.mxu0 %v2071
  %v2130 = vpop.f32.mrf.mxu0
  %v2131 = vadd.f32 0.0, %v2130
  %2132 = vdwg.mxu0
  %2133 = vmatpush.msra.mxu0 0.0
  %2134 = vmatpush.msra.mxu0 0.0
  %2135 = vmatpush.msra.mxu0 0.0
  %2136 = vmatpush.msra.mxu0 0.0
  %2137 = vmatpush.msra.mxu0 0.0
  %2138 = vmatpush.msra.mxu0 0.0
  %2139 = vmatpush.msra.mxu0 0.0
  %2140 = vmatpush.msra.mxu0 0.0
  %2141 = vmatpush.msra.mxu0 0.0
  %2142 = vmatpush.msra.mxu0 0.0
  %2143 = vmatpush.msra.mxu0 0.0
  %2144 = vmatpush.msra.mxu0 0.0
  %2145 = vmatpush.msra.mxu0 0.0
  %2146 = vmatpush.msra.mxu0 0.0
  %2147 = vmatpush.msra.mxu0 0.0
  %2148 = vmatpush.msra.mxu0 %v2033
  %2149 = vmatmul.f32.gmra.mxu0 %v2071
  %v2150 = vpop.f32.mrf.mxu0
  %v2151 = vadd.f32 0.0, %v2150
  %2152 = vdwg.mxu0
  %2153 = vmatpush.msra.mxu0 0.0
  %2154 = vmatpush.msra.mxu0 0.0
  %2155 = vmatpush.msra.mxu0 0.0
  %2156 = vmatpush.msra.mxu0 0.0
  %2157 = vmatpush.msra.mxu0 0.0
  %2158 = vmatpush.msra.mxu0 0.0
  %2159 = vmatpush.msra.mxu0 0.0
  %2160 = vmatpush.msra.mxu0 0.0
  %2161 = vmatpush.msra.mxu0 0.0
  %2162 = vmatpush.msra.mxu0 0.0
  %2163 = vmatpush.msra.mxu0 0.0
  %2164 = vmatpush.msra.mxu0 0.0
  %2165 = vmatpush.msra.mxu0 0.0
  %2166 = vmatpush.msra.mxu0 0.0
  %2167 = vmatpush.msra.mxu0 0.0
  %2168 = vmatpush.msra.mxu0 %v2034
  %2169 = vmatmul.f32.gmra.mxu0 %v2071
  %v2170 = vpop.f32.mrf.mxu0
  %v2171 = vadd.f32 0.0, %v2170
  %2172 = vdwg.mxu0
  %2173 = vmatpush.msra.mxu0 0.0
  %2174 = vmatpush.msra.mxu0 0.0
  %2175 = vmatpush.msra.mxu0 0.0
  %2176 = vmatpush.msra.mxu0 0.0
  %2177 = vmatpush.msra.mxu0 0.0
  %2178 = vmatpush.msra.mxu0 0.0
  %2179 = vmatpush.msra.mxu0 0.0
  %2180 = vmatpush.msra.mxu0 0.0
  %2181 = vmatpush.msra.mxu0 0.0
  %2182 = vmatpush.msra.mxu0 0.0
  %2183 = vmatpush.msra.mxu0 0.0
  %2184 = vmatpush.msra.mxu0 0.0
  %2185 = vmatpush.msra.mxu0 0.0
  %2186 = vmatpush.msra.mxu0 0.0
  %2187 = vmatpush.msra.mxu0 0.0
  %2188 = vmatpush.msra.mxu0 %v2035
  %2189 = vmatmul.f32.gmra.mxu0 %v2071
  %v2190 = vpop.f32.mrf.mxu0
  %v2191 = vadd.f32 0.0, %v2190
  %2192 = vdwg.mxu0
  %2193 = vmatpush.msra.mxu0 0.0
  %2194 = vmatpush.msra.mxu0 0.0
  %2195 = vmatpush.msra.mxu0 0.0
  %2196 = vmatpush.msra.mxu0 0.0
  %2197 = vmatpush.msra.mxu0 0.0
  %2198 = vmatpush.msra.mxu0 0.0
  %2199 = vmatpush.msra.mxu0 0.0
  %2200 = vmatpush.msra.mxu0 0.0
  %2201 = vmatpush.msra.mxu0 0.0
  %2202 = vmatpush.msra.mxu0 0.0
  %2203 = vmatpush.msra.mxu0 0.0
  %2204 = vmatpush.msra.mxu0 0.0
  %2205 = vmatpush.msra.mxu0 0.0
  %2206 = vmatpush.msra.mxu0 0.0
  %2207 = vmatpush.msra.mxu0 0.0
  %2208 = vmatpush.msra.mxu0 %v2036
  %2209 = vmatmul.f32.gmra.mxu0 %v2071
  %v2210 = vpop.f32.mrf.mxu0
  %v2211 = vadd.f32 0.0, %v2210
  %2212 = vdwg.mxu0
  %2213 = vmatpush.msra.mxu0 0.0
  %2214 = vmatpush.msra.mxu0 0.0
  %2215 = vmatpush.msra.mxu0 0.0
  %2216 = vmatpush.msra.mxu0 0.0
  %2217 = vmatpush.msra.mxu0 0.0
  %2218 = vmatpush.msra.mxu0 0.0
  %2219 = vmatpush.msra.mxu0 0.0
  %2220 = vmatpush.msra.mxu0 0.0
  %2221 = vmatpush.msra.mxu0 0.0
  %2222 = vmatpush.msra.mxu0 0.0
  %2223 = vmatpush.msra.mxu0 0.0
  %2224 = vmatpush.msra.mxu0 0.0
  %2225 = vmatpush.msra.mxu0 0.0
  %2226 = vmatpush.msra.mxu0 0.0
  %2227 = vmatpush.msra.mxu0 0.0
  %2228 = vmatpush.msra.mxu0 %v2037
  %2229 = vmatmul.f32.gmra.mxu0 %v2071
  %v2230 = vpop.f32.mrf.mxu0
  %v2231 = vadd.f32 0.0, %v2230
  %2232 = vdwg.mxu0
  %2233 = vmatpush.msra.mxu0 0.0
  %2234 = vmatpush.msra.mxu0 0.0
  %2235 = vmatpush.msra.mxu0 0.0
  %2236 = vmatpush.msra.mxu0 0.0
  %2237 = vmatpush.msra.mxu0 0.0
  %2238 = vmatpush.msra.mxu0 0.0
  %2239 = vmatpush.msra.mxu0 0.0
  %2240 = vmatpush.msra.mxu0 0.0
  %2241 = vmatpush.msra.mxu0 0.0
  %2242 = vmatpush.msra.mxu0 0.0
  %2243 = vmatpush.msra.mxu0 0.0
  %2244 = vmatpush.msra.mxu0 0.0
  %2245 = vmatpush.msra.mxu0 0.0
  %2246 = vmatpush.msra.mxu0 0.0
  %2247 = vmatpush.msra.mxu0 0.0
  %2248 = vmatpush.msra.mxu0 %v2038
  %2249 = vmatmul.f32.gmra.mxu0 %v2071
  %v2250 = vpop.f32.mrf.mxu0
  %v2251 = vadd.f32 0.0, %v2250
  %2252 = vdwg.mxu0
  %2253 = vmatpush.msra.mxu0 0.0
  %2254 = vmatpush.msra.mxu0 0.0
  %2255 = vmatpush.msra.mxu0 0.0
  %2256 = vmatpush.msra.mxu0 0.0
  %2257 = vmatpush.msra.mxu0 0.0
  %2258 = vmatpush.msra.mxu0 0.0
  %2259 = vmatpush.msra.mxu0 0.0
  %2260 = vmatpush.msra.mxu0 0.0
  %2261 = vmatpush.msra.mxu0 0.0
  %2262 = vmatpush.msra.mxu0 0.0
  %2263 = vmatpush.msra.mxu0 0.0
  %2264 = vmatpush.msra.mxu0 0.0
  %2265 = vmatpush.msra.mxu0 0.0
  %2266 = vmatpush.msra.mxu0 0.0
  %2267 = vmatpush.msra.mxu0 0.0
  %2268 = vmatpush.msra.mxu0 %v2039
  %2269 = vmatmul.f32.gmra.mxu0 %v2071
  %v2270 = vpop.f32.mrf.mxu0
  %v2271 = vadd.f32 0.0, %v2270
  %2272 = vdwg.mxu0
  %2273 = vmatpush.msra.mxu0 0.0
  %2274 = vmatpush.msra.mxu0 0.0
  %2275 = vmatpush.msra.mxu0 0.0
  %2276 = vmatpush.msra.mxu0 0.0
  %2277 = vmatpush.msra.mxu0 0.0
  %2278 = vmatpush.msra.mxu0 0.0
  %2279 = vmatpush.msra.mxu0 0.0
  %2280 = vmatpush.msra.mxu0 0.0
  %2281 = vmatpush.msra.mxu0 0.0
  %2282 = vmatpush.msra.mxu0 0.0
  %2283 = vmatpush.msra.mxu0 0.0
  %2284 = vmatpush.msra.mxu0 0.0
  %2285 = vmatpush.msra.mxu0 0.0
  %2286 = vmatpush.msra.mxu0 0.0
  %2287 = vmatpush.msra.mxu0 0.0
  %2288 = vmatpush.msra.mxu0 %v2040
  %2289 = vmatmul.f32.gmra.mxu0 %v2071
  %v2290 = vpop.f32.mrf.mxu0
  %v2291 = vadd.f32 0.0, %v2290
  %2292 = vdwg.mxu0
  %2293 = vmatpush.msra.mxu0 0.0
  %2294 = vmatpush.msra.mxu0 0.0
  %2295 = vmatpush.msra.mxu0 0.0
  %2296 = vmatpush.msra.mxu0 0.0
  %2297 = vmatpush.msra.mxu0 0.0
  %2298 = vmatpush.msra.mxu0 0.0
  %2299 = vmatpush.msra.mxu0 0.0
  %2300 = vmatpush.msra.mxu0 0.0
  %2301 = vmatpush.msra.mxu0 0.0
  %2302 = vmatpush.msra.mxu0 0.0
  %2303 = vmatpush.msra.mxu0 0.0
  %2304 = vmatpush.msra.mxu0 0.0
  %2305 = vmatpush.msra.mxu0 0.0
  %2306 = vmatpush.msra.mxu0 0.0
  %2307 = vmatpush.msra.mxu0 0.0
  %2308 = vmatpush.msra.mxu0 %v2041
  %2309 = vmatmul.f32.gmra.mxu0 %v2071
  %v2310 = vpop.f32.mrf.mxu0
  %v2311 = vadd.f32 0.0, %v2310
  %2312 = vdwg.mxu0
  %2313 = vmatpush.msra.mxu0 0.0
  %2314 = vmatpush.msra.mxu0 0.0
  %2315 = vmatpush.msra.mxu0 0.0
  %2316 = vmatpush.msra.mxu0 0.0
  %2317 = vmatpush.msra.mxu0 0.0
  %2318 = vmatpush.msra.mxu0 0.0
  %2319 = vmatpush.msra.mxu0 0.0
  %2320 = vmatpush.msra.mxu0 0.0
  %2321 = vmatpush.msra.mxu0 0.0
  %2322 = vmatpush.msra.mxu0 0.0
  %2323 = vmatpush.msra.mxu0 0.0
  %2324 = vmatpush.msra.mxu0 0.0
  %2325 = vmatpush.msra.mxu0 0.0
  %2326 = vmatpush.msra.mxu0 0.0
  %2327 = vmatpush.msra.mxu0 0.0
  %2328 = vmatpush.msra.mxu0 %v2042
  %2329 = vmatmul.f32.gmra.mxu0 %v2071
  %v2330 = vpop.f32.mrf.mxu0
  %v2331 = vadd.f32 0.0, %v2330
  %2332 = vdwg.mxu0
  %2333 = vmatpush.msra.mxu0 0.0
  %2334 = vmatpush.msra.mxu0 0.0
  %2335 = vmatpush.msra.mxu0 0.0
  %2336 = vmatpush.msra.mxu0 0.0
  %2337 = vmatpush.msra.mxu0 0.0
  %2338 = vmatpush.msra.mxu0 0.0
  %2339 = vmatpush.msra.mxu0 0.0
  %2340 = vmatpush.msra.mxu0 0.0
  %2341 = vmatpush.msra.mxu0 0.0
  %2342 = vmatpush.msra.mxu0 0.0
  %2343 = vmatpush.msra.mxu0 0.0
  %2344 = vmatpush.msra.mxu0 0.0
  %2345 = vmatpush.msra.mxu0 0.0
  %2346 = vmatpush.msra.mxu0 0.0
  %2347 = vmatpush.msra.mxu0 0.0
  %2348 = vmatpush.msra.mxu0 %v2043
  %2349 = vmatmul.f32.gmra.mxu0 %v2071
  %v2350 = vpop.f32.mrf.mxu0
  %v2351 = vadd.f32 0.0, %v2350
  %2352 = vdwg.mxu0
  %2353 = vmatpush.msra.mxu0 0.0
  %2354 = vmatpush.msra.mxu0 0.0
  %2355 = vmatpush.msra.mxu0 0.0
  %2356 = vmatpush.msra.mxu0 0.0
  %2357 = vmatpush.msra.mxu0 0.0
  %2358 = vmatpush.msra.mxu0 0.0
  %2359 = vmatpush.msra.mxu0 0.0
  %2360 = vmatpush.msra.mxu0 0.0
  %2361 = vmatpush.msra.mxu0 0.0
  %2362 = vmatpush.msra.mxu0 0.0
  %2363 = vmatpush.msra.mxu0 0.0
  %2364 = vmatpush.msra.mxu0 0.0
  %2365 = vmatpush.msra.mxu0 0.0
  %2366 = vmatpush.msra.mxu0 0.0
  %2367 = vmatpush.msra.mxu0 0.0
  %2368 = vmatpush.msra.mxu0 %v2044
  %2369 = vmatmul.f32.gmra.mxu0 %v2071
  %v2370 = vpop.f32.mrf.mxu0
  %v2371 = vadd.f32 0.0, %v2370
  %2372 = vdwg.mxu0
  %2373 = vmatpush.msra.mxu0 0.0
  %2374 = vmatpush.msra.mxu0 0.0
  %2375 = vmatpush.msra.mxu0 0.0
  %2376 = vmatpush.msra.mxu0 0.0
  %2377 = vmatpush.msra.mxu0 0.0
  %2378 = vmatpush.msra.mxu0 0.0
  %2379 = vmatpush.msra.mxu0 0.0
  %2380 = vmatpush.msra.mxu0 0.0
  %2381 = vmatpush.msra.mxu0 0.0
  %2382 = vmatpush.msra.mxu0 0.0
  %2383 = vmatpush.msra.mxu0 0.0
  %2384 = vmatpush.msra.mxu0 0.0
  %2385 = vmatpush.msra.mxu0 0.0
  %2386 = vmatpush.msra.mxu0 0.0
  %2387 = vmatpush.msra.mxu0 0.0
  %2388 = vmatpush.msra.mxu0 %v2045
  %2389 = vmatmul.f32.gmra.mxu0 %v2071
  %v2390 = vpop.f32.mrf.mxu0
  %v2391 = vadd.f32 0.0, %v2390
  %2392 = vdwg.mxu0
  %2393 = vmatpush.msra.mxu0 0.0
  %2394 = vmatpush.msra.mxu0 0.0
  %2395 = vmatpush.msra.mxu0 0.0
  %2396 = vmatpush.msra.mxu0 0.0
  %2397 = vmatpush.msra.mxu0 0.0
  %2398 = vmatpush.msra.mxu0 0.0
  %2399 = vmatpush.msra.mxu0 0.0
  %2400 = vmatpush.msra.mxu0 0.0
  %2401 = vmatpush.msra.mxu0 0.0
  %2402 = vmatpush.msra.mxu0 0.0
  %2403 = vmatpush.msra.mxu0 0.0
  %2404 = vmatpush.msra.mxu0 0.0
  %2405 = vmatpush.msra.mxu0 0.0
  %2406 = vmatpush.msra.mxu0 0.0
  %2407 = vmatpush.msra.mxu0 0.0
  %2408 = vmatpush.msra.mxu0 %v2046
  %2409 = vmatmul.f32.gmra.mxu0 %v2071
  %v2410 = vpop.f32.mrf.mxu0
  %v2411 = vadd.f32 0.0, %v2410
  %2412 = vdwg.mxu0
  %2413 = vmatpush.msra.mxu0 0.0
  %2414 = vmatpush.msra.mxu0 0.0
  %2415 = vmatpush.msra.mxu0 0.0
  %2416 = vmatpush.msra.mxu0 0.0
  %2417 = vmatpush.msra.mxu0 0.0
  %2418 = vmatpush.msra.mxu0 0.0
  %2419 = vmatpush.msra.mxu0 0.0
  %2420 = vmatpush.msra.mxu0 0.0
  %2421 = vmatpush.msra.mxu0 0.0
  %2422 = vmatpush.msra.mxu0 0.0
  %2423 = vmatpush.msra.mxu0 0.0
  %2424 = vmatpush.msra.mxu0 0.0
  %2425 = vmatpush.msra.mxu0 0.0
  %2426 = vmatpush.msra.mxu0 0.0
  %2427 = vmatpush.msra.mxu0 0.0
  %2428 = vmatpush.msra.mxu0 %v2047
  %2429 = vmatmul.f32.gmra.mxu0 %v2071
  %v2430 = vpop.f32.mrf.mxu0
  %v2431 = vadd.f32 0.0, %v2430
  %2432 = vdwg.mxu0
  %2433 = vmatpush.msra.mxu0 0.0
  %2434 = vmatpush.msra.mxu0 0.0
  %2435 = vmatpush.msra.mxu0 0.0
  %2436 = vmatpush.msra.mxu0 0.0
  %2437 = vmatpush.msra.mxu0 0.0
  %2438 = vmatpush.msra.mxu0 0.0
  %2439 = vmatpush.msra.mxu0 0.0
  %2440 = vmatpush.msra.mxu0 0.0
  %2441 = vmatpush.msra.mxu0 0.0
  %2442 = vmatpush.msra.mxu0 0.0
  %2443 = vmatpush.msra.mxu0 0.0
  %2444 = vmatpush.msra.mxu0 0.0
  %2445 = vmatpush.msra.mxu0 0.0
  %2446 = vmatpush.msra.mxu0 0.0
  %2447 = vmatpush.msra.mxu0 0.0
  %2448 = vmatpush.msra.mxu0 %v2048
  %2449 = vmatmul.f32.gmra.mxu0 %v2071
  %v2450 = vpop.f32.mrf.mxu0
  %v2451 = vadd.f32 0.0, %v2450
  %2452 = vdwg.mxu0
  %2453 = vmatpush.msra.mxu0 0.0
  %2454 = vmatpush.msra.mxu0 0.0
  %2455 = vmatpush.msra.mxu0 0.0
  %2456 = vmatpush.msra.mxu0 0.0
  %2457 = vmatpush.msra.mxu0 0.0
  %2458 = vmatpush.msra.mxu0 0.0
  %2459 = vmatpush.msra.mxu0 0.0
  %2460 = vmatpush.msra.mxu0 0.0
  %2461 = vmatpush.msra.mxu0 0.0
  %2462 = vmatpush.msra.mxu0 0.0
  %2463 = vmatpush.msra.mxu0 0.0
  %2464 = vmatpush.msra.mxu0 0.0
  %2465 = vmatpush.msra.mxu0 0.0
  %2466 = vmatpush.msra.mxu0 0.0
  %2467 = vmatpush.msra.mxu0 0.0
  %2468 = vmatpush.msra.mxu0 %v2049
  %2469 = vmatmul.f32.gmra.mxu0 %v2071
  %v2470 = vpop.f32.mrf.mxu0
  %v2471 = vadd.f32 0.0, %v2470
  %2472 = vdwg.mxu0
  %v2473 = vadd.f32 %v1965, %v2091
  %v2474 = vadd.f32 %v1966, %v2111
  %v2475 = vadd.f32 %v1967, %v2131
  %v2476 = vadd.f32 %v1968, %v2151
  %v2477 = vadd.f32 %v1969, %v2171
  %v2478 = vadd.f32 %v1970, %v2191
  %v2479 = vadd.f32 %v1971, %v2211
  %v2480 = vadd.f32 %v1972, %v2231
  %v2481 = vadd.f32 %v1973, %v2251
  %v2482 = vadd.f32 %v1974, %v2271
  %v2483 = vadd.f32 %v1975, %v2291
  %v2484 = vadd.f32 %v1976, %v2311
  %v2485 = vadd.f32 %v1977, %v2331
  %v2486 = vadd.f32 %v1978, %v2351
  %v2487 = vadd.f32 %v1979, %v2371
  %v2488 = vadd.f32 %v1980, %v2391
  %v2489 = vadd.f32 %v1981, %v2411
  %v2490 = vadd.f32 %v1982, %v2431
  %v2491 = vadd.f32 %v1983, %v2451
  %v2492 = vadd.f32 %v1984, %v2471
  %s2493 = scalar_lea.vmem %s0, 40
  %v2494 = vld [vmem:[%s2493] sm:$0xff]
  %2495 = vrot.lane.b32.xlu0 %v35, 92
  %v2496 = vpop.permute.xlu0 %2495
  %2497 = vrot.lane.b32.xlu0 %v36, 92
  %v2498 = vpop.permute.xlu0 %2497
  %2499 = vrot.lane.b32.xlu0 %v37, 92
  %v2500 = vpop.permute.xlu0 %2499
  %2501 = vrot.lane.b32.xlu0 %v38, 92
  %v2502 = vpop.permute.xlu0 %2501
  %2503 = vrot.lane.b32.xlu0 %v39, 92
  %v2504 = vpop.permute.xlu0 %2503
  %2505 = vrot.lane.b32.xlu0 %v40, 92
  %v2506 = vpop.permute.xlu0 %2505
  %2507 = vrot.lane.b32.xlu0 %v41, 92
  %v2508 = vpop.permute.xlu0 %2507
  %2509 = vrot.lane.b32.xlu0 %v42, 92
  %v2510 = vpop.permute.xlu0 %2509
  %2511 = vrot.lane.b32.xlu0 %v43, 92
  %v2512 = vpop.permute.xlu0 %2511
  %2513 = vrot.lane.b32.xlu0 %v44, 92
  %v2514 = vpop.permute.xlu0 %2513
  %2515 = vrot.lane.b32.xlu0 %v45, 92
  %v2516 = vpop.permute.xlu0 %2515
  %2517 = vrot.lane.b32.xlu0 %v46, 92
  %v2518 = vpop.permute.xlu0 %2517
  %2519 = vrot.lane.b32.xlu0 %v47, 92
  %v2520 = vpop.permute.xlu0 %2519
  %2521 = vrot.lane.b32.xlu0 %v48, 92
  %v2522 = vpop.permute.xlu0 %2521
  %2523 = vrot.lane.b32.xlu0 %v49, 92
  %v2524 = vpop.permute.xlu0 %2523
  %2525 = vrot.lane.b32.xlu0 %v50, 92
  %v2526 = vpop.permute.xlu0 %2525
  %2527 = vrot.lane.b32.xlu0 %v51, 92
  %v2528 = vpop.permute.xlu0 %2527
  %2529 = vrot.lane.b32.xlu0 %v52, 92
  %v2530 = vpop.permute.xlu0 %2529
  %2531 = vrot.lane.b32.xlu0 %v53, 92
  %v2532 = vpop.permute.xlu0 %2531
  %2533 = vrot.lane.b32.xlu0 %v54, 92
  %v2534 = vpop.permute.xlu0 %2533
  %2535 = vrot.lane.b32.xlu0 %v55, 92
  %v2536 = vpop.permute.xlu0 %2535
  %vm2537 = vcmask 752640
  %v2538 = vsel %vm2537, %v2496, %v2498
  %v2539 = vsel %vm2537, %v2498, %v2500
  %v2540 = vsel %vm2537, %v2500, %v2502
  %v2541 = vsel %vm2537, %v2502, %v2504
  %v2542 = vsel %vm2537, %v2504, %v2506
  %v2543 = vsel %vm2537, %v2506, %v2508
  %v2544 = vsel %vm2537, %v2508, %v2510
  %v2545 = vsel %vm2537, %v2510, %v2512
  %v2546 = vsel %vm2537, %v2512, %v2514
  %v2547 = vsel %vm2537, %v2514, %v2516
  %v2548 = vsel %vm2537, %v2516, %v2518
  %v2549 = vsel %vm2537, %v2518, %v2520
  %v2550 = vsel %vm2537, %v2520, %v2522
  %v2551 = vsel %vm2537, %v2522, %v2524
  %v2552 = vsel %vm2537, %v2524, %v2526
  %v2553 = vsel %vm2537, %v2526, %v2528
  %v2554 = vsel %vm2537, %v2528, %v2530
  %v2555 = vsel %vm2537, %v2530, %v2532
  %v2556 = vsel %vm2537, %v2532, %v2534
  %v2557 = vsel %vm2537, %v2534, %v2536
  %v2579 = vsel %vm162, %v2494, 0
  %2581 = vmatpush.msra.mxu0 0.0
  %2582 = vmatpush.msra.mxu0 0.0
  %2583 = vmatpush.msra.mxu0 0.0
  %2584 = vmatpush.msra.mxu0 0.0
  %2585 = vmatpush.msra.mxu0 0.0
  %2586 = vmatpush.msra.mxu0 0.0
  %2587 = vmatpush.msra.mxu0 0.0
  %2588 = vmatpush.msra.mxu0 0.0
  %2589 = vmatpush.msra.mxu0 0.0
  %2590 = vmatpush.msra.mxu0 0.0
  %2591 = vmatpush.msra.mxu0 0.0
  %2592 = vmatpush.msra.mxu0 0.0
  %2593 = vmatpush.msra.mxu0 0.0
  %2594 = vmatpush.msra.mxu0 0.0
  %2595 = vmatpush.msra.mxu0 0.0
  %2596 = vmatpush.msra.mxu0 %v2538
  %2597 = vmatmul.f32.gmra.mxu0 %v2579
  %v2598 = vpop.f32.mrf.mxu0
  %v2599 = vadd.f32 0.0, %v2598
  %2600 = vdwg.mxu0
  %2601 = vmatpush.msra.mxu0 0.0
  %2602 = vmatpush.msra.mxu0 0.0
  %2603 = vmatpush.msra.mxu0 0.0
  %2604 = vmatpush.msra.mxu0 0.0
  %2605 = vmatpush.msra.mxu0 0.0
  %2606 = vmatpush.msra.mxu0 0.0
  %2607 = vmatpush.msra.mxu0 0.0
  %2608 = vmatpush.msra.mxu0 0.0
  %2609 = vmatpush.msra.mxu0 0.0
  %2610 = vmatpush.msra.mxu0 0.0
  %2611 = vmatpush.msra.mxu0 0.0
  %2612 = vmatpush.msra.mxu0 0.0
  %2613 = vmatpush.msra.mxu0 0.0
  %2614 = vmatpush.msra.mxu0 0.0
  %2615 = vmatpush.msra.mxu0 0.0
  %2616 = vmatpush.msra.mxu0 %v2539
  %2617 = vmatmul.f32.gmra.mxu0 %v2579
  %v2618 = vpop.f32.mrf.mxu0
  %v2619 = vadd.f32 0.0, %v2618
  %2620 = vdwg.mxu0
  %2621 = vmatpush.msra.mxu0 0.0
  %2622 = vmatpush.msra.mxu0 0.0
  %2623 = vmatpush.msra.mxu0 0.0
  %2624 = vmatpush.msra.mxu0 0.0
  %2625 = vmatpush.msra.mxu0 0.0
  %2626 = vmatpush.msra.mxu0 0.0
  %2627 = vmatpush.msra.mxu0 0.0
  %2628 = vmatpush.msra.mxu0 0.0
  %2629 = vmatpush.msra.mxu0 0.0
  %2630 = vmatpush.msra.mxu0 0.0
  %2631 = vmatpush.msra.mxu0 0.0
  %2632 = vmatpush.msra.mxu0 0.0
  %2633 = vmatpush.msra.mxu0 0.0
  %2634 = vmatpush.msra.mxu0 0.0
  %2635 = vmatpush.msra.mxu0 0.0
  %2636 = vmatpush.msra.mxu0 %v2540
  %2637 = vmatmul.f32.gmra.mxu0 %v2579
  %v2638 = vpop.f32.mrf.mxu0
  %v2639 = vadd.f32 0.0, %v2638
  %2640 = vdwg.mxu0
  %2641 = vmatpush.msra.mxu0 0.0
  %2642 = vmatpush.msra.mxu0 0.0
  %2643 = vmatpush.msra.mxu0 0.0
  %2644 = vmatpush.msra.mxu0 0.0
  %2645 = vmatpush.msra.mxu0 0.0
  %2646 = vmatpush.msra.mxu0 0.0
  %2647 = vmatpush.msra.mxu0 0.0
  %2648 = vmatpush.msra.mxu0 0.0
  %2649 = vmatpush.msra.mxu0 0.0
  %2650 = vmatpush.msra.mxu0 0.0
  %2651 = vmatpush.msra.mxu0 0.0
  %2652 = vmatpush.msra.mxu0 0.0
  %2653 = vmatpush.msra.mxu0 0.0
  %2654 = vmatpush.msra.mxu0 0.0
  %2655 = vmatpush.msra.mxu0 0.0
  %2656 = vmatpush.msra.mxu0 %v2541
  %2657 = vmatmul.f32.gmra.mxu0 %v2579
  %v2658 = vpop.f32.mrf.mxu0
  %v2659 = vadd.f32 0.0, %v2658
  %2660 = vdwg.mxu0
  %2661 = vmatpush.msra.mxu0 0.0
  %2662 = vmatpush.msra.mxu0 0.0
  %2663 = vmatpush.msra.mxu0 0.0
  %2664 = vmatpush.msra.mxu0 0.0
  %2665 = vmatpush.msra.mxu0 0.0
  %2666 = vmatpush.msra.mxu0 0.0
  %2667 = vmatpush.msra.mxu0 0.0
  %2668 = vmatpush.msra.mxu0 0.0
  %2669 = vmatpush.msra.mxu0 0.0
  %2670 = vmatpush.msra.mxu0 0.0
  %2671 = vmatpush.msra.mxu0 0.0
  %2672 = vmatpush.msra.mxu0 0.0
  %2673 = vmatpush.msra.mxu0 0.0
  %2674 = vmatpush.msra.mxu0 0.0
  %2675 = vmatpush.msra.mxu0 0.0
  %2676 = vmatpush.msra.mxu0 %v2542
  %2677 = vmatmul.f32.gmra.mxu0 %v2579
  %v2678 = vpop.f32.mrf.mxu0
  %v2679 = vadd.f32 0.0, %v2678
  %2680 = vdwg.mxu0
  %2681 = vmatpush.msra.mxu0 0.0
  %2682 = vmatpush.msra.mxu0 0.0
  %2683 = vmatpush.msra.mxu0 0.0
  %2684 = vmatpush.msra.mxu0 0.0
  %2685 = vmatpush.msra.mxu0 0.0
  %2686 = vmatpush.msra.mxu0 0.0
  %2687 = vmatpush.msra.mxu0 0.0
  %2688 = vmatpush.msra.mxu0 0.0
  %2689 = vmatpush.msra.mxu0 0.0
  %2690 = vmatpush.msra.mxu0 0.0
  %2691 = vmatpush.msra.mxu0 0.0
  %2692 = vmatpush.msra.mxu0 0.0
  %2693 = vmatpush.msra.mxu0 0.0
  %2694 = vmatpush.msra.mxu0 0.0
  %2695 = vmatpush.msra.mxu0 0.0
  %2696 = vmatpush.msra.mxu0 %v2543
  %2697 = vmatmul.f32.gmra.mxu0 %v2579
  %v2698 = vpop.f32.mrf.mxu0
  %v2699 = vadd.f32 0.0, %v2698
  %2700 = vdwg.mxu0
  %2701 = vmatpush.msra.mxu0 0.0
  %2702 = vmatpush.msra.mxu0 0.0
  %2703 = vmatpush.msra.mxu0 0.0
  %2704 = vmatpush.msra.mxu0 0.0
  %2705 = vmatpush.msra.mxu0 0.0
  %2706 = vmatpush.msra.mxu0 0.0
  %2707 = vmatpush.msra.mxu0 0.0
  %2708 = vmatpush.msra.mxu0 0.0
  %2709 = vmatpush.msra.mxu0 0.0
  %2710 = vmatpush.msra.mxu0 0.0
  %2711 = vmatpush.msra.mxu0 0.0
  %2712 = vmatpush.msra.mxu0 0.0
  %2713 = vmatpush.msra.mxu0 0.0
  %2714 = vmatpush.msra.mxu0 0.0
  %2715 = vmatpush.msra.mxu0 0.0
  %2716 = vmatpush.msra.mxu0 %v2544
  %2717 = vmatmul.f32.gmra.mxu0 %v2579
  %v2718 = vpop.f32.mrf.mxu0
  %v2719 = vadd.f32 0.0, %v2718
  %2720 = vdwg.mxu0
  %2721 = vmatpush.msra.mxu0 0.0
  %2722 = vmatpush.msra.mxu0 0.0
  %2723 = vmatpush.msra.mxu0 0.0
  %2724 = vmatpush.msra.mxu0 0.0
  %2725 = vmatpush.msra.mxu0 0.0
  %2726 = vmatpush.msra.mxu0 0.0
  %2727 = vmatpush.msra.mxu0 0.0
  %2728 = vmatpush.msra.mxu0 0.0
  %2729 = vmatpush.msra.mxu0 0.0
  %2730 = vmatpush.msra.mxu0 0.0
  %2731 = vmatpush.msra.mxu0 0.0
  %2732 = vmatpush.msra.mxu0 0.0
  %2733 = vmatpush.msra.mxu0 0.0
  %2734 = vmatpush.msra.mxu0 0.0
  %2735 = vmatpush.msra.mxu0 0.0
  %2736 = vmatpush.msra.mxu0 %v2545
  %2737 = vmatmul.f32.gmra.mxu0 %v2579
  %v2738 = vpop.f32.mrf.mxu0
  %v2739 = vadd.f32 0.0, %v2738
  %2740 = vdwg.mxu0
  %2741 = vmatpush.msra.mxu0 0.0
  %2742 = vmatpush.msra.mxu0 0.0
  %2743 = vmatpush.msra.mxu0 0.0
  %2744 = vmatpush.msra.mxu0 0.0
  %2745 = vmatpush.msra.mxu0 0.0
  %2746 = vmatpush.msra.mxu0 0.0
  %2747 = vmatpush.msra.mxu0 0.0
  %2748 = vmatpush.msra.mxu0 0.0
  %2749 = vmatpush.msra.mxu0 0.0
  %2750 = vmatpush.msra.mxu0 0.0
  %2751 = vmatpush.msra.mxu0 0.0
  %2752 = vmatpush.msra.mxu0 0.0
  %2753 = vmatpush.msra.mxu0 0.0
  %2754 = vmatpush.msra.mxu0 0.0
  %2755 = vmatpush.msra.mxu0 0.0
  %2756 = vmatpush.msra.mxu0 %v2546
  %2757 = vmatmul.f32.gmra.mxu0 %v2579
  %v2758 = vpop.f32.mrf.mxu0
  %v2759 = vadd.f32 0.0, %v2758
  %2760 = vdwg.mxu0
  %2761 = vmatpush.msra.mxu0 0.0
  %2762 = vmatpush.msra.mxu0 0.0
  %2763 = vmatpush.msra.mxu0 0.0
  %2764 = vmatpush.msra.mxu0 0.0
  %2765 = vmatpush.msra.mxu0 0.0
  %2766 = vmatpush.msra.mxu0 0.0
  %2767 = vmatpush.msra.mxu0 0.0
  %2768 = vmatpush.msra.mxu0 0.0
  %2769 = vmatpush.msra.mxu0 0.0
  %2770 = vmatpush.msra.mxu0 0.0
  %2771 = vmatpush.msra.mxu0 0.0
  %2772 = vmatpush.msra.mxu0 0.0
  %2773 = vmatpush.msra.mxu0 0.0
  %2774 = vmatpush.msra.mxu0 0.0
  %2775 = vmatpush.msra.mxu0 0.0
  %2776 = vmatpush.msra.mxu0 %v2547
  %2777 = vmatmul.f32.gmra.mxu0 %v2579
  %v2778 = vpop.f32.mrf.mxu0
  %v2779 = vadd.f32 0.0, %v2778
  %2780 = vdwg.mxu0
  %2781 = vmatpush.msra.mxu0 0.0
  %2782 = vmatpush.msra.mxu0 0.0
  %2783 = vmatpush.msra.mxu0 0.0
  %2784 = vmatpush.msra.mxu0 0.0
  %2785 = vmatpush.msra.mxu0 0.0
  %2786 = vmatpush.msra.mxu0 0.0
  %2787 = vmatpush.msra.mxu0 0.0
  %2788 = vmatpush.msra.mxu0 0.0
  %2789 = vmatpush.msra.mxu0 0.0
  %2790 = vmatpush.msra.mxu0 0.0
  %2791 = vmatpush.msra.mxu0 0.0
  %2792 = vmatpush.msra.mxu0 0.0
  %2793 = vmatpush.msra.mxu0 0.0
  %2794 = vmatpush.msra.mxu0 0.0
  %2795 = vmatpush.msra.mxu0 0.0
  %2796 = vmatpush.msra.mxu0 %v2548
  %2797 = vmatmul.f32.gmra.mxu0 %v2579
  %v2798 = vpop.f32.mrf.mxu0
  %v2799 = vadd.f32 0.0, %v2798
  %2800 = vdwg.mxu0
  %2801 = vmatpush.msra.mxu0 0.0
  %2802 = vmatpush.msra.mxu0 0.0
  %2803 = vmatpush.msra.mxu0 0.0
  %2804 = vmatpush.msra.mxu0 0.0
  %2805 = vmatpush.msra.mxu0 0.0
  %2806 = vmatpush.msra.mxu0 0.0
  %2807 = vmatpush.msra.mxu0 0.0
  %2808 = vmatpush.msra.mxu0 0.0
  %2809 = vmatpush.msra.mxu0 0.0
  %2810 = vmatpush.msra.mxu0 0.0
  %2811 = vmatpush.msra.mxu0 0.0
  %2812 = vmatpush.msra.mxu0 0.0
  %2813 = vmatpush.msra.mxu0 0.0
  %2814 = vmatpush.msra.mxu0 0.0
  %2815 = vmatpush.msra.mxu0 0.0
  %2816 = vmatpush.msra.mxu0 %v2549
  %2817 = vmatmul.f32.gmra.mxu0 %v2579
  %v2818 = vpop.f32.mrf.mxu0
  %v2819 = vadd.f32 0.0, %v2818
  %2820 = vdwg.mxu0
  %2821 = vmatpush.msra.mxu0 0.0
  %2822 = vmatpush.msra.mxu0 0.0
  %2823 = vmatpush.msra.mxu0 0.0
  %2824 = vmatpush.msra.mxu0 0.0
  %2825 = vmatpush.msra.mxu0 0.0
  %2826 = vmatpush.msra.mxu0 0.0
  %2827 = vmatpush.msra.mxu0 0.0
  %2828 = vmatpush.msra.mxu0 0.0
  %2829 = vmatpush.msra.mxu0 0.0
  %2830 = vmatpush.msra.mxu0 0.0
  %2831 = vmatpush.msra.mxu0 0.0
  %2832 = vmatpush.msra.mxu0 0.0
  %2833 = vmatpush.msra.mxu0 0.0
  %2834 = vmatpush.msra.mxu0 0.0
  %2835 = vmatpush.msra.mxu0 0.0
  %2836 = vmatpush.msra.mxu0 %v2550
  %2837 = vmatmul.f32.gmra.mxu0 %v2579
  %v2838 = vpop.f32.mrf.mxu0
  %v2839 = vadd.f32 0.0, %v2838
  %2840 = vdwg.mxu0
  %2841 = vmatpush.msra.mxu0 0.0
  %2842 = vmatpush.msra.mxu0 0.0
  %2843 = vmatpush.msra.mxu0 0.0
  %2844 = vmatpush.msra.mxu0 0.0
  %2845 = vmatpush.msra.mxu0 0.0
  %2846 = vmatpush.msra.mxu0 0.0
  %2847 = vmatpush.msra.mxu0 0.0
  %2848 = vmatpush.msra.mxu0 0.0
  %2849 = vmatpush.msra.mxu0 0.0
  %2850 = vmatpush.msra.mxu0 0.0
  %2851 = vmatpush.msra.mxu0 0.0
  %2852 = vmatpush.msra.mxu0 0.0
  %2853 = vmatpush.msra.mxu0 0.0
  %2854 = vmatpush.msra.mxu0 0.0
  %2855 = vmatpush.msra.mxu0 0.0
  %2856 = vmatpush.msra.mxu0 %v2551
  %2857 = vmatmul.f32.gmra.mxu0 %v2579
  %v2858 = vpop.f32.mrf.mxu0
  %v2859 = vadd.f32 0.0, %v2858
  %2860 = vdwg.mxu0
  %2861 = vmatpush.msra.mxu0 0.0
  %2862 = vmatpush.msra.mxu0 0.0
  %2863 = vmatpush.msra.mxu0 0.0
  %2864 = vmatpush.msra.mxu0 0.0
  %2865 = vmatpush.msra.mxu0 0.0
  %2866 = vmatpush.msra.mxu0 0.0
  %2867 = vmatpush.msra.mxu0 0.0
  %2868 = vmatpush.msra.mxu0 0.0
  %2869 = vmatpush.msra.mxu0 0.0
  %2870 = vmatpush.msra.mxu0 0.0
  %2871 = vmatpush.msra.mxu0 0.0
  %2872 = vmatpush.msra.mxu0 0.0
  %2873 = vmatpush.msra.mxu0 0.0
  %2874 = vmatpush.msra.mxu0 0.0
  %2875 = vmatpush.msra.mxu0 0.0
  %2876 = vmatpush.msra.mxu0 %v2552
  %2877 = vmatmul.f32.gmra.mxu0 %v2579
  %v2878 = vpop.f32.mrf.mxu0
  %v2879 = vadd.f32 0.0, %v2878
  %2880 = vdwg.mxu0
  %2881 = vmatpush.msra.mxu0 0.0
  %2882 = vmatpush.msra.mxu0 0.0
  %2883 = vmatpush.msra.mxu0 0.0
  %2884 = vmatpush.msra.mxu0 0.0
  %2885 = vmatpush.msra.mxu0 0.0
  %2886 = vmatpush.msra.mxu0 0.0
  %2887 = vmatpush.msra.mxu0 0.0
  %2888 = vmatpush.msra.mxu0 0.0
  %2889 = vmatpush.msra.mxu0 0.0
  %2890 = vmatpush.msra.mxu0 0.0
  %2891 = vmatpush.msra.mxu0 0.0
  %2892 = vmatpush.msra.mxu0 0.0
  %2893 = vmatpush.msra.mxu0 0.0
  %2894 = vmatpush.msra.mxu0 0.0
  %2895 = vmatpush.msra.mxu0 0.0
  %2896 = vmatpush.msra.mxu0 %v2553
  %2897 = vmatmul.f32.gmra.mxu0 %v2579
  %v2898 = vpop.f32.mrf.mxu0
  %v2899 = vadd.f32 0.0, %v2898
  %2900 = vdwg.mxu0
  %2901 = vmatpush.msra.mxu0 0.0
  %2902 = vmatpush.msra.mxu0 0.0
  %2903 = vmatpush.msra.mxu0 0.0
  %2904 = vmatpush.msra.mxu0 0.0
  %2905 = vmatpush.msra.mxu0 0.0
  %2906 = vmatpush.msra.mxu0 0.0
  %2907 = vmatpush.msra.mxu0 0.0
  %2908 = vmatpush.msra.mxu0 0.0
  %2909 = vmatpush.msra.mxu0 0.0
  %2910 = vmatpush.msra.mxu0 0.0
  %2911 = vmatpush.msra.mxu0 0.0
  %2912 = vmatpush.msra.mxu0 0.0
  %2913 = vmatpush.msra.mxu0 0.0
  %2914 = vmatpush.msra.mxu0 0.0
  %2915 = vmatpush.msra.mxu0 0.0
  %2916 = vmatpush.msra.mxu0 %v2554
  %2917 = vmatmul.f32.gmra.mxu0 %v2579
  %v2918 = vpop.f32.mrf.mxu0
  %v2919 = vadd.f32 0.0, %v2918
  %2920 = vdwg.mxu0
  %2921 = vmatpush.msra.mxu0 0.0
  %2922 = vmatpush.msra.mxu0 0.0
  %2923 = vmatpush.msra.mxu0 0.0
  %2924 = vmatpush.msra.mxu0 0.0
  %2925 = vmatpush.msra.mxu0 0.0
  %2926 = vmatpush.msra.mxu0 0.0
  %2927 = vmatpush.msra.mxu0 0.0
  %2928 = vmatpush.msra.mxu0 0.0
  %2929 = vmatpush.msra.mxu0 0.0
  %2930 = vmatpush.msra.mxu0 0.0
  %2931 = vmatpush.msra.mxu0 0.0
  %2932 = vmatpush.msra.mxu0 0.0
  %2933 = vmatpush.msra.mxu0 0.0
  %2934 = vmatpush.msra.mxu0 0.0
  %2935 = vmatpush.msra.mxu0 0.0
  %2936 = vmatpush.msra.mxu0 %v2555
  %2937 = vmatmul.f32.gmra.mxu0 %v2579
  %v2938 = vpop.f32.mrf.mxu0
  %v2939 = vadd.f32 0.0, %v2938
  %2940 = vdwg.mxu0
  %2941 = vmatpush.msra.mxu0 0.0
  %2942 = vmatpush.msra.mxu0 0.0
  %2943 = vmatpush.msra.mxu0 0.0
  %2944 = vmatpush.msra.mxu0 0.0
  %2945 = vmatpush.msra.mxu0 0.0
  %2946 = vmatpush.msra.mxu0 0.0
  %2947 = vmatpush.msra.mxu0 0.0
  %2948 = vmatpush.msra.mxu0 0.0
  %2949 = vmatpush.msra.mxu0 0.0
  %2950 = vmatpush.msra.mxu0 0.0
  %2951 = vmatpush.msra.mxu0 0.0
  %2952 = vmatpush.msra.mxu0 0.0
  %2953 = vmatpush.msra.mxu0 0.0
  %2954 = vmatpush.msra.mxu0 0.0
  %2955 = vmatpush.msra.mxu0 0.0
  %2956 = vmatpush.msra.mxu0 %v2556
  %2957 = vmatmul.f32.gmra.mxu0 %v2579
  %v2958 = vpop.f32.mrf.mxu0
  %v2959 = vadd.f32 0.0, %v2958
  %2960 = vdwg.mxu0
  %2961 = vmatpush.msra.mxu0 0.0
  %2962 = vmatpush.msra.mxu0 0.0
  %2963 = vmatpush.msra.mxu0 0.0
  %2964 = vmatpush.msra.mxu0 0.0
  %2965 = vmatpush.msra.mxu0 0.0
  %2966 = vmatpush.msra.mxu0 0.0
  %2967 = vmatpush.msra.mxu0 0.0
  %2968 = vmatpush.msra.mxu0 0.0
  %2969 = vmatpush.msra.mxu0 0.0
  %2970 = vmatpush.msra.mxu0 0.0
  %2971 = vmatpush.msra.mxu0 0.0
  %2972 = vmatpush.msra.mxu0 0.0
  %2973 = vmatpush.msra.mxu0 0.0
  %2974 = vmatpush.msra.mxu0 0.0
  %2975 = vmatpush.msra.mxu0 0.0
  %2976 = vmatpush.msra.mxu0 %v2557
  %2977 = vmatmul.f32.gmra.mxu0 %v2579
  %v2978 = vpop.f32.mrf.mxu0
  %v2979 = vadd.f32 0.0, %v2978
  %2980 = vdwg.mxu0
  %v2981 = vadd.f32 %v2473, %v2599
  %v2982 = vadd.f32 %v2474, %v2619
  %v2983 = vadd.f32 %v2475, %v2639
  %v2984 = vadd.f32 %v2476, %v2659
  %v2985 = vadd.f32 %v2477, %v2679
  %v2986 = vadd.f32 %v2478, %v2699
  %v2987 = vadd.f32 %v2479, %v2719
  %v2988 = vadd.f32 %v2480, %v2739
  %v2989 = vadd.f32 %v2481, %v2759
  %v2990 = vadd.f32 %v2482, %v2779
  %v2991 = vadd.f32 %v2483, %v2799
  %v2992 = vadd.f32 %v2484, %v2819
  %v2993 = vadd.f32 %v2485, %v2839
  %v2994 = vadd.f32 %v2486, %v2859
  %v2995 = vadd.f32 %v2487, %v2879
  %v2996 = vadd.f32 %v2488, %v2899
  %v2997 = vadd.f32 %v2489, %v2919
  %v2998 = vadd.f32 %v2490, %v2939
  %v2999 = vadd.f32 %v2491, %v2959
  %v3000 = vadd.f32 %v2492, %v2979
  %s3001 = scalar_lea.vmem %s0, 48
  %v3002 = vld [vmem:[%s3001] sm:$0xff]
  %3003 = vrot.lane.b32.xlu0 %v35, 91
  %v3004 = vpop.permute.xlu0 %3003
  %3005 = vrot.lane.b32.xlu0 %v36, 91
  %v3006 = vpop.permute.xlu0 %3005
  %3007 = vrot.lane.b32.xlu0 %v37, 91
  %v3008 = vpop.permute.xlu0 %3007
  %3009 = vrot.lane.b32.xlu0 %v38, 91
  %v3010 = vpop.permute.xlu0 %3009
  %3011 = vrot.lane.b32.xlu0 %v39, 91
  %v3012 = vpop.permute.xlu0 %3011
  %3013 = vrot.lane.b32.xlu0 %v40, 91
  %v3014 = vpop.permute.xlu0 %3013
  %3015 = vrot.lane.b32.xlu0 %v41, 91
  %v3016 = vpop.permute.xlu0 %3015
  %3017 = vrot.lane.b32.xlu0 %v42, 91
  %v3018 = vpop.permute.xlu0 %3017
  %3019 = vrot.lane.b32.xlu0 %v43, 91
  %v3020 = vpop.permute.xlu0 %3019
  %3021 = vrot.lane.b32.xlu0 %v44, 91
  %v3022 = vpop.permute.xlu0 %3021
  %3023 = vrot.lane.b32.xlu0 %v45, 91
  %v3024 = vpop.permute.xlu0 %3023
  %3025 = vrot.lane.b32.xlu0 %v46, 91
  %v3026 = vpop.permute.xlu0 %3025
  %3027 = vrot.lane.b32.xlu0 %v47, 91
  %v3028 = vpop.permute.xlu0 %3027
  %3029 = vrot.lane.b32.xlu0 %v48, 91
  %v3030 = vpop.permute.xlu0 %3029
  %3031 = vrot.lane.b32.xlu0 %v49, 91
  %v3032 = vpop.permute.xlu0 %3031
  %3033 = vrot.lane.b32.xlu0 %v50, 91
  %v3034 = vpop.permute.xlu0 %3033
  %3035 = vrot.lane.b32.xlu0 %v51, 91
  %v3036 = vpop.permute.xlu0 %3035
  %3037 = vrot.lane.b32.xlu0 %v52, 91
  %v3038 = vpop.permute.xlu0 %3037
  %3039 = vrot.lane.b32.xlu0 %v53, 91
  %v3040 = vpop.permute.xlu0 %3039
  %3041 = vrot.lane.b32.xlu0 %v54, 91
  %v3042 = vpop.permute.xlu0 %3041
  %3043 = vrot.lane.b32.xlu0 %v55, 91
  %v3044 = vpop.permute.xlu0 %3043
  %vm3045 = vcmask 744448
  %v3046 = vsel %vm3045, %v3004, %v3006
  %v3047 = vsel %vm3045, %v3006, %v3008
  %v3048 = vsel %vm3045, %v3008, %v3010
  %v3049 = vsel %vm3045, %v3010, %v3012
  %v3050 = vsel %vm3045, %v3012, %v3014
  %v3051 = vsel %vm3045, %v3014, %v3016
  %v3052 = vsel %vm3045, %v3016, %v3018
  %v3053 = vsel %vm3045, %v3018, %v3020
  %v3054 = vsel %vm3045, %v3020, %v3022
  %v3055 = vsel %vm3045, %v3022, %v3024
  %v3056 = vsel %vm3045, %v3024, %v3026
  %v3057 = vsel %vm3045, %v3026, %v3028
  %v3058 = vsel %vm3045, %v3028, %v3030
  %v3059 = vsel %vm3045, %v3030, %v3032
  %v3060 = vsel %vm3045, %v3032, %v3034
  %v3061 = vsel %vm3045, %v3034, %v3036
  %v3062 = vsel %vm3045, %v3036, %v3038
  %v3063 = vsel %vm3045, %v3038, %v3040
  %v3064 = vsel %vm3045, %v3040, %v3042
  %v3065 = vsel %vm3045, %v3042, %v3044
  %v3087 = vsel %vm162, %v3002, 0
  %3089 = vmatpush.msra.mxu0 0.0
  %3090 = vmatpush.msra.mxu0 0.0
  %3091 = vmatpush.msra.mxu0 0.0
  %3092 = vmatpush.msra.mxu0 0.0
  %3093 = vmatpush.msra.mxu0 0.0
  %3094 = vmatpush.msra.mxu0 0.0
  %3095 = vmatpush.msra.mxu0 0.0
  %3096 = vmatpush.msra.mxu0 0.0
  %3097 = vmatpush.msra.mxu0 0.0
  %3098 = vmatpush.msra.mxu0 0.0
  %3099 = vmatpush.msra.mxu0 0.0
  %3100 = vmatpush.msra.mxu0 0.0
  %3101 = vmatpush.msra.mxu0 0.0
  %3102 = vmatpush.msra.mxu0 0.0
  %3103 = vmatpush.msra.mxu0 0.0
  %3104 = vmatpush.msra.mxu0 %v3046
  %3105 = vmatmul.f32.gmra.mxu0 %v3087
  %v3106 = vpop.f32.mrf.mxu0
  %v3107 = vadd.f32 0.0, %v3106
  %3108 = vdwg.mxu0
  %3109 = vmatpush.msra.mxu0 0.0
  %3110 = vmatpush.msra.mxu0 0.0
  %3111 = vmatpush.msra.mxu0 0.0
  %3112 = vmatpush.msra.mxu0 0.0
  %3113 = vmatpush.msra.mxu0 0.0
  %3114 = vmatpush.msra.mxu0 0.0
  %3115 = vmatpush.msra.mxu0 0.0
  %3116 = vmatpush.msra.mxu0 0.0
  %3117 = vmatpush.msra.mxu0 0.0
  %3118 = vmatpush.msra.mxu0 0.0
  %3119 = vmatpush.msra.mxu0 0.0
  %3120 = vmatpush.msra.mxu0 0.0
  %3121 = vmatpush.msra.mxu0 0.0
  %3122 = vmatpush.msra.mxu0 0.0
  %3123 = vmatpush.msra.mxu0 0.0
  %3124 = vmatpush.msra.mxu0 %v3047
  %3125 = vmatmul.f32.gmra.mxu0 %v3087
  %v3126 = vpop.f32.mrf.mxu0
  %v3127 = vadd.f32 0.0, %v3126
  %3128 = vdwg.mxu0
  %3129 = vmatpush.msra.mxu0 0.0
  %3130 = vmatpush.msra.mxu0 0.0
  %3131 = vmatpush.msra.mxu0 0.0
  %3132 = vmatpush.msra.mxu0 0.0
  %3133 = vmatpush.msra.mxu0 0.0
  %3134 = vmatpush.msra.mxu0 0.0
  %3135 = vmatpush.msra.mxu0 0.0
  %3136 = vmatpush.msra.mxu0 0.0
  %3137 = vmatpush.msra.mxu0 0.0
  %3138 = vmatpush.msra.mxu0 0.0
  %3139 = vmatpush.msra.mxu0 0.0
  %3140 = vmatpush.msra.mxu0 0.0
  %3141 = vmatpush.msra.mxu0 0.0
  %3142 = vmatpush.msra.mxu0 0.0
  %3143 = vmatpush.msra.mxu0 0.0
  %3144 = vmatpush.msra.mxu0 %v3048
  %3145 = vmatmul.f32.gmra.mxu0 %v3087
  %v3146 = vpop.f32.mrf.mxu0
  %v3147 = vadd.f32 0.0, %v3146
  %3148 = vdwg.mxu0
  %3149 = vmatpush.msra.mxu0 0.0
  %3150 = vmatpush.msra.mxu0 0.0
  %3151 = vmatpush.msra.mxu0 0.0
  %3152 = vmatpush.msra.mxu0 0.0
  %3153 = vmatpush.msra.mxu0 0.0
  %3154 = vmatpush.msra.mxu0 0.0
  %3155 = vmatpush.msra.mxu0 0.0
  %3156 = vmatpush.msra.mxu0 0.0
  %3157 = vmatpush.msra.mxu0 0.0
  %3158 = vmatpush.msra.mxu0 0.0
  %3159 = vmatpush.msra.mxu0 0.0
  %3160 = vmatpush.msra.mxu0 0.0
  %3161 = vmatpush.msra.mxu0 0.0
  %3162 = vmatpush.msra.mxu0 0.0
  %3163 = vmatpush.msra.mxu0 0.0
  %3164 = vmatpush.msra.mxu0 %v3049
  %3165 = vmatmul.f32.gmra.mxu0 %v3087
  %v3166 = vpop.f32.mrf.mxu0
  %v3167 = vadd.f32 0.0, %v3166
  %3168 = vdwg.mxu0
  %3169 = vmatpush.msra.mxu0 0.0
  %3170 = vmatpush.msra.mxu0 0.0
  %3171 = vmatpush.msra.mxu0 0.0
  %3172 = vmatpush.msra.mxu0 0.0
  %3173 = vmatpush.msra.mxu0 0.0
  %3174 = vmatpush.msra.mxu0 0.0
  %3175 = vmatpush.msra.mxu0 0.0
  %3176 = vmatpush.msra.mxu0 0.0
  %3177 = vmatpush.msra.mxu0 0.0
  %3178 = vmatpush.msra.mxu0 0.0
  %3179 = vmatpush.msra.mxu0 0.0
  %3180 = vmatpush.msra.mxu0 0.0
  %3181 = vmatpush.msra.mxu0 0.0
  %3182 = vmatpush.msra.mxu0 0.0
  %3183 = vmatpush.msra.mxu0 0.0
  %3184 = vmatpush.msra.mxu0 %v3050
  %3185 = vmatmul.f32.gmra.mxu0 %v3087
  %v3186 = vpop.f32.mrf.mxu0
  %v3187 = vadd.f32 0.0, %v3186
  %3188 = vdwg.mxu0
  %3189 = vmatpush.msra.mxu0 0.0
  %3190 = vmatpush.msra.mxu0 0.0
  %3191 = vmatpush.msra.mxu0 0.0
  %3192 = vmatpush.msra.mxu0 0.0
  %3193 = vmatpush.msra.mxu0 0.0
  %3194 = vmatpush.msra.mxu0 0.0
  %3195 = vmatpush.msra.mxu0 0.0
  %3196 = vmatpush.msra.mxu0 0.0
  %3197 = vmatpush.msra.mxu0 0.0
  %3198 = vmatpush.msra.mxu0 0.0
  %3199 = vmatpush.msra.mxu0 0.0
  %3200 = vmatpush.msra.mxu0 0.0
  %3201 = vmatpush.msra.mxu0 0.0
  %3202 = vmatpush.msra.mxu0 0.0
  %3203 = vmatpush.msra.mxu0 0.0
  %3204 = vmatpush.msra.mxu0 %v3051
  %3205 = vmatmul.f32.gmra.mxu0 %v3087
  %v3206 = vpop.f32.mrf.mxu0
  %v3207 = vadd.f32 0.0, %v3206
  %3208 = vdwg.mxu0
  %3209 = vmatpush.msra.mxu0 0.0
  %3210 = vmatpush.msra.mxu0 0.0
  %3211 = vmatpush.msra.mxu0 0.0
  %3212 = vmatpush.msra.mxu0 0.0
  %3213 = vmatpush.msra.mxu0 0.0
  %3214 = vmatpush.msra.mxu0 0.0
  %3215 = vmatpush.msra.mxu0 0.0
  %3216 = vmatpush.msra.mxu0 0.0
  %3217 = vmatpush.msra.mxu0 0.0
  %3218 = vmatpush.msra.mxu0 0.0
  %3219 = vmatpush.msra.mxu0 0.0
  %3220 = vmatpush.msra.mxu0 0.0
  %3221 = vmatpush.msra.mxu0 0.0
  %3222 = vmatpush.msra.mxu0 0.0
  %3223 = vmatpush.msra.mxu0 0.0
  %3224 = vmatpush.msra.mxu0 %v3052
  %3225 = vmatmul.f32.gmra.mxu0 %v3087
  %v3226 = vpop.f32.mrf.mxu0
  %v3227 = vadd.f32 0.0, %v3226
  %3228 = vdwg.mxu0
  %3229 = vmatpush.msra.mxu0 0.0
  %3230 = vmatpush.msra.mxu0 0.0
  %3231 = vmatpush.msra.mxu0 0.0
  %3232 = vmatpush.msra.mxu0 0.0
  %3233 = vmatpush.msra.mxu0 0.0
  %3234 = vmatpush.msra.mxu0 0.0
  %3235 = vmatpush.msra.mxu0 0.0
  %3236 = vmatpush.msra.mxu0 0.0
  %3237 = vmatpush.msra.mxu0 0.0
  %3238 = vmatpush.msra.mxu0 0.0
  %3239 = vmatpush.msra.mxu0 0.0
  %3240 = vmatpush.msra.mxu0 0.0
  %3241 = vmatpush.msra.mxu0 0.0
  %3242 = vmatpush.msra.mxu0 0.0
  %3243 = vmatpush.msra.mxu0 0.0
  %3244 = vmatpush.msra.mxu0 %v3053
  %3245 = vmatmul.f32.gmra.mxu0 %v3087
  %v3246 = vpop.f32.mrf.mxu0
  %v3247 = vadd.f32 0.0, %v3246
  %3248 = vdwg.mxu0
  %3249 = vmatpush.msra.mxu0 0.0
  %3250 = vmatpush.msra.mxu0 0.0
  %3251 = vmatpush.msra.mxu0 0.0
  %3252 = vmatpush.msra.mxu0 0.0
  %3253 = vmatpush.msra.mxu0 0.0
  %3254 = vmatpush.msra.mxu0 0.0
  %3255 = vmatpush.msra.mxu0 0.0
  %3256 = vmatpush.msra.mxu0 0.0
  %3257 = vmatpush.msra.mxu0 0.0
  %3258 = vmatpush.msra.mxu0 0.0
  %3259 = vmatpush.msra.mxu0 0.0
  %3260 = vmatpush.msra.mxu0 0.0
  %3261 = vmatpush.msra.mxu0 0.0
  %3262 = vmatpush.msra.mxu0 0.0
  %3263 = vmatpush.msra.mxu0 0.0
  %3264 = vmatpush.msra.mxu0 %v3054
  %3265 = vmatmul.f32.gmra.mxu0 %v3087
  %v3266 = vpop.f32.mrf.mxu0
  %v3267 = vadd.f32 0.0, %v3266
  %3268 = vdwg.mxu0
  %3269 = vmatpush.msra.mxu0 0.0
  %3270 = vmatpush.msra.mxu0 0.0
  %3271 = vmatpush.msra.mxu0 0.0
  %3272 = vmatpush.msra.mxu0 0.0
  %3273 = vmatpush.msra.mxu0 0.0
  %3274 = vmatpush.msra.mxu0 0.0
  %3275 = vmatpush.msra.mxu0 0.0
  %3276 = vmatpush.msra.mxu0 0.0
  %3277 = vmatpush.msra.mxu0 0.0
  %3278 = vmatpush.msra.mxu0 0.0
  %3279 = vmatpush.msra.mxu0 0.0
  %3280 = vmatpush.msra.mxu0 0.0
  %3281 = vmatpush.msra.mxu0 0.0
  %3282 = vmatpush.msra.mxu0 0.0
  %3283 = vmatpush.msra.mxu0 0.0
  %3284 = vmatpush.msra.mxu0 %v3055
  %3285 = vmatmul.f32.gmra.mxu0 %v3087
  %v3286 = vpop.f32.mrf.mxu0
  %v3287 = vadd.f32 0.0, %v3286
  %3288 = vdwg.mxu0
  %3289 = vmatpush.msra.mxu0 0.0
  %3290 = vmatpush.msra.mxu0 0.0
  %3291 = vmatpush.msra.mxu0 0.0
  %3292 = vmatpush.msra.mxu0 0.0
  %3293 = vmatpush.msra.mxu0 0.0
  %3294 = vmatpush.msra.mxu0 0.0
  %3295 = vmatpush.msra.mxu0 0.0
  %3296 = vmatpush.msra.mxu0 0.0
  %3297 = vmatpush.msra.mxu0 0.0
  %3298 = vmatpush.msra.mxu0 0.0
  %3299 = vmatpush.msra.mxu0 0.0
  %3300 = vmatpush.msra.mxu0 0.0
  %3301 = vmatpush.msra.mxu0 0.0
  %3302 = vmatpush.msra.mxu0 0.0
  %3303 = vmatpush.msra.mxu0 0.0
  %3304 = vmatpush.msra.mxu0 %v3056
  %3305 = vmatmul.f32.gmra.mxu0 %v3087
  %v3306 = vpop.f32.mrf.mxu0
  %v3307 = vadd.f32 0.0, %v3306
  %3308 = vdwg.mxu0
  %3309 = vmatpush.msra.mxu0 0.0
  %3310 = vmatpush.msra.mxu0 0.0
  %3311 = vmatpush.msra.mxu0 0.0
  %3312 = vmatpush.msra.mxu0 0.0
  %3313 = vmatpush.msra.mxu0 0.0
  %3314 = vmatpush.msra.mxu0 0.0
  %3315 = vmatpush.msra.mxu0 0.0
  %3316 = vmatpush.msra.mxu0 0.0
  %3317 = vmatpush.msra.mxu0 0.0
  %3318 = vmatpush.msra.mxu0 0.0
  %3319 = vmatpush.msra.mxu0 0.0
  %3320 = vmatpush.msra.mxu0 0.0
  %3321 = vmatpush.msra.mxu0 0.0
  %3322 = vmatpush.msra.mxu0 0.0
  %3323 = vmatpush.msra.mxu0 0.0
  %3324 = vmatpush.msra.mxu0 %v3057
  %3325 = vmatmul.f32.gmra.mxu0 %v3087
  %v3326 = vpop.f32.mrf.mxu0
  %v3327 = vadd.f32 0.0, %v3326
  %3328 = vdwg.mxu0
  %3329 = vmatpush.msra.mxu0 0.0
  %3330 = vmatpush.msra.mxu0 0.0
  %3331 = vmatpush.msra.mxu0 0.0
  %3332 = vmatpush.msra.mxu0 0.0
  %3333 = vmatpush.msra.mxu0 0.0
  %3334 = vmatpush.msra.mxu0 0.0
  %3335 = vmatpush.msra.mxu0 0.0
  %3336 = vmatpush.msra.mxu0 0.0
  %3337 = vmatpush.msra.mxu0 0.0
  %3338 = vmatpush.msra.mxu0 0.0
  %3339 = vmatpush.msra.mxu0 0.0
  %3340 = vmatpush.msra.mxu0 0.0
  %3341 = vmatpush.msra.mxu0 0.0
  %3342 = vmatpush.msra.mxu0 0.0
  %3343 = vmatpush.msra.mxu0 0.0
  %3344 = vmatpush.msra.mxu0 %v3058
  %3345 = vmatmul.f32.gmra.mxu0 %v3087
  %v3346 = vpop.f32.mrf.mxu0
  %v3347 = vadd.f32 0.0, %v3346
  %3348 = vdwg.mxu0
  %3349 = vmatpush.msra.mxu0 0.0
  %3350 = vmatpush.msra.mxu0 0.0
  %3351 = vmatpush.msra.mxu0 0.0
  %3352 = vmatpush.msra.mxu0 0.0
  %3353 = vmatpush.msra.mxu0 0.0
  %3354 = vmatpush.msra.mxu0 0.0
  %3355 = vmatpush.msra.mxu0 0.0
  %3356 = vmatpush.msra.mxu0 0.0
  %3357 = vmatpush.msra.mxu0 0.0
  %3358 = vmatpush.msra.mxu0 0.0
  %3359 = vmatpush.msra.mxu0 0.0
  %3360 = vmatpush.msra.mxu0 0.0
  %3361 = vmatpush.msra.mxu0 0.0
  %3362 = vmatpush.msra.mxu0 0.0
  %3363 = vmatpush.msra.mxu0 0.0
  %3364 = vmatpush.msra.mxu0 %v3059
  %3365 = vmatmul.f32.gmra.mxu0 %v3087
  %v3366 = vpop.f32.mrf.mxu0
  %v3367 = vadd.f32 0.0, %v3366
  %3368 = vdwg.mxu0
  %3369 = vmatpush.msra.mxu0 0.0
  %3370 = vmatpush.msra.mxu0 0.0
  %3371 = vmatpush.msra.mxu0 0.0
  %3372 = vmatpush.msra.mxu0 0.0
  %3373 = vmatpush.msra.mxu0 0.0
  %3374 = vmatpush.msra.mxu0 0.0
  %3375 = vmatpush.msra.mxu0 0.0
  %3376 = vmatpush.msra.mxu0 0.0
  %3377 = vmatpush.msra.mxu0 0.0
  %3378 = vmatpush.msra.mxu0 0.0
  %3379 = vmatpush.msra.mxu0 0.0
  %3380 = vmatpush.msra.mxu0 0.0
  %3381 = vmatpush.msra.mxu0 0.0
  %3382 = vmatpush.msra.mxu0 0.0
  %3383 = vmatpush.msra.mxu0 0.0
  %3384 = vmatpush.msra.mxu0 %v3060
  %3385 = vmatmul.f32.gmra.mxu0 %v3087
  %v3386 = vpop.f32.mrf.mxu0
  %v3387 = vadd.f32 0.0, %v3386
  %3388 = vdwg.mxu0
  %3389 = vmatpush.msra.mxu0 0.0
  %3390 = vmatpush.msra.mxu0 0.0
  %3391 = vmatpush.msra.mxu0 0.0
  %3392 = vmatpush.msra.mxu0 0.0
  %3393 = vmatpush.msra.mxu0 0.0
  %3394 = vmatpush.msra.mxu0 0.0
  %3395 = vmatpush.msra.mxu0 0.0
  %3396 = vmatpush.msra.mxu0 0.0
  %3397 = vmatpush.msra.mxu0 0.0
  %3398 = vmatpush.msra.mxu0 0.0
  %3399 = vmatpush.msra.mxu0 0.0
  %3400 = vmatpush.msra.mxu0 0.0
  %3401 = vmatpush.msra.mxu0 0.0
  %3402 = vmatpush.msra.mxu0 0.0
  %3403 = vmatpush.msra.mxu0 0.0
  %3404 = vmatpush.msra.mxu0 %v3061
  %3405 = vmatmul.f32.gmra.mxu0 %v3087
  %v3406 = vpop.f32.mrf.mxu0
  %v3407 = vadd.f32 0.0, %v3406
  %3408 = vdwg.mxu0
  %3409 = vmatpush.msra.mxu0 0.0
  %3410 = vmatpush.msra.mxu0 0.0
  %3411 = vmatpush.msra.mxu0 0.0
  %3412 = vmatpush.msra.mxu0 0.0
  %3413 = vmatpush.msra.mxu0 0.0
  %3414 = vmatpush.msra.mxu0 0.0
  %3415 = vmatpush.msra.mxu0 0.0
  %3416 = vmatpush.msra.mxu0 0.0
  %3417 = vmatpush.msra.mxu0 0.0
  %3418 = vmatpush.msra.mxu0 0.0
  %3419 = vmatpush.msra.mxu0 0.0
  %3420 = vmatpush.msra.mxu0 0.0
  %3421 = vmatpush.msra.mxu0 0.0
  %3422 = vmatpush.msra.mxu0 0.0
  %3423 = vmatpush.msra.mxu0 0.0
  %3424 = vmatpush.msra.mxu0 %v3062
  %3425 = vmatmul.f32.gmra.mxu0 %v3087
  %v3426 = vpop.f32.mrf.mxu0
  %v3427 = vadd.f32 0.0, %v3426
  %3428 = vdwg.mxu0
  %3429 = vmatpush.msra.mxu0 0.0
  %3430 = vmatpush.msra.mxu0 0.0
  %3431 = vmatpush.msra.mxu0 0.0
  %3432 = vmatpush.msra.mxu0 0.0
  %3433 = vmatpush.msra.mxu0 0.0
  %3434 = vmatpush.msra.mxu0 0.0
  %3435 = vmatpush.msra.mxu0 0.0
  %3436 = vmatpush.msra.mxu0 0.0
  %3437 = vmatpush.msra.mxu0 0.0
  %3438 = vmatpush.msra.mxu0 0.0
  %3439 = vmatpush.msra.mxu0 0.0
  %3440 = vmatpush.msra.mxu0 0.0
  %3441 = vmatpush.msra.mxu0 0.0
  %3442 = vmatpush.msra.mxu0 0.0
  %3443 = vmatpush.msra.mxu0 0.0
  %3444 = vmatpush.msra.mxu0 %v3063
  %3445 = vmatmul.f32.gmra.mxu0 %v3087
  %v3446 = vpop.f32.mrf.mxu0
  %v3447 = vadd.f32 0.0, %v3446
  %3448 = vdwg.mxu0
  %3449 = vmatpush.msra.mxu0 0.0
  %3450 = vmatpush.msra.mxu0 0.0
  %3451 = vmatpush.msra.mxu0 0.0
  %3452 = vmatpush.msra.mxu0 0.0
  %3453 = vmatpush.msra.mxu0 0.0
  %3454 = vmatpush.msra.mxu0 0.0
  %3455 = vmatpush.msra.mxu0 0.0
  %3456 = vmatpush.msra.mxu0 0.0
  %3457 = vmatpush.msra.mxu0 0.0
  %3458 = vmatpush.msra.mxu0 0.0
  %3459 = vmatpush.msra.mxu0 0.0
  %3460 = vmatpush.msra.mxu0 0.0
  %3461 = vmatpush.msra.mxu0 0.0
  %3462 = vmatpush.msra.mxu0 0.0
  %3463 = vmatpush.msra.mxu0 0.0
  %3464 = vmatpush.msra.mxu0 %v3064
  %3465 = vmatmul.f32.gmra.mxu0 %v3087
  %v3466 = vpop.f32.mrf.mxu0
  %v3467 = vadd.f32 0.0, %v3466
  %3468 = vdwg.mxu0
  %3469 = vmatpush.msra.mxu0 0.0
  %3470 = vmatpush.msra.mxu0 0.0
  %3471 = vmatpush.msra.mxu0 0.0
  %3472 = vmatpush.msra.mxu0 0.0
  %3473 = vmatpush.msra.mxu0 0.0
  %3474 = vmatpush.msra.mxu0 0.0
  %3475 = vmatpush.msra.mxu0 0.0
  %3476 = vmatpush.msra.mxu0 0.0
  %3477 = vmatpush.msra.mxu0 0.0
  %3478 = vmatpush.msra.mxu0 0.0
  %3479 = vmatpush.msra.mxu0 0.0
  %3480 = vmatpush.msra.mxu0 0.0
  %3481 = vmatpush.msra.mxu0 0.0
  %3482 = vmatpush.msra.mxu0 0.0
  %3483 = vmatpush.msra.mxu0 0.0
  %3484 = vmatpush.msra.mxu0 %v3065
  %3485 = vmatmul.f32.gmra.mxu0 %v3087
  %v3486 = vpop.f32.mrf.mxu0
  %v3487 = vadd.f32 0.0, %v3486
  %3488 = vdwg.mxu0
  %v3489 = vadd.f32 %v2981, %v3107
  %v3490 = vadd.f32 %v2982, %v3127
  %v3491 = vadd.f32 %v2983, %v3147
  %v3492 = vadd.f32 %v2984, %v3167
  %v3493 = vadd.f32 %v2985, %v3187
  %v3494 = vadd.f32 %v2986, %v3207
  %v3495 = vadd.f32 %v2987, %v3227
  %v3496 = vadd.f32 %v2988, %v3247
  %v3497 = vadd.f32 %v2989, %v3267
  %v3498 = vadd.f32 %v2990, %v3287
  %v3499 = vadd.f32 %v2991, %v3307
  %v3500 = vadd.f32 %v2992, %v3327
  %v3501 = vadd.f32 %v2993, %v3347
  %v3502 = vadd.f32 %v2994, %v3367
  %v3503 = vadd.f32 %v2995, %v3387
  %v3504 = vadd.f32 %v2996, %v3407
  %v3505 = vadd.f32 %v2997, %v3427
  %v3506 = vadd.f32 %v2998, %v3447
  %v3507 = vadd.f32 %v2999, %v3467
  %v3508 = vadd.f32 %v3000, %v3487
  %s3509 = scalar_lea.vmem %s0, 56
  %v3510 = vld [vmem:[%s3509] sm:$0xff]
  %3511 = vrot.lane.b32.xlu0 %v35, 90
  %v3512 = vpop.permute.xlu0 %3511
  %3513 = vrot.lane.b32.xlu0 %v36, 90
  %v3514 = vpop.permute.xlu0 %3513
  %3515 = vrot.lane.b32.xlu0 %v37, 90
  %v3516 = vpop.permute.xlu0 %3515
  %3517 = vrot.lane.b32.xlu0 %v38, 90
  %v3518 = vpop.permute.xlu0 %3517
  %3519 = vrot.lane.b32.xlu0 %v39, 90
  %v3520 = vpop.permute.xlu0 %3519
  %3521 = vrot.lane.b32.xlu0 %v40, 90
  %v3522 = vpop.permute.xlu0 %3521
  %3523 = vrot.lane.b32.xlu0 %v41, 90
  %v3524 = vpop.permute.xlu0 %3523
  %3525 = vrot.lane.b32.xlu0 %v42, 90
  %v3526 = vpop.permute.xlu0 %3525
  %3527 = vrot.lane.b32.xlu0 %v43, 90
  %v3528 = vpop.permute.xlu0 %3527
  %3529 = vrot.lane.b32.xlu0 %v44, 90
  %v3530 = vpop.permute.xlu0 %3529
  %3531 = vrot.lane.b32.xlu0 %v45, 90
  %v3532 = vpop.permute.xlu0 %3531
  %3533 = vrot.lane.b32.xlu0 %v46, 90
  %v3534 = vpop.permute.xlu0 %3533
  %3535 = vrot.lane.b32.xlu0 %v47, 90
  %v3536 = vpop.permute.xlu0 %3535
  %3537 = vrot.lane.b32.xlu0 %v48, 90
  %v3538 = vpop.permute.xlu0 %3537
  %3539 = vrot.lane.b32.xlu0 %v49, 90
  %v3540 = vpop.permute.xlu0 %3539
  %3541 = vrot.lane.b32.xlu0 %v50, 90
  %v3542 = vpop.permute.xlu0 %3541
  %3543 = vrot.lane.b32.xlu0 %v51, 90
  %v3544 = vpop.permute.xlu0 %3543
  %3545 = vrot.lane.b32.xlu0 %v52, 90
  %v3546 = vpop.permute.xlu0 %3545
  %3547 = vrot.lane.b32.xlu0 %v53, 90
  %v3548 = vpop.permute.xlu0 %3547
  %3549 = vrot.lane.b32.xlu0 %v54, 90
  %v3550 = vpop.permute.xlu0 %3549
  %3551 = vrot.lane.b32.xlu0 %v55, 90
  %v3552 = vpop.permute.xlu0 %3551
  %vm3553 = vcmask 736256
  %v3554 = vsel %vm3553, %v3512, %v3514
  %v3555 = vsel %vm3553, %v3514, %v3516
  %v3556 = vsel %vm3553, %v3516, %v3518
  %v3557 = vsel %vm3553, %v3518, %v3520
  %v3558 = vsel %vm3553, %v3520, %v3522
  %v3559 = vsel %vm3553, %v3522, %v3524
  %v3560 = vsel %vm3553, %v3524, %v3526
  %v3561 = vsel %vm3553, %v3526, %v3528
  %v3562 = vsel %vm3553, %v3528, %v3530
  %v3563 = vsel %vm3553, %v3530, %v3532
  %v3564 = vsel %vm3553, %v3532, %v3534
  %v3565 = vsel %vm3553, %v3534, %v3536
  %v3566 = vsel %vm3553, %v3536, %v3538
  %v3567 = vsel %vm3553, %v3538, %v3540
  %v3568 = vsel %vm3553, %v3540, %v3542
  %v3569 = vsel %vm3553, %v3542, %v3544
  %v3570 = vsel %vm3553, %v3544, %v3546
  %v3571 = vsel %vm3553, %v3546, %v3548
  %v3572 = vsel %vm3553, %v3548, %v3550
  %v3573 = vsel %vm3553, %v3550, %v3552
  %v3595 = vsel %vm162, %v3510, 0
  %3597 = vmatpush.msra.mxu0 0.0
  %3598 = vmatpush.msra.mxu0 0.0
  %3599 = vmatpush.msra.mxu0 0.0
  %3600 = vmatpush.msra.mxu0 0.0
  %3601 = vmatpush.msra.mxu0 0.0
  %3602 = vmatpush.msra.mxu0 0.0
  %3603 = vmatpush.msra.mxu0 0.0
  %3604 = vmatpush.msra.mxu0 0.0
  %3605 = vmatpush.msra.mxu0 0.0
  %3606 = vmatpush.msra.mxu0 0.0
  %3607 = vmatpush.msra.mxu0 0.0
  %3608 = vmatpush.msra.mxu0 0.0
  %3609 = vmatpush.msra.mxu0 0.0
  %3610 = vmatpush.msra.mxu0 0.0
  %3611 = vmatpush.msra.mxu0 0.0
  %3612 = vmatpush.msra.mxu0 %v3554
  %3613 = vmatmul.f32.gmra.mxu0 %v3595
  %v3614 = vpop.f32.mrf.mxu0
  %v3615 = vadd.f32 0.0, %v3614
  %3616 = vdwg.mxu0
  %3617 = vmatpush.msra.mxu0 0.0
  %3618 = vmatpush.msra.mxu0 0.0
  %3619 = vmatpush.msra.mxu0 0.0
  %3620 = vmatpush.msra.mxu0 0.0
  %3621 = vmatpush.msra.mxu0 0.0
  %3622 = vmatpush.msra.mxu0 0.0
  %3623 = vmatpush.msra.mxu0 0.0
  %3624 = vmatpush.msra.mxu0 0.0
  %3625 = vmatpush.msra.mxu0 0.0
  %3626 = vmatpush.msra.mxu0 0.0
  %3627 = vmatpush.msra.mxu0 0.0
  %3628 = vmatpush.msra.mxu0 0.0
  %3629 = vmatpush.msra.mxu0 0.0
  %3630 = vmatpush.msra.mxu0 0.0
  %3631 = vmatpush.msra.mxu0 0.0
  %3632 = vmatpush.msra.mxu0 %v3555
  %3633 = vmatmul.f32.gmra.mxu0 %v3595
  %v3634 = vpop.f32.mrf.mxu0
  %v3635 = vadd.f32 0.0, %v3634
  %3636 = vdwg.mxu0
  %3637 = vmatpush.msra.mxu0 0.0
  %3638 = vmatpush.msra.mxu0 0.0
  %3639 = vmatpush.msra.mxu0 0.0
  %3640 = vmatpush.msra.mxu0 0.0
  %3641 = vmatpush.msra.mxu0 0.0
  %3642 = vmatpush.msra.mxu0 0.0
  %3643 = vmatpush.msra.mxu0 0.0
  %3644 = vmatpush.msra.mxu0 0.0
  %3645 = vmatpush.msra.mxu0 0.0
  %3646 = vmatpush.msra.mxu0 0.0
  %3647 = vmatpush.msra.mxu0 0.0
  %3648 = vmatpush.msra.mxu0 0.0
  %3649 = vmatpush.msra.mxu0 0.0
  %3650 = vmatpush.msra.mxu0 0.0
  %3651 = vmatpush.msra.mxu0 0.0
  %3652 = vmatpush.msra.mxu0 %v3556
  %3653 = vmatmul.f32.gmra.mxu0 %v3595
  %v3654 = vpop.f32.mrf.mxu0
  %v3655 = vadd.f32 0.0, %v3654
  %3656 = vdwg.mxu0
  %3657 = vmatpush.msra.mxu0 0.0
  %3658 = vmatpush.msra.mxu0 0.0
  %3659 = vmatpush.msra.mxu0 0.0
  %3660 = vmatpush.msra.mxu0 0.0
  %3661 = vmatpush.msra.mxu0 0.0
  %3662 = vmatpush.msra.mxu0 0.0
  %3663 = vmatpush.msra.mxu0 0.0
  %3664 = vmatpush.msra.mxu0 0.0
  %3665 = vmatpush.msra.mxu0 0.0
  %3666 = vmatpush.msra.mxu0 0.0
  %3667 = vmatpush.msra.mxu0 0.0
  %3668 = vmatpush.msra.mxu0 0.0
  %3669 = vmatpush.msra.mxu0 0.0
  %3670 = vmatpush.msra.mxu0 0.0
  %3671 = vmatpush.msra.mxu0 0.0
  %3672 = vmatpush.msra.mxu0 %v3557
  %3673 = vmatmul.f32.gmra.mxu0 %v3595
  %v3674 = vpop.f32.mrf.mxu0
  %v3675 = vadd.f32 0.0, %v3674
  %3676 = vdwg.mxu0
  %3677 = vmatpush.msra.mxu0 0.0
  %3678 = vmatpush.msra.mxu0 0.0
  %3679 = vmatpush.msra.mxu0 0.0
  %3680 = vmatpush.msra.mxu0 0.0
  %3681 = vmatpush.msra.mxu0 0.0
  %3682 = vmatpush.msra.mxu0 0.0
  %3683 = vmatpush.msra.mxu0 0.0
  %3684 = vmatpush.msra.mxu0 0.0
  %3685 = vmatpush.msra.mxu0 0.0
  %3686 = vmatpush.msra.mxu0 0.0
  %3687 = vmatpush.msra.mxu0 0.0
  %3688 = vmatpush.msra.mxu0 0.0
  %3689 = vmatpush.msra.mxu0 0.0
  %3690 = vmatpush.msra.mxu0 0.0
  %3691 = vmatpush.msra.mxu0 0.0
  %3692 = vmatpush.msra.mxu0 %v3558
  %3693 = vmatmul.f32.gmra.mxu0 %v3595
  %v3694 = vpop.f32.mrf.mxu0
  %v3695 = vadd.f32 0.0, %v3694
  %3696 = vdwg.mxu0
  %3697 = vmatpush.msra.mxu0 0.0
  %3698 = vmatpush.msra.mxu0 0.0
  %3699 = vmatpush.msra.mxu0 0.0
  %3700 = vmatpush.msra.mxu0 0.0
  %3701 = vmatpush.msra.mxu0 0.0
  %3702 = vmatpush.msra.mxu0 0.0
  %3703 = vmatpush.msra.mxu0 0.0
  %3704 = vmatpush.msra.mxu0 0.0
  %3705 = vmatpush.msra.mxu0 0.0
  %3706 = vmatpush.msra.mxu0 0.0
  %3707 = vmatpush.msra.mxu0 0.0
  %3708 = vmatpush.msra.mxu0 0.0
  %3709 = vmatpush.msra.mxu0 0.0
  %3710 = vmatpush.msra.mxu0 0.0
  %3711 = vmatpush.msra.mxu0 0.0
  %3712 = vmatpush.msra.mxu0 %v3559
  %3713 = vmatmul.f32.gmra.mxu0 %v3595
  %v3714 = vpop.f32.mrf.mxu0
  %v3715 = vadd.f32 0.0, %v3714
  %3716 = vdwg.mxu0
  %3717 = vmatpush.msra.mxu0 0.0
  %3718 = vmatpush.msra.mxu0 0.0
  %3719 = vmatpush.msra.mxu0 0.0
  %3720 = vmatpush.msra.mxu0 0.0
  %3721 = vmatpush.msra.mxu0 0.0
  %3722 = vmatpush.msra.mxu0 0.0
  %3723 = vmatpush.msra.mxu0 0.0
  %3724 = vmatpush.msra.mxu0 0.0
  %3725 = vmatpush.msra.mxu0 0.0
  %3726 = vmatpush.msra.mxu0 0.0
  %3727 = vmatpush.msra.mxu0 0.0
  %3728 = vmatpush.msra.mxu0 0.0
  %3729 = vmatpush.msra.mxu0 0.0
  %3730 = vmatpush.msra.mxu0 0.0
  %3731 = vmatpush.msra.mxu0 0.0
  %3732 = vmatpush.msra.mxu0 %v3560
  %3733 = vmatmul.f32.gmra.mxu0 %v3595
  %v3734 = vpop.f32.mrf.mxu0
  %v3735 = vadd.f32 0.0, %v3734
  %3736 = vdwg.mxu0
  %3737 = vmatpush.msra.mxu0 0.0
  %3738 = vmatpush.msra.mxu0 0.0
  %3739 = vmatpush.msra.mxu0 0.0
  %3740 = vmatpush.msra.mxu0 0.0
  %3741 = vmatpush.msra.mxu0 0.0
  %3742 = vmatpush.msra.mxu0 0.0
  %3743 = vmatpush.msra.mxu0 0.0
  %3744 = vmatpush.msra.mxu0 0.0
  %3745 = vmatpush.msra.mxu0 0.0
  %3746 = vmatpush.msra.mxu0 0.0
  %3747 = vmatpush.msra.mxu0 0.0
  %3748 = vmatpush.msra.mxu0 0.0
  %3749 = vmatpush.msra.mxu0 0.0
  %3750 = vmatpush.msra.mxu0 0.0
  %3751 = vmatpush.msra.mxu0 0.0
  %3752 = vmatpush.msra.mxu0 %v3561
  %3753 = vmatmul.f32.gmra.mxu0 %v3595
  %v3754 = vpop.f32.mrf.mxu0
  %v3755 = vadd.f32 0.0, %v3754
  %3756 = vdwg.mxu0
  %3757 = vmatpush.msra.mxu0 0.0
  %3758 = vmatpush.msra.mxu0 0.0
  %3759 = vmatpush.msra.mxu0 0.0
  %3760 = vmatpush.msra.mxu0 0.0
  %3761 = vmatpush.msra.mxu0 0.0
  %3762 = vmatpush.msra.mxu0 0.0
  %3763 = vmatpush.msra.mxu0 0.0
  %3764 = vmatpush.msra.mxu0 0.0
  %3765 = vmatpush.msra.mxu0 0.0
  %3766 = vmatpush.msra.mxu0 0.0
  %3767 = vmatpush.msra.mxu0 0.0
  %3768 = vmatpush.msra.mxu0 0.0
  %3769 = vmatpush.msra.mxu0 0.0
  %3770 = vmatpush.msra.mxu0 0.0
  %3771 = vmatpush.msra.mxu0 0.0
  %3772 = vmatpush.msra.mxu0 %v3562
  %3773 = vmatmul.f32.gmra.mxu0 %v3595
  %v3774 = vpop.f32.mrf.mxu0
  %v3775 = vadd.f32 0.0, %v3774
  %3776 = vdwg.mxu0
  %3777 = vmatpush.msra.mxu0 0.0
  %3778 = vmatpush.msra.mxu0 0.0
  %3779 = vmatpush.msra.mxu0 0.0
  %3780 = vmatpush.msra.mxu0 0.0
  %3781 = vmatpush.msra.mxu0 0.0
  %3782 = vmatpush.msra.mxu0 0.0
  %3783 = vmatpush.msra.mxu0 0.0
  %3784 = vmatpush.msra.mxu0 0.0
  %3785 = vmatpush.msra.mxu0 0.0
  %3786 = vmatpush.msra.mxu0 0.0
  %3787 = vmatpush.msra.mxu0 0.0
  %3788 = vmatpush.msra.mxu0 0.0
  %3789 = vmatpush.msra.mxu0 0.0
  %3790 = vmatpush.msra.mxu0 0.0
  %3791 = vmatpush.msra.mxu0 0.0
  %3792 = vmatpush.msra.mxu0 %v3563
  %3793 = vmatmul.f32.gmra.mxu0 %v3595
  %v3794 = vpop.f32.mrf.mxu0
  %v3795 = vadd.f32 0.0, %v3794
  %3796 = vdwg.mxu0
  %3797 = vmatpush.msra.mxu0 0.0
  %3798 = vmatpush.msra.mxu0 0.0
  %3799 = vmatpush.msra.mxu0 0.0
  %3800 = vmatpush.msra.mxu0 0.0
  %3801 = vmatpush.msra.mxu0 0.0
  %3802 = vmatpush.msra.mxu0 0.0
  %3803 = vmatpush.msra.mxu0 0.0
  %3804 = vmatpush.msra.mxu0 0.0
  %3805 = vmatpush.msra.mxu0 0.0
  %3806 = vmatpush.msra.mxu0 0.0
  %3807 = vmatpush.msra.mxu0 0.0
  %3808 = vmatpush.msra.mxu0 0.0
  %3809 = vmatpush.msra.mxu0 0.0
  %3810 = vmatpush.msra.mxu0 0.0
  %3811 = vmatpush.msra.mxu0 0.0
  %3812 = vmatpush.msra.mxu0 %v3564
  %3813 = vmatmul.f32.gmra.mxu0 %v3595
  %v3814 = vpop.f32.mrf.mxu0
  %v3815 = vadd.f32 0.0, %v3814
  %3816 = vdwg.mxu0
  %3817 = vmatpush.msra.mxu0 0.0
  %3818 = vmatpush.msra.mxu0 0.0
  %3819 = vmatpush.msra.mxu0 0.0
  %3820 = vmatpush.msra.mxu0 0.0
  %3821 = vmatpush.msra.mxu0 0.0
  %3822 = vmatpush.msra.mxu0 0.0
  %3823 = vmatpush.msra.mxu0 0.0
  %3824 = vmatpush.msra.mxu0 0.0
  %3825 = vmatpush.msra.mxu0 0.0
  %3826 = vmatpush.msra.mxu0 0.0
  %3827 = vmatpush.msra.mxu0 0.0
  %3828 = vmatpush.msra.mxu0 0.0
  %3829 = vmatpush.msra.mxu0 0.0
  %3830 = vmatpush.msra.mxu0 0.0
  %3831 = vmatpush.msra.mxu0 0.0
  %3832 = vmatpush.msra.mxu0 %v3565
  %3833 = vmatmul.f32.gmra.mxu0 %v3595
  %v3834 = vpop.f32.mrf.mxu0
  %v3835 = vadd.f32 0.0, %v3834
  %3836 = vdwg.mxu0
  %3837 = vmatpush.msra.mxu0 0.0
  %3838 = vmatpush.msra.mxu0 0.0
  %3839 = vmatpush.msra.mxu0 0.0
  %3840 = vmatpush.msra.mxu0 0.0
  %3841 = vmatpush.msra.mxu0 0.0
  %3842 = vmatpush.msra.mxu0 0.0
  %3843 = vmatpush.msra.mxu0 0.0
  %3844 = vmatpush.msra.mxu0 0.0
  %3845 = vmatpush.msra.mxu0 0.0
  %3846 = vmatpush.msra.mxu0 0.0
  %3847 = vmatpush.msra.mxu0 0.0
  %3848 = vmatpush.msra.mxu0 0.0
  %3849 = vmatpush.msra.mxu0 0.0
  %3850 = vmatpush.msra.mxu0 0.0
  %3851 = vmatpush.msra.mxu0 0.0
  %3852 = vmatpush.msra.mxu0 %v3566
  %3853 = vmatmul.f32.gmra.mxu0 %v3595
  %v3854 = vpop.f32.mrf.mxu0
  %v3855 = vadd.f32 0.0, %v3854
  %3856 = vdwg.mxu0
  %3857 = vmatpush.msra.mxu0 0.0
  %3858 = vmatpush.msra.mxu0 0.0
  %3859 = vmatpush.msra.mxu0 0.0
  %3860 = vmatpush.msra.mxu0 0.0
  %3861 = vmatpush.msra.mxu0 0.0
  %3862 = vmatpush.msra.mxu0 0.0
  %3863 = vmatpush.msra.mxu0 0.0
  %3864 = vmatpush.msra.mxu0 0.0
  %3865 = vmatpush.msra.mxu0 0.0
  %3866 = vmatpush.msra.mxu0 0.0
  %3867 = vmatpush.msra.mxu0 0.0
  %3868 = vmatpush.msra.mxu0 0.0
  %3869 = vmatpush.msra.mxu0 0.0
  %3870 = vmatpush.msra.mxu0 0.0
  %3871 = vmatpush.msra.mxu0 0.0
  %3872 = vmatpush.msra.mxu0 %v3567
  %3873 = vmatmul.f32.gmra.mxu0 %v3595
  %v3874 = vpop.f32.mrf.mxu0
  %v3875 = vadd.f32 0.0, %v3874
  %3876 = vdwg.mxu0
  %3877 = vmatpush.msra.mxu0 0.0
  %3878 = vmatpush.msra.mxu0 0.0
  %3879 = vmatpush.msra.mxu0 0.0
  %3880 = vmatpush.msra.mxu0 0.0
  %3881 = vmatpush.msra.mxu0 0.0
  %3882 = vmatpush.msra.mxu0 0.0
  %3883 = vmatpush.msra.mxu0 0.0
  %3884 = vmatpush.msra.mxu0 0.0
  %3885 = vmatpush.msra.mxu0 0.0
  %3886 = vmatpush.msra.mxu0 0.0
  %3887 = vmatpush.msra.mxu0 0.0
  %3888 = vmatpush.msra.mxu0 0.0
  %3889 = vmatpush.msra.mxu0 0.0
  %3890 = vmatpush.msra.mxu0 0.0
  %3891 = vmatpush.msra.mxu0 0.0
  %3892 = vmatpush.msra.mxu0 %v3568
  %3893 = vmatmul.f32.gmra.mxu0 %v3595
  %v3894 = vpop.f32.mrf.mxu0
  %v3895 = vadd.f32 0.0, %v3894
  %3896 = vdwg.mxu0
  %3897 = vmatpush.msra.mxu0 0.0
  %3898 = vmatpush.msra.mxu0 0.0
  %3899 = vmatpush.msra.mxu0 0.0
  %3900 = vmatpush.msra.mxu0 0.0
  %3901 = vmatpush.msra.mxu0 0.0
  %3902 = vmatpush.msra.mxu0 0.0
  %3903 = vmatpush.msra.mxu0 0.0
  %3904 = vmatpush.msra.mxu0 0.0
  %3905 = vmatpush.msra.mxu0 0.0
  %3906 = vmatpush.msra.mxu0 0.0
  %3907 = vmatpush.msra.mxu0 0.0
  %3908 = vmatpush.msra.mxu0 0.0
  %3909 = vmatpush.msra.mxu0 0.0
  %3910 = vmatpush.msra.mxu0 0.0
  %3911 = vmatpush.msra.mxu0 0.0
  %3912 = vmatpush.msra.mxu0 %v3569
  %3913 = vmatmul.f32.gmra.mxu0 %v3595
  %v3914 = vpop.f32.mrf.mxu0
  %v3915 = vadd.f32 0.0, %v3914
  %3916 = vdwg.mxu0
  %3917 = vmatpush.msra.mxu0 0.0
  %3918 = vmatpush.msra.mxu0 0.0
  %3919 = vmatpush.msra.mxu0 0.0
  %3920 = vmatpush.msra.mxu0 0.0
  %3921 = vmatpush.msra.mxu0 0.0
  %3922 = vmatpush.msra.mxu0 0.0
  %3923 = vmatpush.msra.mxu0 0.0
  %3924 = vmatpush.msra.mxu0 0.0
  %3925 = vmatpush.msra.mxu0 0.0
  %3926 = vmatpush.msra.mxu0 0.0
  %3927 = vmatpush.msra.mxu0 0.0
  %3928 = vmatpush.msra.mxu0 0.0
  %3929 = vmatpush.msra.mxu0 0.0
  %3930 = vmatpush.msra.mxu0 0.0
  %3931 = vmatpush.msra.mxu0 0.0
  %3932 = vmatpush.msra.mxu0 %v3570
  %3933 = vmatmul.f32.gmra.mxu0 %v3595
  %v3934 = vpop.f32.mrf.mxu0
  %v3935 = vadd.f32 0.0, %v3934
  %3936 = vdwg.mxu0
  %3937 = vmatpush.msra.mxu0 0.0
  %3938 = vmatpush.msra.mxu0 0.0
  %3939 = vmatpush.msra.mxu0 0.0
  %3940 = vmatpush.msra.mxu0 0.0
  %3941 = vmatpush.msra.mxu0 0.0
  %3942 = vmatpush.msra.mxu0 0.0
  %3943 = vmatpush.msra.mxu0 0.0
  %3944 = vmatpush.msra.mxu0 0.0
  %3945 = vmatpush.msra.mxu0 0.0
  %3946 = vmatpush.msra.mxu0 0.0
  %3947 = vmatpush.msra.mxu0 0.0
  %3948 = vmatpush.msra.mxu0 0.0
  %3949 = vmatpush.msra.mxu0 0.0
  %3950 = vmatpush.msra.mxu0 0.0
  %3951 = vmatpush.msra.mxu0 0.0
  %3952 = vmatpush.msra.mxu0 %v3571
  %3953 = vmatmul.f32.gmra.mxu0 %v3595
  %v3954 = vpop.f32.mrf.mxu0
  %v3955 = vadd.f32 0.0, %v3954
  %3956 = vdwg.mxu0
  %3957 = vmatpush.msra.mxu0 0.0
  %3958 = vmatpush.msra.mxu0 0.0
  %3959 = vmatpush.msra.mxu0 0.0
  %3960 = vmatpush.msra.mxu0 0.0
  %3961 = vmatpush.msra.mxu0 0.0
  %3962 = vmatpush.msra.mxu0 0.0
  %3963 = vmatpush.msra.mxu0 0.0
  %3964 = vmatpush.msra.mxu0 0.0
  %3965 = vmatpush.msra.mxu0 0.0
  %3966 = vmatpush.msra.mxu0 0.0
  %3967 = vmatpush.msra.mxu0 0.0
  %3968 = vmatpush.msra.mxu0 0.0
  %3969 = vmatpush.msra.mxu0 0.0
  %3970 = vmatpush.msra.mxu0 0.0
  %3971 = vmatpush.msra.mxu0 0.0
  %3972 = vmatpush.msra.mxu0 %v3572
  %3973 = vmatmul.f32.gmra.mxu0 %v3595
  %v3974 = vpop.f32.mrf.mxu0
  %v3975 = vadd.f32 0.0, %v3974
  %3976 = vdwg.mxu0
  %3977 = vmatpush.msra.mxu0 0.0
  %3978 = vmatpush.msra.mxu0 0.0
  %3979 = vmatpush.msra.mxu0 0.0
  %3980 = vmatpush.msra.mxu0 0.0
  %3981 = vmatpush.msra.mxu0 0.0
  %3982 = vmatpush.msra.mxu0 0.0
  %3983 = vmatpush.msra.mxu0 0.0
  %3984 = vmatpush.msra.mxu0 0.0
  %3985 = vmatpush.msra.mxu0 0.0
  %3986 = vmatpush.msra.mxu0 0.0
  %3987 = vmatpush.msra.mxu0 0.0
  %3988 = vmatpush.msra.mxu0 0.0
  %3989 = vmatpush.msra.mxu0 0.0
  %3990 = vmatpush.msra.mxu0 0.0
  %3991 = vmatpush.msra.mxu0 0.0
  %3992 = vmatpush.msra.mxu0 %v3573
  %3993 = vmatmul.f32.gmra.mxu0 %v3595
  %v3994 = vpop.f32.mrf.mxu0
  %v3995 = vadd.f32 0.0, %v3994
  %3996 = vdwg.mxu0
  %v3997 = vadd.f32 %v3489, %v3615
  %v3998 = vadd.f32 %v3490, %v3635
  %v3999 = vadd.f32 %v3491, %v3655
  %v4000 = vadd.f32 %v3492, %v3675
  %v4001 = vadd.f32 %v3493, %v3695
  %v4002 = vadd.f32 %v3494, %v3715
  %v4003 = vadd.f32 %v3495, %v3735
  %v4004 = vadd.f32 %v3496, %v3755
  %v4005 = vadd.f32 %v3497, %v3775
  %v4006 = vadd.f32 %v3498, %v3795
  %v4007 = vadd.f32 %v3499, %v3815
  %v4008 = vadd.f32 %v3500, %v3835
  %v4009 = vadd.f32 %v3501, %v3855
  %v4010 = vadd.f32 %v3502, %v3875
  %v4011 = vadd.f32 %v3503, %v3895
  %v4012 = vadd.f32 %v3504, %v3915
  %v4013 = vadd.f32 %v3505, %v3935
  %v4014 = vadd.f32 %v3506, %v3955
  %v4015 = vadd.f32 %v3507, %v3975
  %v4016 = vadd.f32 %v3508, %v3995
  %s4017 = scalar_lea.vmem %s0, 64
  %v4018 = vld [vmem:[%s4017] sm:$0xff]
  %4019 = vrot.lane.b32.xlu0 %v35, 58
  %v4020 = vpop.permute.xlu0 %4019
  %4021 = vrot.lane.b32.xlu0 %v36, 58
  %v4022 = vpop.permute.xlu0 %4021
  %4023 = vrot.lane.b32.xlu0 %v37, 58
  %v4024 = vpop.permute.xlu0 %4023
  %4025 = vrot.lane.b32.xlu0 %v38, 58
  %v4026 = vpop.permute.xlu0 %4025
  %4027 = vrot.lane.b32.xlu0 %v39, 58
  %v4028 = vpop.permute.xlu0 %4027
  %4029 = vrot.lane.b32.xlu0 %v40, 58
  %v4030 = vpop.permute.xlu0 %4029
  %4031 = vrot.lane.b32.xlu0 %v41, 58
  %v4032 = vpop.permute.xlu0 %4031
  %4033 = vrot.lane.b32.xlu0 %v42, 58
  %v4034 = vpop.permute.xlu0 %4033
  %4035 = vrot.lane.b32.xlu0 %v43, 58
  %v4036 = vpop.permute.xlu0 %4035
  %4037 = vrot.lane.b32.xlu0 %v44, 58
  %v4038 = vpop.permute.xlu0 %4037
  %4039 = vrot.lane.b32.xlu0 %v45, 58
  %v4040 = vpop.permute.xlu0 %4039
  %4041 = vrot.lane.b32.xlu0 %v46, 58
  %v4042 = vpop.permute.xlu0 %4041
  %4043 = vrot.lane.b32.xlu0 %v47, 58
  %v4044 = vpop.permute.xlu0 %4043
  %4045 = vrot.lane.b32.xlu0 %v48, 58
  %v4046 = vpop.permute.xlu0 %4045
  %4047 = vrot.lane.b32.xlu0 %v49, 58
  %v4048 = vpop.permute.xlu0 %4047
  %4049 = vrot.lane.b32.xlu0 %v50, 58
  %v4050 = vpop.permute.xlu0 %4049
  %4051 = vrot.lane.b32.xlu0 %v51, 58
  %v4052 = vpop.permute.xlu0 %4051
  %4053 = vrot.lane.b32.xlu0 %v52, 58
  %v4054 = vpop.permute.xlu0 %4053
  %4055 = vrot.lane.b32.xlu0 %v53, 58
  %v4056 = vpop.permute.xlu0 %4055
  %4057 = vrot.lane.b32.xlu0 %v54, 58
  %v4058 = vpop.permute.xlu0 %4057
  %4059 = vrot.lane.b32.xlu0 %v55, 58
  %v4060 = vpop.permute.xlu0 %4059
  %vm4061 = vcmask 474112
  %v4062 = vsel %vm4061, %v4020, %v4022
  %v4063 = vsel %vm4061, %v4022, %v4024
  %v4064 = vsel %vm4061, %v4024, %v4026
  %v4065 = vsel %vm4061, %v4026, %v4028
  %v4066 = vsel %vm4061, %v4028, %v4030
  %v4067 = vsel %vm4061, %v4030, %v4032
  %v4068 = vsel %vm4061, %v4032, %v4034
  %v4069 = vsel %vm4061, %v4034, %v4036
  %v4070 = vsel %vm4061, %v4036, %v4038
  %v4071 = vsel %vm4061, %v4038, %v4040
  %v4072 = vsel %vm4061, %v4040, %v4042
  %v4073 = vsel %vm4061, %v4042, %v4044
  %v4074 = vsel %vm4061, %v4044, %v4046
  %v4075 = vsel %vm4061, %v4046, %v4048
  %v4076 = vsel %vm4061, %v4048, %v4050
  %v4077 = vsel %vm4061, %v4050, %v4052
  %v4078 = vsel %vm4061, %v4052, %v4054
  %v4079 = vsel %vm4061, %v4054, %v4056
  %v4080 = vsel %vm4061, %v4056, %v4058
  %v4081 = vsel %vm4061, %v4058, %v4060
  %v4103 = vsel %vm162, %v4018, 0
  %4105 = vmatpush.msra.mxu0 0.0
  %4106 = vmatpush.msra.mxu0 0.0
  %4107 = vmatpush.msra.mxu0 0.0
  %4108 = vmatpush.msra.mxu0 0.0
  %4109 = vmatpush.msra.mxu0 0.0
  %4110 = vmatpush.msra.mxu0 0.0
  %4111 = vmatpush.msra.mxu0 0.0
  %4112 = vmatpush.msra.mxu0 0.0
  %4113 = vmatpush.msra.mxu0 0.0
  %4114 = vmatpush.msra.mxu0 0.0
  %4115 = vmatpush.msra.mxu0 0.0
  %4116 = vmatpush.msra.mxu0 0.0
  %4117 = vmatpush.msra.mxu0 0.0
  %4118 = vmatpush.msra.mxu0 0.0
  %4119 = vmatpush.msra.mxu0 0.0
  %4120 = vmatpush.msra.mxu0 %v4062
  %4121 = vmatmul.f32.gmra.mxu0 %v4103
  %v4122 = vpop.f32.mrf.mxu0
  %v4123 = vadd.f32 0.0, %v4122
  %4124 = vdwg.mxu0
  %4125 = vmatpush.msra.mxu0 0.0
  %4126 = vmatpush.msra.mxu0 0.0
  %4127 = vmatpush.msra.mxu0 0.0
  %4128 = vmatpush.msra.mxu0 0.0
  %4129 = vmatpush.msra.mxu0 0.0
  %4130 = vmatpush.msra.mxu0 0.0
  %4131 = vmatpush.msra.mxu0 0.0
  %4132 = vmatpush.msra.mxu0 0.0
  %4133 = vmatpush.msra.mxu0 0.0
  %4134 = vmatpush.msra.mxu0 0.0
  %4135 = vmatpush.msra.mxu0 0.0
  %4136 = vmatpush.msra.mxu0 0.0
  %4137 = vmatpush.msra.mxu0 0.0
  %4138 = vmatpush.msra.mxu0 0.0
  %4139 = vmatpush.msra.mxu0 0.0
  %4140 = vmatpush.msra.mxu0 %v4063
  %4141 = vmatmul.f32.gmra.mxu0 %v4103
  %v4142 = vpop.f32.mrf.mxu0
  %v4143 = vadd.f32 0.0, %v4142
  %4144 = vdwg.mxu0
  %4145 = vmatpush.msra.mxu0 0.0
  %4146 = vmatpush.msra.mxu0 0.0
  %4147 = vmatpush.msra.mxu0 0.0
  %4148 = vmatpush.msra.mxu0 0.0
  %4149 = vmatpush.msra.mxu0 0.0
  %4150 = vmatpush.msra.mxu0 0.0
  %4151 = vmatpush.msra.mxu0 0.0
  %4152 = vmatpush.msra.mxu0 0.0
  %4153 = vmatpush.msra.mxu0 0.0
  %4154 = vmatpush.msra.mxu0 0.0
  %4155 = vmatpush.msra.mxu0 0.0
  %4156 = vmatpush.msra.mxu0 0.0
  %4157 = vmatpush.msra.mxu0 0.0
  %4158 = vmatpush.msra.mxu0 0.0
  %4159 = vmatpush.msra.mxu0 0.0
  %4160 = vmatpush.msra.mxu0 %v4064
  %4161 = vmatmul.f32.gmra.mxu0 %v4103
  %v4162 = vpop.f32.mrf.mxu0
  %v4163 = vadd.f32 0.0, %v4162
  %4164 = vdwg.mxu0
  %4165 = vmatpush.msra.mxu0 0.0
  %4166 = vmatpush.msra.mxu0 0.0
  %4167 = vmatpush.msra.mxu0 0.0
  %4168 = vmatpush.msra.mxu0 0.0
  %4169 = vmatpush.msra.mxu0 0.0
  %4170 = vmatpush.msra.mxu0 0.0
  %4171 = vmatpush.msra.mxu0 0.0
  %4172 = vmatpush.msra.mxu0 0.0
  %4173 = vmatpush.msra.mxu0 0.0
  %4174 = vmatpush.msra.mxu0 0.0
  %4175 = vmatpush.msra.mxu0 0.0
  %4176 = vmatpush.msra.mxu0 0.0
  %4177 = vmatpush.msra.mxu0 0.0
  %4178 = vmatpush.msra.mxu0 0.0
  %4179 = vmatpush.msra.mxu0 0.0
  %4180 = vmatpush.msra.mxu0 %v4065
  %4181 = vmatmul.f32.gmra.mxu0 %v4103
  %v4182 = vpop.f32.mrf.mxu0
  %v4183 = vadd.f32 0.0, %v4182
  %4184 = vdwg.mxu0
  %4185 = vmatpush.msra.mxu0 0.0
  %4186 = vmatpush.msra.mxu0 0.0
  %4187 = vmatpush.msra.mxu0 0.0
  %4188 = vmatpush.msra.mxu0 0.0
  %4189 = vmatpush.msra.mxu0 0.0
  %4190 = vmatpush.msra.mxu0 0.0
  %4191 = vmatpush.msra.mxu0 0.0
  %4192 = vmatpush.msra.mxu0 0.0
  %4193 = vmatpush.msra.mxu0 0.0
  %4194 = vmatpush.msra.mxu0 0.0
  %4195 = vmatpush.msra.mxu0 0.0
  %4196 = vmatpush.msra.mxu0 0.0
  %4197 = vmatpush.msra.mxu0 0.0
  %4198 = vmatpush.msra.mxu0 0.0
  %4199 = vmatpush.msra.mxu0 0.0
  %4200 = vmatpush.msra.mxu0 %v4066
  %4201 = vmatmul.f32.gmra.mxu0 %v4103
  %v4202 = vpop.f32.mrf.mxu0
  %v4203 = vadd.f32 0.0, %v4202
  %4204 = vdwg.mxu0
  %4205 = vmatpush.msra.mxu0 0.0
  %4206 = vmatpush.msra.mxu0 0.0
  %4207 = vmatpush.msra.mxu0 0.0
  %4208 = vmatpush.msra.mxu0 0.0
  %4209 = vmatpush.msra.mxu0 0.0
  %4210 = vmatpush.msra.mxu0 0.0
  %4211 = vmatpush.msra.mxu0 0.0
  %4212 = vmatpush.msra.mxu0 0.0
  %4213 = vmatpush.msra.mxu0 0.0
  %4214 = vmatpush.msra.mxu0 0.0
  %4215 = vmatpush.msra.mxu0 0.0
  %4216 = vmatpush.msra.mxu0 0.0
  %4217 = vmatpush.msra.mxu0 0.0
  %4218 = vmatpush.msra.mxu0 0.0
  %4219 = vmatpush.msra.mxu0 0.0
  %4220 = vmatpush.msra.mxu0 %v4067
  %4221 = vmatmul.f32.gmra.mxu0 %v4103
  %v4222 = vpop.f32.mrf.mxu0
  %v4223 = vadd.f32 0.0, %v4222
  %4224 = vdwg.mxu0
  %4225 = vmatpush.msra.mxu0 0.0
  %4226 = vmatpush.msra.mxu0 0.0
  %4227 = vmatpush.msra.mxu0 0.0
  %4228 = vmatpush.msra.mxu0 0.0
  %4229 = vmatpush.msra.mxu0 0.0
  %4230 = vmatpush.msra.mxu0 0.0
  %4231 = vmatpush.msra.mxu0 0.0
  %4232 = vmatpush.msra.mxu0 0.0
  %4233 = vmatpush.msra.mxu0 0.0
  %4234 = vmatpush.msra.mxu0 0.0
  %4235 = vmatpush.msra.mxu0 0.0
  %4236 = vmatpush.msra.mxu0 0.0
  %4237 = vmatpush.msra.mxu0 0.0
  %4238 = vmatpush.msra.mxu0 0.0
  %4239 = vmatpush.msra.mxu0 0.0
  %4240 = vmatpush.msra.mxu0 %v4068
  %4241 = vmatmul.f32.gmra.mxu0 %v4103
  %v4242 = vpop.f32.mrf.mxu0
  %v4243 = vadd.f32 0.0, %v4242
  %4244 = vdwg.mxu0
  %4245 = vmatpush.msra.mxu0 0.0
  %4246 = vmatpush.msra.mxu0 0.0
  %4247 = vmatpush.msra.mxu0 0.0
  %4248 = vmatpush.msra.mxu0 0.0
  %4249 = vmatpush.msra.mxu0 0.0
  %4250 = vmatpush.msra.mxu0 0.0
  %4251 = vmatpush.msra.mxu0 0.0
  %4252 = vmatpush.msra.mxu0 0.0
  %4253 = vmatpush.msra.mxu0 0.0
  %4254 = vmatpush.msra.mxu0 0.0
  %4255 = vmatpush.msra.mxu0 0.0
  %4256 = vmatpush.msra.mxu0 0.0
  %4257 = vmatpush.msra.mxu0 0.0
  %4258 = vmatpush.msra.mxu0 0.0
  %4259 = vmatpush.msra.mxu0 0.0
  %4260 = vmatpush.msra.mxu0 %v4069
  %4261 = vmatmul.f32.gmra.mxu0 %v4103
  %v4262 = vpop.f32.mrf.mxu0
  %v4263 = vadd.f32 0.0, %v4262
  %4264 = vdwg.mxu0
  %4265 = vmatpush.msra.mxu0 0.0
  %4266 = vmatpush.msra.mxu0 0.0
  %4267 = vmatpush.msra.mxu0 0.0
  %4268 = vmatpush.msra.mxu0 0.0
  %4269 = vmatpush.msra.mxu0 0.0
  %4270 = vmatpush.msra.mxu0 0.0
  %4271 = vmatpush.msra.mxu0 0.0
  %4272 = vmatpush.msra.mxu0 0.0
  %4273 = vmatpush.msra.mxu0 0.0
  %4274 = vmatpush.msra.mxu0 0.0
  %4275 = vmatpush.msra.mxu0 0.0
  %4276 = vmatpush.msra.mxu0 0.0
  %4277 = vmatpush.msra.mxu0 0.0
  %4278 = vmatpush.msra.mxu0 0.0
  %4279 = vmatpush.msra.mxu0 0.0
  %4280 = vmatpush.msra.mxu0 %v4070
  %4281 = vmatmul.f32.gmra.mxu0 %v4103
  %v4282 = vpop.f32.mrf.mxu0
  %v4283 = vadd.f32 0.0, %v4282
  %4284 = vdwg.mxu0
  %4285 = vmatpush.msra.mxu0 0.0
  %4286 = vmatpush.msra.mxu0 0.0
  %4287 = vmatpush.msra.mxu0 0.0
  %4288 = vmatpush.msra.mxu0 0.0
  %4289 = vmatpush.msra.mxu0 0.0
  %4290 = vmatpush.msra.mxu0 0.0
  %4291 = vmatpush.msra.mxu0 0.0
  %4292 = vmatpush.msra.mxu0 0.0
  %4293 = vmatpush.msra.mxu0 0.0
  %4294 = vmatpush.msra.mxu0 0.0
  %4295 = vmatpush.msra.mxu0 0.0
  %4296 = vmatpush.msra.mxu0 0.0
  %4297 = vmatpush.msra.mxu0 0.0
  %4298 = vmatpush.msra.mxu0 0.0
  %4299 = vmatpush.msra.mxu0 0.0
  %4300 = vmatpush.msra.mxu0 %v4071
  %4301 = vmatmul.f32.gmra.mxu0 %v4103
  %v4302 = vpop.f32.mrf.mxu0
  %v4303 = vadd.f32 0.0, %v4302
  %4304 = vdwg.mxu0
  %4305 = vmatpush.msra.mxu0 0.0
  %4306 = vmatpush.msra.mxu0 0.0
  %4307 = vmatpush.msra.mxu0 0.0
  %4308 = vmatpush.msra.mxu0 0.0
  %4309 = vmatpush.msra.mxu0 0.0
  %4310 = vmatpush.msra.mxu0 0.0
  %4311 = vmatpush.msra.mxu0 0.0
  %4312 = vmatpush.msra.mxu0 0.0
  %4313 = vmatpush.msra.mxu0 0.0
  %4314 = vmatpush.msra.mxu0 0.0
  %4315 = vmatpush.msra.mxu0 0.0
  %4316 = vmatpush.msra.mxu0 0.0
  %4317 = vmatpush.msra.mxu0 0.0
  %4318 = vmatpush.msra.mxu0 0.0
  %4319 = vmatpush.msra.mxu0 0.0
  %4320 = vmatpush.msra.mxu0 %v4072
  %4321 = vmatmul.f32.gmra.mxu0 %v4103
  %v4322 = vpop.f32.mrf.mxu0
  %v4323 = vadd.f32 0.0, %v4322
  %4324 = vdwg.mxu0
  %4325 = vmatpush.msra.mxu0 0.0
  %4326 = vmatpush.msra.mxu0 0.0
  %4327 = vmatpush.msra.mxu0 0.0
  %4328 = vmatpush.msra.mxu0 0.0
  %4329 = vmatpush.msra.mxu0 0.0
  %4330 = vmatpush.msra.mxu0 0.0
  %4331 = vmatpush.msra.mxu0 0.0
  %4332 = vmatpush.msra.mxu0 0.0
  %4333 = vmatpush.msra.mxu0 0.0
  %4334 = vmatpush.msra.mxu0 0.0
  %4335 = vmatpush.msra.mxu0 0.0
  %4336 = vmatpush.msra.mxu0 0.0
  %4337 = vmatpush.msra.mxu0 0.0
  %4338 = vmatpush.msra.mxu0 0.0
  %4339 = vmatpush.msra.mxu0 0.0
  %4340 = vmatpush.msra.mxu0 %v4073
  %4341 = vmatmul.f32.gmra.mxu0 %v4103
  %v4342 = vpop.f32.mrf.mxu0
  %v4343 = vadd.f32 0.0, %v4342
  %4344 = vdwg.mxu0
  %4345 = vmatpush.msra.mxu0 0.0
  %4346 = vmatpush.msra.mxu0 0.0
  %4347 = vmatpush.msra.mxu0 0.0
  %4348 = vmatpush.msra.mxu0 0.0
  %4349 = vmatpush.msra.mxu0 0.0
  %4350 = vmatpush.msra.mxu0 0.0
  %4351 = vmatpush.msra.mxu0 0.0
  %4352 = vmatpush.msra.mxu0 0.0
  %4353 = vmatpush.msra.mxu0 0.0
  %4354 = vmatpush.msra.mxu0 0.0
  %4355 = vmatpush.msra.mxu0 0.0
  %4356 = vmatpush.msra.mxu0 0.0
  %4357 = vmatpush.msra.mxu0 0.0
  %4358 = vmatpush.msra.mxu0 0.0
  %4359 = vmatpush.msra.mxu0 0.0
  %4360 = vmatpush.msra.mxu0 %v4074
  %4361 = vmatmul.f32.gmra.mxu0 %v4103
  %v4362 = vpop.f32.mrf.mxu0
  %v4363 = vadd.f32 0.0, %v4362
  %4364 = vdwg.mxu0
  %4365 = vmatpush.msra.mxu0 0.0
  %4366 = vmatpush.msra.mxu0 0.0
  %4367 = vmatpush.msra.mxu0 0.0
  %4368 = vmatpush.msra.mxu0 0.0
  %4369 = vmatpush.msra.mxu0 0.0
  %4370 = vmatpush.msra.mxu0 0.0
  %4371 = vmatpush.msra.mxu0 0.0
  %4372 = vmatpush.msra.mxu0 0.0
  %4373 = vmatpush.msra.mxu0 0.0
  %4374 = vmatpush.msra.mxu0 0.0
  %4375 = vmatpush.msra.mxu0 0.0
  %4376 = vmatpush.msra.mxu0 0.0
  %4377 = vmatpush.msra.mxu0 0.0
  %4378 = vmatpush.msra.mxu0 0.0
  %4379 = vmatpush.msra.mxu0 0.0
  %4380 = vmatpush.msra.mxu0 %v4075
  %4381 = vmatmul.f32.gmra.mxu0 %v4103
  %v4382 = vpop.f32.mrf.mxu0
  %v4383 = vadd.f32 0.0, %v4382
  %4384 = vdwg.mxu0
  %4385 = vmatpush.msra.mxu0 0.0
  %4386 = vmatpush.msra.mxu0 0.0
  %4387 = vmatpush.msra.mxu0 0.0
  %4388 = vmatpush.msra.mxu0 0.0
  %4389 = vmatpush.msra.mxu0 0.0
  %4390 = vmatpush.msra.mxu0 0.0
  %4391 = vmatpush.msra.mxu0 0.0
  %4392 = vmatpush.msra.mxu0 0.0
  %4393 = vmatpush.msra.mxu0 0.0
  %4394 = vmatpush.msra.mxu0 0.0
  %4395 = vmatpush.msra.mxu0 0.0
  %4396 = vmatpush.msra.mxu0 0.0
  %4397 = vmatpush.msra.mxu0 0.0
  %4398 = vmatpush.msra.mxu0 0.0
  %4399 = vmatpush.msra.mxu0 0.0
  %4400 = vmatpush.msra.mxu0 %v4076
  %4401 = vmatmul.f32.gmra.mxu0 %v4103
  %v4402 = vpop.f32.mrf.mxu0
  %v4403 = vadd.f32 0.0, %v4402
  %4404 = vdwg.mxu0
  %4405 = vmatpush.msra.mxu0 0.0
  %4406 = vmatpush.msra.mxu0 0.0
  %4407 = vmatpush.msra.mxu0 0.0
  %4408 = vmatpush.msra.mxu0 0.0
  %4409 = vmatpush.msra.mxu0 0.0
  %4410 = vmatpush.msra.mxu0 0.0
  %4411 = vmatpush.msra.mxu0 0.0
  %4412 = vmatpush.msra.mxu0 0.0
  %4413 = vmatpush.msra.mxu0 0.0
  %4414 = vmatpush.msra.mxu0 0.0
  %4415 = vmatpush.msra.mxu0 0.0
  %4416 = vmatpush.msra.mxu0 0.0
  %4417 = vmatpush.msra.mxu0 0.0
  %4418 = vmatpush.msra.mxu0 0.0
  %4419 = vmatpush.msra.mxu0 0.0
  %4420 = vmatpush.msra.mxu0 %v4077
  %4421 = vmatmul.f32.gmra.mxu0 %v4103
  %v4422 = vpop.f32.mrf.mxu0
  %v4423 = vadd.f32 0.0, %v4422
  %4424 = vdwg.mxu0
  %4425 = vmatpush.msra.mxu0 0.0
  %4426 = vmatpush.msra.mxu0 0.0
  %4427 = vmatpush.msra.mxu0 0.0
  %4428 = vmatpush.msra.mxu0 0.0
  %4429 = vmatpush.msra.mxu0 0.0
  %4430 = vmatpush.msra.mxu0 0.0
  %4431 = vmatpush.msra.mxu0 0.0
  %4432 = vmatpush.msra.mxu0 0.0
  %4433 = vmatpush.msra.mxu0 0.0
  %4434 = vmatpush.msra.mxu0 0.0
  %4435 = vmatpush.msra.mxu0 0.0
  %4436 = vmatpush.msra.mxu0 0.0
  %4437 = vmatpush.msra.mxu0 0.0
  %4438 = vmatpush.msra.mxu0 0.0
  %4439 = vmatpush.msra.mxu0 0.0
  %4440 = vmatpush.msra.mxu0 %v4078
  %4441 = vmatmul.f32.gmra.mxu0 %v4103
  %v4442 = vpop.f32.mrf.mxu0
  %v4443 = vadd.f32 0.0, %v4442
  %4444 = vdwg.mxu0
  %4445 = vmatpush.msra.mxu0 0.0
  %4446 = vmatpush.msra.mxu0 0.0
  %4447 = vmatpush.msra.mxu0 0.0
  %4448 = vmatpush.msra.mxu0 0.0
  %4449 = vmatpush.msra.mxu0 0.0
  %4450 = vmatpush.msra.mxu0 0.0
  %4451 = vmatpush.msra.mxu0 0.0
  %4452 = vmatpush.msra.mxu0 0.0
  %4453 = vmatpush.msra.mxu0 0.0
  %4454 = vmatpush.msra.mxu0 0.0
  %4455 = vmatpush.msra.mxu0 0.0
  %4456 = vmatpush.msra.mxu0 0.0
  %4457 = vmatpush.msra.mxu0 0.0
  %4458 = vmatpush.msra.mxu0 0.0
  %4459 = vmatpush.msra.mxu0 0.0
  %4460 = vmatpush.msra.mxu0 %v4079
  %4461 = vmatmul.f32.gmra.mxu0 %v4103
  %v4462 = vpop.f32.mrf.mxu0
  %v4463 = vadd.f32 0.0, %v4462
  %4464 = vdwg.mxu0
  %4465 = vmatpush.msra.mxu0 0.0
  %4466 = vmatpush.msra.mxu0 0.0
  %4467 = vmatpush.msra.mxu0 0.0
  %4468 = vmatpush.msra.mxu0 0.0
  %4469 = vmatpush.msra.mxu0 0.0
  %4470 = vmatpush.msra.mxu0 0.0
  %4471 = vmatpush.msra.mxu0 0.0
  %4472 = vmatpush.msra.mxu0 0.0
  %4473 = vmatpush.msra.mxu0 0.0
  %4474 = vmatpush.msra.mxu0 0.0
  %4475 = vmatpush.msra.mxu0 0.0
  %4476 = vmatpush.msra.mxu0 0.0
  %4477 = vmatpush.msra.mxu0 0.0
  %4478 = vmatpush.msra.mxu0 0.0
  %4479 = vmatpush.msra.mxu0 0.0
  %4480 = vmatpush.msra.mxu0 %v4080
  %4481 = vmatmul.f32.gmra.mxu0 %v4103
  %v4482 = vpop.f32.mrf.mxu0
  %v4483 = vadd.f32 0.0, %v4482
  %4484 = vdwg.mxu0
  %4485 = vmatpush.msra.mxu0 0.0
  %4486 = vmatpush.msra.mxu0 0.0
  %4487 = vmatpush.msra.mxu0 0.0
  %4488 = vmatpush.msra.mxu0 0.0
  %4489 = vmatpush.msra.mxu0 0.0
  %4490 = vmatpush.msra.mxu0 0.0
  %4491 = vmatpush.msra.mxu0 0.0
  %4492 = vmatpush.msra.mxu0 0.0
  %4493 = vmatpush.msra.mxu0 0.0
  %4494 = vmatpush.msra.mxu0 0.0
  %4495 = vmatpush.msra.mxu0 0.0
  %4496 = vmatpush.msra.mxu0 0.0
  %4497 = vmatpush.msra.mxu0 0.0
  %4498 = vmatpush.msra.mxu0 0.0
  %4499 = vmatpush.msra.mxu0 0.0
  %4500 = vmatpush.msra.mxu0 %v4081
  %4501 = vmatmul.f32.gmra.mxu0 %v4103
  %v4502 = vpop.f32.mrf.mxu0
  %v4503 = vadd.f32 0.0, %v4502
  %4504 = vdwg.mxu0
  %v4505 = vadd.f32 %v3997, %v4123
  %v4506 = vadd.f32 %v3998, %v4143
  %v4507 = vadd.f32 %v3999, %v4163
  %v4508 = vadd.f32 %v4000, %v4183
  %v4509 = vadd.f32 %v4001, %v4203
  %v4510 = vadd.f32 %v4002, %v4223
  %v4511 = vadd.f32 %v4003, %v4243
  %v4512 = vadd.f32 %v4004, %v4263
  %v4513 = vadd.f32 %v4005, %v4283
  %v4514 = vadd.f32 %v4006, %v4303
  %v4515 = vadd.f32 %v4007, %v4323
  %v4516 = vadd.f32 %v4008, %v4343
  %v4517 = vadd.f32 %v4009, %v4363
  %v4518 = vadd.f32 %v4010, %v4383
  %v4519 = vadd.f32 %v4011, %v4403
  %v4520 = vadd.f32 %v4012, %v4423
  %v4521 = vadd.f32 %v4013, %v4443
  %v4522 = vadd.f32 %v4014, %v4463
  %v4523 = vadd.f32 %v4015, %v4483
  %v4524 = vadd.f32 %v4016, %v4503
  %s4525 = scalar_lea.vmem %s0, 72
  %v4526 = vld [vmem:[%s4525] sm:$0xff]
  %4527 = vrot.lane.b32.xlu0 %v35, 57
  %v4528 = vpop.permute.xlu0 %4527
  %4529 = vrot.lane.b32.xlu0 %v36, 57
  %v4530 = vpop.permute.xlu0 %4529
  %4531 = vrot.lane.b32.xlu0 %v37, 57
  %v4532 = vpop.permute.xlu0 %4531
  %4533 = vrot.lane.b32.xlu0 %v38, 57
  %v4534 = vpop.permute.xlu0 %4533
  %4535 = vrot.lane.b32.xlu0 %v39, 57
  %v4536 = vpop.permute.xlu0 %4535
  %4537 = vrot.lane.b32.xlu0 %v40, 57
  %v4538 = vpop.permute.xlu0 %4537
  %4539 = vrot.lane.b32.xlu0 %v41, 57
  %v4540 = vpop.permute.xlu0 %4539
  %4541 = vrot.lane.b32.xlu0 %v42, 57
  %v4542 = vpop.permute.xlu0 %4541
  %4543 = vrot.lane.b32.xlu0 %v43, 57
  %v4544 = vpop.permute.xlu0 %4543
  %4545 = vrot.lane.b32.xlu0 %v44, 57
  %v4546 = vpop.permute.xlu0 %4545
  %4547 = vrot.lane.b32.xlu0 %v45, 57
  %v4548 = vpop.permute.xlu0 %4547
  %4549 = vrot.lane.b32.xlu0 %v46, 57
  %v4550 = vpop.permute.xlu0 %4549
  %4551 = vrot.lane.b32.xlu0 %v47, 57
  %v4552 = vpop.permute.xlu0 %4551
  %4553 = vrot.lane.b32.xlu0 %v48, 57
  %v4554 = vpop.permute.xlu0 %4553
  %4555 = vrot.lane.b32.xlu0 %v49, 57
  %v4556 = vpop.permute.xlu0 %4555
  %4557 = vrot.lane.b32.xlu0 %v50, 57
  %v4558 = vpop.permute.xlu0 %4557
  %4559 = vrot.lane.b32.xlu0 %v51, 57
  %v4560 = vpop.permute.xlu0 %4559
  %4561 = vrot.lane.b32.xlu0 %v52, 57
  %v4562 = vpop.permute.xlu0 %4561
  %4563 = vrot.lane.b32.xlu0 %v53, 57
  %v4564 = vpop.permute.xlu0 %4563
  %4565 = vrot.lane.b32.xlu0 %v54, 57
  %v4566 = vpop.permute.xlu0 %4565
  %4567 = vrot.lane.b32.xlu0 %v55, 57
  %v4568 = vpop.permute.xlu0 %4567
  %vm4569 = vcmask 465920
  %v4570 = vsel %vm4569, %v4528, %v4530
  %v4571 = vsel %vm4569, %v4530, %v4532
  %v4572 = vsel %vm4569, %v4532, %v4534
  %v4573 = vsel %vm4569, %v4534, %v4536
  %v4574 = vsel %vm4569, %v4536, %v4538
  %v4575 = vsel %vm4569, %v4538, %v4540
  %v4576 = vsel %vm4569, %v4540, %v4542
  %v4577 = vsel %vm4569, %v4542, %v4544
  %v4578 = vsel %vm4569, %v4544, %v4546
  %v4579 = vsel %vm4569, %v4546, %v4548
  %v4580 = vsel %vm4569, %v4548, %v4550
  %v4581 = vsel %vm4569, %v4550, %v4552
  %v4582 = vsel %vm4569, %v4552, %v4554
  %v4583 = vsel %vm4569, %v4554, %v4556
  %v4584 = vsel %vm4569, %v4556, %v4558
  %v4585 = vsel %vm4569, %v4558, %v4560
  %v4586 = vsel %vm4569, %v4560, %v4562
  %v4587 = vsel %vm4569, %v4562, %v4564
  %v4588 = vsel %vm4569, %v4564, %v4566
  %v4589 = vsel %vm4569, %v4566, %v4568
  %v4611 = vsel %vm162, %v4526, 0
  %4613 = vmatpush.msra.mxu0 0.0
  %4614 = vmatpush.msra.mxu0 0.0
  %4615 = vmatpush.msra.mxu0 0.0
  %4616 = vmatpush.msra.mxu0 0.0
  %4617 = vmatpush.msra.mxu0 0.0
  %4618 = vmatpush.msra.mxu0 0.0
  %4619 = vmatpush.msra.mxu0 0.0
  %4620 = vmatpush.msra.mxu0 0.0
  %4621 = vmatpush.msra.mxu0 0.0
  %4622 = vmatpush.msra.mxu0 0.0
  %4623 = vmatpush.msra.mxu0 0.0
  %4624 = vmatpush.msra.mxu0 0.0
  %4625 = vmatpush.msra.mxu0 0.0
  %4626 = vmatpush.msra.mxu0 0.0
  %4627 = vmatpush.msra.mxu0 0.0
  %4628 = vmatpush.msra.mxu0 %v4570
  %4629 = vmatmul.f32.gmra.mxu0 %v4611
  %v4630 = vpop.f32.mrf.mxu0
  %v4631 = vadd.f32 0.0, %v4630
  %4632 = vdwg.mxu0
  %4633 = vmatpush.msra.mxu0 0.0
  %4634 = vmatpush.msra.mxu0 0.0
  %4635 = vmatpush.msra.mxu0 0.0
  %4636 = vmatpush.msra.mxu0 0.0
  %4637 = vmatpush.msra.mxu0 0.0
  %4638 = vmatpush.msra.mxu0 0.0
  %4639 = vmatpush.msra.mxu0 0.0
  %4640 = vmatpush.msra.mxu0 0.0
  %4641 = vmatpush.msra.mxu0 0.0
  %4642 = vmatpush.msra.mxu0 0.0
  %4643 = vmatpush.msra.mxu0 0.0
  %4644 = vmatpush.msra.mxu0 0.0
  %4645 = vmatpush.msra.mxu0 0.0
  %4646 = vmatpush.msra.mxu0 0.0
  %4647 = vmatpush.msra.mxu0 0.0
  %4648 = vmatpush.msra.mxu0 %v4571
  %4649 = vmatmul.f32.gmra.mxu0 %v4611
  %v4650 = vpop.f32.mrf.mxu0
  %v4651 = vadd.f32 0.0, %v4650
  %4652 = vdwg.mxu0
  %4653 = vmatpush.msra.mxu0 0.0
  %4654 = vmatpush.msra.mxu0 0.0
  %4655 = vmatpush.msra.mxu0 0.0
  %4656 = vmatpush.msra.mxu0 0.0
  %4657 = vmatpush.msra.mxu0 0.0
  %4658 = vmatpush.msra.mxu0 0.0
  %4659 = vmatpush.msra.mxu0 0.0
  %4660 = vmatpush.msra.mxu0 0.0
  %4661 = vmatpush.msra.mxu0 0.0
  %4662 = vmatpush.msra.mxu0 0.0
  %4663 = vmatpush.msra.mxu0 0.0
  %4664 = vmatpush.msra.mxu0 0.0
  %4665 = vmatpush.msra.mxu0 0.0
  %4666 = vmatpush.msra.mxu0 0.0
  %4667 = vmatpush.msra.mxu0 0.0
  %4668 = vmatpush.msra.mxu0 %v4572
  %4669 = vmatmul.f32.gmra.mxu0 %v4611
  %v4670 = vpop.f32.mrf.mxu0
  %v4671 = vadd.f32 0.0, %v4670
  %4672 = vdwg.mxu0
  %4673 = vmatpush.msra.mxu0 0.0
  %4674 = vmatpush.msra.mxu0 0.0
  %4675 = vmatpush.msra.mxu0 0.0
  %4676 = vmatpush.msra.mxu0 0.0
  %4677 = vmatpush.msra.mxu0 0.0
  %4678 = vmatpush.msra.mxu0 0.0
  %4679 = vmatpush.msra.mxu0 0.0
  %4680 = vmatpush.msra.mxu0 0.0
  %4681 = vmatpush.msra.mxu0 0.0
  %4682 = vmatpush.msra.mxu0 0.0
  %4683 = vmatpush.msra.mxu0 0.0
  %4684 = vmatpush.msra.mxu0 0.0
  %4685 = vmatpush.msra.mxu0 0.0
  %4686 = vmatpush.msra.mxu0 0.0
  %4687 = vmatpush.msra.mxu0 0.0
  %4688 = vmatpush.msra.mxu0 %v4573
  %4689 = vmatmul.f32.gmra.mxu0 %v4611
  %v4690 = vpop.f32.mrf.mxu0
  %v4691 = vadd.f32 0.0, %v4690
  %4692 = vdwg.mxu0
  %4693 = vmatpush.msra.mxu0 0.0
  %4694 = vmatpush.msra.mxu0 0.0
  %4695 = vmatpush.msra.mxu0 0.0
  %4696 = vmatpush.msra.mxu0 0.0
  %4697 = vmatpush.msra.mxu0 0.0
  %4698 = vmatpush.msra.mxu0 0.0
  %4699 = vmatpush.msra.mxu0 0.0
  %4700 = vmatpush.msra.mxu0 0.0
  %4701 = vmatpush.msra.mxu0 0.0
  %4702 = vmatpush.msra.mxu0 0.0
  %4703 = vmatpush.msra.mxu0 0.0
  %4704 = vmatpush.msra.mxu0 0.0
  %4705 = vmatpush.msra.mxu0 0.0
  %4706 = vmatpush.msra.mxu0 0.0
  %4707 = vmatpush.msra.mxu0 0.0
  %4708 = vmatpush.msra.mxu0 %v4574
  %4709 = vmatmul.f32.gmra.mxu0 %v4611
  %v4710 = vpop.f32.mrf.mxu0
  %v4711 = vadd.f32 0.0, %v4710
  %4712 = vdwg.mxu0
  %4713 = vmatpush.msra.mxu0 0.0
  %4714 = vmatpush.msra.mxu0 0.0
  %4715 = vmatpush.msra.mxu0 0.0
  %4716 = vmatpush.msra.mxu0 0.0
  %4717 = vmatpush.msra.mxu0 0.0
  %4718 = vmatpush.msra.mxu0 0.0
  %4719 = vmatpush.msra.mxu0 0.0
  %4720 = vmatpush.msra.mxu0 0.0
  %4721 = vmatpush.msra.mxu0 0.0
  %4722 = vmatpush.msra.mxu0 0.0
  %4723 = vmatpush.msra.mxu0 0.0
  %4724 = vmatpush.msra.mxu0 0.0
  %4725 = vmatpush.msra.mxu0 0.0
  %4726 = vmatpush.msra.mxu0 0.0
  %4727 = vmatpush.msra.mxu0 0.0
  %4728 = vmatpush.msra.mxu0 %v4575
  %4729 = vmatmul.f32.gmra.mxu0 %v4611
  %v4730 = vpop.f32.mrf.mxu0
  %v4731 = vadd.f32 0.0, %v4730
  %4732 = vdwg.mxu0
  %4733 = vmatpush.msra.mxu0 0.0
  %4734 = vmatpush.msra.mxu0 0.0
  %4735 = vmatpush.msra.mxu0 0.0
  %4736 = vmatpush.msra.mxu0 0.0
  %4737 = vmatpush.msra.mxu0 0.0
  %4738 = vmatpush.msra.mxu0 0.0
  %4739 = vmatpush.msra.mxu0 0.0
  %4740 = vmatpush.msra.mxu0 0.0
  %4741 = vmatpush.msra.mxu0 0.0
  %4742 = vmatpush.msra.mxu0 0.0
  %4743 = vmatpush.msra.mxu0 0.0
  %4744 = vmatpush.msra.mxu0 0.0
  %4745 = vmatpush.msra.mxu0 0.0
  %4746 = vmatpush.msra.mxu0 0.0
  %4747 = vmatpush.msra.mxu0 0.0
  %4748 = vmatpush.msra.mxu0 %v4576
  %4749 = vmatmul.f32.gmra.mxu0 %v4611
  %v4750 = vpop.f32.mrf.mxu0
  %v4751 = vadd.f32 0.0, %v4750
  %4752 = vdwg.mxu0
  %4753 = vmatpush.msra.mxu0 0.0
  %4754 = vmatpush.msra.mxu0 0.0
  %4755 = vmatpush.msra.mxu0 0.0
  %4756 = vmatpush.msra.mxu0 0.0
  %4757 = vmatpush.msra.mxu0 0.0
  %4758 = vmatpush.msra.mxu0 0.0
  %4759 = vmatpush.msra.mxu0 0.0
  %4760 = vmatpush.msra.mxu0 0.0
  %4761 = vmatpush.msra.mxu0 0.0
  %4762 = vmatpush.msra.mxu0 0.0
  %4763 = vmatpush.msra.mxu0 0.0
  %4764 = vmatpush.msra.mxu0 0.0
  %4765 = vmatpush.msra.mxu0 0.0
  %4766 = vmatpush.msra.mxu0 0.0
  %4767 = vmatpush.msra.mxu0 0.0
  %4768 = vmatpush.msra.mxu0 %v4577
  %4769 = vmatmul.f32.gmra.mxu0 %v4611
  %v4770 = vpop.f32.mrf.mxu0
  %v4771 = vadd.f32 0.0, %v4770
  %4772 = vdwg.mxu0
  %4773 = vmatpush.msra.mxu0 0.0
  %4774 = vmatpush.msra.mxu0 0.0
  %4775 = vmatpush.msra.mxu0 0.0
  %4776 = vmatpush.msra.mxu0 0.0
  %4777 = vmatpush.msra.mxu0 0.0
  %4778 = vmatpush.msra.mxu0 0.0
  %4779 = vmatpush.msra.mxu0 0.0
  %4780 = vmatpush.msra.mxu0 0.0
  %4781 = vmatpush.msra.mxu0 0.0
  %4782 = vmatpush.msra.mxu0 0.0
  %4783 = vmatpush.msra.mxu0 0.0
  %4784 = vmatpush.msra.mxu0 0.0
  %4785 = vmatpush.msra.mxu0 0.0
  %4786 = vmatpush.msra.mxu0 0.0
  %4787 = vmatpush.msra.mxu0 0.0
  %4788 = vmatpush.msra.mxu0 %v4578
  %4789 = vmatmul.f32.gmra.mxu0 %v4611
  %v4790 = vpop.f32.mrf.mxu0
  %v4791 = vadd.f32 0.0, %v4790
  %4792 = vdwg.mxu0
  %4793 = vmatpush.msra.mxu0 0.0
  %4794 = vmatpush.msra.mxu0 0.0
  %4795 = vmatpush.msra.mxu0 0.0
  %4796 = vmatpush.msra.mxu0 0.0
  %4797 = vmatpush.msra.mxu0 0.0
  %4798 = vmatpush.msra.mxu0 0.0
  %4799 = vmatpush.msra.mxu0 0.0
  %4800 = vmatpush.msra.mxu0 0.0
  %4801 = vmatpush.msra.mxu0 0.0
  %4802 = vmatpush.msra.mxu0 0.0
  %4803 = vmatpush.msra.mxu0 0.0
  %4804 = vmatpush.msra.mxu0 0.0
  %4805 = vmatpush.msra.mxu0 0.0
  %4806 = vmatpush.msra.mxu0 0.0
  %4807 = vmatpush.msra.mxu0 0.0
  %4808 = vmatpush.msra.mxu0 %v4579
  %4809 = vmatmul.f32.gmra.mxu0 %v4611
  %v4810 = vpop.f32.mrf.mxu0
  %v4811 = vadd.f32 0.0, %v4810
  %4812 = vdwg.mxu0
  %4813 = vmatpush.msra.mxu0 0.0
  %4814 = vmatpush.msra.mxu0 0.0
  %4815 = vmatpush.msra.mxu0 0.0
  %4816 = vmatpush.msra.mxu0 0.0
  %4817 = vmatpush.msra.mxu0 0.0
  %4818 = vmatpush.msra.mxu0 0.0
  %4819 = vmatpush.msra.mxu0 0.0
  %4820 = vmatpush.msra.mxu0 0.0
  %4821 = vmatpush.msra.mxu0 0.0
  %4822 = vmatpush.msra.mxu0 0.0
  %4823 = vmatpush.msra.mxu0 0.0
  %4824 = vmatpush.msra.mxu0 0.0
  %4825 = vmatpush.msra.mxu0 0.0
  %4826 = vmatpush.msra.mxu0 0.0
  %4827 = vmatpush.msra.mxu0 0.0
  %4828 = vmatpush.msra.mxu0 %v4580
  %4829 = vmatmul.f32.gmra.mxu0 %v4611
  %v4830 = vpop.f32.mrf.mxu0
  %v4831 = vadd.f32 0.0, %v4830
  %4832 = vdwg.mxu0
  %4833 = vmatpush.msra.mxu0 0.0
  %4834 = vmatpush.msra.mxu0 0.0
  %4835 = vmatpush.msra.mxu0 0.0
  %4836 = vmatpush.msra.mxu0 0.0
  %4837 = vmatpush.msra.mxu0 0.0
  %4838 = vmatpush.msra.mxu0 0.0
  %4839 = vmatpush.msra.mxu0 0.0
  %4840 = vmatpush.msra.mxu0 0.0
  %4841 = vmatpush.msra.mxu0 0.0
  %4842 = vmatpush.msra.mxu0 0.0
  %4843 = vmatpush.msra.mxu0 0.0
  %4844 = vmatpush.msra.mxu0 0.0
  %4845 = vmatpush.msra.mxu0 0.0
  %4846 = vmatpush.msra.mxu0 0.0
  %4847 = vmatpush.msra.mxu0 0.0
  %4848 = vmatpush.msra.mxu0 %v4581
  %4849 = vmatmul.f32.gmra.mxu0 %v4611
  %v4850 = vpop.f32.mrf.mxu0
  %v4851 = vadd.f32 0.0, %v4850
  %4852 = vdwg.mxu0
  %4853 = vmatpush.msra.mxu0 0.0
  %4854 = vmatpush.msra.mxu0 0.0
  %4855 = vmatpush.msra.mxu0 0.0
  %4856 = vmatpush.msra.mxu0 0.0
  %4857 = vmatpush.msra.mxu0 0.0
  %4858 = vmatpush.msra.mxu0 0.0
  %4859 = vmatpush.msra.mxu0 0.0
  %4860 = vmatpush.msra.mxu0 0.0
  %4861 = vmatpush.msra.mxu0 0.0
  %4862 = vmatpush.msra.mxu0 0.0
  %4863 = vmatpush.msra.mxu0 0.0
  %4864 = vmatpush.msra.mxu0 0.0
  %4865 = vmatpush.msra.mxu0 0.0
  %4866 = vmatpush.msra.mxu0 0.0
  %4867 = vmatpush.msra.mxu0 0.0
  %4868 = vmatpush.msra.mxu0 %v4582
  %4869 = vmatmul.f32.gmra.mxu0 %v4611
  %v4870 = vpop.f32.mrf.mxu0
  %v4871 = vadd.f32 0.0, %v4870
  %4872 = vdwg.mxu0
  %4873 = vmatpush.msra.mxu0 0.0
  %4874 = vmatpush.msra.mxu0 0.0
  %4875 = vmatpush.msra.mxu0 0.0
  %4876 = vmatpush.msra.mxu0 0.0
  %4877 = vmatpush.msra.mxu0 0.0
  %4878 = vmatpush.msra.mxu0 0.0
  %4879 = vmatpush.msra.mxu0 0.0
  %4880 = vmatpush.msra.mxu0 0.0
  %4881 = vmatpush.msra.mxu0 0.0
  %4882 = vmatpush.msra.mxu0 0.0
  %4883 = vmatpush.msra.mxu0 0.0
  %4884 = vmatpush.msra.mxu0 0.0
  %4885 = vmatpush.msra.mxu0 0.0
  %4886 = vmatpush.msra.mxu0 0.0
  %4887 = vmatpush.msra.mxu0 0.0
  %4888 = vmatpush.msra.mxu0 %v4583
  %4889 = vmatmul.f32.gmra.mxu0 %v4611
  %v4890 = vpop.f32.mrf.mxu0
  %v4891 = vadd.f32 0.0, %v4890
  %4892 = vdwg.mxu0
  %4893 = vmatpush.msra.mxu0 0.0
  %4894 = vmatpush.msra.mxu0 0.0
  %4895 = vmatpush.msra.mxu0 0.0
  %4896 = vmatpush.msra.mxu0 0.0
  %4897 = vmatpush.msra.mxu0 0.0
  %4898 = vmatpush.msra.mxu0 0.0
  %4899 = vmatpush.msra.mxu0 0.0
  %4900 = vmatpush.msra.mxu0 0.0
  %4901 = vmatpush.msra.mxu0 0.0
  %4902 = vmatpush.msra.mxu0 0.0
  %4903 = vmatpush.msra.mxu0 0.0
  %4904 = vmatpush.msra.mxu0 0.0
  %4905 = vmatpush.msra.mxu0 0.0
  %4906 = vmatpush.msra.mxu0 0.0
  %4907 = vmatpush.msra.mxu0 0.0
  %4908 = vmatpush.msra.mxu0 %v4584
  %4909 = vmatmul.f32.gmra.mxu0 %v4611
  %v4910 = vpop.f32.mrf.mxu0
  %v4911 = vadd.f32 0.0, %v4910
  %4912 = vdwg.mxu0
  %4913 = vmatpush.msra.mxu0 0.0
  %4914 = vmatpush.msra.mxu0 0.0
  %4915 = vmatpush.msra.mxu0 0.0
  %4916 = vmatpush.msra.mxu0 0.0
  %4917 = vmatpush.msra.mxu0 0.0
  %4918 = vmatpush.msra.mxu0 0.0
  %4919 = vmatpush.msra.mxu0 0.0
  %4920 = vmatpush.msra.mxu0 0.0
  %4921 = vmatpush.msra.mxu0 0.0
  %4922 = vmatpush.msra.mxu0 0.0
  %4923 = vmatpush.msra.mxu0 0.0
  %4924 = vmatpush.msra.mxu0 0.0
  %4925 = vmatpush.msra.mxu0 0.0
  %4926 = vmatpush.msra.mxu0 0.0
  %4927 = vmatpush.msra.mxu0 0.0
  %4928 = vmatpush.msra.mxu0 %v4585
  %4929 = vmatmul.f32.gmra.mxu0 %v4611
  %v4930 = vpop.f32.mrf.mxu0
  %v4931 = vadd.f32 0.0, %v4930
  %4932 = vdwg.mxu0
  %4933 = vmatpush.msra.mxu0 0.0
  %4934 = vmatpush.msra.mxu0 0.0
  %4935 = vmatpush.msra.mxu0 0.0
  %4936 = vmatpush.msra.mxu0 0.0
  %4937 = vmatpush.msra.mxu0 0.0
  %4938 = vmatpush.msra.mxu0 0.0
  %4939 = vmatpush.msra.mxu0 0.0
  %4940 = vmatpush.msra.mxu0 0.0
  %4941 = vmatpush.msra.mxu0 0.0
  %4942 = vmatpush.msra.mxu0 0.0
  %4943 = vmatpush.msra.mxu0 0.0
  %4944 = vmatpush.msra.mxu0 0.0
  %4945 = vmatpush.msra.mxu0 0.0
  %4946 = vmatpush.msra.mxu0 0.0
  %4947 = vmatpush.msra.mxu0 0.0
  %4948 = vmatpush.msra.mxu0 %v4586
  %4949 = vmatmul.f32.gmra.mxu0 %v4611
  %v4950 = vpop.f32.mrf.mxu0
  %v4951 = vadd.f32 0.0, %v4950
  %4952 = vdwg.mxu0
  %4953 = vmatpush.msra.mxu0 0.0
  %4954 = vmatpush.msra.mxu0 0.0
  %4955 = vmatpush.msra.mxu0 0.0
  %4956 = vmatpush.msra.mxu0 0.0
  %4957 = vmatpush.msra.mxu0 0.0
  %4958 = vmatpush.msra.mxu0 0.0
  %4959 = vmatpush.msra.mxu0 0.0
  %4960 = vmatpush.msra.mxu0 0.0
  %4961 = vmatpush.msra.mxu0 0.0
  %4962 = vmatpush.msra.mxu0 0.0
  %4963 = vmatpush.msra.mxu0 0.0
  %4964 = vmatpush.msra.mxu0 0.0
  %4965 = vmatpush.msra.mxu0 0.0
  %4966 = vmatpush.msra.mxu0 0.0
  %4967 = vmatpush.msra.mxu0 0.0
  %4968 = vmatpush.msra.mxu0 %v4587
  %4969 = vmatmul.f32.gmra.mxu0 %v4611
  %v4970 = vpop.f32.mrf.mxu0
  %v4971 = vadd.f32 0.0, %v4970
  %4972 = vdwg.mxu0
  %4973 = vmatpush.msra.mxu0 0.0
  %4974 = vmatpush.msra.mxu0 0.0
  %4975 = vmatpush.msra.mxu0 0.0
  %4976 = vmatpush.msra.mxu0 0.0
  %4977 = vmatpush.msra.mxu0 0.0
  %4978 = vmatpush.msra.mxu0 0.0
  %4979 = vmatpush.msra.mxu0 0.0
  %4980 = vmatpush.msra.mxu0 0.0
  %4981 = vmatpush.msra.mxu0 0.0
  %4982 = vmatpush.msra.mxu0 0.0
  %4983 = vmatpush.msra.mxu0 0.0
  %4984 = vmatpush.msra.mxu0 0.0
  %4985 = vmatpush.msra.mxu0 0.0
  %4986 = vmatpush.msra.mxu0 0.0
  %4987 = vmatpush.msra.mxu0 0.0
  %4988 = vmatpush.msra.mxu0 %v4588
  %4989 = vmatmul.f32.gmra.mxu0 %v4611
  %v4990 = vpop.f32.mrf.mxu0
  %v4991 = vadd.f32 0.0, %v4990
  %4992 = vdwg.mxu0
  %4993 = vmatpush.msra.mxu0 0.0
  %4994 = vmatpush.msra.mxu0 0.0
  %4995 = vmatpush.msra.mxu0 0.0
  %4996 = vmatpush.msra.mxu0 0.0
  %4997 = vmatpush.msra.mxu0 0.0
  %4998 = vmatpush.msra.mxu0 0.0
  %4999 = vmatpush.msra.mxu0 0.0
  %5000 = vmatpush.msra.mxu0 0.0
  %5001 = vmatpush.msra.mxu0 0.0
  %5002 = vmatpush.msra.mxu0 0.0
  %5003 = vmatpush.msra.mxu0 0.0
  %5004 = vmatpush.msra.mxu0 0.0
  %5005 = vmatpush.msra.mxu0 0.0
  %5006 = vmatpush.msra.mxu0 0.0
  %5007 = vmatpush.msra.mxu0 0.0
  %5008 = vmatpush.msra.mxu0 %v4589
  %5009 = vmatmul.f32.gmra.mxu0 %v4611
  %v5010 = vpop.f32.mrf.mxu0
  %v5011 = vadd.f32 0.0, %v5010
  %5012 = vdwg.mxu0
  %v5013 = vadd.f32 %v4505, %v4631
  %v5014 = vadd.f32 %v4506, %v4651
  %v5015 = vadd.f32 %v4507, %v4671
  %v5016 = vadd.f32 %v4508, %v4691
  %v5017 = vadd.f32 %v4509, %v4711
  %v5018 = vadd.f32 %v4510, %v4731
  %v5019 = vadd.f32 %v4511, %v4751
  %v5020 = vadd.f32 %v4512, %v4771
  %v5021 = vadd.f32 %v4513, %v4791
  %v5022 = vadd.f32 %v4514, %v4811
  %v5023 = vadd.f32 %v4515, %v4831
  %v5024 = vadd.f32 %v4516, %v4851
  %v5025 = vadd.f32 %v4517, %v4871
  %v5026 = vadd.f32 %v4518, %v4891
  %v5027 = vadd.f32 %v4519, %v4911
  %v5028 = vadd.f32 %v4520, %v4931
  %v5029 = vadd.f32 %v4521, %v4951
  %v5030 = vadd.f32 %v4522, %v4971
  %v5031 = vadd.f32 %v4523, %v4991
  %v5032 = vadd.f32 %v4524, %v5011
  %s5033 = scalar_lea.vmem %s0, 80
  %v5034 = vld [vmem:[%s5033] sm:$0xff]
  %5035 = vrot.lane.b32.xlu0 %v35, 56
  %v5036 = vpop.permute.xlu0 %5035
  %5037 = vrot.lane.b32.xlu0 %v36, 56
  %v5038 = vpop.permute.xlu0 %5037
  %5039 = vrot.lane.b32.xlu0 %v37, 56
  %v5040 = vpop.permute.xlu0 %5039
  %5041 = vrot.lane.b32.xlu0 %v38, 56
  %v5042 = vpop.permute.xlu0 %5041
  %5043 = vrot.lane.b32.xlu0 %v39, 56
  %v5044 = vpop.permute.xlu0 %5043
  %5045 = vrot.lane.b32.xlu0 %v40, 56
  %v5046 = vpop.permute.xlu0 %5045
  %5047 = vrot.lane.b32.xlu0 %v41, 56
  %v5048 = vpop.permute.xlu0 %5047
  %5049 = vrot.lane.b32.xlu0 %v42, 56
  %v5050 = vpop.permute.xlu0 %5049
  %5051 = vrot.lane.b32.xlu0 %v43, 56
  %v5052 = vpop.permute.xlu0 %5051
  %5053 = vrot.lane.b32.xlu0 %v44, 56
  %v5054 = vpop.permute.xlu0 %5053
  %5055 = vrot.lane.b32.xlu0 %v45, 56
  %v5056 = vpop.permute.xlu0 %5055
  %5057 = vrot.lane.b32.xlu0 %v46, 56
  %v5058 = vpop.permute.xlu0 %5057
  %5059 = vrot.lane.b32.xlu0 %v47, 56
  %v5060 = vpop.permute.xlu0 %5059
  %5061 = vrot.lane.b32.xlu0 %v48, 56
  %v5062 = vpop.permute.xlu0 %5061
  %5063 = vrot.lane.b32.xlu0 %v49, 56
  %v5064 = vpop.permute.xlu0 %5063
  %5065 = vrot.lane.b32.xlu0 %v50, 56
  %v5066 = vpop.permute.xlu0 %5065
  %5067 = vrot.lane.b32.xlu0 %v51, 56
  %v5068 = vpop.permute.xlu0 %5067
  %5069 = vrot.lane.b32.xlu0 %v52, 56
  %v5070 = vpop.permute.xlu0 %5069
  %5071 = vrot.lane.b32.xlu0 %v53, 56
  %v5072 = vpop.permute.xlu0 %5071
  %5073 = vrot.lane.b32.xlu0 %v54, 56
  %v5074 = vpop.permute.xlu0 %5073
  %5075 = vrot.lane.b32.xlu0 %v55, 56
  %v5076 = vpop.permute.xlu0 %5075
  %vm5077 = vcmask 457728
  %v5078 = vsel %vm5077, %v5036, %v5038
  %v5079 = vsel %vm5077, %v5038, %v5040
  %v5080 = vsel %vm5077, %v5040, %v5042
  %v5081 = vsel %vm5077, %v5042, %v5044
  %v5082 = vsel %vm5077, %v5044, %v5046
  %v5083 = vsel %vm5077, %v5046, %v5048
  %v5084 = vsel %vm5077, %v5048, %v5050
  %v5085 = vsel %vm5077, %v5050, %v5052
  %v5086 = vsel %vm5077, %v5052, %v5054
  %v5087 = vsel %vm5077, %v5054, %v5056
  %v5088 = vsel %vm5077, %v5056, %v5058
  %v5089 = vsel %vm5077, %v5058, %v5060
  %v5090 = vsel %vm5077, %v5060, %v5062
  %v5091 = vsel %vm5077, %v5062, %v5064
  %v5092 = vsel %vm5077, %v5064, %v5066
  %v5093 = vsel %vm5077, %v5066, %v5068
  %v5094 = vsel %vm5077, %v5068, %v5070
  %v5095 = vsel %vm5077, %v5070, %v5072
  %v5096 = vsel %vm5077, %v5072, %v5074
  %v5097 = vsel %vm5077, %v5074, %v5076
  %v5119 = vsel %vm162, %v5034, 0
  %5121 = vmatpush.msra.mxu0 0.0
  %5122 = vmatpush.msra.mxu0 0.0
  %5123 = vmatpush.msra.mxu0 0.0
  %5124 = vmatpush.msra.mxu0 0.0
  %5125 = vmatpush.msra.mxu0 0.0
  %5126 = vmatpush.msra.mxu0 0.0
  %5127 = vmatpush.msra.mxu0 0.0
  %5128 = vmatpush.msra.mxu0 0.0
  %5129 = vmatpush.msra.mxu0 0.0
  %5130 = vmatpush.msra.mxu0 0.0
  %5131 = vmatpush.msra.mxu0 0.0
  %5132 = vmatpush.msra.mxu0 0.0
  %5133 = vmatpush.msra.mxu0 0.0
  %5134 = vmatpush.msra.mxu0 0.0
  %5135 = vmatpush.msra.mxu0 0.0
  %5136 = vmatpush.msra.mxu0 %v5078
  %5137 = vmatmul.f32.gmra.mxu0 %v5119
  %v5138 = vpop.f32.mrf.mxu0
  %v5139 = vadd.f32 0.0, %v5138
  %5140 = vdwg.mxu0
  %5141 = vmatpush.msra.mxu0 0.0
  %5142 = vmatpush.msra.mxu0 0.0
  %5143 = vmatpush.msra.mxu0 0.0
  %5144 = vmatpush.msra.mxu0 0.0
  %5145 = vmatpush.msra.mxu0 0.0
  %5146 = vmatpush.msra.mxu0 0.0
  %5147 = vmatpush.msra.mxu0 0.0
  %5148 = vmatpush.msra.mxu0 0.0
  %5149 = vmatpush.msra.mxu0 0.0
  %5150 = vmatpush.msra.mxu0 0.0
  %5151 = vmatpush.msra.mxu0 0.0
  %5152 = vmatpush.msra.mxu0 0.0
  %5153 = vmatpush.msra.mxu0 0.0
  %5154 = vmatpush.msra.mxu0 0.0
  %5155 = vmatpush.msra.mxu0 0.0
  %5156 = vmatpush.msra.mxu0 %v5079
  %5157 = vmatmul.f32.gmra.mxu0 %v5119
  %v5158 = vpop.f32.mrf.mxu0
  %v5159 = vadd.f32 0.0, %v5158
  %5160 = vdwg.mxu0
  %5161 = vmatpush.msra.mxu0 0.0
  %5162 = vmatpush.msra.mxu0 0.0
  %5163 = vmatpush.msra.mxu0 0.0
  %5164 = vmatpush.msra.mxu0 0.0
  %5165 = vmatpush.msra.mxu0 0.0
  %5166 = vmatpush.msra.mxu0 0.0
  %5167 = vmatpush.msra.mxu0 0.0
  %5168 = vmatpush.msra.mxu0 0.0
  %5169 = vmatpush.msra.mxu0 0.0
  %5170 = vmatpush.msra.mxu0 0.0
  %5171 = vmatpush.msra.mxu0 0.0
  %5172 = vmatpush.msra.mxu0 0.0
  %5173 = vmatpush.msra.mxu0 0.0
  %5174 = vmatpush.msra.mxu0 0.0
  %5175 = vmatpush.msra.mxu0 0.0
  %5176 = vmatpush.msra.mxu0 %v5080
  %5177 = vmatmul.f32.gmra.mxu0 %v5119
  %v5178 = vpop.f32.mrf.mxu0
  %v5179 = vadd.f32 0.0, %v5178
  %5180 = vdwg.mxu0
  %5181 = vmatpush.msra.mxu0 0.0
  %5182 = vmatpush.msra.mxu0 0.0
  %5183 = vmatpush.msra.mxu0 0.0
  %5184 = vmatpush.msra.mxu0 0.0
  %5185 = vmatpush.msra.mxu0 0.0
  %5186 = vmatpush.msra.mxu0 0.0
  %5187 = vmatpush.msra.mxu0 0.0
  %5188 = vmatpush.msra.mxu0 0.0
  %5189 = vmatpush.msra.mxu0 0.0
  %5190 = vmatpush.msra.mxu0 0.0
  %5191 = vmatpush.msra.mxu0 0.0
  %5192 = vmatpush.msra.mxu0 0.0
  %5193 = vmatpush.msra.mxu0 0.0
  %5194 = vmatpush.msra.mxu0 0.0
  %5195 = vmatpush.msra.mxu0 0.0
  %5196 = vmatpush.msra.mxu0 %v5081
  %5197 = vmatmul.f32.gmra.mxu0 %v5119
  %v5198 = vpop.f32.mrf.mxu0
  %v5199 = vadd.f32 0.0, %v5198
  %5200 = vdwg.mxu0
  %5201 = vmatpush.msra.mxu0 0.0
  %5202 = vmatpush.msra.mxu0 0.0
  %5203 = vmatpush.msra.mxu0 0.0
  %5204 = vmatpush.msra.mxu0 0.0
  %5205 = vmatpush.msra.mxu0 0.0
  %5206 = vmatpush.msra.mxu0 0.0
  %5207 = vmatpush.msra.mxu0 0.0
  %5208 = vmatpush.msra.mxu0 0.0
  %5209 = vmatpush.msra.mxu0 0.0
  %5210 = vmatpush.msra.mxu0 0.0
  %5211 = vmatpush.msra.mxu0 0.0
  %5212 = vmatpush.msra.mxu0 0.0
  %5213 = vmatpush.msra.mxu0 0.0
  %5214 = vmatpush.msra.mxu0 0.0
  %5215 = vmatpush.msra.mxu0 0.0
  %5216 = vmatpush.msra.mxu0 %v5082
  %5217 = vmatmul.f32.gmra.mxu0 %v5119
  %v5218 = vpop.f32.mrf.mxu0
  %v5219 = vadd.f32 0.0, %v5218
  %5220 = vdwg.mxu0
  %5221 = vmatpush.msra.mxu0 0.0
  %5222 = vmatpush.msra.mxu0 0.0
  %5223 = vmatpush.msra.mxu0 0.0
  %5224 = vmatpush.msra.mxu0 0.0
  %5225 = vmatpush.msra.mxu0 0.0
  %5226 = vmatpush.msra.mxu0 0.0
  %5227 = vmatpush.msra.mxu0 0.0
  %5228 = vmatpush.msra.mxu0 0.0
  %5229 = vmatpush.msra.mxu0 0.0
  %5230 = vmatpush.msra.mxu0 0.0
  %5231 = vmatpush.msra.mxu0 0.0
  %5232 = vmatpush.msra.mxu0 0.0
  %5233 = vmatpush.msra.mxu0 0.0
  %5234 = vmatpush.msra.mxu0 0.0
  %5235 = vmatpush.msra.mxu0 0.0
  %5236 = vmatpush.msra.mxu0 %v5083
  %5237 = vmatmul.f32.gmra.mxu0 %v5119
  %v5238 = vpop.f32.mrf.mxu0
  %v5239 = vadd.f32 0.0, %v5238
  %5240 = vdwg.mxu0
  %5241 = vmatpush.msra.mxu0 0.0
  %5242 = vmatpush.msra.mxu0 0.0
  %5243 = vmatpush.msra.mxu0 0.0
  %5244 = vmatpush.msra.mxu0 0.0
  %5245 = vmatpush.msra.mxu0 0.0
  %5246 = vmatpush.msra.mxu0 0.0
  %5247 = vmatpush.msra.mxu0 0.0
  %5248 = vmatpush.msra.mxu0 0.0
  %5249 = vmatpush.msra.mxu0 0.0
  %5250 = vmatpush.msra.mxu0 0.0
  %5251 = vmatpush.msra.mxu0 0.0
  %5252 = vmatpush.msra.mxu0 0.0
  %5253 = vmatpush.msra.mxu0 0.0
  %5254 = vmatpush.msra.mxu0 0.0
  %5255 = vmatpush.msra.mxu0 0.0
  %5256 = vmatpush.msra.mxu0 %v5084
  %5257 = vmatmul.f32.gmra.mxu0 %v5119
  %v5258 = vpop.f32.mrf.mxu0
  %v5259 = vadd.f32 0.0, %v5258
  %5260 = vdwg.mxu0
  %5261 = vmatpush.msra.mxu0 0.0
  %5262 = vmatpush.msra.mxu0 0.0
  %5263 = vmatpush.msra.mxu0 0.0
  %5264 = vmatpush.msra.mxu0 0.0
  %5265 = vmatpush.msra.mxu0 0.0
  %5266 = vmatpush.msra.mxu0 0.0
  %5267 = vmatpush.msra.mxu0 0.0
  %5268 = vmatpush.msra.mxu0 0.0
  %5269 = vmatpush.msra.mxu0 0.0
  %5270 = vmatpush.msra.mxu0 0.0
  %5271 = vmatpush.msra.mxu0 0.0
  %5272 = vmatpush.msra.mxu0 0.0
  %5273 = vmatpush.msra.mxu0 0.0
  %5274 = vmatpush.msra.mxu0 0.0
  %5275 = vmatpush.msra.mxu0 0.0
  %5276 = vmatpush.msra.mxu0 %v5085
  %5277 = vmatmul.f32.gmra.mxu0 %v5119
  %v5278 = vpop.f32.mrf.mxu0
  %v5279 = vadd.f32 0.0, %v5278
  %5280 = vdwg.mxu0
  %5281 = vmatpush.msra.mxu0 0.0
  %5282 = vmatpush.msra.mxu0 0.0
  %5283 = vmatpush.msra.mxu0 0.0
  %5284 = vmatpush.msra.mxu0 0.0
  %5285 = vmatpush.msra.mxu0 0.0
  %5286 = vmatpush.msra.mxu0 0.0
  %5287 = vmatpush.msra.mxu0 0.0
  %5288 = vmatpush.msra.mxu0 0.0
  %5289 = vmatpush.msra.mxu0 0.0
  %5290 = vmatpush.msra.mxu0 0.0
  %5291 = vmatpush.msra.mxu0 0.0
  %5292 = vmatpush.msra.mxu0 0.0
  %5293 = vmatpush.msra.mxu0 0.0
  %5294 = vmatpush.msra.mxu0 0.0
  %5295 = vmatpush.msra.mxu0 0.0
  %5296 = vmatpush.msra.mxu0 %v5086
  %5297 = vmatmul.f32.gmra.mxu0 %v5119
  %v5298 = vpop.f32.mrf.mxu0
  %v5299 = vadd.f32 0.0, %v5298
  %5300 = vdwg.mxu0
  %5301 = vmatpush.msra.mxu0 0.0
  %5302 = vmatpush.msra.mxu0 0.0
  %5303 = vmatpush.msra.mxu0 0.0
  %5304 = vmatpush.msra.mxu0 0.0
  %5305 = vmatpush.msra.mxu0 0.0
  %5306 = vmatpush.msra.mxu0 0.0
  %5307 = vmatpush.msra.mxu0 0.0
  %5308 = vmatpush.msra.mxu0 0.0
  %5309 = vmatpush.msra.mxu0 0.0
  %5310 = vmatpush.msra.mxu0 0.0
  %5311 = vmatpush.msra.mxu0 0.0
  %5312 = vmatpush.msra.mxu0 0.0
  %5313 = vmatpush.msra.mxu0 0.0
  %5314 = vmatpush.msra.mxu0 0.0
  %5315 = vmatpush.msra.mxu0 0.0
  %5316 = vmatpush.msra.mxu0 %v5087
  %5317 = vmatmul.f32.gmra.mxu0 %v5119
  %v5318 = vpop.f32.mrf.mxu0
  %v5319 = vadd.f32 0.0, %v5318
  %5320 = vdwg.mxu0
  %5321 = vmatpush.msra.mxu0 0.0
  %5322 = vmatpush.msra.mxu0 0.0
  %5323 = vmatpush.msra.mxu0 0.0
  %5324 = vmatpush.msra.mxu0 0.0
  %5325 = vmatpush.msra.mxu0 0.0
  %5326 = vmatpush.msra.mxu0 0.0
  %5327 = vmatpush.msra.mxu0 0.0
  %5328 = vmatpush.msra.mxu0 0.0
  %5329 = vmatpush.msra.mxu0 0.0
  %5330 = vmatpush.msra.mxu0 0.0
  %5331 = vmatpush.msra.mxu0 0.0
  %5332 = vmatpush.msra.mxu0 0.0
  %5333 = vmatpush.msra.mxu0 0.0
  %5334 = vmatpush.msra.mxu0 0.0
  %5335 = vmatpush.msra.mxu0 0.0
  %5336 = vmatpush.msra.mxu0 %v5088
  %5337 = vmatmul.f32.gmra.mxu0 %v5119
  %v5338 = vpop.f32.mrf.mxu0
  %v5339 = vadd.f32 0.0, %v5338
  %5340 = vdwg.mxu0
  %5341 = vmatpush.msra.mxu0 0.0
  %5342 = vmatpush.msra.mxu0 0.0
  %5343 = vmatpush.msra.mxu0 0.0
  %5344 = vmatpush.msra.mxu0 0.0
  %5345 = vmatpush.msra.mxu0 0.0
  %5346 = vmatpush.msra.mxu0 0.0
  %5347 = vmatpush.msra.mxu0 0.0
  %5348 = vmatpush.msra.mxu0 0.0
  %5349 = vmatpush.msra.mxu0 0.0
  %5350 = vmatpush.msra.mxu0 0.0
  %5351 = vmatpush.msra.mxu0 0.0
  %5352 = vmatpush.msra.mxu0 0.0
  %5353 = vmatpush.msra.mxu0 0.0
  %5354 = vmatpush.msra.mxu0 0.0
  %5355 = vmatpush.msra.mxu0 0.0
  %5356 = vmatpush.msra.mxu0 %v5089
  %5357 = vmatmul.f32.gmra.mxu0 %v5119
  %v5358 = vpop.f32.mrf.mxu0
  %v5359 = vadd.f32 0.0, %v5358
  %5360 = vdwg.mxu0
  %5361 = vmatpush.msra.mxu0 0.0
  %5362 = vmatpush.msra.mxu0 0.0
  %5363 = vmatpush.msra.mxu0 0.0
  %5364 = vmatpush.msra.mxu0 0.0
  %5365 = vmatpush.msra.mxu0 0.0
  %5366 = vmatpush.msra.mxu0 0.0
  %5367 = vmatpush.msra.mxu0 0.0
  %5368 = vmatpush.msra.mxu0 0.0
  %5369 = vmatpush.msra.mxu0 0.0
  %5370 = vmatpush.msra.mxu0 0.0
  %5371 = vmatpush.msra.mxu0 0.0
  %5372 = vmatpush.msra.mxu0 0.0
  %5373 = vmatpush.msra.mxu0 0.0
  %5374 = vmatpush.msra.mxu0 0.0
  %5375 = vmatpush.msra.mxu0 0.0
  %5376 = vmatpush.msra.mxu0 %v5090
  %5377 = vmatmul.f32.gmra.mxu0 %v5119
  %v5378 = vpop.f32.mrf.mxu0
  %v5379 = vadd.f32 0.0, %v5378
  %5380 = vdwg.mxu0
  %5381 = vmatpush.msra.mxu0 0.0
  %5382 = vmatpush.msra.mxu0 0.0
  %5383 = vmatpush.msra.mxu0 0.0
  %5384 = vmatpush.msra.mxu0 0.0
  %5385 = vmatpush.msra.mxu0 0.0
  %5386 = vmatpush.msra.mxu0 0.0
  %5387 = vmatpush.msra.mxu0 0.0
  %5388 = vmatpush.msra.mxu0 0.0
  %5389 = vmatpush.msra.mxu0 0.0
  %5390 = vmatpush.msra.mxu0 0.0
  %5391 = vmatpush.msra.mxu0 0.0
  %5392 = vmatpush.msra.mxu0 0.0
  %5393 = vmatpush.msra.mxu0 0.0
  %5394 = vmatpush.msra.mxu0 0.0
  %5395 = vmatpush.msra.mxu0 0.0
  %5396 = vmatpush.msra.mxu0 %v5091
  %5397 = vmatmul.f32.gmra.mxu0 %v5119
  %v5398 = vpop.f32.mrf.mxu0
  %v5399 = vadd.f32 0.0, %v5398
  %5400 = vdwg.mxu0
  %5401 = vmatpush.msra.mxu0 0.0
  %5402 = vmatpush.msra.mxu0 0.0
  %5403 = vmatpush.msra.mxu0 0.0
  %5404 = vmatpush.msra.mxu0 0.0
  %5405 = vmatpush.msra.mxu0 0.0
  %5406 = vmatpush.msra.mxu0 0.0
  %5407 = vmatpush.msra.mxu0 0.0
  %5408 = vmatpush.msra.mxu0 0.0
  %5409 = vmatpush.msra.mxu0 0.0
  %5410 = vmatpush.msra.mxu0 0.0
  %5411 = vmatpush.msra.mxu0 0.0
  %5412 = vmatpush.msra.mxu0 0.0
  %5413 = vmatpush.msra.mxu0 0.0
  %5414 = vmatpush.msra.mxu0 0.0
  %5415 = vmatpush.msra.mxu0 0.0
  %5416 = vmatpush.msra.mxu0 %v5092
  %5417 = vmatmul.f32.gmra.mxu0 %v5119
  %v5418 = vpop.f32.mrf.mxu0
  %v5419 = vadd.f32 0.0, %v5418
  %5420 = vdwg.mxu0
  %5421 = vmatpush.msra.mxu0 0.0
  %5422 = vmatpush.msra.mxu0 0.0
  %5423 = vmatpush.msra.mxu0 0.0
  %5424 = vmatpush.msra.mxu0 0.0
  %5425 = vmatpush.msra.mxu0 0.0
  %5426 = vmatpush.msra.mxu0 0.0
  %5427 = vmatpush.msra.mxu0 0.0
  %5428 = vmatpush.msra.mxu0 0.0
  %5429 = vmatpush.msra.mxu0 0.0
  %5430 = vmatpush.msra.mxu0 0.0
  %5431 = vmatpush.msra.mxu0 0.0
  %5432 = vmatpush.msra.mxu0 0.0
  %5433 = vmatpush.msra.mxu0 0.0
  %5434 = vmatpush.msra.mxu0 0.0
  %5435 = vmatpush.msra.mxu0 0.0
  %5436 = vmatpush.msra.mxu0 %v5093
  %5437 = vmatmul.f32.gmra.mxu0 %v5119
  %v5438 = vpop.f32.mrf.mxu0
  %v5439 = vadd.f32 0.0, %v5438
  %5440 = vdwg.mxu0
  %5441 = vmatpush.msra.mxu0 0.0
  %5442 = vmatpush.msra.mxu0 0.0
  %5443 = vmatpush.msra.mxu0 0.0
  %5444 = vmatpush.msra.mxu0 0.0
  %5445 = vmatpush.msra.mxu0 0.0
  %5446 = vmatpush.msra.mxu0 0.0
  %5447 = vmatpush.msra.mxu0 0.0
  %5448 = vmatpush.msra.mxu0 0.0
  %5449 = vmatpush.msra.mxu0 0.0
  %5450 = vmatpush.msra.mxu0 0.0
  %5451 = vmatpush.msra.mxu0 0.0
  %5452 = vmatpush.msra.mxu0 0.0
  %5453 = vmatpush.msra.mxu0 0.0
  %5454 = vmatpush.msra.mxu0 0.0
  %5455 = vmatpush.msra.mxu0 0.0
  %5456 = vmatpush.msra.mxu0 %v5094
  %5457 = vmatmul.f32.gmra.mxu0 %v5119
  %v5458 = vpop.f32.mrf.mxu0
  %v5459 = vadd.f32 0.0, %v5458
  %5460 = vdwg.mxu0
  %5461 = vmatpush.msra.mxu0 0.0
  %5462 = vmatpush.msra.mxu0 0.0
  %5463 = vmatpush.msra.mxu0 0.0
  %5464 = vmatpush.msra.mxu0 0.0
  %5465 = vmatpush.msra.mxu0 0.0
  %5466 = vmatpush.msra.mxu0 0.0
  %5467 = vmatpush.msra.mxu0 0.0
  %5468 = vmatpush.msra.mxu0 0.0
  %5469 = vmatpush.msra.mxu0 0.0
  %5470 = vmatpush.msra.mxu0 0.0
  %5471 = vmatpush.msra.mxu0 0.0
  %5472 = vmatpush.msra.mxu0 0.0
  %5473 = vmatpush.msra.mxu0 0.0
  %5474 = vmatpush.msra.mxu0 0.0
  %5475 = vmatpush.msra.mxu0 0.0
  %5476 = vmatpush.msra.mxu0 %v5095
  %5477 = vmatmul.f32.gmra.mxu0 %v5119
  %v5478 = vpop.f32.mrf.mxu0
  %v5479 = vadd.f32 0.0, %v5478
  %5480 = vdwg.mxu0
  %5481 = vmatpush.msra.mxu0 0.0
  %5482 = vmatpush.msra.mxu0 0.0
  %5483 = vmatpush.msra.mxu0 0.0
  %5484 = vmatpush.msra.mxu0 0.0
  %5485 = vmatpush.msra.mxu0 0.0
  %5486 = vmatpush.msra.mxu0 0.0
  %5487 = vmatpush.msra.mxu0 0.0
  %5488 = vmatpush.msra.mxu0 0.0
  %5489 = vmatpush.msra.mxu0 0.0
  %5490 = vmatpush.msra.mxu0 0.0
  %5491 = vmatpush.msra.mxu0 0.0
  %5492 = vmatpush.msra.mxu0 0.0
  %5493 = vmatpush.msra.mxu0 0.0
  %5494 = vmatpush.msra.mxu0 0.0
  %5495 = vmatpush.msra.mxu0 0.0
  %5496 = vmatpush.msra.mxu0 %v5096
  %5497 = vmatmul.f32.gmra.mxu0 %v5119
  %v5498 = vpop.f32.mrf.mxu0
  %v5499 = vadd.f32 0.0, %v5498
  %5500 = vdwg.mxu0
  %5501 = vmatpush.msra.mxu0 0.0
  %5502 = vmatpush.msra.mxu0 0.0
  %5503 = vmatpush.msra.mxu0 0.0
  %5504 = vmatpush.msra.mxu0 0.0
  %5505 = vmatpush.msra.mxu0 0.0
  %5506 = vmatpush.msra.mxu0 0.0
  %5507 = vmatpush.msra.mxu0 0.0
  %5508 = vmatpush.msra.mxu0 0.0
  %5509 = vmatpush.msra.mxu0 0.0
  %5510 = vmatpush.msra.mxu0 0.0
  %5511 = vmatpush.msra.mxu0 0.0
  %5512 = vmatpush.msra.mxu0 0.0
  %5513 = vmatpush.msra.mxu0 0.0
  %5514 = vmatpush.msra.mxu0 0.0
  %5515 = vmatpush.msra.mxu0 0.0
  %5516 = vmatpush.msra.mxu0 %v5097
  %5517 = vmatmul.f32.gmra.mxu0 %v5119
  %v5518 = vpop.f32.mrf.mxu0
  %v5519 = vadd.f32 0.0, %v5518
  %5520 = vdwg.mxu0
  %v5521 = vadd.f32 %v5013, %v5139
  %v5522 = vadd.f32 %v5014, %v5159
  %v5523 = vadd.f32 %v5015, %v5179
  %v5524 = vadd.f32 %v5016, %v5199
  %v5525 = vadd.f32 %v5017, %v5219
  %v5526 = vadd.f32 %v5018, %v5239
  %v5527 = vadd.f32 %v5019, %v5259
  %v5528 = vadd.f32 %v5020, %v5279
  %v5529 = vadd.f32 %v5021, %v5299
  %v5530 = vadd.f32 %v5022, %v5319
  %v5531 = vadd.f32 %v5023, %v5339
  %v5532 = vadd.f32 %v5024, %v5359
  %v5533 = vadd.f32 %v5025, %v5379
  %v5534 = vadd.f32 %v5026, %v5399
  %v5535 = vadd.f32 %v5027, %v5419
  %v5536 = vadd.f32 %v5028, %v5439
  %v5537 = vadd.f32 %v5029, %v5459
  %v5538 = vadd.f32 %v5030, %v5479
  %v5539 = vadd.f32 %v5031, %v5499
  %v5540 = vadd.f32 %v5032, %v5519
  %s5541 = scalar_lea.vmem %s0, 88
  %v5542 = vld [vmem:[%s5541] sm:$0xff]
  %5543 = vrot.lane.b32.xlu0 %v35, 55
  %v5544 = vpop.permute.xlu0 %5543
  %5545 = vrot.lane.b32.xlu0 %v36, 55
  %v5546 = vpop.permute.xlu0 %5545
  %5547 = vrot.lane.b32.xlu0 %v37, 55
  %v5548 = vpop.permute.xlu0 %5547
  %5549 = vrot.lane.b32.xlu0 %v38, 55
  %v5550 = vpop.permute.xlu0 %5549
  %5551 = vrot.lane.b32.xlu0 %v39, 55
  %v5552 = vpop.permute.xlu0 %5551
  %5553 = vrot.lane.b32.xlu0 %v40, 55
  %v5554 = vpop.permute.xlu0 %5553
  %5555 = vrot.lane.b32.xlu0 %v41, 55
  %v5556 = vpop.permute.xlu0 %5555
  %5557 = vrot.lane.b32.xlu0 %v42, 55
  %v5558 = vpop.permute.xlu0 %5557
  %5559 = vrot.lane.b32.xlu0 %v43, 55
  %v5560 = vpop.permute.xlu0 %5559
  %5561 = vrot.lane.b32.xlu0 %v44, 55
  %v5562 = vpop.permute.xlu0 %5561
  %5563 = vrot.lane.b32.xlu0 %v45, 55
  %v5564 = vpop.permute.xlu0 %5563
  %5565 = vrot.lane.b32.xlu0 %v46, 55
  %v5566 = vpop.permute.xlu0 %5565
  %5567 = vrot.lane.b32.xlu0 %v47, 55
  %v5568 = vpop.permute.xlu0 %5567
  %5569 = vrot.lane.b32.xlu0 %v48, 55
  %v5570 = vpop.permute.xlu0 %5569
  %5571 = vrot.lane.b32.xlu0 %v49, 55
  %v5572 = vpop.permute.xlu0 %5571
  %5573 = vrot.lane.b32.xlu0 %v50, 55
  %v5574 = vpop.permute.xlu0 %5573
  %5575 = vrot.lane.b32.xlu0 %v51, 55
  %v5576 = vpop.permute.xlu0 %5575
  %5577 = vrot.lane.b32.xlu0 %v52, 55
  %v5578 = vpop.permute.xlu0 %5577
  %5579 = vrot.lane.b32.xlu0 %v53, 55
  %v5580 = vpop.permute.xlu0 %5579
  %5581 = vrot.lane.b32.xlu0 %v54, 55
  %v5582 = vpop.permute.xlu0 %5581
  %5583 = vrot.lane.b32.xlu0 %v55, 55
  %v5584 = vpop.permute.xlu0 %5583
  %vm5585 = vcmask 449536
  %v5586 = vsel %vm5585, %v5544, %v5546
  %v5587 = vsel %vm5585, %v5546, %v5548
  %v5588 = vsel %vm5585, %v5548, %v5550
  %v5589 = vsel %vm5585, %v5550, %v5552
  %v5590 = vsel %vm5585, %v5552, %v5554
  %v5591 = vsel %vm5585, %v5554, %v5556
  %v5592 = vsel %vm5585, %v5556, %v5558
  %v5593 = vsel %vm5585, %v5558, %v5560
  %v5594 = vsel %vm5585, %v5560, %v5562
  %v5595 = vsel %vm5585, %v5562, %v5564
  %v5596 = vsel %vm5585, %v5564, %v5566
  %v5597 = vsel %vm5585, %v5566, %v5568
  %v5598 = vsel %vm5585, %v5568, %v5570
  %v5599 = vsel %vm5585, %v5570, %v5572
  %v5600 = vsel %vm5585, %v5572, %v5574
  %v5601 = vsel %vm5585, %v5574, %v5576
  %v5602 = vsel %vm5585, %v5576, %v5578
  %v5603 = vsel %vm5585, %v5578, %v5580
  %v5604 = vsel %vm5585, %v5580, %v5582
  %v5605 = vsel %vm5585, %v5582, %v5584
  %v5627 = vsel %vm162, %v5542, 0
  %5629 = vmatpush.msra.mxu0 0.0
  %5630 = vmatpush.msra.mxu0 0.0
  %5631 = vmatpush.msra.mxu0 0.0
  %5632 = vmatpush.msra.mxu0 0.0
  %5633 = vmatpush.msra.mxu0 0.0
  %5634 = vmatpush.msra.mxu0 0.0
  %5635 = vmatpush.msra.mxu0 0.0
  %5636 = vmatpush.msra.mxu0 0.0
  %5637 = vmatpush.msra.mxu0 0.0
  %5638 = vmatpush.msra.mxu0 0.0
  %5639 = vmatpush.msra.mxu0 0.0
  %5640 = vmatpush.msra.mxu0 0.0
  %5641 = vmatpush.msra.mxu0 0.0
  %5642 = vmatpush.msra.mxu0 0.0
  %5643 = vmatpush.msra.mxu0 0.0
  %5644 = vmatpush.msra.mxu0 %v5586
  %5645 = vmatmul.f32.gmra.mxu0 %v5627
  %v5646 = vpop.f32.mrf.mxu0
  %v5647 = vadd.f32 0.0, %v5646
  %5648 = vdwg.mxu0
  %5649 = vmatpush.msra.mxu0 0.0
  %5650 = vmatpush.msra.mxu0 0.0
  %5651 = vmatpush.msra.mxu0 0.0
  %5652 = vmatpush.msra.mxu0 0.0
  %5653 = vmatpush.msra.mxu0 0.0
  %5654 = vmatpush.msra.mxu0 0.0
  %5655 = vmatpush.msra.mxu0 0.0
  %5656 = vmatpush.msra.mxu0 0.0
  %5657 = vmatpush.msra.mxu0 0.0
  %5658 = vmatpush.msra.mxu0 0.0
  %5659 = vmatpush.msra.mxu0 0.0
  %5660 = vmatpush.msra.mxu0 0.0
  %5661 = vmatpush.msra.mxu0 0.0
  %5662 = vmatpush.msra.mxu0 0.0
  %5663 = vmatpush.msra.mxu0 0.0
  %5664 = vmatpush.msra.mxu0 %v5587
  %5665 = vmatmul.f32.gmra.mxu0 %v5627
  %v5666 = vpop.f32.mrf.mxu0
  %v5667 = vadd.f32 0.0, %v5666
  %5668 = vdwg.mxu0
  %5669 = vmatpush.msra.mxu0 0.0
  %5670 = vmatpush.msra.mxu0 0.0
  %5671 = vmatpush.msra.mxu0 0.0
  %5672 = vmatpush.msra.mxu0 0.0
  %5673 = vmatpush.msra.mxu0 0.0
  %5674 = vmatpush.msra.mxu0 0.0
  %5675 = vmatpush.msra.mxu0 0.0
  %5676 = vmatpush.msra.mxu0 0.0
  %5677 = vmatpush.msra.mxu0 0.0
  %5678 = vmatpush.msra.mxu0 0.0
  %5679 = vmatpush.msra.mxu0 0.0
  %5680 = vmatpush.msra.mxu0 0.0
  %5681 = vmatpush.msra.mxu0 0.0
  %5682 = vmatpush.msra.mxu0 0.0
  %5683 = vmatpush.msra.mxu0 0.0
  %5684 = vmatpush.msra.mxu0 %v5588
  %5685 = vmatmul.f32.gmra.mxu0 %v5627
  %v5686 = vpop.f32.mrf.mxu0
  %v5687 = vadd.f32 0.0, %v5686
  %5688 = vdwg.mxu0
  %5689 = vmatpush.msra.mxu0 0.0
  %5690 = vmatpush.msra.mxu0 0.0
  %5691 = vmatpush.msra.mxu0 0.0
  %5692 = vmatpush.msra.mxu0 0.0
  %5693 = vmatpush.msra.mxu0 0.0
  %5694 = vmatpush.msra.mxu0 0.0
  %5695 = vmatpush.msra.mxu0 0.0
  %5696 = vmatpush.msra.mxu0 0.0
  %5697 = vmatpush.msra.mxu0 0.0
  %5698 = vmatpush.msra.mxu0 0.0
  %5699 = vmatpush.msra.mxu0 0.0
  %5700 = vmatpush.msra.mxu0 0.0
  %5701 = vmatpush.msra.mxu0 0.0
  %5702 = vmatpush.msra.mxu0 0.0
  %5703 = vmatpush.msra.mxu0 0.0
  %5704 = vmatpush.msra.mxu0 %v5589
  %5705 = vmatmul.f32.gmra.mxu0 %v5627
  %v5706 = vpop.f32.mrf.mxu0
  %v5707 = vadd.f32 0.0, %v5706
  %5708 = vdwg.mxu0
  %5709 = vmatpush.msra.mxu0 0.0
  %5710 = vmatpush.msra.mxu0 0.0
  %5711 = vmatpush.msra.mxu0 0.0
  %5712 = vmatpush.msra.mxu0 0.0
  %5713 = vmatpush.msra.mxu0 0.0
  %5714 = vmatpush.msra.mxu0 0.0
  %5715 = vmatpush.msra.mxu0 0.0
  %5716 = vmatpush.msra.mxu0 0.0
  %5717 = vmatpush.msra.mxu0 0.0
  %5718 = vmatpush.msra.mxu0 0.0
  %5719 = vmatpush.msra.mxu0 0.0
  %5720 = vmatpush.msra.mxu0 0.0
  %5721 = vmatpush.msra.mxu0 0.0
  %5722 = vmatpush.msra.mxu0 0.0
  %5723 = vmatpush.msra.mxu0 0.0
  %5724 = vmatpush.msra.mxu0 %v5590
  %5725 = vmatmul.f32.gmra.mxu0 %v5627
  %v5726 = vpop.f32.mrf.mxu0
  %v5727 = vadd.f32 0.0, %v5726
  %5728 = vdwg.mxu0
  %5729 = vmatpush.msra.mxu0 0.0
  %5730 = vmatpush.msra.mxu0 0.0
  %5731 = vmatpush.msra.mxu0 0.0
  %5732 = vmatpush.msra.mxu0 0.0
  %5733 = vmatpush.msra.mxu0 0.0
  %5734 = vmatpush.msra.mxu0 0.0
  %5735 = vmatpush.msra.mxu0 0.0
  %5736 = vmatpush.msra.mxu0 0.0
  %5737 = vmatpush.msra.mxu0 0.0
  %5738 = vmatpush.msra.mxu0 0.0
  %5739 = vmatpush.msra.mxu0 0.0
  %5740 = vmatpush.msra.mxu0 0.0
  %5741 = vmatpush.msra.mxu0 0.0
  %5742 = vmatpush.msra.mxu0 0.0
  %5743 = vmatpush.msra.mxu0 0.0
  %5744 = vmatpush.msra.mxu0 %v5591
  %5745 = vmatmul.f32.gmra.mxu0 %v5627
  %v5746 = vpop.f32.mrf.mxu0
  %v5747 = vadd.f32 0.0, %v5746
  %5748 = vdwg.mxu0
  %5749 = vmatpush.msra.mxu0 0.0
  %5750 = vmatpush.msra.mxu0 0.0
  %5751 = vmatpush.msra.mxu0 0.0
  %5752 = vmatpush.msra.mxu0 0.0
  %5753 = vmatpush.msra.mxu0 0.0
  %5754 = vmatpush.msra.mxu0 0.0
  %5755 = vmatpush.msra.mxu0 0.0
  %5756 = vmatpush.msra.mxu0 0.0
  %5757 = vmatpush.msra.mxu0 0.0
  %5758 = vmatpush.msra.mxu0 0.0
  %5759 = vmatpush.msra.mxu0 0.0
  %5760 = vmatpush.msra.mxu0 0.0
  %5761 = vmatpush.msra.mxu0 0.0
  %5762 = vmatpush.msra.mxu0 0.0
  %5763 = vmatpush.msra.mxu0 0.0
  %5764 = vmatpush.msra.mxu0 %v5592
  %5765 = vmatmul.f32.gmra.mxu0 %v5627
  %v5766 = vpop.f32.mrf.mxu0
  %v5767 = vadd.f32 0.0, %v5766
  %5768 = vdwg.mxu0
  %5769 = vmatpush.msra.mxu0 0.0
  %5770 = vmatpush.msra.mxu0 0.0
  %5771 = vmatpush.msra.mxu0 0.0
  %5772 = vmatpush.msra.mxu0 0.0
  %5773 = vmatpush.msra.mxu0 0.0
  %5774 = vmatpush.msra.mxu0 0.0
  %5775 = vmatpush.msra.mxu0 0.0
  %5776 = vmatpush.msra.mxu0 0.0
  %5777 = vmatpush.msra.mxu0 0.0
  %5778 = vmatpush.msra.mxu0 0.0
  %5779 = vmatpush.msra.mxu0 0.0
  %5780 = vmatpush.msra.mxu0 0.0
  %5781 = vmatpush.msra.mxu0 0.0
  %5782 = vmatpush.msra.mxu0 0.0
  %5783 = vmatpush.msra.mxu0 0.0
  %5784 = vmatpush.msra.mxu0 %v5593
  %5785 = vmatmul.f32.gmra.mxu0 %v5627
  %v5786 = vpop.f32.mrf.mxu0
  %v5787 = vadd.f32 0.0, %v5786
  %5788 = vdwg.mxu0
  %5789 = vmatpush.msra.mxu0 0.0
  %5790 = vmatpush.msra.mxu0 0.0
  %5791 = vmatpush.msra.mxu0 0.0
  %5792 = vmatpush.msra.mxu0 0.0
  %5793 = vmatpush.msra.mxu0 0.0
  %5794 = vmatpush.msra.mxu0 0.0
  %5795 = vmatpush.msra.mxu0 0.0
  %5796 = vmatpush.msra.mxu0 0.0
  %5797 = vmatpush.msra.mxu0 0.0
  %5798 = vmatpush.msra.mxu0 0.0
  %5799 = vmatpush.msra.mxu0 0.0
  %5800 = vmatpush.msra.mxu0 0.0
  %5801 = vmatpush.msra.mxu0 0.0
  %5802 = vmatpush.msra.mxu0 0.0
  %5803 = vmatpush.msra.mxu0 0.0
  %5804 = vmatpush.msra.mxu0 %v5594
  %5805 = vmatmul.f32.gmra.mxu0 %v5627
  %v5806 = vpop.f32.mrf.mxu0
  %v5807 = vadd.f32 0.0, %v5806
  %5808 = vdwg.mxu0
  %5809 = vmatpush.msra.mxu0 0.0
  %5810 = vmatpush.msra.mxu0 0.0
  %5811 = vmatpush.msra.mxu0 0.0
  %5812 = vmatpush.msra.mxu0 0.0
  %5813 = vmatpush.msra.mxu0 0.0
  %5814 = vmatpush.msra.mxu0 0.0
  %5815 = vmatpush.msra.mxu0 0.0
  %5816 = vmatpush.msra.mxu0 0.0
  %5817 = vmatpush.msra.mxu0 0.0
  %5818 = vmatpush.msra.mxu0 0.0
  %5819 = vmatpush.msra.mxu0 0.0
  %5820 = vmatpush.msra.mxu0 0.0
  %5821 = vmatpush.msra.mxu0 0.0
  %5822 = vmatpush.msra.mxu0 0.0
  %5823 = vmatpush.msra.mxu0 0.0
  %5824 = vmatpush.msra.mxu0 %v5595
  %5825 = vmatmul.f32.gmra.mxu0 %v5627
  %v5826 = vpop.f32.mrf.mxu0
  %v5827 = vadd.f32 0.0, %v5826
  %5828 = vdwg.mxu0
  %5829 = vmatpush.msra.mxu0 0.0
  %5830 = vmatpush.msra.mxu0 0.0
  %5831 = vmatpush.msra.mxu0 0.0
  %5832 = vmatpush.msra.mxu0 0.0
  %5833 = vmatpush.msra.mxu0 0.0
  %5834 = vmatpush.msra.mxu0 0.0
  %5835 = vmatpush.msra.mxu0 0.0
  %5836 = vmatpush.msra.mxu0 0.0
  %5837 = vmatpush.msra.mxu0 0.0
  %5838 = vmatpush.msra.mxu0 0.0
  %5839 = vmatpush.msra.mxu0 0.0
  %5840 = vmatpush.msra.mxu0 0.0
  %5841 = vmatpush.msra.mxu0 0.0
  %5842 = vmatpush.msra.mxu0 0.0
  %5843 = vmatpush.msra.mxu0 0.0
  %5844 = vmatpush.msra.mxu0 %v5596
  %5845 = vmatmul.f32.gmra.mxu0 %v5627
  %v5846 = vpop.f32.mrf.mxu0
  %v5847 = vadd.f32 0.0, %v5846
  %5848 = vdwg.mxu0
  %5849 = vmatpush.msra.mxu0 0.0
  %5850 = vmatpush.msra.mxu0 0.0
  %5851 = vmatpush.msra.mxu0 0.0
  %5852 = vmatpush.msra.mxu0 0.0
  %5853 = vmatpush.msra.mxu0 0.0
  %5854 = vmatpush.msra.mxu0 0.0
  %5855 = vmatpush.msra.mxu0 0.0
  %5856 = vmatpush.msra.mxu0 0.0
  %5857 = vmatpush.msra.mxu0 0.0
  %5858 = vmatpush.msra.mxu0 0.0
  %5859 = vmatpush.msra.mxu0 0.0
  %5860 = vmatpush.msra.mxu0 0.0
  %5861 = vmatpush.msra.mxu0 0.0
  %5862 = vmatpush.msra.mxu0 0.0
  %5863 = vmatpush.msra.mxu0 0.0
  %5864 = vmatpush.msra.mxu0 %v5597
  %5865 = vmatmul.f32.gmra.mxu0 %v5627
  %v5866 = vpop.f32.mrf.mxu0
  %v5867 = vadd.f32 0.0, %v5866
  %5868 = vdwg.mxu0
  %5869 = vmatpush.msra.mxu0 0.0
  %5870 = vmatpush.msra.mxu0 0.0
  %5871 = vmatpush.msra.mxu0 0.0
  %5872 = vmatpush.msra.mxu0 0.0
  %5873 = vmatpush.msra.mxu0 0.0
  %5874 = vmatpush.msra.mxu0 0.0
  %5875 = vmatpush.msra.mxu0 0.0
  %5876 = vmatpush.msra.mxu0 0.0
  %5877 = vmatpush.msra.mxu0 0.0
  %5878 = vmatpush.msra.mxu0 0.0
  %5879 = vmatpush.msra.mxu0 0.0
  %5880 = vmatpush.msra.mxu0 0.0
  %5881 = vmatpush.msra.mxu0 0.0
  %5882 = vmatpush.msra.mxu0 0.0
  %5883 = vmatpush.msra.mxu0 0.0
  %5884 = vmatpush.msra.mxu0 %v5598
  %5885 = vmatmul.f32.gmra.mxu0 %v5627
  %v5886 = vpop.f32.mrf.mxu0
  %v5887 = vadd.f32 0.0, %v5886
  %5888 = vdwg.mxu0
  %5889 = vmatpush.msra.mxu0 0.0
  %5890 = vmatpush.msra.mxu0 0.0
  %5891 = vmatpush.msra.mxu0 0.0
  %5892 = vmatpush.msra.mxu0 0.0
  %5893 = vmatpush.msra.mxu0 0.0
  %5894 = vmatpush.msra.mxu0 0.0
  %5895 = vmatpush.msra.mxu0 0.0
  %5896 = vmatpush.msra.mxu0 0.0
  %5897 = vmatpush.msra.mxu0 0.0
  %5898 = vmatpush.msra.mxu0 0.0
  %5899 = vmatpush.msra.mxu0 0.0
  %5900 = vmatpush.msra.mxu0 0.0
  %5901 = vmatpush.msra.mxu0 0.0
  %5902 = vmatpush.msra.mxu0 0.0
  %5903 = vmatpush.msra.mxu0 0.0
  %5904 = vmatpush.msra.mxu0 %v5599
  %5905 = vmatmul.f32.gmra.mxu0 %v5627
  %v5906 = vpop.f32.mrf.mxu0
  %v5907 = vadd.f32 0.0, %v5906
  %5908 = vdwg.mxu0
  %5909 = vmatpush.msra.mxu0 0.0
  %5910 = vmatpush.msra.mxu0 0.0
  %5911 = vmatpush.msra.mxu0 0.0
  %5912 = vmatpush.msra.mxu0 0.0
  %5913 = vmatpush.msra.mxu0 0.0
  %5914 = vmatpush.msra.mxu0 0.0
  %5915 = vmatpush.msra.mxu0 0.0
  %5916 = vmatpush.msra.mxu0 0.0
  %5917 = vmatpush.msra.mxu0 0.0
  %5918 = vmatpush.msra.mxu0 0.0
  %5919 = vmatpush.msra.mxu0 0.0
  %5920 = vmatpush.msra.mxu0 0.0
  %5921 = vmatpush.msra.mxu0 0.0
  %5922 = vmatpush.msra.mxu0 0.0
  %5923 = vmatpush.msra.mxu0 0.0
  %5924 = vmatpush.msra.mxu0 %v5600
  %5925 = vmatmul.f32.gmra.mxu0 %v5627
  %v5926 = vpop.f32.mrf.mxu0
  %v5927 = vadd.f32 0.0, %v5926
  %5928 = vdwg.mxu0
  %5929 = vmatpush.msra.mxu0 0.0
  %5930 = vmatpush.msra.mxu0 0.0
  %5931 = vmatpush.msra.mxu0 0.0
  %5932 = vmatpush.msra.mxu0 0.0
  %5933 = vmatpush.msra.mxu0 0.0
  %5934 = vmatpush.msra.mxu0 0.0
  %5935 = vmatpush.msra.mxu0 0.0
  %5936 = vmatpush.msra.mxu0 0.0
  %5937 = vmatpush.msra.mxu0 0.0
  %5938 = vmatpush.msra.mxu0 0.0
  %5939 = vmatpush.msra.mxu0 0.0
  %5940 = vmatpush.msra.mxu0 0.0
  %5941 = vmatpush.msra.mxu0 0.0
  %5942 = vmatpush.msra.mxu0 0.0
  %5943 = vmatpush.msra.mxu0 0.0
  %5944 = vmatpush.msra.mxu0 %v5601
  %5945 = vmatmul.f32.gmra.mxu0 %v5627
  %v5946 = vpop.f32.mrf.mxu0
  %v5947 = vadd.f32 0.0, %v5946
  %5948 = vdwg.mxu0
  %5949 = vmatpush.msra.mxu0 0.0
  %5950 = vmatpush.msra.mxu0 0.0
  %5951 = vmatpush.msra.mxu0 0.0
  %5952 = vmatpush.msra.mxu0 0.0
  %5953 = vmatpush.msra.mxu0 0.0
  %5954 = vmatpush.msra.mxu0 0.0
  %5955 = vmatpush.msra.mxu0 0.0
  %5956 = vmatpush.msra.mxu0 0.0
  %5957 = vmatpush.msra.mxu0 0.0
  %5958 = vmatpush.msra.mxu0 0.0
  %5959 = vmatpush.msra.mxu0 0.0
  %5960 = vmatpush.msra.mxu0 0.0
  %5961 = vmatpush.msra.mxu0 0.0
  %5962 = vmatpush.msra.mxu0 0.0
  %5963 = vmatpush.msra.mxu0 0.0
  %5964 = vmatpush.msra.mxu0 %v5602
  %5965 = vmatmul.f32.gmra.mxu0 %v5627
  %v5966 = vpop.f32.mrf.mxu0
  %v5967 = vadd.f32 0.0, %v5966
  %5968 = vdwg.mxu0
  %5969 = vmatpush.msra.mxu0 0.0
  %5970 = vmatpush.msra.mxu0 0.0
  %5971 = vmatpush.msra.mxu0 0.0
  %5972 = vmatpush.msra.mxu0 0.0
  %5973 = vmatpush.msra.mxu0 0.0
  %5974 = vmatpush.msra.mxu0 0.0
  %5975 = vmatpush.msra.mxu0 0.0
  %5976 = vmatpush.msra.mxu0 0.0
  %5977 = vmatpush.msra.mxu0 0.0
  %5978 = vmatpush.msra.mxu0 0.0
  %5979 = vmatpush.msra.mxu0 0.0
  %5980 = vmatpush.msra.mxu0 0.0
  %5981 = vmatpush.msra.mxu0 0.0
  %5982 = vmatpush.msra.mxu0 0.0
  %5983 = vmatpush.msra.mxu0 0.0
  %5984 = vmatpush.msra.mxu0 %v5603
  %5985 = vmatmul.f32.gmra.mxu0 %v5627
  %v5986 = vpop.f32.mrf.mxu0
  %v5987 = vadd.f32 0.0, %v5986
  %5988 = vdwg.mxu0
  %5989 = vmatpush.msra.mxu0 0.0
  %5990 = vmatpush.msra.mxu0 0.0
  %5991 = vmatpush.msra.mxu0 0.0
  %5992 = vmatpush.msra.mxu0 0.0
  %5993 = vmatpush.msra.mxu0 0.0
  %5994 = vmatpush.msra.mxu0 0.0
  %5995 = vmatpush.msra.mxu0 0.0
  %5996 = vmatpush.msra.mxu0 0.0
  %5997 = vmatpush.msra.mxu0 0.0
  %5998 = vmatpush.msra.mxu0 0.0
  %5999 = vmatpush.msra.mxu0 0.0
  %6000 = vmatpush.msra.mxu0 0.0
  %6001 = vmatpush.msra.mxu0 0.0
  %6002 = vmatpush.msra.mxu0 0.0
  %6003 = vmatpush.msra.mxu0 0.0
  %6004 = vmatpush.msra.mxu0 %v5604
  %6005 = vmatmul.f32.gmra.mxu0 %v5627
  %v6006 = vpop.f32.mrf.mxu0
  %v6007 = vadd.f32 0.0, %v6006
  %6008 = vdwg.mxu0
  %6009 = vmatpush.msra.mxu0 0.0
  %6010 = vmatpush.msra.mxu0 0.0
  %6011 = vmatpush.msra.mxu0 0.0
  %6012 = vmatpush.msra.mxu0 0.0
  %6013 = vmatpush.msra.mxu0 0.0
  %6014 = vmatpush.msra.mxu0 0.0
  %6015 = vmatpush.msra.mxu0 0.0
  %6016 = vmatpush.msra.mxu0 0.0
  %6017 = vmatpush.msra.mxu0 0.0
  %6018 = vmatpush.msra.mxu0 0.0
  %6019 = vmatpush.msra.mxu0 0.0
  %6020 = vmatpush.msra.mxu0 0.0
  %6021 = vmatpush.msra.mxu0 0.0
  %6022 = vmatpush.msra.mxu0 0.0
  %6023 = vmatpush.msra.mxu0 0.0
  %6024 = vmatpush.msra.mxu0 %v5605
  %6025 = vmatmul.f32.gmra.mxu0 %v5627
  %v6026 = vpop.f32.mrf.mxu0
  %v6027 = vadd.f32 0.0, %v6026
  %6028 = vdwg.mxu0
  %v6029 = vadd.f32 %v5521, %v5647
  %v6030 = vadd.f32 %v5522, %v5667
  %v6031 = vadd.f32 %v5523, %v5687
  %v6032 = vadd.f32 %v5524, %v5707
  %v6033 = vadd.f32 %v5525, %v5727
  %v6034 = vadd.f32 %v5526, %v5747
  %v6035 = vadd.f32 %v5527, %v5767
  %v6036 = vadd.f32 %v5528, %v5787
  %v6037 = vadd.f32 %v5529, %v5807
  %v6038 = vadd.f32 %v5530, %v5827
  %v6039 = vadd.f32 %v5531, %v5847
  %v6040 = vadd.f32 %v5532, %v5867
  %v6041 = vadd.f32 %v5533, %v5887
  %v6042 = vadd.f32 %v5534, %v5907
  %v6043 = vadd.f32 %v5535, %v5927
  %v6044 = vadd.f32 %v5536, %v5947
  %v6045 = vadd.f32 %v5537, %v5967
  %v6046 = vadd.f32 %v5538, %v5987
  %v6047 = vadd.f32 %v5539, %v6007
  %v6048 = vadd.f32 %v5540, %v6027
  %s6049 = scalar_lea.vmem %s0, 96
  %v6050 = vld [vmem:[%s6049] sm:$0xff]
  %6051 = vrot.lane.b32.xlu0 %v35, 23
  %v6052 = vpop.permute.xlu0 %6051
  %6053 = vrot.lane.b32.xlu0 %v36, 23
  %v6054 = vpop.permute.xlu0 %6053
  %6055 = vrot.lane.b32.xlu0 %v37, 23
  %v6056 = vpop.permute.xlu0 %6055
  %6057 = vrot.lane.b32.xlu0 %v38, 23
  %v6058 = vpop.permute.xlu0 %6057
  %6059 = vrot.lane.b32.xlu0 %v39, 23
  %v6060 = vpop.permute.xlu0 %6059
  %6061 = vrot.lane.b32.xlu0 %v40, 23
  %v6062 = vpop.permute.xlu0 %6061
  %6063 = vrot.lane.b32.xlu0 %v41, 23
  %v6064 = vpop.permute.xlu0 %6063
  %6065 = vrot.lane.b32.xlu0 %v42, 23
  %v6066 = vpop.permute.xlu0 %6065
  %6067 = vrot.lane.b32.xlu0 %v43, 23
  %v6068 = vpop.permute.xlu0 %6067
  %6069 = vrot.lane.b32.xlu0 %v44, 23
  %v6070 = vpop.permute.xlu0 %6069
  %6071 = vrot.lane.b32.xlu0 %v45, 23
  %v6072 = vpop.permute.xlu0 %6071
  %6073 = vrot.lane.b32.xlu0 %v46, 23
  %v6074 = vpop.permute.xlu0 %6073
  %6075 = vrot.lane.b32.xlu0 %v47, 23
  %v6076 = vpop.permute.xlu0 %6075
  %6077 = vrot.lane.b32.xlu0 %v48, 23
  %v6078 = vpop.permute.xlu0 %6077
  %6079 = vrot.lane.b32.xlu0 %v49, 23
  %v6080 = vpop.permute.xlu0 %6079
  %6081 = vrot.lane.b32.xlu0 %v50, 23
  %v6082 = vpop.permute.xlu0 %6081
  %6083 = vrot.lane.b32.xlu0 %v51, 23
  %v6084 = vpop.permute.xlu0 %6083
  %6085 = vrot.lane.b32.xlu0 %v52, 23
  %v6086 = vpop.permute.xlu0 %6085
  %6087 = vrot.lane.b32.xlu0 %v53, 23
  %v6088 = vpop.permute.xlu0 %6087
  %6089 = vrot.lane.b32.xlu0 %v54, 23
  %v6090 = vpop.permute.xlu0 %6089
  %6091 = vrot.lane.b32.xlu0 %v55, 23
  %v6092 = vpop.permute.xlu0 %6091
  %vm6093 = vcmask 187392
  %v6094 = vsel %vm6093, %v6052, %v6054
  %v6095 = vsel %vm6093, %v6054, %v6056
  %v6096 = vsel %vm6093, %v6056, %v6058
  %v6097 = vsel %vm6093, %v6058, %v6060
  %v6098 = vsel %vm6093, %v6060, %v6062
  %v6099 = vsel %vm6093, %v6062, %v6064
  %v6100 = vsel %vm6093, %v6064, %v6066
  %v6101 = vsel %vm6093, %v6066, %v6068
  %v6102 = vsel %vm6093, %v6068, %v6070
  %v6103 = vsel %vm6093, %v6070, %v6072
  %v6104 = vsel %vm6093, %v6072, %v6074
  %v6105 = vsel %vm6093, %v6074, %v6076
  %v6106 = vsel %vm6093, %v6076, %v6078
  %v6107 = vsel %vm6093, %v6078, %v6080
  %v6108 = vsel %vm6093, %v6080, %v6082
  %v6109 = vsel %vm6093, %v6082, %v6084
  %v6110 = vsel %vm6093, %v6084, %v6086
  %v6111 = vsel %vm6093, %v6086, %v6088
  %v6112 = vsel %vm6093, %v6088, %v6090
  %v6113 = vsel %vm6093, %v6090, %v6092
  %v6135 = vsel %vm162, %v6050, 0
  %6137 = vmatpush.msra.mxu0 0.0
  %6138 = vmatpush.msra.mxu0 0.0
  %6139 = vmatpush.msra.mxu0 0.0
  %6140 = vmatpush.msra.mxu0 0.0
  %6141 = vmatpush.msra.mxu0 0.0
  %6142 = vmatpush.msra.mxu0 0.0
  %6143 = vmatpush.msra.mxu0 0.0
  %6144 = vmatpush.msra.mxu0 0.0
  %6145 = vmatpush.msra.mxu0 0.0
  %6146 = vmatpush.msra.mxu0 0.0
  %6147 = vmatpush.msra.mxu0 0.0
  %6148 = vmatpush.msra.mxu0 0.0
  %6149 = vmatpush.msra.mxu0 0.0
  %6150 = vmatpush.msra.mxu0 0.0
  %6151 = vmatpush.msra.mxu0 0.0
  %6152 = vmatpush.msra.mxu0 %v6094
  %6153 = vmatmul.f32.gmra.mxu0 %v6135
  %v6154 = vpop.f32.mrf.mxu0
  %v6155 = vadd.f32 0.0, %v6154
  %6156 = vdwg.mxu0
  %6157 = vmatpush.msra.mxu0 0.0
  %6158 = vmatpush.msra.mxu0 0.0
  %6159 = vmatpush.msra.mxu0 0.0
  %6160 = vmatpush.msra.mxu0 0.0
  %6161 = vmatpush.msra.mxu0 0.0
  %6162 = vmatpush.msra.mxu0 0.0
  %6163 = vmatpush.msra.mxu0 0.0
  %6164 = vmatpush.msra.mxu0 0.0
  %6165 = vmatpush.msra.mxu0 0.0
  %6166 = vmatpush.msra.mxu0 0.0
  %6167 = vmatpush.msra.mxu0 0.0
  %6168 = vmatpush.msra.mxu0 0.0
  %6169 = vmatpush.msra.mxu0 0.0
  %6170 = vmatpush.msra.mxu0 0.0
  %6171 = vmatpush.msra.mxu0 0.0
  %6172 = vmatpush.msra.mxu0 %v6095
  %6173 = vmatmul.f32.gmra.mxu0 %v6135
  %v6174 = vpop.f32.mrf.mxu0
  %v6175 = vadd.f32 0.0, %v6174
  %6176 = vdwg.mxu0
  %6177 = vmatpush.msra.mxu0 0.0
  %6178 = vmatpush.msra.mxu0 0.0
  %6179 = vmatpush.msra.mxu0 0.0
  %6180 = vmatpush.msra.mxu0 0.0
  %6181 = vmatpush.msra.mxu0 0.0
  %6182 = vmatpush.msra.mxu0 0.0
  %6183 = vmatpush.msra.mxu0 0.0
  %6184 = vmatpush.msra.mxu0 0.0
  %6185 = vmatpush.msra.mxu0 0.0
  %6186 = vmatpush.msra.mxu0 0.0
  %6187 = vmatpush.msra.mxu0 0.0
  %6188 = vmatpush.msra.mxu0 0.0
  %6189 = vmatpush.msra.mxu0 0.0
  %6190 = vmatpush.msra.mxu0 0.0
  %6191 = vmatpush.msra.mxu0 0.0
  %6192 = vmatpush.msra.mxu0 %v6096
  %6193 = vmatmul.f32.gmra.mxu0 %v6135
  %v6194 = vpop.f32.mrf.mxu0
  %v6195 = vadd.f32 0.0, %v6194
  %6196 = vdwg.mxu0
  %6197 = vmatpush.msra.mxu0 0.0
  %6198 = vmatpush.msra.mxu0 0.0
  %6199 = vmatpush.msra.mxu0 0.0
  %6200 = vmatpush.msra.mxu0 0.0
  %6201 = vmatpush.msra.mxu0 0.0
  %6202 = vmatpush.msra.mxu0 0.0
  %6203 = vmatpush.msra.mxu0 0.0
  %6204 = vmatpush.msra.mxu0 0.0
  %6205 = vmatpush.msra.mxu0 0.0
  %6206 = vmatpush.msra.mxu0 0.0
  %6207 = vmatpush.msra.mxu0 0.0
  %6208 = vmatpush.msra.mxu0 0.0
  %6209 = vmatpush.msra.mxu0 0.0
  %6210 = vmatpush.msra.mxu0 0.0
  %6211 = vmatpush.msra.mxu0 0.0
  %6212 = vmatpush.msra.mxu0 %v6097
  %6213 = vmatmul.f32.gmra.mxu0 %v6135
  %v6214 = vpop.f32.mrf.mxu0
  %v6215 = vadd.f32 0.0, %v6214
  %6216 = vdwg.mxu0
  %6217 = vmatpush.msra.mxu0 0.0
  %6218 = vmatpush.msra.mxu0 0.0
  %6219 = vmatpush.msra.mxu0 0.0
  %6220 = vmatpush.msra.mxu0 0.0
  %6221 = vmatpush.msra.mxu0 0.0
  %6222 = vmatpush.msra.mxu0 0.0
  %6223 = vmatpush.msra.mxu0 0.0
  %6224 = vmatpush.msra.mxu0 0.0
  %6225 = vmatpush.msra.mxu0 0.0
  %6226 = vmatpush.msra.mxu0 0.0
  %6227 = vmatpush.msra.mxu0 0.0
  %6228 = vmatpush.msra.mxu0 0.0
  %6229 = vmatpush.msra.mxu0 0.0
  %6230 = vmatpush.msra.mxu0 0.0
  %6231 = vmatpush.msra.mxu0 0.0
  %6232 = vmatpush.msra.mxu0 %v6098
  %6233 = vmatmul.f32.gmra.mxu0 %v6135
  %v6234 = vpop.f32.mrf.mxu0
  %v6235 = vadd.f32 0.0, %v6234
  %6236 = vdwg.mxu0
  %6237 = vmatpush.msra.mxu0 0.0
  %6238 = vmatpush.msra.mxu0 0.0
  %6239 = vmatpush.msra.mxu0 0.0
  %6240 = vmatpush.msra.mxu0 0.0
  %6241 = vmatpush.msra.mxu0 0.0
  %6242 = vmatpush.msra.mxu0 0.0
  %6243 = vmatpush.msra.mxu0 0.0
  %6244 = vmatpush.msra.mxu0 0.0
  %6245 = vmatpush.msra.mxu0 0.0
  %6246 = vmatpush.msra.mxu0 0.0
  %6247 = vmatpush.msra.mxu0 0.0
  %6248 = vmatpush.msra.mxu0 0.0
  %6249 = vmatpush.msra.mxu0 0.0
  %6250 = vmatpush.msra.mxu0 0.0
  %6251 = vmatpush.msra.mxu0 0.0
  %6252 = vmatpush.msra.mxu0 %v6099
  %6253 = vmatmul.f32.gmra.mxu0 %v6135
  %v6254 = vpop.f32.mrf.mxu0
  %v6255 = vadd.f32 0.0, %v6254
  %6256 = vdwg.mxu0
  %6257 = vmatpush.msra.mxu0 0.0
  %6258 = vmatpush.msra.mxu0 0.0
  %6259 = vmatpush.msra.mxu0 0.0
  %6260 = vmatpush.msra.mxu0 0.0
  %6261 = vmatpush.msra.mxu0 0.0
  %6262 = vmatpush.msra.mxu0 0.0
  %6263 = vmatpush.msra.mxu0 0.0
  %6264 = vmatpush.msra.mxu0 0.0
  %6265 = vmatpush.msra.mxu0 0.0
  %6266 = vmatpush.msra.mxu0 0.0
  %6267 = vmatpush.msra.mxu0 0.0
  %6268 = vmatpush.msra.mxu0 0.0
  %6269 = vmatpush.msra.mxu0 0.0
  %6270 = vmatpush.msra.mxu0 0.0
  %6271 = vmatpush.msra.mxu0 0.0
  %6272 = vmatpush.msra.mxu0 %v6100
  %6273 = vmatmul.f32.gmra.mxu0 %v6135
  %v6274 = vpop.f32.mrf.mxu0
  %v6275 = vadd.f32 0.0, %v6274
  %6276 = vdwg.mxu0
  %6277 = vmatpush.msra.mxu0 0.0
  %6278 = vmatpush.msra.mxu0 0.0
  %6279 = vmatpush.msra.mxu0 0.0
  %6280 = vmatpush.msra.mxu0 0.0
  %6281 = vmatpush.msra.mxu0 0.0
  %6282 = vmatpush.msra.mxu0 0.0
  %6283 = vmatpush.msra.mxu0 0.0
  %6284 = vmatpush.msra.mxu0 0.0
  %6285 = vmatpush.msra.mxu0 0.0
  %6286 = vmatpush.msra.mxu0 0.0
  %6287 = vmatpush.msra.mxu0 0.0
  %6288 = vmatpush.msra.mxu0 0.0
  %6289 = vmatpush.msra.mxu0 0.0
  %6290 = vmatpush.msra.mxu0 0.0
  %6291 = vmatpush.msra.mxu0 0.0
  %6292 = vmatpush.msra.mxu0 %v6101
  %6293 = vmatmul.f32.gmra.mxu0 %v6135
  %v6294 = vpop.f32.mrf.mxu0
  %v6295 = vadd.f32 0.0, %v6294
  %6296 = vdwg.mxu0
  %6297 = vmatpush.msra.mxu0 0.0
  %6298 = vmatpush.msra.mxu0 0.0
  %6299 = vmatpush.msra.mxu0 0.0
  %6300 = vmatpush.msra.mxu0 0.0
  %6301 = vmatpush.msra.mxu0 0.0
  %6302 = vmatpush.msra.mxu0 0.0
  %6303 = vmatpush.msra.mxu0 0.0
  %6304 = vmatpush.msra.mxu0 0.0
  %6305 = vmatpush.msra.mxu0 0.0
  %6306 = vmatpush.msra.mxu0 0.0
  %6307 = vmatpush.msra.mxu0 0.0
  %6308 = vmatpush.msra.mxu0 0.0
  %6309 = vmatpush.msra.mxu0 0.0
  %6310 = vmatpush.msra.mxu0 0.0
  %6311 = vmatpush.msra.mxu0 0.0
  %6312 = vmatpush.msra.mxu0 %v6102
  %6313 = vmatmul.f32.gmra.mxu0 %v6135
  %v6314 = vpop.f32.mrf.mxu0
  %v6315 = vadd.f32 0.0, %v6314
  %6316 = vdwg.mxu0
  %6317 = vmatpush.msra.mxu0 0.0
  %6318 = vmatpush.msra.mxu0 0.0
  %6319 = vmatpush.msra.mxu0 0.0
  %6320 = vmatpush.msra.mxu0 0.0
  %6321 = vmatpush.msra.mxu0 0.0
  %6322 = vmatpush.msra.mxu0 0.0
  %6323 = vmatpush.msra.mxu0 0.0
  %6324 = vmatpush.msra.mxu0 0.0
  %6325 = vmatpush.msra.mxu0 0.0
  %6326 = vmatpush.msra.mxu0 0.0
  %6327 = vmatpush.msra.mxu0 0.0
  %6328 = vmatpush.msra.mxu0 0.0
  %6329 = vmatpush.msra.mxu0 0.0
  %6330 = vmatpush.msra.mxu0 0.0
  %6331 = vmatpush.msra.mxu0 0.0
  %6332 = vmatpush.msra.mxu0 %v6103
  %6333 = vmatmul.f32.gmra.mxu0 %v6135
  %v6334 = vpop.f32.mrf.mxu0
  %v6335 = vadd.f32 0.0, %v6334
  %6336 = vdwg.mxu0
  %6337 = vmatpush.msra.mxu0 0.0
  %6338 = vmatpush.msra.mxu0 0.0
  %6339 = vmatpush.msra.mxu0 0.0
  %6340 = vmatpush.msra.mxu0 0.0
  %6341 = vmatpush.msra.mxu0 0.0
  %6342 = vmatpush.msra.mxu0 0.0
  %6343 = vmatpush.msra.mxu0 0.0
  %6344 = vmatpush.msra.mxu0 0.0
  %6345 = vmatpush.msra.mxu0 0.0
  %6346 = vmatpush.msra.mxu0 0.0
  %6347 = vmatpush.msra.mxu0 0.0
  %6348 = vmatpush.msra.mxu0 0.0
  %6349 = vmatpush.msra.mxu0 0.0
  %6350 = vmatpush.msra.mxu0 0.0
  %6351 = vmatpush.msra.mxu0 0.0
  %6352 = vmatpush.msra.mxu0 %v6104
  %6353 = vmatmul.f32.gmra.mxu0 %v6135
  %v6354 = vpop.f32.mrf.mxu0
  %v6355 = vadd.f32 0.0, %v6354
  %6356 = vdwg.mxu0
  %6357 = vmatpush.msra.mxu0 0.0
  %6358 = vmatpush.msra.mxu0 0.0
  %6359 = vmatpush.msra.mxu0 0.0
  %6360 = vmatpush.msra.mxu0 0.0
  %6361 = vmatpush.msra.mxu0 0.0
  %6362 = vmatpush.msra.mxu0 0.0
  %6363 = vmatpush.msra.mxu0 0.0
  %6364 = vmatpush.msra.mxu0 0.0
  %6365 = vmatpush.msra.mxu0 0.0
  %6366 = vmatpush.msra.mxu0 0.0
  %6367 = vmatpush.msra.mxu0 0.0
  %6368 = vmatpush.msra.mxu0 0.0
  %6369 = vmatpush.msra.mxu0 0.0
  %6370 = vmatpush.msra.mxu0 0.0
  %6371 = vmatpush.msra.mxu0 0.0
  %6372 = vmatpush.msra.mxu0 %v6105
  %6373 = vmatmul.f32.gmra.mxu0 %v6135
  %v6374 = vpop.f32.mrf.mxu0
  %v6375 = vadd.f32 0.0, %v6374
  %6376 = vdwg.mxu0
  %6377 = vmatpush.msra.mxu0 0.0
  %6378 = vmatpush.msra.mxu0 0.0
  %6379 = vmatpush.msra.mxu0 0.0
  %6380 = vmatpush.msra.mxu0 0.0
  %6381 = vmatpush.msra.mxu0 0.0
  %6382 = vmatpush.msra.mxu0 0.0
  %6383 = vmatpush.msra.mxu0 0.0
  %6384 = vmatpush.msra.mxu0 0.0
  %6385 = vmatpush.msra.mxu0 0.0
  %6386 = vmatpush.msra.mxu0 0.0
  %6387 = vmatpush.msra.mxu0 0.0
  %6388 = vmatpush.msra.mxu0 0.0
  %6389 = vmatpush.msra.mxu0 0.0
  %6390 = vmatpush.msra.mxu0 0.0
  %6391 = vmatpush.msra.mxu0 0.0
  %6392 = vmatpush.msra.mxu0 %v6106
  %6393 = vmatmul.f32.gmra.mxu0 %v6135
  %v6394 = vpop.f32.mrf.mxu0
  %v6395 = vadd.f32 0.0, %v6394
  %6396 = vdwg.mxu0
  %6397 = vmatpush.msra.mxu0 0.0
  %6398 = vmatpush.msra.mxu0 0.0
  %6399 = vmatpush.msra.mxu0 0.0
  %6400 = vmatpush.msra.mxu0 0.0
  %6401 = vmatpush.msra.mxu0 0.0
  %6402 = vmatpush.msra.mxu0 0.0
  %6403 = vmatpush.msra.mxu0 0.0
  %6404 = vmatpush.msra.mxu0 0.0
  %6405 = vmatpush.msra.mxu0 0.0
  %6406 = vmatpush.msra.mxu0 0.0
  %6407 = vmatpush.msra.mxu0 0.0
  %6408 = vmatpush.msra.mxu0 0.0
  %6409 = vmatpush.msra.mxu0 0.0
  %6410 = vmatpush.msra.mxu0 0.0
  %6411 = vmatpush.msra.mxu0 0.0
  %6412 = vmatpush.msra.mxu0 %v6107
  %6413 = vmatmul.f32.gmra.mxu0 %v6135
  %v6414 = vpop.f32.mrf.mxu0
  %v6415 = vadd.f32 0.0, %v6414
  %6416 = vdwg.mxu0
  %6417 = vmatpush.msra.mxu0 0.0
  %6418 = vmatpush.msra.mxu0 0.0
  %6419 = vmatpush.msra.mxu0 0.0
  %6420 = vmatpush.msra.mxu0 0.0
  %6421 = vmatpush.msra.mxu0 0.0
  %6422 = vmatpush.msra.mxu0 0.0
  %6423 = vmatpush.msra.mxu0 0.0
  %6424 = vmatpush.msra.mxu0 0.0
  %6425 = vmatpush.msra.mxu0 0.0
  %6426 = vmatpush.msra.mxu0 0.0
  %6427 = vmatpush.msra.mxu0 0.0
  %6428 = vmatpush.msra.mxu0 0.0
  %6429 = vmatpush.msra.mxu0 0.0
  %6430 = vmatpush.msra.mxu0 0.0
  %6431 = vmatpush.msra.mxu0 0.0
  %6432 = vmatpush.msra.mxu0 %v6108
  %6433 = vmatmul.f32.gmra.mxu0 %v6135
  %v6434 = vpop.f32.mrf.mxu0
  %v6435 = vadd.f32 0.0, %v6434
  %6436 = vdwg.mxu0
  %6437 = vmatpush.msra.mxu0 0.0
  %6438 = vmatpush.msra.mxu0 0.0
  %6439 = vmatpush.msra.mxu0 0.0
  %6440 = vmatpush.msra.mxu0 0.0
  %6441 = vmatpush.msra.mxu0 0.0
  %6442 = vmatpush.msra.mxu0 0.0
  %6443 = vmatpush.msra.mxu0 0.0
  %6444 = vmatpush.msra.mxu0 0.0
  %6445 = vmatpush.msra.mxu0 0.0
  %6446 = vmatpush.msra.mxu0 0.0
  %6447 = vmatpush.msra.mxu0 0.0
  %6448 = vmatpush.msra.mxu0 0.0
  %6449 = vmatpush.msra.mxu0 0.0
  %6450 = vmatpush.msra.mxu0 0.0
  %6451 = vmatpush.msra.mxu0 0.0
  %6452 = vmatpush.msra.mxu0 %v6109
  %6453 = vmatmul.f32.gmra.mxu0 %v6135
  %v6454 = vpop.f32.mrf.mxu0
  %v6455 = vadd.f32 0.0, %v6454
  %6456 = vdwg.mxu0
  %6457 = vmatpush.msra.mxu0 0.0
  %6458 = vmatpush.msra.mxu0 0.0
  %6459 = vmatpush.msra.mxu0 0.0
  %6460 = vmatpush.msra.mxu0 0.0
  %6461 = vmatpush.msra.mxu0 0.0
  %6462 = vmatpush.msra.mxu0 0.0
  %6463 = vmatpush.msra.mxu0 0.0
  %6464 = vmatpush.msra.mxu0 0.0
  %6465 = vmatpush.msra.mxu0 0.0
  %6466 = vmatpush.msra.mxu0 0.0
  %6467 = vmatpush.msra.mxu0 0.0
  %6468 = vmatpush.msra.mxu0 0.0
  %6469 = vmatpush.msra.mxu0 0.0
  %6470 = vmatpush.msra.mxu0 0.0
  %6471 = vmatpush.msra.mxu0 0.0
  %6472 = vmatpush.msra.mxu0 %v6110
  %6473 = vmatmul.f32.gmra.mxu0 %v6135
  %v6474 = vpop.f32.mrf.mxu0
  %v6475 = vadd.f32 0.0, %v6474
  %6476 = vdwg.mxu0
  %6477 = vmatpush.msra.mxu0 0.0
  %6478 = vmatpush.msra.mxu0 0.0
  %6479 = vmatpush.msra.mxu0 0.0
  %6480 = vmatpush.msra.mxu0 0.0
  %6481 = vmatpush.msra.mxu0 0.0
  %6482 = vmatpush.msra.mxu0 0.0
  %6483 = vmatpush.msra.mxu0 0.0
  %6484 = vmatpush.msra.mxu0 0.0
  %6485 = vmatpush.msra.mxu0 0.0
  %6486 = vmatpush.msra.mxu0 0.0
  %6487 = vmatpush.msra.mxu0 0.0
  %6488 = vmatpush.msra.mxu0 0.0
  %6489 = vmatpush.msra.mxu0 0.0
  %6490 = vmatpush.msra.mxu0 0.0
  %6491 = vmatpush.msra.mxu0 0.0
  %6492 = vmatpush.msra.mxu0 %v6111
  %6493 = vmatmul.f32.gmra.mxu0 %v6135
  %v6494 = vpop.f32.mrf.mxu0
  %v6495 = vadd.f32 0.0, %v6494
  %6496 = vdwg.mxu0
  %6497 = vmatpush.msra.mxu0 0.0
  %6498 = vmatpush.msra.mxu0 0.0
  %6499 = vmatpush.msra.mxu0 0.0
  %6500 = vmatpush.msra.mxu0 0.0
  %6501 = vmatpush.msra.mxu0 0.0
  %6502 = vmatpush.msra.mxu0 0.0
  %6503 = vmatpush.msra.mxu0 0.0
  %6504 = vmatpush.msra.mxu0 0.0
  %6505 = vmatpush.msra.mxu0 0.0
  %6506 = vmatpush.msra.mxu0 0.0
  %6507 = vmatpush.msra.mxu0 0.0
  %6508 = vmatpush.msra.mxu0 0.0
  %6509 = vmatpush.msra.mxu0 0.0
  %6510 = vmatpush.msra.mxu0 0.0
  %6511 = vmatpush.msra.mxu0 0.0
  %6512 = vmatpush.msra.mxu0 %v6112
  %6513 = vmatmul.f32.gmra.mxu0 %v6135
  %v6514 = vpop.f32.mrf.mxu0
  %v6515 = vadd.f32 0.0, %v6514
  %6516 = vdwg.mxu0
  %6517 = vmatpush.msra.mxu0 0.0
  %6518 = vmatpush.msra.mxu0 0.0
  %6519 = vmatpush.msra.mxu0 0.0
  %6520 = vmatpush.msra.mxu0 0.0
  %6521 = vmatpush.msra.mxu0 0.0
  %6522 = vmatpush.msra.mxu0 0.0
  %6523 = vmatpush.msra.mxu0 0.0
  %6524 = vmatpush.msra.mxu0 0.0
  %6525 = vmatpush.msra.mxu0 0.0
  %6526 = vmatpush.msra.mxu0 0.0
  %6527 = vmatpush.msra.mxu0 0.0
  %6528 = vmatpush.msra.mxu0 0.0
  %6529 = vmatpush.msra.mxu0 0.0
  %6530 = vmatpush.msra.mxu0 0.0
  %6531 = vmatpush.msra.mxu0 0.0
  %6532 = vmatpush.msra.mxu0 %v6113
  %6533 = vmatmul.f32.gmra.mxu0 %v6135
  %v6534 = vpop.f32.mrf.mxu0
  %v6535 = vadd.f32 0.0, %v6534
  %6536 = vdwg.mxu0
  %v6537 = vadd.f32 %v6029, %v6155
  %v6538 = vadd.f32 %v6030, %v6175
  %v6539 = vadd.f32 %v6031, %v6195
  %v6540 = vadd.f32 %v6032, %v6215
  %v6541 = vadd.f32 %v6033, %v6235
  %v6542 = vadd.f32 %v6034, %v6255
  %v6543 = vadd.f32 %v6035, %v6275
  %v6544 = vadd.f32 %v6036, %v6295
  %v6545 = vadd.f32 %v6037, %v6315
  %v6546 = vadd.f32 %v6038, %v6335
  %v6547 = vadd.f32 %v6039, %v6355
  %v6548 = vadd.f32 %v6040, %v6375
  %v6549 = vadd.f32 %v6041, %v6395
  %v6550 = vadd.f32 %v6042, %v6415
  %v6551 = vadd.f32 %v6043, %v6435
  %v6552 = vadd.f32 %v6044, %v6455
  %v6553 = vadd.f32 %v6045, %v6475
  %v6554 = vadd.f32 %v6046, %v6495
  %v6555 = vadd.f32 %v6047, %v6515
  %v6556 = vadd.f32 %v6048, %v6535
  %s6557 = scalar_lea.vmem %s0, 104
  %v6558 = vld [vmem:[%s6557] sm:$0xff]
  %6559 = vrot.lane.b32.xlu0 %v35, 22
  %v6560 = vpop.permute.xlu0 %6559
  %6561 = vrot.lane.b32.xlu0 %v36, 22
  %v6562 = vpop.permute.xlu0 %6561
  %6563 = vrot.lane.b32.xlu0 %v37, 22
  %v6564 = vpop.permute.xlu0 %6563
  %6565 = vrot.lane.b32.xlu0 %v38, 22
  %v6566 = vpop.permute.xlu0 %6565
  %6567 = vrot.lane.b32.xlu0 %v39, 22
  %v6568 = vpop.permute.xlu0 %6567
  %6569 = vrot.lane.b32.xlu0 %v40, 22
  %v6570 = vpop.permute.xlu0 %6569
  %6571 = vrot.lane.b32.xlu0 %v41, 22
  %v6572 = vpop.permute.xlu0 %6571
  %6573 = vrot.lane.b32.xlu0 %v42, 22
  %v6574 = vpop.permute.xlu0 %6573
  %6575 = vrot.lane.b32.xlu0 %v43, 22
  %v6576 = vpop.permute.xlu0 %6575
  %6577 = vrot.lane.b32.xlu0 %v44, 22
  %v6578 = vpop.permute.xlu0 %6577
  %6579 = vrot.lane.b32.xlu0 %v45, 22
  %v6580 = vpop.permute.xlu0 %6579
  %6581 = vrot.lane.b32.xlu0 %v46, 22
  %v6582 = vpop.permute.xlu0 %6581
  %6583 = vrot.lane.b32.xlu0 %v47, 22
  %v6584 = vpop.permute.xlu0 %6583
  %6585 = vrot.lane.b32.xlu0 %v48, 22
  %v6586 = vpop.permute.xlu0 %6585
  %6587 = vrot.lane.b32.xlu0 %v49, 22
  %v6588 = vpop.permute.xlu0 %6587
  %6589 = vrot.lane.b32.xlu0 %v50, 22
  %v6590 = vpop.permute.xlu0 %6589
  %6591 = vrot.lane.b32.xlu0 %v51, 22
  %v6592 = vpop.permute.xlu0 %6591
  %6593 = vrot.lane.b32.xlu0 %v52, 22
  %v6594 = vpop.permute.xlu0 %6593
  %6595 = vrot.lane.b32.xlu0 %v53, 22
  %v6596 = vpop.permute.xlu0 %6595
  %6597 = vrot.lane.b32.xlu0 %v54, 22
  %v6598 = vpop.permute.xlu0 %6597
  %6599 = vrot.lane.b32.xlu0 %v55, 22
  %v6600 = vpop.permute.xlu0 %6599
  %vm6601 = vcmask 179200
  %v6602 = vsel %vm6601, %v6560, %v6562
  %v6603 = vsel %vm6601, %v6562, %v6564
  %v6604 = vsel %vm6601, %v6564, %v6566
  %v6605 = vsel %vm6601, %v6566, %v6568
  %v6606 = vsel %vm6601, %v6568, %v6570
  %v6607 = vsel %vm6601, %v6570, %v6572
  %v6608 = vsel %vm6601, %v6572, %v6574
  %v6609 = vsel %vm6601, %v6574, %v6576
  %v6610 = vsel %vm6601, %v6576, %v6578
  %v6611 = vsel %vm6601, %v6578, %v6580
  %v6612 = vsel %vm6601, %v6580, %v6582
  %v6613 = vsel %vm6601, %v6582, %v6584
  %v6614 = vsel %vm6601, %v6584, %v6586
  %v6615 = vsel %vm6601, %v6586, %v6588
  %v6616 = vsel %vm6601, %v6588, %v6590
  %v6617 = vsel %vm6601, %v6590, %v6592
  %v6618 = vsel %vm6601, %v6592, %v6594
  %v6619 = vsel %vm6601, %v6594, %v6596
  %v6620 = vsel %vm6601, %v6596, %v6598
  %v6621 = vsel %vm6601, %v6598, %v6600
  %v6643 = vsel %vm162, %v6558, 0
  %6645 = vmatpush.msra.mxu0 0.0
  %6646 = vmatpush.msra.mxu0 0.0
  %6647 = vmatpush.msra.mxu0 0.0
  %6648 = vmatpush.msra.mxu0 0.0
  %6649 = vmatpush.msra.mxu0 0.0
  %6650 = vmatpush.msra.mxu0 0.0
  %6651 = vmatpush.msra.mxu0 0.0
  %6652 = vmatpush.msra.mxu0 0.0
  %6653 = vmatpush.msra.mxu0 0.0
  %6654 = vmatpush.msra.mxu0 0.0
  %6655 = vmatpush.msra.mxu0 0.0
  %6656 = vmatpush.msra.mxu0 0.0
  %6657 = vmatpush.msra.mxu0 0.0
  %6658 = vmatpush.msra.mxu0 0.0
  %6659 = vmatpush.msra.mxu0 0.0
  %6660 = vmatpush.msra.mxu0 %v6602
  %6661 = vmatmul.f32.gmra.mxu0 %v6643
  %v6662 = vpop.f32.mrf.mxu0
  %v6663 = vadd.f32 0.0, %v6662
  %6664 = vdwg.mxu0
  %6665 = vmatpush.msra.mxu0 0.0
  %6666 = vmatpush.msra.mxu0 0.0
  %6667 = vmatpush.msra.mxu0 0.0
  %6668 = vmatpush.msra.mxu0 0.0
  %6669 = vmatpush.msra.mxu0 0.0
  %6670 = vmatpush.msra.mxu0 0.0
  %6671 = vmatpush.msra.mxu0 0.0
  %6672 = vmatpush.msra.mxu0 0.0
  %6673 = vmatpush.msra.mxu0 0.0
  %6674 = vmatpush.msra.mxu0 0.0
  %6675 = vmatpush.msra.mxu0 0.0
  %6676 = vmatpush.msra.mxu0 0.0
  %6677 = vmatpush.msra.mxu0 0.0
  %6678 = vmatpush.msra.mxu0 0.0
  %6679 = vmatpush.msra.mxu0 0.0
  %6680 = vmatpush.msra.mxu0 %v6603
  %6681 = vmatmul.f32.gmra.mxu0 %v6643
  %v6682 = vpop.f32.mrf.mxu0
  %v6683 = vadd.f32 0.0, %v6682
  %6684 = vdwg.mxu0
  %6685 = vmatpush.msra.mxu0 0.0
  %6686 = vmatpush.msra.mxu0 0.0
  %6687 = vmatpush.msra.mxu0 0.0
  %6688 = vmatpush.msra.mxu0 0.0
  %6689 = vmatpush.msra.mxu0 0.0
  %6690 = vmatpush.msra.mxu0 0.0
  %6691 = vmatpush.msra.mxu0 0.0
  %6692 = vmatpush.msra.mxu0 0.0
  %6693 = vmatpush.msra.mxu0 0.0
  %6694 = vmatpush.msra.mxu0 0.0
  %6695 = vmatpush.msra.mxu0 0.0
  %6696 = vmatpush.msra.mxu0 0.0
  %6697 = vmatpush.msra.mxu0 0.0
  %6698 = vmatpush.msra.mxu0 0.0
  %6699 = vmatpush.msra.mxu0 0.0
  %6700 = vmatpush.msra.mxu0 %v6604
  %6701 = vmatmul.f32.gmra.mxu0 %v6643
  %v6702 = vpop.f32.mrf.mxu0
  %v6703 = vadd.f32 0.0, %v6702
  %6704 = vdwg.mxu0
  %6705 = vmatpush.msra.mxu0 0.0
  %6706 = vmatpush.msra.mxu0 0.0
  %6707 = vmatpush.msra.mxu0 0.0
  %6708 = vmatpush.msra.mxu0 0.0
  %6709 = vmatpush.msra.mxu0 0.0
  %6710 = vmatpush.msra.mxu0 0.0
  %6711 = vmatpush.msra.mxu0 0.0
  %6712 = vmatpush.msra.mxu0 0.0
  %6713 = vmatpush.msra.mxu0 0.0
  %6714 = vmatpush.msra.mxu0 0.0
  %6715 = vmatpush.msra.mxu0 0.0
  %6716 = vmatpush.msra.mxu0 0.0
  %6717 = vmatpush.msra.mxu0 0.0
  %6718 = vmatpush.msra.mxu0 0.0
  %6719 = vmatpush.msra.mxu0 0.0
  %6720 = vmatpush.msra.mxu0 %v6605
  %6721 = vmatmul.f32.gmra.mxu0 %v6643
  %v6722 = vpop.f32.mrf.mxu0
  %v6723 = vadd.f32 0.0, %v6722
  %6724 = vdwg.mxu0
  %6725 = vmatpush.msra.mxu0 0.0
  %6726 = vmatpush.msra.mxu0 0.0
  %6727 = vmatpush.msra.mxu0 0.0
  %6728 = vmatpush.msra.mxu0 0.0
  %6729 = vmatpush.msra.mxu0 0.0
  %6730 = vmatpush.msra.mxu0 0.0
  %6731 = vmatpush.msra.mxu0 0.0
  %6732 = vmatpush.msra.mxu0 0.0
  %6733 = vmatpush.msra.mxu0 0.0
  %6734 = vmatpush.msra.mxu0 0.0
  %6735 = vmatpush.msra.mxu0 0.0
  %6736 = vmatpush.msra.mxu0 0.0
  %6737 = vmatpush.msra.mxu0 0.0
  %6738 = vmatpush.msra.mxu0 0.0
  %6739 = vmatpush.msra.mxu0 0.0
  %6740 = vmatpush.msra.mxu0 %v6606
  %6741 = vmatmul.f32.gmra.mxu0 %v6643
  %v6742 = vpop.f32.mrf.mxu0
  %v6743 = vadd.f32 0.0, %v6742
  %6744 = vdwg.mxu0
  %6745 = vmatpush.msra.mxu0 0.0
  %6746 = vmatpush.msra.mxu0 0.0
  %6747 = vmatpush.msra.mxu0 0.0
  %6748 = vmatpush.msra.mxu0 0.0
  %6749 = vmatpush.msra.mxu0 0.0
  %6750 = vmatpush.msra.mxu0 0.0
  %6751 = vmatpush.msra.mxu0 0.0
  %6752 = vmatpush.msra.mxu0 0.0
  %6753 = vmatpush.msra.mxu0 0.0
  %6754 = vmatpush.msra.mxu0 0.0
  %6755 = vmatpush.msra.mxu0 0.0
  %6756 = vmatpush.msra.mxu0 0.0
  %6757 = vmatpush.msra.mxu0 0.0
  %6758 = vmatpush.msra.mxu0 0.0
  %6759 = vmatpush.msra.mxu0 0.0
  %6760 = vmatpush.msra.mxu0 %v6607
  %6761 = vmatmul.f32.gmra.mxu0 %v6643
  %v6762 = vpop.f32.mrf.mxu0
  %v6763 = vadd.f32 0.0, %v6762
  %6764 = vdwg.mxu0
  %6765 = vmatpush.msra.mxu0 0.0
  %6766 = vmatpush.msra.mxu0 0.0
  %6767 = vmatpush.msra.mxu0 0.0
  %6768 = vmatpush.msra.mxu0 0.0
  %6769 = vmatpush.msra.mxu0 0.0
  %6770 = vmatpush.msra.mxu0 0.0
  %6771 = vmatpush.msra.mxu0 0.0
  %6772 = vmatpush.msra.mxu0 0.0
  %6773 = vmatpush.msra.mxu0 0.0
  %6774 = vmatpush.msra.mxu0 0.0
  %6775 = vmatpush.msra.mxu0 0.0
  %6776 = vmatpush.msra.mxu0 0.0
  %6777 = vmatpush.msra.mxu0 0.0
  %6778 = vmatpush.msra.mxu0 0.0
  %6779 = vmatpush.msra.mxu0 0.0
  %6780 = vmatpush.msra.mxu0 %v6608
  %6781 = vmatmul.f32.gmra.mxu0 %v6643
  %v6782 = vpop.f32.mrf.mxu0
  %v6783 = vadd.f32 0.0, %v6782
  %6784 = vdwg.mxu0
  %6785 = vmatpush.msra.mxu0 0.0
  %6786 = vmatpush.msra.mxu0 0.0
  %6787 = vmatpush.msra.mxu0 0.0
  %6788 = vmatpush.msra.mxu0 0.0
  %6789 = vmatpush.msra.mxu0 0.0
  %6790 = vmatpush.msra.mxu0 0.0
  %6791 = vmatpush.msra.mxu0 0.0
  %6792 = vmatpush.msra.mxu0 0.0
  %6793 = vmatpush.msra.mxu0 0.0
  %6794 = vmatpush.msra.mxu0 0.0
  %6795 = vmatpush.msra.mxu0 0.0
  %6796 = vmatpush.msra.mxu0 0.0
  %6797 = vmatpush.msra.mxu0 0.0
  %6798 = vmatpush.msra.mxu0 0.0
  %6799 = vmatpush.msra.mxu0 0.0
  %6800 = vmatpush.msra.mxu0 %v6609
  %6801 = vmatmul.f32.gmra.mxu0 %v6643
  %v6802 = vpop.f32.mrf.mxu0
  %v6803 = vadd.f32 0.0, %v6802
  %6804 = vdwg.mxu0
  %6805 = vmatpush.msra.mxu0 0.0
  %6806 = vmatpush.msra.mxu0 0.0
  %6807 = vmatpush.msra.mxu0 0.0
  %6808 = vmatpush.msra.mxu0 0.0
  %6809 = vmatpush.msra.mxu0 0.0
  %6810 = vmatpush.msra.mxu0 0.0
  %6811 = vmatpush.msra.mxu0 0.0
  %6812 = vmatpush.msra.mxu0 0.0
  %6813 = vmatpush.msra.mxu0 0.0
  %6814 = vmatpush.msra.mxu0 0.0
  %6815 = vmatpush.msra.mxu0 0.0
  %6816 = vmatpush.msra.mxu0 0.0
  %6817 = vmatpush.msra.mxu0 0.0
  %6818 = vmatpush.msra.mxu0 0.0
  %6819 = vmatpush.msra.mxu0 0.0
  %6820 = vmatpush.msra.mxu0 %v6610
  %6821 = vmatmul.f32.gmra.mxu0 %v6643
  %v6822 = vpop.f32.mrf.mxu0
  %v6823 = vadd.f32 0.0, %v6822
  %6824 = vdwg.mxu0
  %6825 = vmatpush.msra.mxu0 0.0
  %6826 = vmatpush.msra.mxu0 0.0
  %6827 = vmatpush.msra.mxu0 0.0
  %6828 = vmatpush.msra.mxu0 0.0
  %6829 = vmatpush.msra.mxu0 0.0
  %6830 = vmatpush.msra.mxu0 0.0
  %6831 = vmatpush.msra.mxu0 0.0
  %6832 = vmatpush.msra.mxu0 0.0
  %6833 = vmatpush.msra.mxu0 0.0
  %6834 = vmatpush.msra.mxu0 0.0
  %6835 = vmatpush.msra.mxu0 0.0
  %6836 = vmatpush.msra.mxu0 0.0
  %6837 = vmatpush.msra.mxu0 0.0
  %6838 = vmatpush.msra.mxu0 0.0
  %6839 = vmatpush.msra.mxu0 0.0
  %6840 = vmatpush.msra.mxu0 %v6611
  %6841 = vmatmul.f32.gmra.mxu0 %v6643
  %v6842 = vpop.f32.mrf.mxu0
  %v6843 = vadd.f32 0.0, %v6842
  %6844 = vdwg.mxu0
  %6845 = vmatpush.msra.mxu0 0.0
  %6846 = vmatpush.msra.mxu0 0.0
  %6847 = vmatpush.msra.mxu0 0.0
  %6848 = vmatpush.msra.mxu0 0.0
  %6849 = vmatpush.msra.mxu0 0.0
  %6850 = vmatpush.msra.mxu0 0.0
  %6851 = vmatpush.msra.mxu0 0.0
  %6852 = vmatpush.msra.mxu0 0.0
  %6853 = vmatpush.msra.mxu0 0.0
  %6854 = vmatpush.msra.mxu0 0.0
  %6855 = vmatpush.msra.mxu0 0.0
  %6856 = vmatpush.msra.mxu0 0.0
  %6857 = vmatpush.msra.mxu0 0.0
  %6858 = vmatpush.msra.mxu0 0.0
  %6859 = vmatpush.msra.mxu0 0.0
  %6860 = vmatpush.msra.mxu0 %v6612
  %6861 = vmatmul.f32.gmra.mxu0 %v6643
  %v6862 = vpop.f32.mrf.mxu0
  %v6863 = vadd.f32 0.0, %v6862
  %6864 = vdwg.mxu0
  %6865 = vmatpush.msra.mxu0 0.0
  %6866 = vmatpush.msra.mxu0 0.0
  %6867 = vmatpush.msra.mxu0 0.0
  %6868 = vmatpush.msra.mxu0 0.0
  %6869 = vmatpush.msra.mxu0 0.0
  %6870 = vmatpush.msra.mxu0 0.0
  %6871 = vmatpush.msra.mxu0 0.0
  %6872 = vmatpush.msra.mxu0 0.0
  %6873 = vmatpush.msra.mxu0 0.0
  %6874 = vmatpush.msra.mxu0 0.0
  %6875 = vmatpush.msra.mxu0 0.0
  %6876 = vmatpush.msra.mxu0 0.0
  %6877 = vmatpush.msra.mxu0 0.0
  %6878 = vmatpush.msra.mxu0 0.0
  %6879 = vmatpush.msra.mxu0 0.0
  %6880 = vmatpush.msra.mxu0 %v6613
  %6881 = vmatmul.f32.gmra.mxu0 %v6643
  %v6882 = vpop.f32.mrf.mxu0
  %v6883 = vadd.f32 0.0, %v6882
  %6884 = vdwg.mxu0
  %6885 = vmatpush.msra.mxu0 0.0
  %6886 = vmatpush.msra.mxu0 0.0
  %6887 = vmatpush.msra.mxu0 0.0
  %6888 = vmatpush.msra.mxu0 0.0
  %6889 = vmatpush.msra.mxu0 0.0
  %6890 = vmatpush.msra.mxu0 0.0
  %6891 = vmatpush.msra.mxu0 0.0
  %6892 = vmatpush.msra.mxu0 0.0
  %6893 = vmatpush.msra.mxu0 0.0
  %6894 = vmatpush.msra.mxu0 0.0
  %6895 = vmatpush.msra.mxu0 0.0
  %6896 = vmatpush.msra.mxu0 0.0
  %6897 = vmatpush.msra.mxu0 0.0
  %6898 = vmatpush.msra.mxu0 0.0
  %6899 = vmatpush.msra.mxu0 0.0
  %6900 = vmatpush.msra.mxu0 %v6614
  %6901 = vmatmul.f32.gmra.mxu0 %v6643
  %v6902 = vpop.f32.mrf.mxu0
  %v6903 = vadd.f32 0.0, %v6902
  %6904 = vdwg.mxu0
  %6905 = vmatpush.msra.mxu0 0.0
  %6906 = vmatpush.msra.mxu0 0.0
  %6907 = vmatpush.msra.mxu0 0.0
  %6908 = vmatpush.msra.mxu0 0.0
  %6909 = vmatpush.msra.mxu0 0.0
  %6910 = vmatpush.msra.mxu0 0.0
  %6911 = vmatpush.msra.mxu0 0.0
  %6912 = vmatpush.msra.mxu0 0.0
  %6913 = vmatpush.msra.mxu0 0.0
  %6914 = vmatpush.msra.mxu0 0.0
  %6915 = vmatpush.msra.mxu0 0.0
  %6916 = vmatpush.msra.mxu0 0.0
  %6917 = vmatpush.msra.mxu0 0.0
  %6918 = vmatpush.msra.mxu0 0.0
  %6919 = vmatpush.msra.mxu0 0.0
  %6920 = vmatpush.msra.mxu0 %v6615
  %6921 = vmatmul.f32.gmra.mxu0 %v6643
  %v6922 = vpop.f32.mrf.mxu0
  %v6923 = vadd.f32 0.0, %v6922
  %6924 = vdwg.mxu0
  %6925 = vmatpush.msra.mxu0 0.0
  %6926 = vmatpush.msra.mxu0 0.0
  %6927 = vmatpush.msra.mxu0 0.0
  %6928 = vmatpush.msra.mxu0 0.0
  %6929 = vmatpush.msra.mxu0 0.0
  %6930 = vmatpush.msra.mxu0 0.0
  %6931 = vmatpush.msra.mxu0 0.0
  %6932 = vmatpush.msra.mxu0 0.0
  %6933 = vmatpush.msra.mxu0 0.0
  %6934 = vmatpush.msra.mxu0 0.0
  %6935 = vmatpush.msra.mxu0 0.0
  %6936 = vmatpush.msra.mxu0 0.0
  %6937 = vmatpush.msra.mxu0 0.0
  %6938 = vmatpush.msra.mxu0 0.0
  %6939 = vmatpush.msra.mxu0 0.0
  %6940 = vmatpush.msra.mxu0 %v6616
  %6941 = vmatmul.f32.gmra.mxu0 %v6643
  %v6942 = vpop.f32.mrf.mxu0
  %v6943 = vadd.f32 0.0, %v6942
  %6944 = vdwg.mxu0
  %6945 = vmatpush.msra.mxu0 0.0
  %6946 = vmatpush.msra.mxu0 0.0
  %6947 = vmatpush.msra.mxu0 0.0
  %6948 = vmatpush.msra.mxu0 0.0
  %6949 = vmatpush.msra.mxu0 0.0
  %6950 = vmatpush.msra.mxu0 0.0
  %6951 = vmatpush.msra.mxu0 0.0
  %6952 = vmatpush.msra.mxu0 0.0
  %6953 = vmatpush.msra.mxu0 0.0
  %6954 = vmatpush.msra.mxu0 0.0
  %6955 = vmatpush.msra.mxu0 0.0
  %6956 = vmatpush.msra.mxu0 0.0
  %6957 = vmatpush.msra.mxu0 0.0
  %6958 = vmatpush.msra.mxu0 0.0
  %6959 = vmatpush.msra.mxu0 0.0
  %6960 = vmatpush.msra.mxu0 %v6617
  %6961 = vmatmul.f32.gmra.mxu0 %v6643
  %v6962 = vpop.f32.mrf.mxu0
  %v6963 = vadd.f32 0.0, %v6962
  %6964 = vdwg.mxu0
  %6965 = vmatpush.msra.mxu0 0.0
  %6966 = vmatpush.msra.mxu0 0.0
  %6967 = vmatpush.msra.mxu0 0.0
  %6968 = vmatpush.msra.mxu0 0.0
  %6969 = vmatpush.msra.mxu0 0.0
  %6970 = vmatpush.msra.mxu0 0.0
  %6971 = vmatpush.msra.mxu0 0.0
  %6972 = vmatpush.msra.mxu0 0.0
  %6973 = vmatpush.msra.mxu0 0.0
  %6974 = vmatpush.msra.mxu0 0.0
  %6975 = vmatpush.msra.mxu0 0.0
  %6976 = vmatpush.msra.mxu0 0.0
  %6977 = vmatpush.msra.mxu0 0.0
  %6978 = vmatpush.msra.mxu0 0.0
  %6979 = vmatpush.msra.mxu0 0.0
  %6980 = vmatpush.msra.mxu0 %v6618
  %6981 = vmatmul.f32.gmra.mxu0 %v6643
  %v6982 = vpop.f32.mrf.mxu0
  %v6983 = vadd.f32 0.0, %v6982
  %6984 = vdwg.mxu0
  %6985 = vmatpush.msra.mxu0 0.0
  %6986 = vmatpush.msra.mxu0 0.0
  %6987 = vmatpush.msra.mxu0 0.0
  %6988 = vmatpush.msra.mxu0 0.0
  %6989 = vmatpush.msra.mxu0 0.0
  %6990 = vmatpush.msra.mxu0 0.0
  %6991 = vmatpush.msra.mxu0 0.0
  %6992 = vmatpush.msra.mxu0 0.0
  %6993 = vmatpush.msra.mxu0 0.0
  %6994 = vmatpush.msra.mxu0 0.0
  %6995 = vmatpush.msra.mxu0 0.0
  %6996 = vmatpush.msra.mxu0 0.0
  %6997 = vmatpush.msra.mxu0 0.0
  %6998 = vmatpush.msra.mxu0 0.0
  %6999 = vmatpush.msra.mxu0 0.0
  %7000 = vmatpush.msra.mxu0 %v6619
  %7001 = vmatmul.f32.gmra.mxu0 %v6643
  %v7002 = vpop.f32.mrf.mxu0
  %v7003 = vadd.f32 0.0, %v7002
  %7004 = vdwg.mxu0
  %7005 = vmatpush.msra.mxu0 0.0
  %7006 = vmatpush.msra.mxu0 0.0
  %7007 = vmatpush.msra.mxu0 0.0
  %7008 = vmatpush.msra.mxu0 0.0
  %7009 = vmatpush.msra.mxu0 0.0
  %7010 = vmatpush.msra.mxu0 0.0
  %7011 = vmatpush.msra.mxu0 0.0
  %7012 = vmatpush.msra.mxu0 0.0
  %7013 = vmatpush.msra.mxu0 0.0
  %7014 = vmatpush.msra.mxu0 0.0
  %7015 = vmatpush.msra.mxu0 0.0
  %7016 = vmatpush.msra.mxu0 0.0
  %7017 = vmatpush.msra.mxu0 0.0
  %7018 = vmatpush.msra.mxu0 0.0
  %7019 = vmatpush.msra.mxu0 0.0
  %7020 = vmatpush.msra.mxu0 %v6620
  %7021 = vmatmul.f32.gmra.mxu0 %v6643
  %v7022 = vpop.f32.mrf.mxu0
  %v7023 = vadd.f32 0.0, %v7022
  %7024 = vdwg.mxu0
  %7025 = vmatpush.msra.mxu0 0.0
  %7026 = vmatpush.msra.mxu0 0.0
  %7027 = vmatpush.msra.mxu0 0.0
  %7028 = vmatpush.msra.mxu0 0.0
  %7029 = vmatpush.msra.mxu0 0.0
  %7030 = vmatpush.msra.mxu0 0.0
  %7031 = vmatpush.msra.mxu0 0.0
  %7032 = vmatpush.msra.mxu0 0.0
  %7033 = vmatpush.msra.mxu0 0.0
  %7034 = vmatpush.msra.mxu0 0.0
  %7035 = vmatpush.msra.mxu0 0.0
  %7036 = vmatpush.msra.mxu0 0.0
  %7037 = vmatpush.msra.mxu0 0.0
  %7038 = vmatpush.msra.mxu0 0.0
  %7039 = vmatpush.msra.mxu0 0.0
  %7040 = vmatpush.msra.mxu0 %v6621
  %7041 = vmatmul.f32.gmra.mxu0 %v6643
  %v7042 = vpop.f32.mrf.mxu0
  %v7043 = vadd.f32 0.0, %v7042
  %7044 = vdwg.mxu0
  %v7045 = vadd.f32 %v6537, %v6663
  %v7046 = vadd.f32 %v6538, %v6683
  %v7047 = vadd.f32 %v6539, %v6703
  %v7048 = vadd.f32 %v6540, %v6723
  %v7049 = vadd.f32 %v6541, %v6743
  %v7050 = vadd.f32 %v6542, %v6763
  %v7051 = vadd.f32 %v6543, %v6783
  %v7052 = vadd.f32 %v6544, %v6803
  %v7053 = vadd.f32 %v6545, %v6823
  %v7054 = vadd.f32 %v6546, %v6843
  %v7055 = vadd.f32 %v6547, %v6863
  %v7056 = vadd.f32 %v6548, %v6883
  %v7057 = vadd.f32 %v6549, %v6903
  %v7058 = vadd.f32 %v6550, %v6923
  %v7059 = vadd.f32 %v6551, %v6943
  %v7060 = vadd.f32 %v6552, %v6963
  %v7061 = vadd.f32 %v6553, %v6983
  %v7062 = vadd.f32 %v6554, %v7003
  %v7063 = vadd.f32 %v6555, %v7023
  %v7064 = vadd.f32 %v6556, %v7043
  %s7065 = scalar_lea.vmem %s0, 112
  %v7066 = vld [vmem:[%s7065] sm:$0xff]
  %7067 = vrot.lane.b32.xlu0 %v35, 21
  %v7068 = vpop.permute.xlu0 %7067
  %7069 = vrot.lane.b32.xlu0 %v36, 21
  %v7070 = vpop.permute.xlu0 %7069
  %7071 = vrot.lane.b32.xlu0 %v37, 21
  %v7072 = vpop.permute.xlu0 %7071
  %7073 = vrot.lane.b32.xlu0 %v38, 21
  %v7074 = vpop.permute.xlu0 %7073
  %7075 = vrot.lane.b32.xlu0 %v39, 21
  %v7076 = vpop.permute.xlu0 %7075
  %7077 = vrot.lane.b32.xlu0 %v40, 21
  %v7078 = vpop.permute.xlu0 %7077
  %7079 = vrot.lane.b32.xlu0 %v41, 21
  %v7080 = vpop.permute.xlu0 %7079
  %7081 = vrot.lane.b32.xlu0 %v42, 21
  %v7082 = vpop.permute.xlu0 %7081
  %7083 = vrot.lane.b32.xlu0 %v43, 21
  %v7084 = vpop.permute.xlu0 %7083
  %7085 = vrot.lane.b32.xlu0 %v44, 21
  %v7086 = vpop.permute.xlu0 %7085
  %7087 = vrot.lane.b32.xlu0 %v45, 21
  %v7088 = vpop.permute.xlu0 %7087
  %7089 = vrot.lane.b32.xlu0 %v46, 21
  %v7090 = vpop.permute.xlu0 %7089
  %7091 = vrot.lane.b32.xlu0 %v47, 21
  %v7092 = vpop.permute.xlu0 %7091
  %7093 = vrot.lane.b32.xlu0 %v48, 21
  %v7094 = vpop.permute.xlu0 %7093
  %7095 = vrot.lane.b32.xlu0 %v49, 21
  %v7096 = vpop.permute.xlu0 %7095
  %7097 = vrot.lane.b32.xlu0 %v50, 21
  %v7098 = vpop.permute.xlu0 %7097
  %7099 = vrot.lane.b32.xlu0 %v51, 21
  %v7100 = vpop.permute.xlu0 %7099
  %7101 = vrot.lane.b32.xlu0 %v52, 21
  %v7102 = vpop.permute.xlu0 %7101
  %7103 = vrot.lane.b32.xlu0 %v53, 21
  %v7104 = vpop.permute.xlu0 %7103
  %7105 = vrot.lane.b32.xlu0 %v54, 21
  %v7106 = vpop.permute.xlu0 %7105
  %7107 = vrot.lane.b32.xlu0 %v55, 21
  %v7108 = vpop.permute.xlu0 %7107
  %vm7109 = vcmask 171008
  %v7110 = vsel %vm7109, %v7068, %v7070
  %v7111 = vsel %vm7109, %v7070, %v7072
  %v7112 = vsel %vm7109, %v7072, %v7074
  %v7113 = vsel %vm7109, %v7074, %v7076
  %v7114 = vsel %vm7109, %v7076, %v7078
  %v7115 = vsel %vm7109, %v7078, %v7080
  %v7116 = vsel %vm7109, %v7080, %v7082
  %v7117 = vsel %vm7109, %v7082, %v7084
  %v7118 = vsel %vm7109, %v7084, %v7086
  %v7119 = vsel %vm7109, %v7086, %v7088
  %v7120 = vsel %vm7109, %v7088, %v7090
  %v7121 = vsel %vm7109, %v7090, %v7092
  %v7122 = vsel %vm7109, %v7092, %v7094
  %v7123 = vsel %vm7109, %v7094, %v7096
  %v7124 = vsel %vm7109, %v7096, %v7098
  %v7125 = vsel %vm7109, %v7098, %v7100
  %v7126 = vsel %vm7109, %v7100, %v7102
  %v7127 = vsel %vm7109, %v7102, %v7104
  %v7128 = vsel %vm7109, %v7104, %v7106
  %v7129 = vsel %vm7109, %v7106, %v7108
  %v7151 = vsel %vm162, %v7066, 0
  %7153 = vmatpush.msra.mxu0 0.0
  %7154 = vmatpush.msra.mxu0 0.0
  %7155 = vmatpush.msra.mxu0 0.0
  %7156 = vmatpush.msra.mxu0 0.0
  %7157 = vmatpush.msra.mxu0 0.0
  %7158 = vmatpush.msra.mxu0 0.0
  %7159 = vmatpush.msra.mxu0 0.0
  %7160 = vmatpush.msra.mxu0 0.0
  %7161 = vmatpush.msra.mxu0 0.0
  %7162 = vmatpush.msra.mxu0 0.0
  %7163 = vmatpush.msra.mxu0 0.0
  %7164 = vmatpush.msra.mxu0 0.0
  %7165 = vmatpush.msra.mxu0 0.0
  %7166 = vmatpush.msra.mxu0 0.0
  %7167 = vmatpush.msra.mxu0 0.0
  %7168 = vmatpush.msra.mxu0 %v7110
  %7169 = vmatmul.f32.gmra.mxu0 %v7151
  %v7170 = vpop.f32.mrf.mxu0
  %v7171 = vadd.f32 0.0, %v7170
  %7172 = vdwg.mxu0
  %7173 = vmatpush.msra.mxu0 0.0
  %7174 = vmatpush.msra.mxu0 0.0
  %7175 = vmatpush.msra.mxu0 0.0
  %7176 = vmatpush.msra.mxu0 0.0
  %7177 = vmatpush.msra.mxu0 0.0
  %7178 = vmatpush.msra.mxu0 0.0
  %7179 = vmatpush.msra.mxu0 0.0
  %7180 = vmatpush.msra.mxu0 0.0
  %7181 = vmatpush.msra.mxu0 0.0
  %7182 = vmatpush.msra.mxu0 0.0
  %7183 = vmatpush.msra.mxu0 0.0
  %7184 = vmatpush.msra.mxu0 0.0
  %7185 = vmatpush.msra.mxu0 0.0
  %7186 = vmatpush.msra.mxu0 0.0
  %7187 = vmatpush.msra.mxu0 0.0
  %7188 = vmatpush.msra.mxu0 %v7111
  %7189 = vmatmul.f32.gmra.mxu0 %v7151
  %v7190 = vpop.f32.mrf.mxu0
  %v7191 = vadd.f32 0.0, %v7190
  %7192 = vdwg.mxu0
  %7193 = vmatpush.msra.mxu0 0.0
  %7194 = vmatpush.msra.mxu0 0.0
  %7195 = vmatpush.msra.mxu0 0.0
  %7196 = vmatpush.msra.mxu0 0.0
  %7197 = vmatpush.msra.mxu0 0.0
  %7198 = vmatpush.msra.mxu0 0.0
  %7199 = vmatpush.msra.mxu0 0.0
  %7200 = vmatpush.msra.mxu0 0.0
  %7201 = vmatpush.msra.mxu0 0.0
  %7202 = vmatpush.msra.mxu0 0.0
  %7203 = vmatpush.msra.mxu0 0.0
  %7204 = vmatpush.msra.mxu0 0.0
  %7205 = vmatpush.msra.mxu0 0.0
  %7206 = vmatpush.msra.mxu0 0.0
  %7207 = vmatpush.msra.mxu0 0.0
  %7208 = vmatpush.msra.mxu0 %v7112
  %7209 = vmatmul.f32.gmra.mxu0 %v7151
  %v7210 = vpop.f32.mrf.mxu0
  %v7211 = vadd.f32 0.0, %v7210
  %7212 = vdwg.mxu0
  %7213 = vmatpush.msra.mxu0 0.0
  %7214 = vmatpush.msra.mxu0 0.0
  %7215 = vmatpush.msra.mxu0 0.0
  %7216 = vmatpush.msra.mxu0 0.0
  %7217 = vmatpush.msra.mxu0 0.0
  %7218 = vmatpush.msra.mxu0 0.0
  %7219 = vmatpush.msra.mxu0 0.0
  %7220 = vmatpush.msra.mxu0 0.0
  %7221 = vmatpush.msra.mxu0 0.0
  %7222 = vmatpush.msra.mxu0 0.0
  %7223 = vmatpush.msra.mxu0 0.0
  %7224 = vmatpush.msra.mxu0 0.0
  %7225 = vmatpush.msra.mxu0 0.0
  %7226 = vmatpush.msra.mxu0 0.0
  %7227 = vmatpush.msra.mxu0 0.0
  %7228 = vmatpush.msra.mxu0 %v7113
  %7229 = vmatmul.f32.gmra.mxu0 %v7151
  %v7230 = vpop.f32.mrf.mxu0
  %v7231 = vadd.f32 0.0, %v7230
  %7232 = vdwg.mxu0
  %7233 = vmatpush.msra.mxu0 0.0
  %7234 = vmatpush.msra.mxu0 0.0
  %7235 = vmatpush.msra.mxu0 0.0
  %7236 = vmatpush.msra.mxu0 0.0
  %7237 = vmatpush.msra.mxu0 0.0
  %7238 = vmatpush.msra.mxu0 0.0
  %7239 = vmatpush.msra.mxu0 0.0
  %7240 = vmatpush.msra.mxu0 0.0
  %7241 = vmatpush.msra.mxu0 0.0
  %7242 = vmatpush.msra.mxu0 0.0
  %7243 = vmatpush.msra.mxu0 0.0
  %7244 = vmatpush.msra.mxu0 0.0
  %7245 = vmatpush.msra.mxu0 0.0
  %7246 = vmatpush.msra.mxu0 0.0
  %7247 = vmatpush.msra.mxu0 0.0
  %7248 = vmatpush.msra.mxu0 %v7114
  %7249 = vmatmul.f32.gmra.mxu0 %v7151
  %v7250 = vpop.f32.mrf.mxu0
  %v7251 = vadd.f32 0.0, %v7250
  %7252 = vdwg.mxu0
  %7253 = vmatpush.msra.mxu0 0.0
  %7254 = vmatpush.msra.mxu0 0.0
  %7255 = vmatpush.msra.mxu0 0.0
  %7256 = vmatpush.msra.mxu0 0.0
  %7257 = vmatpush.msra.mxu0 0.0
  %7258 = vmatpush.msra.mxu0 0.0
  %7259 = vmatpush.msra.mxu0 0.0
  %7260 = vmatpush.msra.mxu0 0.0
  %7261 = vmatpush.msra.mxu0 0.0
  %7262 = vmatpush.msra.mxu0 0.0
  %7263 = vmatpush.msra.mxu0 0.0
  %7264 = vmatpush.msra.mxu0 0.0
  %7265 = vmatpush.msra.mxu0 0.0
  %7266 = vmatpush.msra.mxu0 0.0
  %7267 = vmatpush.msra.mxu0 0.0
  %7268 = vmatpush.msra.mxu0 %v7115
  %7269 = vmatmul.f32.gmra.mxu0 %v7151
  %v7270 = vpop.f32.mrf.mxu0
  %v7271 = vadd.f32 0.0, %v7270
  %7272 = vdwg.mxu0
  %7273 = vmatpush.msra.mxu0 0.0
  %7274 = vmatpush.msra.mxu0 0.0
  %7275 = vmatpush.msra.mxu0 0.0
  %7276 = vmatpush.msra.mxu0 0.0
  %7277 = vmatpush.msra.mxu0 0.0
  %7278 = vmatpush.msra.mxu0 0.0
  %7279 = vmatpush.msra.mxu0 0.0
  %7280 = vmatpush.msra.mxu0 0.0
  %7281 = vmatpush.msra.mxu0 0.0
  %7282 = vmatpush.msra.mxu0 0.0
  %7283 = vmatpush.msra.mxu0 0.0
  %7284 = vmatpush.msra.mxu0 0.0
  %7285 = vmatpush.msra.mxu0 0.0
  %7286 = vmatpush.msra.mxu0 0.0
  %7287 = vmatpush.msra.mxu0 0.0
  %7288 = vmatpush.msra.mxu0 %v7116
  %7289 = vmatmul.f32.gmra.mxu0 %v7151
  %v7290 = vpop.f32.mrf.mxu0
  %v7291 = vadd.f32 0.0, %v7290
  %7292 = vdwg.mxu0
  %7293 = vmatpush.msra.mxu0 0.0
  %7294 = vmatpush.msra.mxu0 0.0
  %7295 = vmatpush.msra.mxu0 0.0
  %7296 = vmatpush.msra.mxu0 0.0
  %7297 = vmatpush.msra.mxu0 0.0
  %7298 = vmatpush.msra.mxu0 0.0
  %7299 = vmatpush.msra.mxu0 0.0
  %7300 = vmatpush.msra.mxu0 0.0
  %7301 = vmatpush.msra.mxu0 0.0
  %7302 = vmatpush.msra.mxu0 0.0
  %7303 = vmatpush.msra.mxu0 0.0
  %7304 = vmatpush.msra.mxu0 0.0
  %7305 = vmatpush.msra.mxu0 0.0
  %7306 = vmatpush.msra.mxu0 0.0
  %7307 = vmatpush.msra.mxu0 0.0
  %7308 = vmatpush.msra.mxu0 %v7117
  %7309 = vmatmul.f32.gmra.mxu0 %v7151
  %v7310 = vpop.f32.mrf.mxu0
  %v7311 = vadd.f32 0.0, %v7310
  %7312 = vdwg.mxu0
  %7313 = vmatpush.msra.mxu0 0.0
  %7314 = vmatpush.msra.mxu0 0.0
  %7315 = vmatpush.msra.mxu0 0.0
  %7316 = vmatpush.msra.mxu0 0.0
  %7317 = vmatpush.msra.mxu0 0.0
  %7318 = vmatpush.msra.mxu0 0.0
  %7319 = vmatpush.msra.mxu0 0.0
  %7320 = vmatpush.msra.mxu0 0.0
  %7321 = vmatpush.msra.mxu0 0.0
  %7322 = vmatpush.msra.mxu0 0.0
  %7323 = vmatpush.msra.mxu0 0.0
  %7324 = vmatpush.msra.mxu0 0.0
  %7325 = vmatpush.msra.mxu0 0.0
  %7326 = vmatpush.msra.mxu0 0.0
  %7327 = vmatpush.msra.mxu0 0.0
  %7328 = vmatpush.msra.mxu0 %v7118
  %7329 = vmatmul.f32.gmra.mxu0 %v7151
  %v7330 = vpop.f32.mrf.mxu0
  %v7331 = vadd.f32 0.0, %v7330
  %7332 = vdwg.mxu0
  %7333 = vmatpush.msra.mxu0 0.0
  %7334 = vmatpush.msra.mxu0 0.0
  %7335 = vmatpush.msra.mxu0 0.0
  %7336 = vmatpush.msra.mxu0 0.0
  %7337 = vmatpush.msra.mxu0 0.0
  %7338 = vmatpush.msra.mxu0 0.0
  %7339 = vmatpush.msra.mxu0 0.0
  %7340 = vmatpush.msra.mxu0 0.0
  %7341 = vmatpush.msra.mxu0 0.0
  %7342 = vmatpush.msra.mxu0 0.0
  %7343 = vmatpush.msra.mxu0 0.0
  %7344 = vmatpush.msra.mxu0 0.0
  %7345 = vmatpush.msra.mxu0 0.0
  %7346 = vmatpush.msra.mxu0 0.0
  %7347 = vmatpush.msra.mxu0 0.0
  %7348 = vmatpush.msra.mxu0 %v7119
  %7349 = vmatmul.f32.gmra.mxu0 %v7151
  %v7350 = vpop.f32.mrf.mxu0
  %v7351 = vadd.f32 0.0, %v7350
  %7352 = vdwg.mxu0
  %7353 = vmatpush.msra.mxu0 0.0
  %7354 = vmatpush.msra.mxu0 0.0
  %7355 = vmatpush.msra.mxu0 0.0
  %7356 = vmatpush.msra.mxu0 0.0
  %7357 = vmatpush.msra.mxu0 0.0
  %7358 = vmatpush.msra.mxu0 0.0
  %7359 = vmatpush.msra.mxu0 0.0
  %7360 = vmatpush.msra.mxu0 0.0
  %7361 = vmatpush.msra.mxu0 0.0
  %7362 = vmatpush.msra.mxu0 0.0
  %7363 = vmatpush.msra.mxu0 0.0
  %7364 = vmatpush.msra.mxu0 0.0
  %7365 = vmatpush.msra.mxu0 0.0
  %7366 = vmatpush.msra.mxu0 0.0
  %7367 = vmatpush.msra.mxu0 0.0
  %7368 = vmatpush.msra.mxu0 %v7120
  %7369 = vmatmul.f32.gmra.mxu0 %v7151
  %v7370 = vpop.f32.mrf.mxu0
  %v7371 = vadd.f32 0.0, %v7370
  %7372 = vdwg.mxu0
  %7373 = vmatpush.msra.mxu0 0.0
  %7374 = vmatpush.msra.mxu0 0.0
  %7375 = vmatpush.msra.mxu0 0.0
  %7376 = vmatpush.msra.mxu0 0.0
  %7377 = vmatpush.msra.mxu0 0.0
  %7378 = vmatpush.msra.mxu0 0.0
  %7379 = vmatpush.msra.mxu0 0.0
  %7380 = vmatpush.msra.mxu0 0.0
  %7381 = vmatpush.msra.mxu0 0.0
  %7382 = vmatpush.msra.mxu0 0.0
  %7383 = vmatpush.msra.mxu0 0.0
  %7384 = vmatpush.msra.mxu0 0.0
  %7385 = vmatpush.msra.mxu0 0.0
  %7386 = vmatpush.msra.mxu0 0.0
  %7387 = vmatpush.msra.mxu0 0.0
  %7388 = vmatpush.msra.mxu0 %v7121
  %7389 = vmatmul.f32.gmra.mxu0 %v7151
  %v7390 = vpop.f32.mrf.mxu0
  %v7391 = vadd.f32 0.0, %v7390
  %7392 = vdwg.mxu0
  %7393 = vmatpush.msra.mxu0 0.0
  %7394 = vmatpush.msra.mxu0 0.0
  %7395 = vmatpush.msra.mxu0 0.0
  %7396 = vmatpush.msra.mxu0 0.0
  %7397 = vmatpush.msra.mxu0 0.0
  %7398 = vmatpush.msra.mxu0 0.0
  %7399 = vmatpush.msra.mxu0 0.0
  %7400 = vmatpush.msra.mxu0 0.0
  %7401 = vmatpush.msra.mxu0 0.0
  %7402 = vmatpush.msra.mxu0 0.0
  %7403 = vmatpush.msra.mxu0 0.0
  %7404 = vmatpush.msra.mxu0 0.0
  %7405 = vmatpush.msra.mxu0 0.0
  %7406 = vmatpush.msra.mxu0 0.0
  %7407 = vmatpush.msra.mxu0 0.0
  %7408 = vmatpush.msra.mxu0 %v7122
  %7409 = vmatmul.f32.gmra.mxu0 %v7151
  %v7410 = vpop.f32.mrf.mxu0
  %v7411 = vadd.f32 0.0, %v7410
  %7412 = vdwg.mxu0
  %7413 = vmatpush.msra.mxu0 0.0
  %7414 = vmatpush.msra.mxu0 0.0
  %7415 = vmatpush.msra.mxu0 0.0
  %7416 = vmatpush.msra.mxu0 0.0
  %7417 = vmatpush.msra.mxu0 0.0
  %7418 = vmatpush.msra.mxu0 0.0
  %7419 = vmatpush.msra.mxu0 0.0
  %7420 = vmatpush.msra.mxu0 0.0
  %7421 = vmatpush.msra.mxu0 0.0
  %7422 = vmatpush.msra.mxu0 0.0
  %7423 = vmatpush.msra.mxu0 0.0
  %7424 = vmatpush.msra.mxu0 0.0
  %7425 = vmatpush.msra.mxu0 0.0
  %7426 = vmatpush.msra.mxu0 0.0
  %7427 = vmatpush.msra.mxu0 0.0
  %7428 = vmatpush.msra.mxu0 %v7123
  %7429 = vmatmul.f32.gmra.mxu0 %v7151
  %v7430 = vpop.f32.mrf.mxu0
  %v7431 = vadd.f32 0.0, %v7430
  %7432 = vdwg.mxu0
  %7433 = vmatpush.msra.mxu0 0.0
  %7434 = vmatpush.msra.mxu0 0.0
  %7435 = vmatpush.msra.mxu0 0.0
  %7436 = vmatpush.msra.mxu0 0.0
  %7437 = vmatpush.msra.mxu0 0.0
  %7438 = vmatpush.msra.mxu0 0.0
  %7439 = vmatpush.msra.mxu0 0.0
  %7440 = vmatpush.msra.mxu0 0.0
  %7441 = vmatpush.msra.mxu0 0.0
  %7442 = vmatpush.msra.mxu0 0.0
  %7443 = vmatpush.msra.mxu0 0.0
  %7444 = vmatpush.msra.mxu0 0.0
  %7445 = vmatpush.msra.mxu0 0.0
  %7446 = vmatpush.msra.mxu0 0.0
  %7447 = vmatpush.msra.mxu0 0.0
  %7448 = vmatpush.msra.mxu0 %v7124
  %7449 = vmatmul.f32.gmra.mxu0 %v7151
  %v7450 = vpop.f32.mrf.mxu0
  %v7451 = vadd.f32 0.0, %v7450
  %7452 = vdwg.mxu0
  %7453 = vmatpush.msra.mxu0 0.0
  %7454 = vmatpush.msra.mxu0 0.0
  %7455 = vmatpush.msra.mxu0 0.0
  %7456 = vmatpush.msra.mxu0 0.0
  %7457 = vmatpush.msra.mxu0 0.0
  %7458 = vmatpush.msra.mxu0 0.0
  %7459 = vmatpush.msra.mxu0 0.0
  %7460 = vmatpush.msra.mxu0 0.0
  %7461 = vmatpush.msra.mxu0 0.0
  %7462 = vmatpush.msra.mxu0 0.0
  %7463 = vmatpush.msra.mxu0 0.0
  %7464 = vmatpush.msra.mxu0 0.0
  %7465 = vmatpush.msra.mxu0 0.0
  %7466 = vmatpush.msra.mxu0 0.0
  %7467 = vmatpush.msra.mxu0 0.0
  %7468 = vmatpush.msra.mxu0 %v7125
  %7469 = vmatmul.f32.gmra.mxu0 %v7151
  %v7470 = vpop.f32.mrf.mxu0
  %v7471 = vadd.f32 0.0, %v7470
  %7472 = vdwg.mxu0
  %7473 = vmatpush.msra.mxu0 0.0
  %7474 = vmatpush.msra.mxu0 0.0
  %7475 = vmatpush.msra.mxu0 0.0
  %7476 = vmatpush.msra.mxu0 0.0
  %7477 = vmatpush.msra.mxu0 0.0
  %7478 = vmatpush.msra.mxu0 0.0
  %7479 = vmatpush.msra.mxu0 0.0
  %7480 = vmatpush.msra.mxu0 0.0
  %7481 = vmatpush.msra.mxu0 0.0
  %7482 = vmatpush.msra.mxu0 0.0
  %7483 = vmatpush.msra.mxu0 0.0
  %7484 = vmatpush.msra.mxu0 0.0
  %7485 = vmatpush.msra.mxu0 0.0
  %7486 = vmatpush.msra.mxu0 0.0
  %7487 = vmatpush.msra.mxu0 0.0
  %7488 = vmatpush.msra.mxu0 %v7126
  %7489 = vmatmul.f32.gmra.mxu0 %v7151
  %v7490 = vpop.f32.mrf.mxu0
  %v7491 = vadd.f32 0.0, %v7490
  %7492 = vdwg.mxu0
  %7493 = vmatpush.msra.mxu0 0.0
  %7494 = vmatpush.msra.mxu0 0.0
  %7495 = vmatpush.msra.mxu0 0.0
  %7496 = vmatpush.msra.mxu0 0.0
  %7497 = vmatpush.msra.mxu0 0.0
  %7498 = vmatpush.msra.mxu0 0.0
  %7499 = vmatpush.msra.mxu0 0.0
  %7500 = vmatpush.msra.mxu0 0.0
  %7501 = vmatpush.msra.mxu0 0.0
  %7502 = vmatpush.msra.mxu0 0.0
  %7503 = vmatpush.msra.mxu0 0.0
  %7504 = vmatpush.msra.mxu0 0.0
  %7505 = vmatpush.msra.mxu0 0.0
  %7506 = vmatpush.msra.mxu0 0.0
  %7507 = vmatpush.msra.mxu0 0.0
  %7508 = vmatpush.msra.mxu0 %v7127
  %7509 = vmatmul.f32.gmra.mxu0 %v7151
  %v7510 = vpop.f32.mrf.mxu0
  %v7511 = vadd.f32 0.0, %v7510
  %7512 = vdwg.mxu0
  %7513 = vmatpush.msra.mxu0 0.0
  %7514 = vmatpush.msra.mxu0 0.0
  %7515 = vmatpush.msra.mxu0 0.0
  %7516 = vmatpush.msra.mxu0 0.0
  %7517 = vmatpush.msra.mxu0 0.0
  %7518 = vmatpush.msra.mxu0 0.0
  %7519 = vmatpush.msra.mxu0 0.0
  %7520 = vmatpush.msra.mxu0 0.0
  %7521 = vmatpush.msra.mxu0 0.0
  %7522 = vmatpush.msra.mxu0 0.0
  %7523 = vmatpush.msra.mxu0 0.0
  %7524 = vmatpush.msra.mxu0 0.0
  %7525 = vmatpush.msra.mxu0 0.0
  %7526 = vmatpush.msra.mxu0 0.0
  %7527 = vmatpush.msra.mxu0 0.0
  %7528 = vmatpush.msra.mxu0 %v7128
  %7529 = vmatmul.f32.gmra.mxu0 %v7151
  %v7530 = vpop.f32.mrf.mxu0
  %v7531 = vadd.f32 0.0, %v7530
  %7532 = vdwg.mxu0
  %7533 = vmatpush.msra.mxu0 0.0
  %7534 = vmatpush.msra.mxu0 0.0
  %7535 = vmatpush.msra.mxu0 0.0
  %7536 = vmatpush.msra.mxu0 0.0
  %7537 = vmatpush.msra.mxu0 0.0
  %7538 = vmatpush.msra.mxu0 0.0
  %7539 = vmatpush.msra.mxu0 0.0
  %7540 = vmatpush.msra.mxu0 0.0
  %7541 = vmatpush.msra.mxu0 0.0
  %7542 = vmatpush.msra.mxu0 0.0
  %7543 = vmatpush.msra.mxu0 0.0
  %7544 = vmatpush.msra.mxu0 0.0
  %7545 = vmatpush.msra.mxu0 0.0
  %7546 = vmatpush.msra.mxu0 0.0
  %7547 = vmatpush.msra.mxu0 0.0
  %7548 = vmatpush.msra.mxu0 %v7129
  %7549 = vmatmul.f32.gmra.mxu0 %v7151
  %v7550 = vpop.f32.mrf.mxu0
  %v7551 = vadd.f32 0.0, %v7550
  %7552 = vdwg.mxu0
  %v7553 = vadd.f32 %v7045, %v7171
  %v7554 = vadd.f32 %v7046, %v7191
  %v7555 = vadd.f32 %v7047, %v7211
  %v7556 = vadd.f32 %v7048, %v7231
  %v7557 = vadd.f32 %v7049, %v7251
  %v7558 = vadd.f32 %v7050, %v7271
  %v7559 = vadd.f32 %v7051, %v7291
  %v7560 = vadd.f32 %v7052, %v7311
  %v7561 = vadd.f32 %v7053, %v7331
  %v7562 = vadd.f32 %v7054, %v7351
  %v7563 = vadd.f32 %v7055, %v7371
  %v7564 = vadd.f32 %v7056, %v7391
  %v7565 = vadd.f32 %v7057, %v7411
  %v7566 = vadd.f32 %v7058, %v7431
  %v7567 = vadd.f32 %v7059, %v7451
  %v7568 = vadd.f32 %v7060, %v7471
  %v7569 = vadd.f32 %v7061, %v7491
  %v7570 = vadd.f32 %v7062, %v7511
  %v7571 = vadd.f32 %v7063, %v7531
  %v7572 = vadd.f32 %v7064, %v7551
  %s7573 = scalar_lea.vmem %s0, 120
  %v7574 = vld [vmem:[%s7573] sm:$0xff]
  %7575 = vrot.lane.b32.xlu0 %v35, 20
  %v7576 = vpop.permute.xlu0 %7575
  %7577 = vrot.lane.b32.xlu0 %v36, 20
  %v7578 = vpop.permute.xlu0 %7577
  %7579 = vrot.lane.b32.xlu0 %v37, 20
  %v7580 = vpop.permute.xlu0 %7579
  %7581 = vrot.lane.b32.xlu0 %v38, 20
  %v7582 = vpop.permute.xlu0 %7581
  %7583 = vrot.lane.b32.xlu0 %v39, 20
  %v7584 = vpop.permute.xlu0 %7583
  %7585 = vrot.lane.b32.xlu0 %v40, 20
  %v7586 = vpop.permute.xlu0 %7585
  %7587 = vrot.lane.b32.xlu0 %v41, 20
  %v7588 = vpop.permute.xlu0 %7587
  %7589 = vrot.lane.b32.xlu0 %v42, 20
  %v7590 = vpop.permute.xlu0 %7589
  %7591 = vrot.lane.b32.xlu0 %v43, 20
  %v7592 = vpop.permute.xlu0 %7591
  %7593 = vrot.lane.b32.xlu0 %v44, 20
  %v7594 = vpop.permute.xlu0 %7593
  %7595 = vrot.lane.b32.xlu0 %v45, 20
  %v7596 = vpop.permute.xlu0 %7595
  %7597 = vrot.lane.b32.xlu0 %v46, 20
  %v7598 = vpop.permute.xlu0 %7597
  %7599 = vrot.lane.b32.xlu0 %v47, 20
  %v7600 = vpop.permute.xlu0 %7599
  %7601 = vrot.lane.b32.xlu0 %v48, 20
  %v7602 = vpop.permute.xlu0 %7601
  %7603 = vrot.lane.b32.xlu0 %v49, 20
  %v7604 = vpop.permute.xlu0 %7603
  %7605 = vrot.lane.b32.xlu0 %v50, 20
  %v7606 = vpop.permute.xlu0 %7605
  %7607 = vrot.lane.b32.xlu0 %v51, 20
  %v7608 = vpop.permute.xlu0 %7607
  %7609 = vrot.lane.b32.xlu0 %v52, 20
  %v7610 = vpop.permute.xlu0 %7609
  %7611 = vrot.lane.b32.xlu0 %v53, 20
  %v7612 = vpop.permute.xlu0 %7611
  %7613 = vrot.lane.b32.xlu0 %v54, 20
  %v7614 = vpop.permute.xlu0 %7613
  %7615 = vrot.lane.b32.xlu0 %v55, 20
  %v7616 = vpop.permute.xlu0 %7615
  %vm7617 = vcmask 162816
  %v7618 = vsel %vm7617, %v7576, %v7578
  %v7619 = vsel %vm7617, %v7578, %v7580
  %v7620 = vsel %vm7617, %v7580, %v7582
  %v7621 = vsel %vm7617, %v7582, %v7584
  %v7622 = vsel %vm7617, %v7584, %v7586
  %v7623 = vsel %vm7617, %v7586, %v7588
  %v7624 = vsel %vm7617, %v7588, %v7590
  %v7625 = vsel %vm7617, %v7590, %v7592
  %v7626 = vsel %vm7617, %v7592, %v7594
  %v7627 = vsel %vm7617, %v7594, %v7596
  %v7628 = vsel %vm7617, %v7596, %v7598
  %v7629 = vsel %vm7617, %v7598, %v7600
  %v7630 = vsel %vm7617, %v7600, %v7602
  %v7631 = vsel %vm7617, %v7602, %v7604
  %v7632 = vsel %vm7617, %v7604, %v7606
  %v7633 = vsel %vm7617, %v7606, %v7608
  %v7634 = vsel %vm7617, %v7608, %v7610
  %v7635 = vsel %vm7617, %v7610, %v7612
  %v7636 = vsel %vm7617, %v7612, %v7614
  %v7637 = vsel %vm7617, %v7614, %v7616
  %v7659 = vsel %vm162, %v7574, 0
  %7661 = vmatpush.msra.mxu0 0.0
  %7662 = vmatpush.msra.mxu0 0.0
  %7663 = vmatpush.msra.mxu0 0.0
  %7664 = vmatpush.msra.mxu0 0.0
  %7665 = vmatpush.msra.mxu0 0.0
  %7666 = vmatpush.msra.mxu0 0.0
  %7667 = vmatpush.msra.mxu0 0.0
  %7668 = vmatpush.msra.mxu0 0.0
  %7669 = vmatpush.msra.mxu0 0.0
  %7670 = vmatpush.msra.mxu0 0.0
  %7671 = vmatpush.msra.mxu0 0.0
  %7672 = vmatpush.msra.mxu0 0.0
  %7673 = vmatpush.msra.mxu0 0.0
  %7674 = vmatpush.msra.mxu0 0.0
  %7675 = vmatpush.msra.mxu0 0.0
  %7676 = vmatpush.msra.mxu0 %v7618
  %7677 = vmatmul.f32.gmra.mxu0 %v7659
  %v7678 = vpop.f32.mrf.mxu0
  %v7679 = vadd.f32 0.0, %v7678
  %7680 = vdwg.mxu0
  %7681 = vmatpush.msra.mxu0 0.0
  %7682 = vmatpush.msra.mxu0 0.0
  %7683 = vmatpush.msra.mxu0 0.0
  %7684 = vmatpush.msra.mxu0 0.0
  %7685 = vmatpush.msra.mxu0 0.0
  %7686 = vmatpush.msra.mxu0 0.0
  %7687 = vmatpush.msra.mxu0 0.0
  %7688 = vmatpush.msra.mxu0 0.0
  %7689 = vmatpush.msra.mxu0 0.0
  %7690 = vmatpush.msra.mxu0 0.0
  %7691 = vmatpush.msra.mxu0 0.0
  %7692 = vmatpush.msra.mxu0 0.0
  %7693 = vmatpush.msra.mxu0 0.0
  %7694 = vmatpush.msra.mxu0 0.0
  %7695 = vmatpush.msra.mxu0 0.0
  %7696 = vmatpush.msra.mxu0 %v7619
  %7697 = vmatmul.f32.gmra.mxu0 %v7659
  %v7698 = vpop.f32.mrf.mxu0
  %v7699 = vadd.f32 0.0, %v7698
  %7700 = vdwg.mxu0
  %7701 = vmatpush.msra.mxu0 0.0
  %7702 = vmatpush.msra.mxu0 0.0
  %7703 = vmatpush.msra.mxu0 0.0
  %7704 = vmatpush.msra.mxu0 0.0
  %7705 = vmatpush.msra.mxu0 0.0
  %7706 = vmatpush.msra.mxu0 0.0
  %7707 = vmatpush.msra.mxu0 0.0
  %7708 = vmatpush.msra.mxu0 0.0
  %7709 = vmatpush.msra.mxu0 0.0
  %7710 = vmatpush.msra.mxu0 0.0
  %7711 = vmatpush.msra.mxu0 0.0
  %7712 = vmatpush.msra.mxu0 0.0
  %7713 = vmatpush.msra.mxu0 0.0
  %7714 = vmatpush.msra.mxu0 0.0
  %7715 = vmatpush.msra.mxu0 0.0
  %7716 = vmatpush.msra.mxu0 %v7620
  %7717 = vmatmul.f32.gmra.mxu0 %v7659
  %v7718 = vpop.f32.mrf.mxu0
  %v7719 = vadd.f32 0.0, %v7718
  %7720 = vdwg.mxu0
  %7721 = vmatpush.msra.mxu0 0.0
  %7722 = vmatpush.msra.mxu0 0.0
  %7723 = vmatpush.msra.mxu0 0.0
  %7724 = vmatpush.msra.mxu0 0.0
  %7725 = vmatpush.msra.mxu0 0.0
  %7726 = vmatpush.msra.mxu0 0.0
  %7727 = vmatpush.msra.mxu0 0.0
  %7728 = vmatpush.msra.mxu0 0.0
  %7729 = vmatpush.msra.mxu0 0.0
  %7730 = vmatpush.msra.mxu0 0.0
  %7731 = vmatpush.msra.mxu0 0.0
  %7732 = vmatpush.msra.mxu0 0.0
  %7733 = vmatpush.msra.mxu0 0.0
  %7734 = vmatpush.msra.mxu0 0.0
  %7735 = vmatpush.msra.mxu0 0.0
  %7736 = vmatpush.msra.mxu0 %v7621
  %7737 = vmatmul.f32.gmra.mxu0 %v7659
  %v7738 = vpop.f32.mrf.mxu0
  %v7739 = vadd.f32 0.0, %v7738
  %7740 = vdwg.mxu0
  %7741 = vmatpush.msra.mxu0 0.0
  %7742 = vmatpush.msra.mxu0 0.0
  %7743 = vmatpush.msra.mxu0 0.0
  %7744 = vmatpush.msra.mxu0 0.0
  %7745 = vmatpush.msra.mxu0 0.0
  %7746 = vmatpush.msra.mxu0 0.0
  %7747 = vmatpush.msra.mxu0 0.0
  %7748 = vmatpush.msra.mxu0 0.0
  %7749 = vmatpush.msra.mxu0 0.0
  %7750 = vmatpush.msra.mxu0 0.0
  %7751 = vmatpush.msra.mxu0 0.0
  %7752 = vmatpush.msra.mxu0 0.0
  %7753 = vmatpush.msra.mxu0 0.0
  %7754 = vmatpush.msra.mxu0 0.0
  %7755 = vmatpush.msra.mxu0 0.0
  %7756 = vmatpush.msra.mxu0 %v7622
  %7757 = vmatmul.f32.gmra.mxu0 %v7659
  %v7758 = vpop.f32.mrf.mxu0
  %v7759 = vadd.f32 0.0, %v7758
  %7760 = vdwg.mxu0
  %7761 = vmatpush.msra.mxu0 0.0
  %7762 = vmatpush.msra.mxu0 0.0
  %7763 = vmatpush.msra.mxu0 0.0
  %7764 = vmatpush.msra.mxu0 0.0
  %7765 = vmatpush.msra.mxu0 0.0
  %7766 = vmatpush.msra.mxu0 0.0
  %7767 = vmatpush.msra.mxu0 0.0
  %7768 = vmatpush.msra.mxu0 0.0
  %7769 = vmatpush.msra.mxu0 0.0
  %7770 = vmatpush.msra.mxu0 0.0
  %7771 = vmatpush.msra.mxu0 0.0
  %7772 = vmatpush.msra.mxu0 0.0
  %7773 = vmatpush.msra.mxu0 0.0
  %7774 = vmatpush.msra.mxu0 0.0
  %7775 = vmatpush.msra.mxu0 0.0
  %7776 = vmatpush.msra.mxu0 %v7623
  %7777 = vmatmul.f32.gmra.mxu0 %v7659
  %v7778 = vpop.f32.mrf.mxu0
  %v7779 = vadd.f32 0.0, %v7778
  %7780 = vdwg.mxu0
  %7781 = vmatpush.msra.mxu0 0.0
  %7782 = vmatpush.msra.mxu0 0.0
  %7783 = vmatpush.msra.mxu0 0.0
  %7784 = vmatpush.msra.mxu0 0.0
  %7785 = vmatpush.msra.mxu0 0.0
  %7786 = vmatpush.msra.mxu0 0.0
  %7787 = vmatpush.msra.mxu0 0.0
  %7788 = vmatpush.msra.mxu0 0.0
  %7789 = vmatpush.msra.mxu0 0.0
  %7790 = vmatpush.msra.mxu0 0.0
  %7791 = vmatpush.msra.mxu0 0.0
  %7792 = vmatpush.msra.mxu0 0.0
  %7793 = vmatpush.msra.mxu0 0.0
  %7794 = vmatpush.msra.mxu0 0.0
  %7795 = vmatpush.msra.mxu0 0.0
  %7796 = vmatpush.msra.mxu0 %v7624
  %7797 = vmatmul.f32.gmra.mxu0 %v7659
  %v7798 = vpop.f32.mrf.mxu0
  %v7799 = vadd.f32 0.0, %v7798
  %7800 = vdwg.mxu0
  %7801 = vmatpush.msra.mxu0 0.0
  %7802 = vmatpush.msra.mxu0 0.0
  %7803 = vmatpush.msra.mxu0 0.0
  %7804 = vmatpush.msra.mxu0 0.0
  %7805 = vmatpush.msra.mxu0 0.0
  %7806 = vmatpush.msra.mxu0 0.0
  %7807 = vmatpush.msra.mxu0 0.0
  %7808 = vmatpush.msra.mxu0 0.0
  %7809 = vmatpush.msra.mxu0 0.0
  %7810 = vmatpush.msra.mxu0 0.0
  %7811 = vmatpush.msra.mxu0 0.0
  %7812 = vmatpush.msra.mxu0 0.0
  %7813 = vmatpush.msra.mxu0 0.0
  %7814 = vmatpush.msra.mxu0 0.0
  %7815 = vmatpush.msra.mxu0 0.0
  %7816 = vmatpush.msra.mxu0 %v7625
  %7817 = vmatmul.f32.gmra.mxu0 %v7659
  %v7818 = vpop.f32.mrf.mxu0
  %v7819 = vadd.f32 0.0, %v7818
  %7820 = vdwg.mxu0
  %7821 = vmatpush.msra.mxu0 0.0
  %7822 = vmatpush.msra.mxu0 0.0
  %7823 = vmatpush.msra.mxu0 0.0
  %7824 = vmatpush.msra.mxu0 0.0
  %7825 = vmatpush.msra.mxu0 0.0
  %7826 = vmatpush.msra.mxu0 0.0
  %7827 = vmatpush.msra.mxu0 0.0
  %7828 = vmatpush.msra.mxu0 0.0
  %7829 = vmatpush.msra.mxu0 0.0
  %7830 = vmatpush.msra.mxu0 0.0
  %7831 = vmatpush.msra.mxu0 0.0
  %7832 = vmatpush.msra.mxu0 0.0
  %7833 = vmatpush.msra.mxu0 0.0
  %7834 = vmatpush.msra.mxu0 0.0
  %7835 = vmatpush.msra.mxu0 0.0
  %7836 = vmatpush.msra.mxu0 %v7626
  %7837 = vmatmul.f32.gmra.mxu0 %v7659
  %v7838 = vpop.f32.mrf.mxu0
  %v7839 = vadd.f32 0.0, %v7838
  %7840 = vdwg.mxu0
  %7841 = vmatpush.msra.mxu0 0.0
  %7842 = vmatpush.msra.mxu0 0.0
  %7843 = vmatpush.msra.mxu0 0.0
  %7844 = vmatpush.msra.mxu0 0.0
  %7845 = vmatpush.msra.mxu0 0.0
  %7846 = vmatpush.msra.mxu0 0.0
  %7847 = vmatpush.msra.mxu0 0.0
  %7848 = vmatpush.msra.mxu0 0.0
  %7849 = vmatpush.msra.mxu0 0.0
  %7850 = vmatpush.msra.mxu0 0.0
  %7851 = vmatpush.msra.mxu0 0.0
  %7852 = vmatpush.msra.mxu0 0.0
  %7853 = vmatpush.msra.mxu0 0.0
  %7854 = vmatpush.msra.mxu0 0.0
  %7855 = vmatpush.msra.mxu0 0.0
  %7856 = vmatpush.msra.mxu0 %v7627
  %7857 = vmatmul.f32.gmra.mxu0 %v7659
  %v7858 = vpop.f32.mrf.mxu0
  %v7859 = vadd.f32 0.0, %v7858
  %7860 = vdwg.mxu0
  %7861 = vmatpush.msra.mxu0 0.0
  %7862 = vmatpush.msra.mxu0 0.0
  %7863 = vmatpush.msra.mxu0 0.0
  %7864 = vmatpush.msra.mxu0 0.0
  %7865 = vmatpush.msra.mxu0 0.0
  %7866 = vmatpush.msra.mxu0 0.0
  %7867 = vmatpush.msra.mxu0 0.0
  %7868 = vmatpush.msra.mxu0 0.0
  %7869 = vmatpush.msra.mxu0 0.0
  %7870 = vmatpush.msra.mxu0 0.0
  %7871 = vmatpush.msra.mxu0 0.0
  %7872 = vmatpush.msra.mxu0 0.0
  %7873 = vmatpush.msra.mxu0 0.0
  %7874 = vmatpush.msra.mxu0 0.0
  %7875 = vmatpush.msra.mxu0 0.0
  %7876 = vmatpush.msra.mxu0 %v7628
  %7877 = vmatmul.f32.gmra.mxu0 %v7659
  %v7878 = vpop.f32.mrf.mxu0
  %v7879 = vadd.f32 0.0, %v7878
  %7880 = vdwg.mxu0
  %7881 = vmatpush.msra.mxu0 0.0
  %7882 = vmatpush.msra.mxu0 0.0
  %7883 = vmatpush.msra.mxu0 0.0
  %7884 = vmatpush.msra.mxu0 0.0
  %7885 = vmatpush.msra.mxu0 0.0
  %7886 = vmatpush.msra.mxu0 0.0
  %7887 = vmatpush.msra.mxu0 0.0
  %7888 = vmatpush.msra.mxu0 0.0
  %7889 = vmatpush.msra.mxu0 0.0
  %7890 = vmatpush.msra.mxu0 0.0
  %7891 = vmatpush.msra.mxu0 0.0
  %7892 = vmatpush.msra.mxu0 0.0
  %7893 = vmatpush.msra.mxu0 0.0
  %7894 = vmatpush.msra.mxu0 0.0
  %7895 = vmatpush.msra.mxu0 0.0
  %7896 = vmatpush.msra.mxu0 %v7629
  %7897 = vmatmul.f32.gmra.mxu0 %v7659
  %v7898 = vpop.f32.mrf.mxu0
  %v7899 = vadd.f32 0.0, %v7898
  %7900 = vdwg.mxu0
  %7901 = vmatpush.msra.mxu0 0.0
  %7902 = vmatpush.msra.mxu0 0.0
  %7903 = vmatpush.msra.mxu0 0.0
  %7904 = vmatpush.msra.mxu0 0.0
  %7905 = vmatpush.msra.mxu0 0.0
  %7906 = vmatpush.msra.mxu0 0.0
  %7907 = vmatpush.msra.mxu0 0.0
  %7908 = vmatpush.msra.mxu0 0.0
  %7909 = vmatpush.msra.mxu0 0.0
  %7910 = vmatpush.msra.mxu0 0.0
  %7911 = vmatpush.msra.mxu0 0.0
  %7912 = vmatpush.msra.mxu0 0.0
  %7913 = vmatpush.msra.mxu0 0.0
  %7914 = vmatpush.msra.mxu0 0.0
  %7915 = vmatpush.msra.mxu0 0.0
  %7916 = vmatpush.msra.mxu0 %v7630
  %7917 = vmatmul.f32.gmra.mxu0 %v7659
  %v7918 = vpop.f32.mrf.mxu0
  %v7919 = vadd.f32 0.0, %v7918
  %7920 = vdwg.mxu0
  %7921 = vmatpush.msra.mxu0 0.0
  %7922 = vmatpush.msra.mxu0 0.0
  %7923 = vmatpush.msra.mxu0 0.0
  %7924 = vmatpush.msra.mxu0 0.0
  %7925 = vmatpush.msra.mxu0 0.0
  %7926 = vmatpush.msra.mxu0 0.0
  %7927 = vmatpush.msra.mxu0 0.0
  %7928 = vmatpush.msra.mxu0 0.0
  %7929 = vmatpush.msra.mxu0 0.0
  %7930 = vmatpush.msra.mxu0 0.0
  %7931 = vmatpush.msra.mxu0 0.0
  %7932 = vmatpush.msra.mxu0 0.0
  %7933 = vmatpush.msra.mxu0 0.0
  %7934 = vmatpush.msra.mxu0 0.0
  %7935 = vmatpush.msra.mxu0 0.0
  %7936 = vmatpush.msra.mxu0 %v7631
  %7937 = vmatmul.f32.gmra.mxu0 %v7659
  %v7938 = vpop.f32.mrf.mxu0
  %v7939 = vadd.f32 0.0, %v7938
  %7940 = vdwg.mxu0
  %7941 = vmatpush.msra.mxu0 0.0
  %7942 = vmatpush.msra.mxu0 0.0
  %7943 = vmatpush.msra.mxu0 0.0
  %7944 = vmatpush.msra.mxu0 0.0
  %7945 = vmatpush.msra.mxu0 0.0
  %7946 = vmatpush.msra.mxu0 0.0
  %7947 = vmatpush.msra.mxu0 0.0
  %7948 = vmatpush.msra.mxu0 0.0
  %7949 = vmatpush.msra.mxu0 0.0
  %7950 = vmatpush.msra.mxu0 0.0
  %7951 = vmatpush.msra.mxu0 0.0
  %7952 = vmatpush.msra.mxu0 0.0
  %7953 = vmatpush.msra.mxu0 0.0
  %7954 = vmatpush.msra.mxu0 0.0
  %7955 = vmatpush.msra.mxu0 0.0
  %7956 = vmatpush.msra.mxu0 %v7632
  %7957 = vmatmul.f32.gmra.mxu0 %v7659
  %v7958 = vpop.f32.mrf.mxu0
  %v7959 = vadd.f32 0.0, %v7958
  %7960 = vdwg.mxu0
  %7961 = vmatpush.msra.mxu0 0.0
  %7962 = vmatpush.msra.mxu0 0.0
  %7963 = vmatpush.msra.mxu0 0.0
  %7964 = vmatpush.msra.mxu0 0.0
  %7965 = vmatpush.msra.mxu0 0.0
  %7966 = vmatpush.msra.mxu0 0.0
  %7967 = vmatpush.msra.mxu0 0.0
  %7968 = vmatpush.msra.mxu0 0.0
  %7969 = vmatpush.msra.mxu0 0.0
  %7970 = vmatpush.msra.mxu0 0.0
  %7971 = vmatpush.msra.mxu0 0.0
  %7972 = vmatpush.msra.mxu0 0.0
  %7973 = vmatpush.msra.mxu0 0.0
  %7974 = vmatpush.msra.mxu0 0.0
  %7975 = vmatpush.msra.mxu0 0.0
  %7976 = vmatpush.msra.mxu0 %v7633
  %7977 = vmatmul.f32.gmra.mxu0 %v7659
  %v7978 = vpop.f32.mrf.mxu0
  %v7979 = vadd.f32 0.0, %v7978
  %7980 = vdwg.mxu0
  %7981 = vmatpush.msra.mxu0 0.0
  %7982 = vmatpush.msra.mxu0 0.0
  %7983 = vmatpush.msra.mxu0 0.0
  %7984 = vmatpush.msra.mxu0 0.0
  %7985 = vmatpush.msra.mxu0 0.0
  %7986 = vmatpush.msra.mxu0 0.0
  %7987 = vmatpush.msra.mxu0 0.0
  %7988 = vmatpush.msra.mxu0 0.0
  %7989 = vmatpush.msra.mxu0 0.0
  %7990 = vmatpush.msra.mxu0 0.0
  %7991 = vmatpush.msra.mxu0 0.0
  %7992 = vmatpush.msra.mxu0 0.0
  %7993 = vmatpush.msra.mxu0 0.0
  %7994 = vmatpush.msra.mxu0 0.0
  %7995 = vmatpush.msra.mxu0 0.0
  %7996 = vmatpush.msra.mxu0 %v7634
  %7997 = vmatmul.f32.gmra.mxu0 %v7659
  %v7998 = vpop.f32.mrf.mxu0
  %v7999 = vadd.f32 0.0, %v7998
  %8000 = vdwg.mxu0
  %8001 = vmatpush.msra.mxu0 0.0
  %8002 = vmatpush.msra.mxu0 0.0
  %8003 = vmatpush.msra.mxu0 0.0
  %8004 = vmatpush.msra.mxu0 0.0
  %8005 = vmatpush.msra.mxu0 0.0
  %8006 = vmatpush.msra.mxu0 0.0
  %8007 = vmatpush.msra.mxu0 0.0
  %8008 = vmatpush.msra.mxu0 0.0
  %8009 = vmatpush.msra.mxu0 0.0
  %8010 = vmatpush.msra.mxu0 0.0
  %8011 = vmatpush.msra.mxu0 0.0
  %8012 = vmatpush.msra.mxu0 0.0
  %8013 = vmatpush.msra.mxu0 0.0
  %8014 = vmatpush.msra.mxu0 0.0
  %8015 = vmatpush.msra.mxu0 0.0
  %8016 = vmatpush.msra.mxu0 %v7635
  %8017 = vmatmul.f32.gmra.mxu0 %v7659
  %v8018 = vpop.f32.mrf.mxu0
  %v8019 = vadd.f32 0.0, %v8018
  %8020 = vdwg.mxu0
  %8021 = vmatpush.msra.mxu0 0.0
  %8022 = vmatpush.msra.mxu0 0.0
  %8023 = vmatpush.msra.mxu0 0.0
  %8024 = vmatpush.msra.mxu0 0.0
  %8025 = vmatpush.msra.mxu0 0.0
  %8026 = vmatpush.msra.mxu0 0.0
  %8027 = vmatpush.msra.mxu0 0.0
  %8028 = vmatpush.msra.mxu0 0.0
  %8029 = vmatpush.msra.mxu0 0.0
  %8030 = vmatpush.msra.mxu0 0.0
  %8031 = vmatpush.msra.mxu0 0.0
  %8032 = vmatpush.msra.mxu0 0.0
  %8033 = vmatpush.msra.mxu0 0.0
  %8034 = vmatpush.msra.mxu0 0.0
  %8035 = vmatpush.msra.mxu0 0.0
  %8036 = vmatpush.msra.mxu0 %v7636
  %8037 = vmatmul.f32.gmra.mxu0 %v7659
  %v8038 = vpop.f32.mrf.mxu0
  %v8039 = vadd.f32 0.0, %v8038
  %8040 = vdwg.mxu0
  %8041 = vmatpush.msra.mxu0 0.0
  %8042 = vmatpush.msra.mxu0 0.0
  %8043 = vmatpush.msra.mxu0 0.0
  %8044 = vmatpush.msra.mxu0 0.0
  %8045 = vmatpush.msra.mxu0 0.0
  %8046 = vmatpush.msra.mxu0 0.0
  %8047 = vmatpush.msra.mxu0 0.0
  %8048 = vmatpush.msra.mxu0 0.0
  %8049 = vmatpush.msra.mxu0 0.0
  %8050 = vmatpush.msra.mxu0 0.0
  %8051 = vmatpush.msra.mxu0 0.0
  %8052 = vmatpush.msra.mxu0 0.0
  %8053 = vmatpush.msra.mxu0 0.0
  %8054 = vmatpush.msra.mxu0 0.0
  %8055 = vmatpush.msra.mxu0 0.0
  %8056 = vmatpush.msra.mxu0 %v7637
  %8057 = vmatmul.f32.gmra.mxu0 %v7659
  %v8058 = vpop.f32.mrf.mxu0
  %v8059 = vadd.f32 0.0, %v8058
  %8060 = vdwg.mxu0
  %v8061 = vadd.f32 %v7553, %v7679
  %v8062 = vadd.f32 %v7554, %v7699
  %v8063 = vadd.f32 %v7555, %v7719
  %v8064 = vadd.f32 %v7556, %v7739
  %v8065 = vadd.f32 %v7557, %v7759
  %v8066 = vadd.f32 %v7558, %v7779
  %v8067 = vadd.f32 %v7559, %v7799
  %v8068 = vadd.f32 %v7560, %v7819
  %v8069 = vadd.f32 %v7561, %v7839
  %v8070 = vadd.f32 %v7562, %v7859
  %v8071 = vadd.f32 %v7563, %v7879
  %v8072 = vadd.f32 %v7564, %v7899
  %v8073 = vadd.f32 %v7565, %v7919
  %v8074 = vadd.f32 %v7566, %v7939
  %v8075 = vadd.f32 %v7567, %v7959
  %v8076 = vadd.f32 %v7568, %v7979
  %v8077 = vadd.f32 %v7569, %v7999
  %v8078 = vadd.f32 %v7570, %v8019
  %v8079 = vadd.f32 %v7571, %v8039
  %v8080 = vadd.f32 %v7572, %v8059
  %v8081 = vld [vmem:[%s2] sm:$0xff]
  %8083 = vset.pattern.permute.xlu0 0
  %8084 = vperm.xlu0 %8083, %v8081
  %v8085 = vpop.permute.xlu0 %8084
  %v8087 = vadd.f32 %v8061, %v8085
  %v8088 = vadd.f32 %v8062, %v8085
  %v8089 = vadd.f32 %v8063, %v8085
  %v8090 = vadd.f32 %v8064, %v8085
  %v8091 = vadd.f32 %v8065, %v8085
  %v8092 = vadd.f32 %v8066, %v8085
  %v8093 = vadd.f32 %v8067, %v8085
  %v8094 = vadd.f32 %v8068, %v8085
  %v8095 = vadd.f32 %v8069, %v8085
  %v8096 = vadd.f32 %v8070, %v8085
  %v8097 = vadd.f32 %v8071, %v8085
  %v8098 = vadd.f32 %v8072, %v8085
  %v8099 = vadd.f32 %v8073, %v8085
  %v8100 = vadd.f32 %v8074, %v8085
  %v8101 = vadd.f32 %v8075, %v8085
  %v8102 = vadd.f32 %v8076, %v8085
  %v8103 = vadd.f32 %v8077, %v8085
  %v8104 = vadd.f32 %v8078, %v8085
  %v8105 = vadd.f32 %v8079, %v8085
  %v8106 = vadd.f32 %v8080, %v8085
  %v8107 = vtanh.pop %v8087
  %v8108 = vtanh.pop %v8088
  %v8109 = vtanh.pop %v8089
  %v8110 = vtanh.pop %v8090
  %v8111 = vtanh.pop %v8091
  %v8112 = vtanh.pop %v8092
  %v8113 = vtanh.pop %v8093
  %v8114 = vtanh.pop %v8094
  %v8115 = vtanh.pop %v8095
  %v8116 = vtanh.pop %v8096
  %v8117 = vtanh.pop %v8097
  %v8118 = vtanh.pop %v8098
  %v8119 = vtanh.pop %v8099
  %v8120 = vtanh.pop %v8100
  %v8121 = vtanh.pop %v8101
  %v8122 = vtanh.pop %v8102
  %v8123 = vtanh.pop %v8103
  %v8124 = vtanh.pop %v8104
  %v8125 = vtanh.pop %v8105
  %v8126 = vtanh.pop %v8106
  %8127 = vst [vmem:[%s3] sm:$0xff] %v8107
  %8128 = vst [vmem:[%s3 + $0x8] sm:$0xff] %v8108
  %8129 = vst [vmem:[%s3 + $0x10] sm:$0xff] %v8109
  %8130 = vst [vmem:[%s3 + $0x18] sm:$0xff] %v8110
  %8131 = vst [vmem:[%s3 + $0x20] sm:$0xff] %v8111
  %8132 = vst [vmem:[%s3 + $0x28] sm:$0xff] %v8112
  %8133 = vst [vmem:[%s3 + $0x30] sm:$0xff] %v8113
  %8134 = vst [vmem:[%s3 + $0x38] sm:$0xff] %v8114
  %8135 = vst [vmem:[%s3 + $0x40] sm:$0xff] %v8115
  %8136 = vst [vmem:[%s3 + $0x48] sm:$0xff] %v8116
  %8137 = vst [vmem:[%s3 + $0x50] sm:$0xff] %v8117
  %8138 = vst [vmem:[%s3 + $0x58] sm:$0xff] %v8118
  %8139 = vst [vmem:[%s3 + $0x60] sm:$0xff] %v8119
  %8140 = vst [vmem:[%s3 + $0x68] sm:$0xff] %v8120
  %8141 = vst [vmem:[%s3 + $0x70] sm:$0xff] %v8121
  %8142 = vst [vmem:[%s3 + $0x78] sm:$0xff] %v8122
  %8143 = vst [vmem:[%s3 + $0x80] sm:$0xff] %v8123
  %8144 = vst [vmem:[%s3 + $0x88] sm:$0xff] %v8124
  %8145 = vst [vmem:[%s3 + $0x90] sm:$0xff] %v8125
  %8146 = vst [vmem:[%s3 + $0x98] sm:$0xff] %v8126
  // Predicated region
  $region14: #{netg_forward.5} parent=0 // pred_check
    _
  $region15: #{netg_forward.5} parent=0 // pred_check_branch
    %8148 = sbr.rel (0) target = $region17
  $region16: #{netg_forward.5} parent=0 // pred_region
    _
  $region17: #{netg_forward.5} parent=0 // pred_fallthru
    _
  // Predicated region
  $region18: #{netg_forward.5} parent=0 // pred_check
    _
  $region19: #{netg_forward.5} parent=0 // pred_check_branch
    %8150 = sbr.rel (0) target = $region21
  $region20: #{netg_forward.5} parent=0 // pred_region
    _
  $region21: #{netg_forward.5} parent=0 // pred_fallthru
    _

</llo_original>
